<compile_context>
chip_gen: v7x
topology: tpu7x:2x2x1
jax: 0.10.0
libtpu: 0.0.40
codegen_flags: <defaults>
</compile_context>

<pallas_src>
import functools
import math

import jax
import jax.numpy as jnp
import numpy as np
from jax.experimental import pallas as pl
from jax.experimental.pallas import tpu as pltpu

INV_SQRT2 = 1.0 / math.sqrt(2.0)


# ----------------------------------------------------------------------------
# Fused Pallas kernel: 7x (conv + GLU + residual) + value epilogue
# ----------------------------------------------------------------------------
def fused_text_enc_kernel(*refs, L, K, BT, H, pad, has_mask, fuse_glu,
                          matmul_dtype):
    """One grid step = one block of Bblk sequences, all layers fused.

    Refs (in order):
      emb_ref  : [BT, H]                embeddings (Bblk sequences, flattened)
      mask_ref : [BT, 1]  (optional)    input mask
      tapm_ref : [K, BT, 1]             per-tap validity mask (halo + batch
                                        boundary zeros), precomputed on host
      fused GLU : w_ref [L*K, H, 2H], b_ref [L, 1, 2H]
      split GLU : w1_ref/w2_ref [L*K, H, H], b1_ref/b2_ref [L, 1, H]
      key_ref  : [BT, H]                output: key
      val_ref  : [BT, H]                output: value = (key + emb)/sqrt(2)
    """
    if fuse_glu:
        if has_mask:
            emb_ref, mask_ref, tapm_ref, w_ref, b_ref, key_ref, val_ref = refs
        else:
            emb_ref, tapm_ref, w_ref, b_ref, key_ref, val_ref = refs
            mask_ref = None
    else:
        if has_mask:
            (emb_ref, mask_ref, tapm_ref, w1_ref, w2_ref, b1_ref, b2_ref,
             key_ref, val_ref) = refs
        else:
            (emb_ref, tapm_ref, w1_ref, w2_ref, b1_ref, b2_ref,
             key_ref, val_ref) = refs
            mask_ref = None

    emb = emb_ref[...].astype(jnp.float32)                   # [BT, H]
    x = emb
    if mask_ref is not None:
        m = mask_ref[...].astype(jnp.float32)                # [BT, 1]

    # Hoist the K per-tap edge masks out of the layer loop (reused 7x).
    tap_m = [tapm_ref[k] for k in range(K)]                  # each [BT, 1] f32

    for l in range(L):                                       # unrolled layers
        if mask_ref is not None:
            # TODO(synk): custom Conv1d(x, mask) wrapper is not provided; we
            # assume the mask multiplies the conv input (standard impl).
            x = x * m

        # Conv taps built in-register: XLU roll + edge mask instead of a VMEM
        # pad-scratch store + K sublane-unaligned reloads per layer.
        xs = []
        for k in range(K):
            s = k - pad                                      # static shift
            if s == 0:
                xk = x
            else:
                xk = pltpu.roll(x, (-s) % BT, axis=0) * tap_m[k]
            xs.append(xk.astype(matmul_dtype))

        if fuse_glu:
            # One [BT,H] x [H,2H] MXU push per tap; bias is the accumulator
            # init; lane-aligned split of the 2H accumulator (H % 128 == 0).
            acc = jnp.broadcast_to(b_ref[l].astype(jnp.float32), (BT, 2 * H))
            for k in range(K):
                acc = acc + jnp.dot(xs[k], w_ref[l * K + k],
                                    preferred_element_type=jnp.float32)
            acc1, acc2 = acc[:, :H], acc[:, H:]
        else:
            acc1 = jnp.broadcast_to(b1_ref[l].astype(jnp.float32), (BT, H))
            acc2 = jnp.broadcast_to(b2_ref[l].astype(jnp.float32), (BT, H))
            for k in range(K):
                acc1 = acc1 + jnp.dot(xs[k], w1_ref[l * K + k],
                                      preferred_element_type=jnp.float32)
                acc2 = acc2 + jnp.dot(xs[k], w2_ref[l * K + k],
                                      preferred_element_type=jnp.float32)

        # GLU gate + residual, kept f32 on the VPU (sigmoid -> EUP slot).
        x = (acc1 * jax.nn.sigmoid(acc2) + x) * INV_SQRT2

    key_ref[...] = x.astype(key_ref.dtype)
    # value = (key + embedded)/sqrt(2): fused epilogue, no extra pass.
    val_ref[...] = ((x + emb) * INV_SQRT2).astype(val_ref.dtype)


# ----------------------------------------------------------------------------
# Wrapper: parameter layout + pallas_call plumbing
# ----------------------------------------------------------------------------
def _pick_batch_block(B, T, target_rows=256):
    """Largest divisor of B whose block presents ~target_rows MXU rows."""
    max_blk = max(1, target_rows // max(T, 1))
    best = 1
    for d in range(1, B + 1):
        if B % d == 0 and d <= max_blk:
            best = d
    return best


def text_enc_forward(params, text, mask=None, matmul_dtype=jnp.bfloat16):
    """text: int32 [B, T] -> (key [B, T, H], value [B, T, H])."""
    # Embedding gather is glue (XLA take); dropout is identity in eval mode.
    emb = params["embedding"][text]                          # [B, T, H]
    B, T, H = emb.shape
    w1, w2, b1, b2 = params["w1"], params["w2"], params["b1"], params["b2"]
    L, K = w1.shape[0], w1.shape[1]
    pad = (K - 1) // 2           # matches PyTorch 'same' for odd kernel sizes
    has_mask = mask is not None
    fuse_glu = (H % 128 == 0)    # lane-aligned split of the 2H accumulator
    Bblk = _pick_batch_block(B, T)
    BT = Bblk * T
    n_blocks = B // Bblk

    # Flatten (batch, time) -> rows on the host (contiguous, free reshape) so
    # the kernel never reshapes and every matmul sees BT rows.
    emb_flat = emb.reshape(B * T, H)

    # Per-tap validity mask: zeroes the 'same'-padding halo AND stops taps
    # from leaking across sequence boundaries of the flattened row axis.
    t = np.arange(T)
    tapm_np = np.zeros((K, BT, 1), np.float32)
    for k in range(K):
        s = k - pad
        valid = ((t + s >= 0) & (t + s < T)).astype(np.float32)
        tapm_np[k, :, 0] = np.tile(valid, Bblk)
    tap_mask = jnp.asarray(tapm_np)

    kern = functools.partial(fused_text_enc_kernel, L=L, K=K, BT=BT, H=H,
                             pad=pad, has_mask=has_mask, fuse_glu=fuse_glu,
                             matmul_dtype=matmul_dtype)

    in_specs = [pl.BlockSpec((BT, H), lambda b: (b, 0))]
    inputs = [emb_flat]
    if has_mask:
        mask_flat = jnp.reshape(mask, (B * T, 1)).astype(emb.dtype)
        in_specs.append(pl.BlockSpec((BT, 1), lambda b: (b, 0)))
        inputs.append(mask_flat)
    in_specs.append(pl.BlockSpec((K, BT, 1), lambda b: (0, 0, 0)))
    inputs.append(tap_mask)

    # Weights/biases: constant block index across the grid -> stay resident.
    if fuse_glu:
        # Host-concat the GLU halves -> one wide RHS per tap.
        w12 = jnp.concatenate([w1, w2], axis=-1).reshape(L * K, H, 2 * H)
        w12 = w12.astype(matmul_dtype)
        b12 = jnp.concatenate([b1, b2], axis=-1)             # [L, 1, 2H] f32
        in_specs += [pl.BlockSpec((L * K, H, 2 * H), lambda b: (0, 0, 0)),
                     pl.BlockSpec((L, 1, 2 * H), lambda b: (0, 0, 0))]
        inputs += [w12, b12]
        w_bytes = (int(w12.size) * w12.dtype.itemsize
                   + int(b12.size) * b12.dtype.itemsize)
    else:
        w1f = w1.reshape(L * K, H, H).astype(matmul_dtype)
        w2f = w2.reshape(L * K, H, H).astype(matmul_dtype)
        in_specs += [pl.BlockSpec((L * K, H, H), lambda b: (0, 0, 0)),
                     pl.BlockSpec((L * K, H, H), lambda b: (0, 0, 0)),
                     pl.BlockSpec((L, 1, H), lambda b: (0, 0, 0)),
                     pl.BlockSpec((L, 1, H), lambda b: (0, 0, 0))]
        inputs += [w1f, w2f, b1, b2]
        w_bytes = ((int(w1f.size) + int(w2f.size)) * w1f.dtype.itemsize
                   + (int(b1.size) + int(b2.size)) * b1.dtype.itemsize)

    # Explicit scoped-VMEM budget: IO blocks (double-buffered) + resident
    # weights + headroom for f32 temporaries.
    io_bytes = (BT * (3 * H + (1 if has_mask else 0)) * emb.dtype.itemsize
                + int(tap_mask.size) * 4)
    vmem_limit = int(min(max(2 * io_bytes + 2 * w_bytes + (8 << 20),
                             32 << 20), 64 << 20))

    key_flat, val_flat = pl.pallas_call(
        kern,
        out_shape=(jax.ShapeDtypeStruct((B * T, H), emb.dtype),
                   jax.ShapeDtypeStruct((B * T, H), emb.dtype)),
        grid=(n_blocks,),
        in_specs=in_specs,
        out_specs=(pl.BlockSpec((BT, H), lambda b: (b, 0)),
                   pl.BlockSpec((BT, H), lambda b: (b, 0))),
        compiler_params=pltpu.CompilerParams(
            # Batch-block axis is independent work -> megacore sharding (v7x).
            dimension_semantics=("parallel",),
            vmem_limit_bytes=vmem_limit),
    )(*inputs)
    return key_flat.reshape(B, T, H), val_flat.reshape(B, T, H)


def init_params(key, n_symbols, hidden_dim, kernel_size, n_layers=7):
    """Deterministic synthetic parameters (PyTorch shapes, then re-laid out)."""
    keys = jax.random.split(key, 1 + 2 * n_layers)
    H, K = hidden_dim, kernel_size
    params = {}
    # nn.Embedding(n_symbols, hidden_dim): weight [n_symbols, hidden_dim]
    params["embedding"] = (jax.random.normal(keys[0], (n_symbols, H),
                                             jnp.float32) * 0.1)
    w1_list, w2_list, b1_list, b2_list = [], [], [], []
    for i in range(n_layers):
        # nn.Conv1d weight is [out_ch, in_ch, K] = [2H, H, K]; bias [2H].
        fan_in = H * K
        bound = 1.0 / math.sqrt(fan_in)
        w_oik = jax.random.uniform(keys[1 + 2 * i], (2 * H, H, K),
                                   jnp.float32, -bound, bound)
        b = jax.random.uniform(keys[2 + 2 * i], (2 * H,),
                               jnp.float32, -bound, bound)
        # torch.chunk along channels: x1 <- out ch [0:H], x2 <- out ch [H:2H].
        # Re-layout each half to tap-major channel-last form [K, H_in, H_out].
        w1_list.append(jnp.transpose(w_oik[:H], (2, 1, 0)))
        w2_list.append(jnp.transpose(w_oik[H:], (2, 1, 0)))
        b1_list.append(b[:H].reshape(1, H))
        b2_list.append(b[H:].reshape(1, H))
    params["w1"] = jnp.stack(w1_list)       # [L, K, H, H]
    params["w2"] = jnp.stack(w2_list)       # [L, K, H, H]
    params["b1"] = jnp.stack(b1_list)       # [L, 1, H]
    params["b2"] = jnp.stack(b2_list)       # [L, 1, H]
    return params


# ----------------------------------------------------------------------------
# Float64 NumPy reference (correctness check only)
# ----------------------------------------------------------------------------
def text_enc_reference(params, text, mask=None):
    emb = np.asarray(params["embedding"], np.float64)[np.asarray(text)]
    w1 = np.asarray(params["w1"], np.float64)
    w2 = np.asarray(params["w2"], np.float64)
    b1 = np.asarray(params["b1"], np.float64)
    b2 = np.asarray(params["b2"], np.float64)
    L, K = w1.shape[0], w1.shape[1]
    pad = (K - 1) // 2
    B, T, _ = emb.shape
    x = emb
    for l in range(L):
        if mask is not None:
            x = x * np.asarray(mask, np.float64).reshape(B, T, 1)
        xp = np.pad(x, ((0, 0), (pad, pad), (0, 0)))
        y1 = b1[l][None]
        y2 = b2[l][None]
        for k in range(K):
            y1 = y1 + np.einsum("bth,hc->btc", xp[:, k:k + T, :], w1[l, k])
            y2 = y2 + np.einsum("bth,hc->btc", xp[:, k:k + T, :], w2[l, k])
        x = (y1 * (1.0 / (1.0 + np.exp(-y2))) + x) * INV_SQRT2
    key = x
    value = (key + emb) * INV_SQRT2
    return key, value


if __name__ == "__main__":
    cases = [
        # (n_symbols, hidden_dim, kernel_size, B, T)
        (40, 32, 5, 2, 8),     # split-weight GLU path (H % 128 != 0)
        (40, 128, 5, 2, 16),   # fused [H,2H]-matmul path, lane-dense H
    ]
    root = jax.random.PRNGKey(0)
    for idx, (n_symbols, hidden_dim, kernel_size, B, T) in enumerate(cases):
        k_param, k_text = jax.random.split(jax.random.fold_in(root, idx))
        params = init_params(k_param, n_symbols, hidden_dim, kernel_size)
        text = jax.random.randint(k_text, (B, T), 0, n_symbols,
                                  dtype=jnp.int32)
        k_exp, v_exp = text_enc_reference(params, text)

        # f32 matmul operands: tight structural check.
        k_f32, v_f32 = text_enc_forward(params, text, mask=None,
                                        matmul_dtype=jnp.float32)
        jax.block_until_ready((k_f32, v_f32))
        np.testing.assert_allclose(np.asarray(k_f32), k_exp,
                                   rtol=1e-3, atol=1e-3)
        np.testing.assert_allclose(np.asarray(v_f32), v_exp,
                                   rtol=1e-3, atol=1e-3)

        # bf16 matmul operands (default, f32 accumulation): production path;
        # looser tolerance is expected precision loss, not a bug.
        k_bf, v_bf = text_enc_forward(params, text, mask=None)
        jax.block_until_ready((k_bf, v_bf))
        assert k_bf.shape == (B, T, hidden_dim)
        assert v_bf.shape == (B, T, hidden_dim)
        np.testing.assert_allclose(np.asarray(k_bf), k_exp,
                                   rtol=2e-2, atol=2e-2)
        np.testing.assert_allclose(np.asarray(v_bf), v_exp,
                                   rtol=2e-2, atol=2e-2)

    print("KERNEL_OK")
</pallas_src>

<mosaic_0001>
module attributes {stable_mosaic.version = 11 : i64} {
  func.func @fused_text_enc_kernel(%arg0: i32, %arg1: memref<16x32xf32, #tpu.memory_space<vmem>>, %arg2: memref<5x16x1xf32, #tpu.memory_space<vmem>>, %arg3: memref<35x32x32xf32, #tpu.memory_space<vmem>>, %arg4: memref<35x32x32xf32, #tpu.memory_space<vmem>>, %arg5: memref<7x1x32xf32, #tpu.memory_space<vmem>>, %arg6: memref<7x1x32xf32, #tpu.memory_space<vmem>>, %arg7: memref<16x32xf32, #tpu.memory_space<vmem>>, %arg8: memref<16x32xf32, #tpu.memory_space<vmem>>) attributes {dimension_semantics = [#tpu.dimension_semantics<parallel>], iteration_bounds = array<i64: 1>, scalar_prefetch = 0 : i64, scratch_operands = 0 : i64, tpu.core_type = #tpu.core_type<tc>, window_params = [{transform_indices = @transform_0, window_bounds = array<i64: 16, 32>}, {pipeline_mode = #tpu.pipeline_mode<synchronous>, transform_indices = @transform_1, window_bounds = array<i64: 5, 16, 1>}, {pipeline_mode = #tpu.pipeline_mode<synchronous>, transform_indices = @transform_2, window_bounds = array<i64: 35, 32, 32>}, {pipeline_mode = #tpu.pipeline_mode<synchronous>, transform_indices = @transform_3, window_bounds = array<i64: 35, 32, 32>}, {pipeline_mode = #tpu.pipeline_mode<synchronous>, transform_indices = @transform_4, window_bounds = array<i64: 7, 1, 32>}, {pipeline_mode = #tpu.pipeline_mode<synchronous>, transform_indices = @transform_5, window_bounds = array<i64: 7, 1, 32>}, {transform_indices = @transform_6, window_bounds = array<i64: 16, 32>}, {transform_indices = @transform_7, window_bounds = array<i64: 16, 32>}]} {
    %c0 = arith.constant 0 : index
    %c0_0 = arith.constant 0 : index
    %0 = vector.load %arg1[%c0, %c0_0] : memref<16x32xf32, #tpu.memory_space<vmem>>, vector<16x32xf32>
    %c0_1 = arith.constant 0 : index
    %c0_2 = arith.constant 0 : index
    %c0_3 = arith.constant 0 : index
    %1 = vector.load %arg2[%c0_1, %c0_2, %c0_3] : memref<5x16x1xf32, #tpu.memory_space<vmem>>, vector<1x16x1xf32>
    %2 = vector.shape_cast %1 : vector<1x16x1xf32> to vector<16x1xf32>
    %c1 = arith.constant 1 : index
    %c0_4 = arith.constant 0 : index
    %c0_5 = arith.constant 0 : index
    %3 = vector.load %arg2[%c1, %c0_4, %c0_5] : memref<5x16x1xf32, #tpu.memory_space<vmem>>, vector<1x16x1xf32>
    %4 = vector.shape_cast %3 : vector<1x16x1xf32> to vector<16x1xf32>
    %c3 = arith.constant 3 : index
    %c0_6 = arith.constant 0 : index
    %c0_7 = arith.constant 0 : index
    %5 = vector.load %arg2[%c3, %c0_6, %c0_7] : memref<5x16x1xf32, #tpu.memory_space<vmem>>, vector<1x16x1xf32>
    %6 = vector.shape_cast %5 : vector<1x16x1xf32> to vector<16x1xf32>
    %c4 = arith.constant 4 : index
    %c0_8 = arith.constant 0 : index
    %c0_9 = arith.constant 0 : index
    %7 = vector.load %arg2[%c4, %c0_8, %c0_9] : memref<5x16x1xf32, #tpu.memory_space<vmem>>, vector<1x16x1xf32>
    %8 = vector.shape_cast %7 : vector<1x16x1xf32> to vector<16x1xf32>
    %c2_i32 = arith.constant 2 : i32
    %9 = tpu.dynamic_rotate %0 by %c2_i32 dim 0 : vector<16x32xf32>, i32 -> vector<16x32xf32>
    %10 = vector.broadcast %2 : vector<16x1xf32> to vector<16x32xf32>
    %11 = arith.mulf %9, %10 : vector<16x32xf32>
    %c1_i32 = arith.constant 1 : i32
    %12 = tpu.dynamic_rotate %0 by %c1_i32 dim 0 : vector<16x32xf32>, i32 -> vector<16x32xf32>
    %13 = vector.broadcast %4 : vector<16x1xf32> to vector<16x32xf32>
    %14 = arith.mulf %12, %13 : vector<16x32xf32>
    %c15_i32 = arith.constant 15 : i32
    %15 = tpu.dynamic_rotate %0 by %c15_i32 dim 0 : vector<16x32xf32>, i32 -> vector<16x32xf32>
    %16 = vector.broadcast %6 : vector<16x1xf32> to vector<16x32xf32>
    %17 = arith.mulf %15, %16 : vector<16x32xf32>
    %c14_i32 = arith.constant 14 : i32
    %18 = tpu.dynamic_rotate %0 by %c14_i32 dim 0 : vector<16x32xf32>, i32 -> vector<16x32xf32>
    %19 = vector.broadcast %8 : vector<16x1xf32> to vector<16x32xf32>
    %20 = arith.mulf %18, %19 : vector<16x32xf32>
    %c0_10 = arith.constant 0 : index
    %c0_11 = arith.constant 0 : index
    %c0_12 = arith.constant 0 : index
    %21 = vector.load %arg5[%c0_10, %c0_11, %c0_12] : memref<7x1x32xf32, #tpu.memory_space<vmem>>, vector<1x1x32xf32>
    %22 = vector.shape_cast %21 : vector<1x1x32xf32> to vector<1x32xf32>
    %23 = vector.shape_cast %22 : vector<1x32xf32> to vector<1x32xf32>
    %24 = vector.broadcast %23 : vector<1x32xf32> to vector<16x32xf32>
    %c0_13 = arith.constant 0 : index
    %c0_14 = arith.constant 0 : index
    %c0_15 = arith.constant 0 : index
    %25 = vector.load %arg6[%c0_13, %c0_14, %c0_15] : memref<7x1x32xf32, #tpu.memory_space<vmem>>, vector<1x1x32xf32>
    %26 = vector.shape_cast %25 : vector<1x1x32xf32> to vector<1x32xf32>
    %27 = vector.shape_cast %26 : vector<1x32xf32> to vector<1x32xf32>
    %28 = vector.broadcast %27 : vector<1x32xf32> to vector<16x32xf32>
    %c0_16 = arith.constant 0 : index
    %c0_17 = arith.constant 0 : index
    %c0_18 = arith.constant 0 : index
    %29 = vector.load %arg3[%c0_16, %c0_17, %c0_18] : memref<35x32x32xf32, #tpu.memory_space<vmem>>, vector<1x32x32xf32>
    %30 = vector.shape_cast %29 : vector<1x32x32xf32> to vector<32x32xf32>
    %cst = arith.constant dense<0.000000e+00> : vector<16x32xf32>
    %31 = tpu.matmul %11, %30, %cst {dimension_numbers = #tpu.dot_dimension_numbers<[1], [0], [0], [1], [0, 0, 1, 1], [], []>} : vector<16x32xf32>, vector<32x32xf32>, vector<16x32xf32> -> vector<16x32xf32>
    %32 = arith.addf %24, %31 : vector<16x32xf32>
    %c0_19 = arith.constant 0 : index
    %c0_20 = arith.constant 0 : index
    %c0_21 = arith.constant 0 : index
    %33 = vector.load %arg4[%c0_19, %c0_20, %c0_21] : memref<35x32x32xf32, #tpu.memory_space<vmem>>, vector<1x32x32xf32>
    %34 = vector.shape_cast %33 : vector<1x32x32xf32> to vector<32x32xf32>
    %cst_22 = arith.constant dense<0.000000e+00> : vector<16x32xf32>
    %35 = tpu.matmul %11, %34, %cst_22 {dimension_numbers = #tpu.dot_dimension_numbers<[1], [0], [0], [1], [0, 0, 1, 1], [], []>} : vector<16x32xf32>, vector<32x32xf32>, vector<16x32xf32> -> vector<16x32xf32>
    %36 = arith.addf %28, %35 : vector<16x32xf32>
    %c1_23 = arith.constant 1 : index
    %c0_24 = arith.constant 0 : index
    %c0_25 = arith.constant 0 : index
    %37 = vector.load %arg3[%c1_23, %c0_24, %c0_25] : memref<35x32x32xf32, #tpu.memory_space<vmem>>, vector<1x32x32xf32>
    %38 = vector.shape_cast %37 : vector<1x32x32xf32> to vector<32x32xf32>
    %cst_26 = arith.constant dense<0.000000e+00> : vector<16x32xf32>
    %39 = tpu.matmul %14, %38, %cst_26 {dimension_numbers = #tpu.dot_dimension_numbers<[1], [0], [0], [1], [0, 0, 1, 1], [], []>} : vector<16x32xf32>, vector<32x32xf32>, vector<16x32xf32> -> vector<16x32xf32>
    %40 = arith.addf %32, %39 : vector<16x32xf32>
    %c1_27 = arith.constant 1 : index
    %c0_28 = arith.constant 0 : index
    %c0_29 = arith.constant 0 : index
    %41 = vector.load %arg4[%c1_27, %c0_28, %c0_29] : memref<35x32x32xf32, #tpu.memory_space<vmem>>, vector<1x32x32xf32>
    %42 = vector.shape_cast %41 : vector<1x32x32xf32> to vector<32x32xf32>
    %cst_30 = arith.constant dense<0.000000e+00> : vector<16x32xf32>
    %43 = tpu.matmul %14, %42, %cst_30 {dimension_numbers = #tpu.dot_dimension_numbers<[1], [0], [0], [1], [0, 0, 1, 1], [], []>} : vector<16x32xf32>, vector<32x32xf32>, vector<16x32xf32> -> vector<16x32xf32>
    %44 = arith.addf %36, %43 : vector<16x32xf32>
    %c2 = arith.constant 2 : index
    %c0_31 = arith.constant 0 : index
    %c0_32 = arith.constant 0 : index
    %45 = vector.load %arg3[%c2, %c0_31, %c0_32] : memref<35x32x32xf32, #tpu.memory_space<vmem>>, vector<1x32x32xf32>
    %46 = vector.shape_cast %45 : vector<1x32x32xf32> to vector<32x32xf32>
    %cst_33 = arith.constant dense<0.000000e+00> : vector<16x32xf32>
    %47 = tpu.matmul %0, %46, %cst_33 {dimension_numbers = #tpu.dot_dimension_numbers<[1], [0], [0], [1], [0, 0, 1, 1], [], []>} : vector<16x32xf32>, vector<32x32xf32>, vector<16x32xf32> -> vector<16x32xf32>
    %48 = arith.addf %40, %47 : vector<16x32xf32>
    %c2_34 = arith.constant 2 : index
    %c0_35 = arith.constant 0 : index
    %c0_36 = arith.constant 0 : index
    %49 = vector.load %arg4[%c2_34, %c0_35, %c0_36] : memref<35x32x32xf32, #tpu.memory_space<vmem>>, vector<1x32x32xf32>
    %50 = vector.shape_cast %49 : vector<1x32x32xf32> to vector<32x32xf32>
    %cst_37 = arith.constant dense<0.000000e+00> : vector<16x32xf32>
    %51 = tpu.matmul %0, %50, %cst_37 {dimension_numbers = #tpu.dot_dimension_numbers<[1], [0], [0], [1], [0, 0, 1, 1], [], []>} : vector<16x32xf32>, vector<32x32xf32>, vector<16x32xf32> -> vector<16x32xf32>
    %52 = arith.addf %44, %51 : vector<16x32xf32>
    %c3_38 = arith.constant 3 : index
    %c0_39 = arith.constant 0 : index
    %c0_40 = arith.constant 0 : index
    %53 = vector.load %arg3[%c3_38, %c0_39, %c0_40] : memref<35x32x32xf32, #tpu.memory_space<vmem>>, vector<1x32x32xf32>
    %54 = vector.shape_cast %53 : vector<1x32x32xf32> to vector<32x32xf32>
    %cst_41 = arith.constant dense<0.000000e+00> : vector<16x32xf32>
    %55 = tpu.matmul %17, %54, %cst_41 {dimension_numbers = #tpu.dot_dimension_numbers<[1], [0], [0], [1], [0, 0, 1, 1], [], []>} : vector<16x32xf32>, vector<32x32xf32>, vector<16x32xf32> -> vector<16x32xf32>
    %56 = arith.addf %48, %55 : vector<16x32xf32>
    %c3_42 = arith.constant 3 : index
    %c0_43 = arith.constant 0 : index
    %c0_44 = arith.constant 0 : index
    %57 = vector.load %arg4[%c3_42, %c0_43, %c0_44] : memref<35x32x32xf32, #tpu.memory_space<vmem>>, vector<1x32x32xf32>
    %58 = vector.shape_cast %57 : vector<1x32x32xf32> to vector<32x32xf32>
    %cst_45 = arith.constant dense<0.000000e+00> : vector<16x32xf32>
    %59 = tpu.matmul %17, %58, %cst_45 {dimension_numbers = #tpu.dot_dimension_numbers<[1], [0], [0], [1], [0, 0, 1, 1], [], []>} : vector<16x32xf32>, vector<32x32xf32>, vector<16x32xf32> -> vector<16x32xf32>
    %60 = arith.addf %52, %59 : vector<16x32xf32>
    %c4_46 = arith.constant 4 : index
    %c0_47 = arith.constant 0 : index
    %c0_48 = arith.constant 0 : index
    %61 = vector.load %arg3[%c4_46, %c0_47, %c0_48] : memref<35x32x32xf32, #tpu.memory_space<vmem>>, vector<1x32x32xf32>
    %62 = vector.shape_cast %61 : vector<1x32x32xf32> to vector<32x32xf32>
    %cst_49 = arith.constant dense<0.000000e+00> : vector<16x32xf32>
    %63 = tpu.matmul %20, %62, %cst_49 {dimension_numbers = #tpu.dot_dimension_numbers<[1], [0], [0], [1], [0, 0, 1, 1], [], []>} : vector<16x32xf32>, vector<32x32xf32>, vector<16x32xf32> -> vector<16x32xf32>
    %64 = arith.addf %56, %63 : vector<16x32xf32>
    %c4_50 = arith.constant 4 : index
    %c0_51 = arith.constant 0 : index
    %c0_52 = arith.constant 0 : index
    %65 = vector.load %arg4[%c4_50, %c0_51, %c0_52] : memref<35x32x32xf32, #tpu.memory_space<vmem>>, vector<1x32x32xf32>
    %66 = vector.shape_cast %65 : vector<1x32x32xf32> to vector<32x32xf32>
    %cst_53 = arith.constant dense<0.000000e+00> : vector<16x32xf32>
    %67 = tpu.matmul %20, %66, %cst_53 {dimension_numbers = #tpu.dot_dimension_numbers<[1], [0], [0], [1], [0, 0, 1, 1], [], []>} : vector<16x32xf32>, vector<32x32xf32>, vector<16x32xf32> -> vector<16x32xf32>
    %68 = arith.addf %60, %67 : vector<16x32xf32>
    %69 = arith.negf %68 : vector<16x32xf32>
    %70 = math.exp %69 : vector<16x32xf32>
    %cst_54 = arith.constant 1.000000e+00 : f32
    %71 = vector.broadcast %cst_54 : f32 to vector<16x32xf32>
    %72 = arith.addf %71, %70 : vector<16x32xf32>
    %73 = arith.divf %71, %72 : vector<16x32xf32>
    %74 = arith.mulf %64, %73 : vector<16x32xf32>
    %75 = arith.addf %74, %0 : vector<16x32xf32>
    %cst_55 = arith.constant 0.707106769 : f32
    %76 = vector.broadcast %cst_55 : f32 to vector<16x32xf32>
    %77 = arith.mulf %75, %76 : vector<16x32xf32>
    %c2_i32_56 = arith.constant 2 : i32
    %78 = tpu.dynamic_rotate %77 by %c2_i32_56 dim 0 : vector<16x32xf32>, i32 -> vector<16x32xf32>
    %79 = vector.broadcast %2 : vector<16x1xf32> to vector<16x32xf32>
    %80 = arith.mulf %78, %79 : vector<16x32xf32>
    %c1_i32_57 = arith.constant 1 : i32
    %81 = tpu.dynamic_rotate %77 by %c1_i32_57 dim 0 : vector<16x32xf32>, i32 -> vector<16x32xf32>
    %82 = vector.broadcast %4 : vector<16x1xf32> to vector<16x32xf32>
    %83 = arith.mulf %81, %82 : vector<16x32xf32>
    %c15_i32_58 = arith.constant 15 : i32
    %84 = tpu.dynamic_rotate %77 by %c15_i32_58 dim 0 : vector<16x32xf32>, i32 -> vector<16x32xf32>
    %85 = vector.broadcast %6 : vector<16x1xf32> to vector<16x32xf32>
    %86 = arith.mulf %84, %85 : vector<16x32xf32>
    %c14_i32_59 = arith.constant 14 : i32
    %87 = tpu.dynamic_rotate %77 by %c14_i32_59 dim 0 : vector<16x32xf32>, i32 -> vector<16x32xf32>
    %88 = vector.broadcast %8 : vector<16x1xf32> to vector<16x32xf32>
    %89 = arith.mulf %87, %88 : vector<16x32xf32>
    %c1_60 = arith.constant 1 : index
    %c0_61 = arith.constant 0 : index
    %c0_62 = arith.constant 0 : index
    %90 = vector.load %arg5[%c1_60, %c0_61, %c0_62] : memref<7x1x32xf32, #tpu.memory_space<vmem>>, vector<1x1x32xf32>
    %91 = vector.shape_cast %90 : vector<1x1x32xf32> to vector<1x32xf32>
    %92 = vector.shape_cast %91 : vector<1x32xf32> to vector<1x32xf32>
    %93 = vector.broadcast %92 : vector<1x32xf32> to vector<16x32xf32>
    %c1_63 = arith.constant 1 : index
    %c0_64 = arith.constant 0 : index
    %c0_65 = arith.constant 0 : index
    %94 = vector.load %arg6[%c1_63, %c0_64, %c0_65] : memref<7x1x32xf32, #tpu.memory_space<vmem>>, vector<1x1x32xf32>
    %95 = vector.shape_cast %94 : vector<1x1x32xf32> to vector<1x32xf32>
    %96 = vector.shape_cast %95 : vector<1x32xf32> to vector<1x32xf32>
    %97 = vector.broadcast %96 : vector<1x32xf32> to vector<16x32xf32>
    %c5 = arith.constant 5 : index
    %c0_66 = arith.constant 0 : index
    %c0_67 = arith.constant 0 : index
    %98 = vector.load %arg3[%c5, %c0_66, %c0_67] : memref<35x32x32xf32, #tpu.memory_space<vmem>>, vector<1x32x32xf32>
    %99 = vector.shape_cast %98 : vector<1x32x32xf32> to vector<32x32xf32>
    %cst_68 = arith.constant dense<0.000000e+00> : vector<16x32xf32>
    %100 = tpu.matmul %80, %99, %cst_68 {dimension_numbers = #tpu.dot_dimension_numbers<[1], [0], [0], [1], [0, 0, 1, 1], [], []>} : vector<16x32xf32>, vector<32x32xf32>, vector<16x32xf32> -> vector<16x32xf32>
    %101 = arith.addf %93, %100 : vector<16x32xf32>
    %c5_69 = arith.constant 5 : index
    %c0_70 = arith.constant 0 : index
    %c0_71 = arith.constant 0 : index
    %102 = vector.load %arg4[%c5_69, %c0_70, %c0_71] : memref<35x32x32xf32, #tpu.memory_space<vmem>>, vector<1x32x32xf32>
    %103 = vector.shape_cast %102 : vector<1x32x32xf32> to vector<32x32xf32>
    %cst_72 = arith.constant dense<0.000000e+00> : vector<16x32xf32>
    %104 = tpu.matmul %80, %103, %cst_72 {dimension_numbers = #tpu.dot_dimension_numbers<[1], [0], [0], [1], [0, 0, 1, 1], [], []>} : vector<16x32xf32>, vector<32x32xf32>, vector<16x32xf32> -> vector<16x32xf32>
    %105 = arith.addf %97, %104 : vector<16x32xf32>
    %c6 = arith.constant 6 : index
    %c0_73 = arith.constant 0 : index
    %c0_74 = arith.constant 0 : index
    %106 = vector.load %arg3[%c6, %c0_73, %c0_74] : memref<35x32x32xf32, #tpu.memory_space<vmem>>, vector<1x32x32xf32>
    %107 = vector.shape_cast %106 : vector<1x32x32xf32> to vector<32x32xf32>
    %cst_75 = arith.constant dense<0.000000e+00> : vector<16x32xf32>
    %108 = tpu.matmul %83, %107, %cst_75 {dimension_numbers = #tpu.dot_dimension_numbers<[1], [0], [0], [1], [0, 0, 1, 1], [], []>} : vector<16x32xf32>, vector<32x32xf32>, vector<16x32xf32> -> vector<16x32xf32>
    %109 = arith.addf %101, %108 : vector<16x32xf32>
    %c6_76 = arith.constant 6 : index
    %c0_77 = arith.constant 0 : index
    %c0_78 = arith.constant 0 : index
    %110 = vector.load %arg4[%c6_76, %c0_77, %c0_78] : memref<35x32x32xf32, #tpu.memory_space<vmem>>, vector<1x32x32xf32>
    %111 = vector.shape_cast %110 : vector<1x32x32xf32> to vector<32x32xf32>
    %cst_79 = arith.constant dense<0.000000e+00> : vector<16x32xf32>
    %112 = tpu.matmul %83, %111, %cst_79 {dimension_numbers = #tpu.dot_dimension_numbers<[1], [0], [0], [1], [0, 0, 1, 1], [], []>} : vector<16x32xf32>, vector<32x32xf32>, vector<16x32xf32> -> vector<16x32xf32>
    %113 = arith.addf %105, %112 : vector<16x32xf32>
    %c7 = arith.constant 7 : index
    %c0_80 = arith.constant 0 : index
    %c0_81 = arith.constant 0 : index
    %114 = vector.load %arg3[%c7, %c0_80, %c0_81] : memref<35x32x32xf32, #tpu.memory_space<vmem>>, vector<1x32x32xf32>
    %115 = vector.shape_cast %114 : vector<1x32x32xf32> to vector<32x32xf32>
    %cst_82 = arith.constant dense<0.000000e+00> : vector<16x32xf32>
    %116 = tpu.matmul %77, %115, %cst_82 {dimension_numbers = #tpu.dot_dimension_numbers<[1], [0], [0], [1], [0, 0, 1, 1], [], []>} : vector<16x32xf32>, vector<32x32xf32>, vector<16x32xf32> -> vector<16x32xf32>
    %117 = arith.addf %109, %116 : vector<16x32xf32>
    %c7_83 = arith.constant 7 : index
    %c0_84 = arith.constant 0 : index
    %c0_85 = arith.constant 0 : index
    %118 = vector.load %arg4[%c7_83, %c0_84, %c0_85] : memref<35x32x32xf32, #tpu.memory_space<vmem>>, vector<1x32x32xf32>
    %119 = vector.shape_cast %118 : vector<1x32x32xf32> to vector<32x32xf32>
    %cst_86 = arith.constant dense<0.000000e+00> : vector<16x32xf32>
    %120 = tpu.matmul %77, %119, %cst_86 {dimension_numbers = #tpu.dot_dimension_numbers<[1], [0], [0], [1], [0, 0, 1, 1], [], []>} : vector<16x32xf32>, vector<32x32xf32>, vector<16x32xf32> -> vector<16x32xf32>
    %121 = arith.addf %113, %120 : vector<16x32xf32>
    %c8 = arith.constant 8 : index
    %c0_87 = arith.constant 0 : index
    %c0_88 = arith.constant 0 : index
    %122 = vector.load %arg3[%c8, %c0_87, %c0_88] : memref<35x32x32xf32, #tpu.memory_space<vmem>>, vector<1x32x32xf32>
    %123 = vector.shape_cast %122 : vector<1x32x32xf32> to vector<32x32xf32>
    %cst_89 = arith.constant dense<0.000000e+00> : vector<16x32xf32>
    %124 = tpu.matmul %86, %123, %cst_89 {dimension_numbers = #tpu.dot_dimension_numbers<[1], [0], [0], [1], [0, 0, 1, 1], [], []>} : vector<16x32xf32>, vector<32x32xf32>, vector<16x32xf32> -> vector<16x32xf32>
    %125 = arith.addf %117, %124 : vector<16x32xf32>
    %c8_90 = arith.constant 8 : index
    %c0_91 = arith.constant 0 : index
    %c0_92 = arith.constant 0 : index
    %126 = vector.load %arg4[%c8_90, %c0_91, %c0_92] : memref<35x32x32xf32, #tpu.memory_space<vmem>>, vector<1x32x32xf32>
    %127 = vector.shape_cast %126 : vector<1x32x32xf32> to vector<32x32xf32>
    %cst_93 = arith.constant dense<0.000000e+00> : vector<16x32xf32>
    %128 = tpu.matmul %86, %127, %cst_93 {dimension_numbers = #tpu.dot_dimension_numbers<[1], [0], [0], [1], [0, 0, 1, 1], [], []>} : vector<16x32xf32>, vector<32x32xf32>, vector<16x32xf32> -> vector<16x32xf32>
    %129 = arith.addf %121, %128 : vector<16x32xf32>
    %c9 = arith.constant 9 : index
    %c0_94 = arith.constant 0 : index
    %c0_95 = arith.constant 0 : index
    %130 = vector.load %arg3[%c9, %c0_94, %c0_95] : memref<35x32x32xf32, #tpu.memory_space<vmem>>, vector<1x32x32xf32>
    %131 = vector.shape_cast %130 : vector<1x32x32xf32> to vector<32x32xf32>
    %cst_96 = arith.constant dense<0.000000e+00> : vector<16x32xf32>
    %132 = tpu.matmul %89, %131, %cst_96 {dimension_numbers = #tpu.dot_dimension_numbers<[1], [0], [0], [1], [0, 0, 1, 1], [], []>} : vector<16x32xf32>, vector<32x32xf32>, vector<16x32xf32> -> vector<16x32xf32>
    %133 = arith.addf %125, %132 : vector<16x32xf32>
    %c9_97 = arith.constant 9 : index
    %c0_98 = arith.constant 0 : index
    %c0_99 = arith.constant 0 : index
    %134 = vector.load %arg4[%c9_97, %c0_98, %c0_99] : memref<35x32x32xf32, #tpu.memory_space<vmem>>, vector<1x32x32xf32>
    %135 = vector.shape_cast %134 : vector<1x32x32xf32> to vector<32x32xf32>
    %cst_100 = arith.constant dense<0.000000e+00> : vector<16x32xf32>
    %136 = tpu.matmul %89, %135, %cst_100 {dimension_numbers = #tpu.dot_dimension_numbers<[1], [0], [0], [1], [0, 0, 1, 1], [], []>} : vector<16x32xf32>, vector<32x32xf32>, vector<16x32xf32> -> vector<16x32xf32>
    %137 = arith.addf %129, %136 : vector<16x32xf32>
    %138 = arith.negf %137 : vector<16x32xf32>
    %139 = math.exp %138 : vector<16x32xf32>
    %cst_101 = arith.constant 1.000000e+00 : f32
    %140 = vector.broadcast %cst_101 : f32 to vector<16x32xf32>
    %141 = arith.addf %140, %139 : vector<16x32xf32>
    %142 = arith.divf %140, %141 : vector<16x32xf32>
    %143 = arith.mulf %133, %142 : vector<16x32xf32>
    %144 = arith.addf %143, %77 : vector<16x32xf32>
    %cst_102 = arith.constant 0.707106769 : f32
    %145 = vector.broadcast %cst_102 : f32 to vector<16x32xf32>
    %146 = arith.mulf %144, %145 : vector<16x32xf32>
    %c2_i32_103 = arith.constant 2 : i32
    %147 = tpu.dynamic_rotate %146 by %c2_i32_103 dim 0 : vector<16x32xf32>, i32 -> vector<16x32xf32>
    %148 = vector.broadcast %2 : vector<16x1xf32> to vector<16x32xf32>
    %149 = arith.mulf %147, %148 : vector<16x32xf32>
    %c1_i32_104 = arith.constant 1 : i32
    %150 = tpu.dynamic_rotate %146 by %c1_i32_104 dim 0 : vector<16x32xf32>, i32 -> vector<16x32xf32>
    %151 = vector.broadcast %4 : vector<16x1xf32> to vector<16x32xf32>
    %152 = arith.mulf %150, %151 : vector<16x32xf32>
    %c15_i32_105 = arith.constant 15 : i32
    %153 = tpu.dynamic_rotate %146 by %c15_i32_105 dim 0 : vector<16x32xf32>, i32 -> vector<16x32xf32>
    %154 = vector.broadcast %6 : vector<16x1xf32> to vector<16x32xf32>
    %155 = arith.mulf %153, %154 : vector<16x32xf32>
    %c14_i32_106 = arith.constant 14 : i32
    %156 = tpu.dynamic_rotate %146 by %c14_i32_106 dim 0 : vector<16x32xf32>, i32 -> vector<16x32xf32>
    %157 = vector.broadcast %8 : vector<16x1xf32> to vector<16x32xf32>
    %158 = arith.mulf %156, %157 : vector<16x32xf32>
    %c2_107 = arith.constant 2 : index
    %c0_108 = arith.constant 0 : index
    %c0_109 = arith.constant 0 : index
    %159 = vector.load %arg5[%c2_107, %c0_108, %c0_109] : memref<7x1x32xf32, #tpu.memory_space<vmem>>, vector<1x1x32xf32>
    %160 = vector.shape_cast %159 : vector<1x1x32xf32> to vector<1x32xf32>
    %161 = vector.shape_cast %160 : vector<1x32xf32> to vector<1x32xf32>
    %162 = vector.broadcast %161 : vector<1x32xf32> to vector<16x32xf32>
    %c2_110 = arith.constant 2 : index
    %c0_111 = arith.constant 0 : index
    %c0_112 = arith.constant 0 : index
    %163 = vector.load %arg6[%c2_110, %c0_111, %c0_112] : memref<7x1x32xf32, #tpu.memory_space<vmem>>, vector<1x1x32xf32>
    %164 = vector.shape_cast %163 : vector<1x1x32xf32> to vector<1x32xf32>
    %165 = vector.shape_cast %164 : vector<1x32xf32> to vector<1x32xf32>
    %166 = vector.broadcast %165 : vector<1x32xf32> to vector<16x32xf32>
    %c10 = arith.constant 10 : index
    %c0_113 = arith.constant 0 : index
    %c0_114 = arith.constant 0 : index
    %167 = vector.load %arg3[%c10, %c0_113, %c0_114] : memref<35x32x32xf32, #tpu.memory_space<vmem>>, vector<1x32x32xf32>
    %168 = vector.shape_cast %167 : vector<1x32x32xf32> to vector<32x32xf32>
    %cst_115 = arith.constant dense<0.000000e+00> : vector<16x32xf32>
    %169 = tpu.matmul %149, %168, %cst_115 {dimension_numbers = #tpu.dot_dimension_numbers<[1], [0], [0], [1], [0, 0, 1, 1], [], []>} : vector<16x32xf32>, vector<32x32xf32>, vector<16x32xf32> -> vector<16x32xf32>
    %170 = arith.addf %162, %169 : vector<16x32xf32>
    %c10_116 = arith.constant 10 : index
    %c0_117 = arith.constant 0 : index
    %c0_118 = arith.constant 0 : index
    %171 = vector.load %arg4[%c10_116, %c0_117, %c0_118] : memref<35x32x32xf32, #tpu.memory_space<vmem>>, vector<1x32x32xf32>
    %172 = vector.shape_cast %171 : vector<1x32x32xf32> to vector<32x32xf32>
    %cst_119 = arith.constant dense<0.000000e+00> : vector<16x32xf32>
    %173 = tpu.matmul %149, %172, %cst_119 {dimension_numbers = #tpu.dot_dimension_numbers<[1], [0], [0], [1], [0, 0, 1, 1], [], []>} : vector<16x32xf32>, vector<32x32xf32>, vector<16x32xf32> -> vector<16x32xf32>
    %174 = arith.addf %166, %173 : vector<16x32xf32>
    %c11 = arith.constant 11 : index
    %c0_120 = arith.constant 0 : index
    %c0_121 = arith.constant 0 : index
    %175 = vector.load %arg3[%c11, %c0_120, %c0_121] : memref<35x32x32xf32, #tpu.memory_space<vmem>>, vector<1x32x32xf32>
    %176 = vector.shape_cast %175 : vector<1x32x32xf32> to vector<32x32xf32>
    %cst_122 = arith.constant dense<0.000000e+00> : vector<16x32xf32>
    %177 = tpu.matmul %152, %176, %cst_122 {dimension_numbers = #tpu.dot_dimension_numbers<[1], [0], [0], [1], [0, 0, 1, 1], [], []>} : vector<16x32xf32>, vector<32x32xf32>, vector<16x32xf32> -> vector<16x32xf32>
    %178 = arith.addf %170, %177 : vector<16x32xf32>
    %c11_123 = arith.constant 11 : index
    %c0_124 = arith.constant 0 : index
    %c0_125 = arith.constant 0 : index
    %179 = vector.load %arg4[%c11_123, %c0_124, %c0_125] : memref<35x32x32xf32, #tpu.memory_space<vmem>>, vector<1x32x32xf32>
    %180 = vector.shape_cast %179 : vector<1x32x32xf32> to vector<32x32xf32>
    %cst_126 = arith.constant dense<0.000000e+00> : vector<16x32xf32>
    %181 = tpu.matmul %152, %180, %cst_126 {dimension_numbers = #tpu.dot_dimension_numbers<[1], [0], [0], [1], [0, 0, 1, 1], [], []>} : vector<16x32xf32>, vector<32x32xf32>, vector<16x32xf32> -> vector<16x32xf32>
    %182 = arith.addf %174, %181 : vector<16x32xf32>
    %c12 = arith.constant 12 : index
    %c0_127 = arith.constant 0 : index
    %c0_128 = arith.constant 0 : index
    %183 = vector.load %arg3[%c12, %c0_127, %c0_128] : memref<35x32x32xf32, #tpu.memory_space<vmem>>, vector<1x32x32xf32>
    %184 = vector.shape_cast %183 : vector<1x32x32xf32> to vector<32x32xf32>
    %cst_129 = arith.constant dense<0.000000e+00> : vector<16x32xf32>
    %185 = tpu.matmul %146, %184, %cst_129 {dimension_numbers = #tpu.dot_dimension_numbers<[1], [0], [0], [1], [0, 0, 1, 1], [], []>} : vector<16x32xf32>, vector<32x32xf32>, vector<16x32xf32> -> vector<16x32xf32>
    %186 = arith.addf %178, %185 : vector<16x32xf32>
    %c12_130 = arith.constant 12 : index
    %c0_131 = arith.constant 0 : index
    %c0_132 = arith.constant 0 : index
    %187 = vector.load %arg4[%c12_130, %c0_131, %c0_132] : memref<35x32x32xf32, #tpu.memory_space<vmem>>, vector<1x32x32xf32>
    %188 = vector.shape_cast %187 : vector<1x32x32xf32> to vector<32x32xf32>
    %cst_133 = arith.constant dense<0.000000e+00> : vector<16x32xf32>
    %189 = tpu.matmul %146, %188, %cst_133 {dimension_numbers = #tpu.dot_dimension_numbers<[1], [0], [0], [1], [0, 0, 1, 1], [], []>} : vector<16x32xf32>, vector<32x32xf32>, vector<16x32xf32> -> vector<16x32xf32>
    %190 = arith.addf %182, %189 : vector<16x32xf32>
    %c13 = arith.constant 13 : index
    %c0_134 = arith.constant 0 : index
    %c0_135 = arith.constant 0 : index
    %191 = vector.load %arg3[%c13, %c0_134, %c0_135] : memref<35x32x32xf32, #tpu.memory_space<vmem>>, vector<1x32x32xf32>
    %192 = vector.shape_cast %191 : vector<1x32x32xf32> to vector<32x32xf32>
    %cst_136 = arith.constant dense<0.000000e+00> : vector<16x32xf32>
    %193 = tpu.matmul %155, %192, %cst_136 {dimension_numbers = #tpu.dot_dimension_numbers<[1], [0], [0], [1], [0, 0, 1, 1], [], []>} : vector<16x32xf32>, vector<32x32xf32>, vector<16x32xf32> -> vector<16x32xf32>
    %194 = arith.addf %186, %193 : vector<16x32xf32>
    %c13_137 = arith.constant 13 : index
    %c0_138 = arith.constant 0 : index
    %c0_139 = arith.constant 0 : index
    %195 = vector.load %arg4[%c13_137, %c0_138, %c0_139] : memref<35x32x32xf32, #tpu.memory_space<vmem>>, vector<1x32x32xf32>
    %196 = vector.shape_cast %195 : vector<1x32x32xf32> to vector<32x32xf32>
    %cst_140 = arith.constant dense<0.000000e+00> : vector<16x32xf32>
    %197 = tpu.matmul %155, %196, %cst_140 {dimension_numbers = #tpu.dot_dimension_numbers<[1], [0], [0], [1], [0, 0, 1, 1], [], []>} : vector<16x32xf32>, vector<32x32xf32>, vector<16x32xf32> -> vector<16x32xf32>
    %198 = arith.addf %190, %197 : vector<16x32xf32>
    %c14 = arith.constant 14 : index
    %c0_141 = arith.constant 0 : index
    %c0_142 = arith.constant 0 : index
    %199 = vector.load %arg3[%c14, %c0_141, %c0_142] : memref<35x32x32xf32, #tpu.memory_space<vmem>>, vector<1x32x32xf32>
    %200 = vector.shape_cast %199 : vector<1x32x32xf32> to vector<32x32xf32>
    %cst_143 = arith.constant dense<0.000000e+00> : vector<16x32xf32>
    %201 = tpu.matmul %158, %200, %cst_143 {dimension_numbers = #tpu.dot_dimension_numbers<[1], [0], [0], [1], [0, 0, 1, 1], [], []>} : vector<16x32xf32>, vector<32x32xf32>, vector<16x32xf32> -> vector<16x32xf32>
    %202 = arith.addf %194, %201 : vector<16x32xf32>
    %c14_144 = arith.constant 14 : index
    %c0_145 = arith.constant 0 : index
    %c0_146 = arith.constant 0 : index
    %203 = vector.load %arg4[%c14_144, %c0_145, %c0_146] : memref<35x32x32xf32, #tpu.memory_space<vmem>>, vector<1x32x32xf32>
    %204 = vector.shape_cast %203 : vector<1x32x32xf32> to vector<32x32xf32>
    %cst_147 = arith.constant dense<0.000000e+00> : vector<16x32xf32>
    %205 = tpu.matmul %158, %204, %cst_147 {dimension_numbers = #tpu.dot_dimension_numbers<[1], [0], [0], [1], [0, 0, 1, 1], [], []>} : vector<16x32xf32>, vector<32x32xf32>, vector<16x32xf32> -> vector<16x32xf32>
    %206 = arith.addf %198, %205 : vector<16x32xf32>
    %207 = arith.negf %206 : vector<16x32xf32>
    %208 = math.exp %207 : vector<16x32xf32>
    %cst_148 = arith.constant 1.000000e+00 : f32
    %209 = vector.broadcast %cst_148 : f32 to vector<16x32xf32>
    %210 = arith.addf %209, %208 : vector<16x32xf32>
    %211 = arith.divf %209, %210 : vector<16x32xf32>
    %212 = arith.mulf %202, %211 : vector<16x32xf32>
    %213 = arith.addf %212, %146 : vector<16x32xf32>
    %cst_149 = arith.constant 0.707106769 : f32
    %214 = vector.broadcast %cst_149 : f32 to vector<16x32xf32>
    %215 = arith.mulf %213, %214 : vector<16x32xf32>
    %c2_i32_150 = arith.constant 2 : i32
    %216 = tpu.dynamic_rotate %215 by %c2_i32_150 dim 0 : vector<16x32xf32>, i32 -> vector<16x32xf32>
    %217 = vector.broadcast %2 : vector<16x1xf32> to vector<16x32xf32>
    %218 = arith.mulf %216, %217 : vector<16x32xf32>
    %c1_i32_151 = arith.constant 1 : i32
    %219 = tpu.dynamic_rotate %215 by %c1_i32_151 dim 0 : vector<16x32xf32>, i32 -> vector<16x32xf32>
    %220 = vector.broadcast %4 : vector<16x1xf32> to vector<16x32xf32>
    %221 = arith.mulf %219, %220 : vector<16x32xf32>
    %c15_i32_152 = arith.constant 15 : i32
    %222 = tpu.dynamic_rotate %215 by %c15_i32_152 dim 0 : vector<16x32xf32>, i32 -> vector<16x32xf32>
    %223 = vector.broadcast %6 : vector<16x1xf32> to vector<16x32xf32>
    %224 = arith.mulf %222, %223 : vector<16x32xf32>
    %c14_i32_153 = arith.constant 14 : i32
    %225 = tpu.dynamic_rotate %215 by %c14_i32_153 dim 0 : vector<16x32xf32>, i32 -> vector<16x32xf32>
    %226 = vector.broadcast %8 : vector<16x1xf32> to vector<16x32xf32>
    %227 = arith.mulf %225, %226 : vector<16x32xf32>
    %c3_154 = arith.constant 3 : index
    %c0_155 = arith.constant 0 : index
    %c0_156 = arith.constant 0 : index
    %228 = vector.load %arg5[%c3_154, %c0_155, %c0_156] : memref<7x1x32xf32, #tpu.memory_space<vmem>>, vector<1x1x32xf32>
    %229 = vector.shape_cast %228 : vector<1x1x32xf32> to vector<1x32xf32>
    %230 = vector.shape_cast %229 : vector<1x32xf32> to vector<1x32xf32>
    %231 = vector.broadcast %230 : vector<1x32xf32> to vector<16x32xf32>
    %c3_157 = arith.constant 3 : index
    %c0_158 = arith.constant 0 : index
    %c0_159 = arith.constant 0 : index
    %232 = vector.load %arg6[%c3_157, %c0_158, %c0_159] : memref<7x1x32xf32, #tpu.memory_space<vmem>>, vector<1x1x32xf32>
    %233 = vector.shape_cast %232 : vector<1x1x32xf32> to vector<1x32xf32>
    %234 = vector.shape_cast %233 : vector<1x32xf32> to vector<1x32xf32>
    %235 = vector.broadcast %234 : vector<1x32xf32> to vector<16x32xf32>
    %c15 = arith.constant 15 : index
    %c0_160 = arith.constant 0 : index
    %c0_161 = arith.constant 0 : index
    %236 = vector.load %arg3[%c15, %c0_160, %c0_161] : memref<35x32x32xf32, #tpu.memory_space<vmem>>, vector<1x32x32xf32>
    %237 = vector.shape_cast %236 : vector<1x32x32xf32> to vector<32x32xf32>
    %cst_162 = arith.constant dense<0.000000e+00> : vector<16x32xf32>
    %238 = tpu.matmul %218, %237, %cst_162 {dimension_numbers = #tpu.dot_dimension_numbers<[1], [0], [0], [1], [0, 0, 1, 1], [], []>} : vector<16x32xf32>, vector<32x32xf32>, vector<16x32xf32> -> vector<16x32xf32>
    %239 = arith.addf %231, %238 : vector<16x32xf32>
    %c15_163 = arith.constant 15 : index
    %c0_164 = arith.constant 0 : index
    %c0_165 = arith.constant 0 : index
    %240 = vector.load %arg4[%c15_163, %c0_164, %c0_165] : memref<35x32x32xf32, #tpu.memory_space<vmem>>, vector<1x32x32xf32>
    %241 = vector.shape_cast %240 : vector<1x32x32xf32> to vector<32x32xf32>
    %cst_166 = arith.constant dense<0.000000e+00> : vector<16x32xf32>
    %242 = tpu.matmul %218, %241, %cst_166 {dimension_numbers = #tpu.dot_dimension_numbers<[1], [0], [0], [1], [0, 0, 1, 1], [], []>} : vector<16x32xf32>, vector<32x32xf32>, vector<16x32xf32> -> vector<16x32xf32>
    %243 = arith.addf %235, %242 : vector<16x32xf32>
    %c16 = arith.constant 16 : index
    %c0_167 = arith.constant 0 : index
    %c0_168 = arith.constant 0 : index
    %244 = vector.load %arg3[%c16, %c0_167, %c0_168] : memref<35x32x32xf32, #tpu.memory_space<vmem>>, vector<1x32x32xf32>
    %245 = vector.shape_cast %244 : vector<1x32x32xf32> to vector<32x32xf32>
    %cst_169 = arith.constant dense<0.000000e+00> : vector<16x32xf32>
    %246 = tpu.matmul %221, %245, %cst_169 {dimension_numbers = #tpu.dot_dimension_numbers<[1], [0], [0], [1], [0, 0, 1, 1], [], []>} : vector<16x32xf32>, vector<32x32xf32>, vector<16x32xf32> -> vector<16x32xf32>
    %247 = arith.addf %239, %246 : vector<16x32xf32>
    %c16_170 = arith.constant 16 : index
    %c0_171 = arith.constant 0 : index
    %c0_172 = arith.constant 0 : index
    %248 = vector.load %arg4[%c16_170, %c0_171, %c0_172] : memref<35x32x32xf32, #tpu.memory_space<vmem>>, vector<1x32x32xf32>
    %249 = vector.shape_cast %248 : vector<1x32x32xf32> to vector<32x32xf32>
    %cst_173 = arith.constant dense<0.000000e+00> : vector<16x32xf32>
    %250 = tpu.matmul %221, %249, %cst_173 {dimension_numbers = #tpu.dot_dimension_numbers<[1], [0], [0], [1], [0, 0, 1, 1], [], []>} : vector<16x32xf32>, vector<32x32xf32>, vector<16x32xf32> -> vector<16x32xf32>
    %251 = arith.addf %243, %250 : vector<16x32xf32>
    %c17 = arith.constant 17 : index
    %c0_174 = arith.constant 0 : index
    %c0_175 = arith.constant 0 : index
    %252 = vector.load %arg3[%c17, %c0_174, %c0_175] : memref<35x32x32xf32, #tpu.memory_space<vmem>>, vector<1x32x32xf32>
    %253 = vector.shape_cast %252 : vector<1x32x32xf32> to vector<32x32xf32>
    %cst_176 = arith.constant dense<0.000000e+00> : vector<16x32xf32>
    %254 = tpu.matmul %215, %253, %cst_176 {dimension_numbers = #tpu.dot_dimension_numbers<[1], [0], [0], [1], [0, 0, 1, 1], [], []>} : vector<16x32xf32>, vector<32x32xf32>, vector<16x32xf32> -> vector<16x32xf32>
    %255 = arith.addf %247, %254 : vector<16x32xf32>
    %c17_177 = arith.constant 17 : index
    %c0_178 = arith.constant 0 : index
    %c0_179 = arith.constant 0 : index
    %256 = vector.load %arg4[%c17_177, %c0_178, %c0_179] : memref<35x32x32xf32, #tpu.memory_space<vmem>>, vector<1x32x32xf32>
    %257 = vector.shape_cast %256 : vector<1x32x32xf32> to vector<32x32xf32>
    %cst_180 = arith.constant dense<0.000000e+00> : vector<16x32xf32>
    %258 = tpu.matmul %215, %257, %cst_180 {dimension_numbers = #tpu.dot_dimension_numbers<[1], [0], [0], [1], [0, 0, 1, 1], [], []>} : vector<16x32xf32>, vector<32x32xf32>, vector<16x32xf32> -> vector<16x32xf32>
    %259 = arith.addf %251, %258 : vector<16x32xf32>
    %c18 = arith.constant 18 : index
    %c0_181 = arith.constant 0 : index
    %c0_182 = arith.constant 0 : index
    %260 = vector.load %arg3[%c18, %c0_181, %c0_182] : memref<35x32x32xf32, #tpu.memory_space<vmem>>, vector<1x32x32xf32>
    %261 = vector.shape_cast %260 : vector<1x32x32xf32> to vector<32x32xf32>
    %cst_183 = arith.constant dense<0.000000e+00> : vector<16x32xf32>
    %262 = tpu.matmul %224, %261, %cst_183 {dimension_numbers = #tpu.dot_dimension_numbers<[1], [0], [0], [1], [0, 0, 1, 1], [], []>} : vector<16x32xf32>, vector<32x32xf32>, vector<16x32xf32> -> vector<16x32xf32>
    %263 = arith.addf %255, %262 : vector<16x32xf32>
    %c18_184 = arith.constant 18 : index
    %c0_185 = arith.constant 0 : index
    %c0_186 = arith.constant 0 : index
    %264 = vector.load %arg4[%c18_184, %c0_185, %c0_186] : memref<35x32x32xf32, #tpu.memory_space<vmem>>, vector<1x32x32xf32>
    %265 = vector.shape_cast %264 : vector<1x32x32xf32> to vector<32x32xf32>
    %cst_187 = arith.constant dense<0.000000e+00> : vector<16x32xf32>
    %266 = tpu.matmul %224, %265, %cst_187 {dimension_numbers = #tpu.dot_dimension_numbers<[1], [0], [0], [1], [0, 0, 1, 1], [], []>} : vector<16x32xf32>, vector<32x32xf32>, vector<16x32xf32> -> vector<16x32xf32>
    %267 = arith.addf %259, %266 : vector<16x32xf32>
    %c19 = arith.constant 19 : index
    %c0_188 = arith.constant 0 : index
    %c0_189 = arith.constant 0 : index
    %268 = vector.load %arg3[%c19, %c0_188, %c0_189] : memref<35x32x32xf32, #tpu.memory_space<vmem>>, vector<1x32x32xf32>
    %269 = vector.shape_cast %268 : vector<1x32x32xf32> to vector<32x32xf32>
    %cst_190 = arith.constant dense<0.000000e+00> : vector<16x32xf32>
    %270 = tpu.matmul %227, %269, %cst_190 {dimension_numbers = #tpu.dot_dimension_numbers<[1], [0], [0], [1], [0, 0, 1, 1], [], []>} : vector<16x32xf32>, vector<32x32xf32>, vector<16x32xf32> -> vector<16x32xf32>
    %271 = arith.addf %263, %270 : vector<16x32xf32>
    %c19_191 = arith.constant 19 : index
    %c0_192 = arith.constant 0 : index
    %c0_193 = arith.constant 0 : index
    %272 = vector.load %arg4[%c19_191, %c0_192, %c0_193] : memref<35x32x32xf32, #tpu.memory_space<vmem>>, vector<1x32x32xf32>
    %273 = vector.shape_cast %272 : vector<1x32x32xf32> to vector<32x32xf32>
    %cst_194 = arith.constant dense<0.000000e+00> : vector<16x32xf32>
    %274 = tpu.matmul %227, %273, %cst_194 {dimension_numbers = #tpu.dot_dimension_numbers<[1], [0], [0], [1], [0, 0, 1, 1], [], []>} : vector<16x32xf32>, vector<32x32xf32>, vector<16x32xf32> -> vector<16x32xf32>
    %275 = arith.addf %267, %274 : vector<16x32xf32>
    %276 = arith.negf %275 : vector<16x32xf32>
    %277 = math.exp %276 : vector<16x32xf32>
    %cst_195 = arith.constant 1.000000e+00 : f32
    %278 = vector.broadcast %cst_195 : f32 to vector<16x32xf32>
    %279 = arith.addf %278, %277 : vector<16x32xf32>
    %280 = arith.divf %278, %279 : vector<16x32xf32>
    %281 = arith.mulf %271, %280 : vector<16x32xf32>
    %282 = arith.addf %281, %215 : vector<16x32xf32>
    %cst_196 = arith.constant 0.707106769 : f32
    %283 = vector.broadcast %cst_196 : f32 to vector<16x32xf32>
    %284 = arith.mulf %282, %283 : vector<16x32xf32>
    %c2_i32_197 = arith.constant 2 : i32
    %285 = tpu.dynamic_rotate %284 by %c2_i32_197 dim 0 : vector<16x32xf32>, i32 -> vector<16x32xf32>
    %286 = vector.broadcast %2 : vector<16x1xf32> to vector<16x32xf32>
    %287 = arith.mulf %285, %286 : vector<16x32xf32>
    %c1_i32_198 = arith.constant 1 : i32
    %288 = tpu.dynamic_rotate %284 by %c1_i32_198 dim 0 : vector<16x32xf32>, i32 -> vector<16x32xf32>
    %289 = vector.broadcast %4 : vector<16x1xf32> to vector<16x32xf32>
    %290 = arith.mulf %288, %289 : vector<16x32xf32>
    %c15_i32_199 = arith.constant 15 : i32
    %291 = tpu.dynamic_rotate %284 by %c15_i32_199 dim 0 : vector<16x32xf32>, i32 -> vector<16x32xf32>
    %292 = vector.broadcast %6 : vector<16x1xf32> to vector<16x32xf32>
    %293 = arith.mulf %291, %292 : vector<16x32xf32>
    %c14_i32_200 = arith.constant 14 : i32
    %294 = tpu.dynamic_rotate %284 by %c14_i32_200 dim 0 : vector<16x32xf32>, i32 -> vector<16x32xf32>
    %295 = vector.broadcast %8 : vector<16x1xf32> to vector<16x32xf32>
    %296 = arith.mulf %294, %295 : vector<16x32xf32>
    %c4_201 = arith.constant 4 : index
    %c0_202 = arith.constant 0 : index
    %c0_203 = arith.constant 0 : index
    %297 = vector.load %arg5[%c4_201, %c0_202, %c0_203] : memref<7x1x32xf32, #tpu.memory_space<vmem>>, vector<1x1x32xf32>
    %298 = vector.shape_cast %297 : vector<1x1x32xf32> to vector<1x32xf32>
    %299 = vector.shape_cast %298 : vector<1x32xf32> to vector<1x32xf32>
    %300 = vector.broadcast %299 : vector<1x32xf32> to vector<16x32xf32>
    %c4_204 = arith.constant 4 : index
    %c0_205 = arith.constant 0 : index
    %c0_206 = arith.constant 0 : index
    %301 = vector.load %arg6[%c4_204, %c0_205, %c0_206] : memref<7x1x32xf32, #tpu.memory_space<vmem>>, vector<1x1x32xf32>
    %302 = vector.shape_cast %301 : vector<1x1x32xf32> to vector<1x32xf32>
    %303 = vector.shape_cast %302 : vector<1x32xf32> to vector<1x32xf32>
    %304 = vector.broadcast %303 : vector<1x32xf32> to vector<16x32xf32>
    %c20 = arith.constant 20 : index
    %c0_207 = arith.constant 0 : index
    %c0_208 = arith.constant 0 : index
    %305 = vector.load %arg3[%c20, %c0_207, %c0_208] : memref<35x32x32xf32, #tpu.memory_space<vmem>>, vector<1x32x32xf32>
    %306 = vector.shape_cast %305 : vector<1x32x32xf32> to vector<32x32xf32>
    %cst_209 = arith.constant dense<0.000000e+00> : vector<16x32xf32>
    %307 = tpu.matmul %287, %306, %cst_209 {dimension_numbers = #tpu.dot_dimension_numbers<[1], [0], [0], [1], [0, 0, 1, 1], [], []>} : vector<16x32xf32>, vector<32x32xf32>, vector<16x32xf32> -> vector<16x32xf32>
    %308 = arith.addf %300, %307 : vector<16x32xf32>
    %c20_210 = arith.constant 20 : index
    %c0_211 = arith.constant 0 : index
    %c0_212 = arith.constant 0 : index
    %309 = vector.load %arg4[%c20_210, %c0_211, %c0_212] : memref<35x32x32xf32, #tpu.memory_space<vmem>>, vector<1x32x32xf32>
    %310 = vector.shape_cast %309 : vector<1x32x32xf32> to vector<32x32xf32>
    %cst_213 = arith.constant dense<0.000000e+00> : vector<16x32xf32>
    %311 = tpu.matmul %287, %310, %cst_213 {dimension_numbers = #tpu.dot_dimension_numbers<[1], [0], [0], [1], [0, 0, 1, 1], [], []>} : vector<16x32xf32>, vector<32x32xf32>, vector<16x32xf32> -> vector<16x32xf32>
    %312 = arith.addf %304, %311 : vector<16x32xf32>
    %c21 = arith.constant 21 : index
    %c0_214 = arith.constant 0 : index
    %c0_215 = arith.constant 0 : index
    %313 = vector.load %arg3[%c21, %c0_214, %c0_215] : memref<35x32x32xf32, #tpu.memory_space<vmem>>, vector<1x32x32xf32>
    %314 = vector.shape_cast %313 : vector<1x32x32xf32> to vector<32x32xf32>
    %cst_216 = arith.constant dense<0.000000e+00> : vector<16x32xf32>
    %315 = tpu.matmul %290, %314, %cst_216 {dimension_numbers = #tpu.dot_dimension_numbers<[1], [0], [0], [1], [0, 0, 1, 1], [], []>} : vector<16x32xf32>, vector<32x32xf32>, vector<16x32xf32> -> vector<16x32xf32>
    %316 = arith.addf %308, %315 : vector<16x32xf32>
    %c21_217 = arith.constant 21 : index
    %c0_218 = arith.constant 0 : index
    %c0_219 = arith.constant 0 : index
    %317 = vector.load %arg4[%c21_217, %c0_218, %c0_219] : memref<35x32x32xf32, #tpu.memory_space<vmem>>, vector<1x32x32xf32>
    %318 = vector.shape_cast %317 : vector<1x32x32xf32> to vector<32x32xf32>
    %cst_220 = arith.constant dense<0.000000e+00> : vector<16x32xf32>
    %319 = tpu.matmul %290, %318, %cst_220 {dimension_numbers = #tpu.dot_dimension_numbers<[1], [0], [0], [1], [0, 0, 1, 1], [], []>} : vector<16x32xf32>, vector<32x32xf32>, vector<16x32xf32> -> vector<16x32xf32>
    %320 = arith.addf %312, %319 : vector<16x32xf32>
    %c22 = arith.constant 22 : index
    %c0_221 = arith.constant 0 : index
    %c0_222 = arith.constant 0 : index
    %321 = vector.load %arg3[%c22, %c0_221, %c0_222] : memref<35x32x32xf32, #tpu.memory_space<vmem>>, vector<1x32x32xf32>
    %322 = vector.shape_cast %321 : vector<1x32x32xf32> to vector<32x32xf32>
    %cst_223 = arith.constant dense<0.000000e+00> : vector<16x32xf32>
    %323 = tpu.matmul %284, %322, %cst_223 {dimension_numbers = #tpu.dot_dimension_numbers<[1], [0], [0], [1], [0, 0, 1, 1], [], []>} : vector<16x32xf32>, vector<32x32xf32>, vector<16x32xf32> -> vector<16x32xf32>
    %324 = arith.addf %316, %323 : vector<16x32xf32>
    %c22_224 = arith.constant 22 : index
    %c0_225 = arith.constant 0 : index
    %c0_226 = arith.constant 0 : index
    %325 = vector.load %arg4[%c22_224, %c0_225, %c0_226] : memref<35x32x32xf32, #tpu.memory_space<vmem>>, vector<1x32x32xf32>
    %326 = vector.shape_cast %325 : vector<1x32x32xf32> to vector<32x32xf32>
    %cst_227 = arith.constant dense<0.000000e+00> : vector<16x32xf32>
    %327 = tpu.matmul %284, %326, %cst_227 {dimension_numbers = #tpu.dot_dimension_numbers<[1], [0], [0], [1], [0, 0, 1, 1], [], []>} : vector<16x32xf32>, vector<32x32xf32>, vector<16x32xf32> -> vector<16x32xf32>
    %328 = arith.addf %320, %327 : vector<16x32xf32>
    %c23 = arith.constant 23 : index
    %c0_228 = arith.constant 0 : index
    %c0_229 = arith.constant 0 : index
    %329 = vector.load %arg3[%c23, %c0_228, %c0_229] : memref<35x32x32xf32, #tpu.memory_space<vmem>>, vector<1x32x32xf32>
    %330 = vector.shape_cast %329 : vector<1x32x32xf32> to vector<32x32xf32>
    %cst_230 = arith.constant dense<0.000000e+00> : vector<16x32xf32>
    %331 = tpu.matmul %293, %330, %cst_230 {dimension_numbers = #tpu.dot_dimension_numbers<[1], [0], [0], [1], [0, 0, 1, 1], [], []>} : vector<16x32xf32>, vector<32x32xf32>, vector<16x32xf32> -> vector<16x32xf32>
    %332 = arith.addf %324, %331 : vector<16x32xf32>
    %c23_231 = arith.constant 23 : index
    %c0_232 = arith.constant 0 : index
    %c0_233 = arith.constant 0 : index
    %333 = vector.load %arg4[%c23_231, %c0_232, %c0_233] : memref<35x32x32xf32, #tpu.memory_space<vmem>>, vector<1x32x32xf32>
    %334 = vector.shape_cast %333 : vector<1x32x32xf32> to vector<32x32xf32>
    %cst_234 = arith.constant dense<0.000000e+00> : vector<16x32xf32>
    %335 = tpu.matmul %293, %334, %cst_234 {dimension_numbers = #tpu.dot_dimension_numbers<[1], [0], [0], [1], [0, 0, 1, 1], [], []>} : vector<16x32xf32>, vector<32x32xf32>, vector<16x32xf32> -> vector<16x32xf32>
    %336 = arith.addf %328, %335 : vector<16x32xf32>
    %c24 = arith.constant 24 : index
    %c0_235 = arith.constant 0 : index
    %c0_236 = arith.constant 0 : index
    %337 = vector.load %arg3[%c24, %c0_235, %c0_236] : memref<35x32x32xf32, #tpu.memory_space<vmem>>, vector<1x32x32xf32>
    %338 = vector.shape_cast %337 : vector<1x32x32xf32> to vector<32x32xf32>
    %cst_237 = arith.constant dense<0.000000e+00> : vector<16x32xf32>
    %339 = tpu.matmul %296, %338, %cst_237 {dimension_numbers = #tpu.dot_dimension_numbers<[1], [0], [0], [1], [0, 0, 1, 1], [], []>} : vector<16x32xf32>, vector<32x32xf32>, vector<16x32xf32> -> vector<16x32xf32>
    %340 = arith.addf %332, %339 : vector<16x32xf32>
    %c24_238 = arith.constant 24 : index
    %c0_239 = arith.constant 0 : index
    %c0_240 = arith.constant 0 : index
    %341 = vector.load %arg4[%c24_238, %c0_239, %c0_240] : memref<35x32x32xf32, #tpu.memory_space<vmem>>, vector<1x32x32xf32>
    %342 = vector.shape_cast %341 : vector<1x32x32xf32> to vector<32x32xf32>
    %cst_241 = arith.constant dense<0.000000e+00> : vector<16x32xf32>
    %343 = tpu.matmul %296, %342, %cst_241 {dimension_numbers = #tpu.dot_dimension_numbers<[1], [0], [0], [1], [0, 0, 1, 1], [], []>} : vector<16x32xf32>, vector<32x32xf32>, vector<16x32xf32> -> vector<16x32xf32>
    %344 = arith.addf %336, %343 : vector<16x32xf32>
    %345 = arith.negf %344 : vector<16x32xf32>
    %346 = math.exp %345 : vector<16x32xf32>
    %cst_242 = arith.constant 1.000000e+00 : f32
    %347 = vector.broadcast %cst_242 : f32 to vector<16x32xf32>
    %348 = arith.addf %347, %346 : vector<16x32xf32>
    %349 = arith.divf %347, %348 : vector<16x32xf32>
    %350 = arith.mulf %340, %349 : vector<16x32xf32>
    %351 = arith.addf %350, %284 : vector<16x32xf32>
    %cst_243 = arith.constant 0.707106769 : f32
    %352 = vector.broadcast %cst_243 : f32 to vector<16x32xf32>
    %353 = arith.mulf %351, %352 : vector<16x32xf32>
    %c2_i32_244 = arith.constant 2 : i32
    %354 = tpu.dynamic_rotate %353 by %c2_i32_244 dim 0 : vector<16x32xf32>, i32 -> vector<16x32xf32>
    %355 = vector.broadcast %2 : vector<16x1xf32> to vector<16x32xf32>
    %356 = arith.mulf %354, %355 : vector<16x32xf32>
    %c1_i32_245 = arith.constant 1 : i32
    %357 = tpu.dynamic_rotate %353 by %c1_i32_245 dim 0 : vector<16x32xf32>, i32 -> vector<16x32xf32>
    %358 = vector.broadcast %4 : vector<16x1xf32> to vector<16x32xf32>
    %359 = arith.mulf %357, %358 : vector<16x32xf32>
    %c15_i32_246 = arith.constant 15 : i32
    %360 = tpu.dynamic_rotate %353 by %c15_i32_246 dim 0 : vector<16x32xf32>, i32 -> vector<16x32xf32>
    %361 = vector.broadcast %6 : vector<16x1xf32> to vector<16x32xf32>
    %362 = arith.mulf %360, %361 : vector<16x32xf32>
    %c14_i32_247 = arith.constant 14 : i32
    %363 = tpu.dynamic_rotate %353 by %c14_i32_247 dim 0 : vector<16x32xf32>, i32 -> vector<16x32xf32>
    %364 = vector.broadcast %8 : vector<16x1xf32> to vector<16x32xf32>
    %365 = arith.mulf %363, %364 : vector<16x32xf32>
    %c5_248 = arith.constant 5 : index
    %c0_249 = arith.constant 0 : index
    %c0_250 = arith.constant 0 : index
    %366 = vector.load %arg5[%c5_248, %c0_249, %c0_250] : memref<7x1x32xf32, #tpu.memory_space<vmem>>, vector<1x1x32xf32>
    %367 = vector.shape_cast %366 : vector<1x1x32xf32> to vector<1x32xf32>
    %368 = vector.shape_cast %367 : vector<1x32xf32> to vector<1x32xf32>
    %369 = vector.broadcast %368 : vector<1x32xf32> to vector<16x32xf32>
    %c5_251 = arith.constant 5 : index
    %c0_252 = arith.constant 0 : index
    %c0_253 = arith.constant 0 : index
    %370 = vector.load %arg6[%c5_251, %c0_252, %c0_253] : memref<7x1x32xf32, #tpu.memory_space<vmem>>, vector<1x1x32xf32>
    %371 = vector.shape_cast %370 : vector<1x1x32xf32> to vector<1x32xf32>
    %372 = vector.shape_cast %371 : vector<1x32xf32> to vector<1x32xf32>
    %373 = vector.broadcast %372 : vector<1x32xf32> to vector<16x32xf32>
    %c25 = arith.constant 25 : index
    %c0_254 = arith.constant 0 : index
    %c0_255 = arith.constant 0 : index
    %374 = vector.load %arg3[%c25, %c0_254, %c0_255] : memref<35x32x32xf32, #tpu.memory_space<vmem>>, vector<1x32x32xf32>
    %375 = vector.shape_cast %374 : vector<1x32x32xf32> to vector<32x32xf32>
    %cst_256 = arith.constant dense<0.000000e+00> : vector<16x32xf32>
    %376 = tpu.matmul %356, %375, %cst_256 {dimension_numbers = #tpu.dot_dimension_numbers<[1], [0], [0], [1], [0, 0, 1, 1], [], []>} : vector<16x32xf32>, vector<32x32xf32>, vector<16x32xf32> -> vector<16x32xf32>
    %377 = arith.addf %369, %376 : vector<16x32xf32>
    %c25_257 = arith.constant 25 : index
    %c0_258 = arith.constant 0 : index
    %c0_259 = arith.constant 0 : index
    %378 = vector.load %arg4[%c25_257, %c0_258, %c0_259] : memref<35x32x32xf32, #tpu.memory_space<vmem>>, vector<1x32x32xf32>
    %379 = vector.shape_cast %378 : vector<1x32x32xf32> to vector<32x32xf32>
    %cst_260 = arith.constant dense<0.000000e+00> : vector<16x32xf32>
    %380 = tpu.matmul %356, %379, %cst_260 {dimension_numbers = #tpu.dot_dimension_numbers<[1], [0], [0], [1], [0, 0, 1, 1], [], []>} : vector<16x32xf32>, vector<32x32xf32>, vector<16x32xf32> -> vector<16x32xf32>
    %381 = arith.addf %373, %380 : vector<16x32xf32>
    %c26 = arith.constant 26 : index
    %c0_261 = arith.constant 0 : index
    %c0_262 = arith.constant 0 : index
    %382 = vector.load %arg3[%c26, %c0_261, %c0_262] : memref<35x32x32xf32, #tpu.memory_space<vmem>>, vector<1x32x32xf32>
    %383 = vector.shape_cast %382 : vector<1x32x32xf32> to vector<32x32xf32>
    %cst_263 = arith.constant dense<0.000000e+00> : vector<16x32xf32>
    %384 = tpu.matmul %359, %383, %cst_263 {dimension_numbers = #tpu.dot_dimension_numbers<[1], [0], [0], [1], [0, 0, 1, 1], [], []>} : vector<16x32xf32>, vector<32x32xf32>, vector<16x32xf32> -> vector<16x32xf32>
    %385 = arith.addf %377, %384 : vector<16x32xf32>
    %c26_264 = arith.constant 26 : index
    %c0_265 = arith.constant 0 : index
    %c0_266 = arith.constant 0 : index
    %386 = vector.load %arg4[%c26_264, %c0_265, %c0_266] : memref<35x32x32xf32, #tpu.memory_space<vmem>>, vector<1x32x32xf32>
    %387 = vector.shape_cast %386 : vector<1x32x32xf32> to vector<32x32xf32>
    %cst_267 = arith.constant dense<0.000000e+00> : vector<16x32xf32>
    %388 = tpu.matmul %359, %387, %cst_267 {dimension_numbers = #tpu.dot_dimension_numbers<[1], [0], [0], [1], [0, 0, 1, 1], [], []>} : vector<16x32xf32>, vector<32x32xf32>, vector<16x32xf32> -> vector<16x32xf32>
    %389 = arith.addf %381, %388 : vector<16x32xf32>
    %c27 = arith.constant 27 : index
    %c0_268 = arith.constant 0 : index
    %c0_269 = arith.constant 0 : index
    %390 = vector.load %arg3[%c27, %c0_268, %c0_269] : memref<35x32x32xf32, #tpu.memory_space<vmem>>, vector<1x32x32xf32>
    %391 = vector.shape_cast %390 : vector<1x32x32xf32> to vector<32x32xf32>
    %cst_270 = arith.constant dense<0.000000e+00> : vector<16x32xf32>
    %392 = tpu.matmul %353, %391, %cst_270 {dimension_numbers = #tpu.dot_dimension_numbers<[1], [0], [0], [1], [0, 0, 1, 1], [], []>} : vector<16x32xf32>, vector<32x32xf32>, vector<16x32xf32> -> vector<16x32xf32>
    %393 = arith.addf %385, %392 : vector<16x32xf32>
    %c27_271 = arith.constant 27 : index
    %c0_272 = arith.constant 0 : index
    %c0_273 = arith.constant 0 : index
    %394 = vector.load %arg4[%c27_271, %c0_272, %c0_273] : memref<35x32x32xf32, #tpu.memory_space<vmem>>, vector<1x32x32xf32>
    %395 = vector.shape_cast %394 : vector<1x32x32xf32> to vector<32x32xf32>
    %cst_274 = arith.constant dense<0.000000e+00> : vector<16x32xf32>
    %396 = tpu.matmul %353, %395, %cst_274 {dimension_numbers = #tpu.dot_dimension_numbers<[1], [0], [0], [1], [0, 0, 1, 1], [], []>} : vector<16x32xf32>, vector<32x32xf32>, vector<16x32xf32> -> vector<16x32xf32>
    %397 = arith.addf %389, %396 : vector<16x32xf32>
    %c28 = arith.constant 28 : index
    %c0_275 = arith.constant 0 : index
    %c0_276 = arith.constant 0 : index
    %398 = vector.load %arg3[%c28, %c0_275, %c0_276] : memref<35x32x32xf32, #tpu.memory_space<vmem>>, vector<1x32x32xf32>
    %399 = vector.shape_cast %398 : vector<1x32x32xf32> to vector<32x32xf32>
    %cst_277 = arith.constant dense<0.000000e+00> : vector<16x32xf32>
    %400 = tpu.matmul %362, %399, %cst_277 {dimension_numbers = #tpu.dot_dimension_numbers<[1], [0], [0], [1], [0, 0, 1, 1], [], []>} : vector<16x32xf32>, vector<32x32xf32>, vector<16x32xf32> -> vector<16x32xf32>
    %401 = arith.addf %393, %400 : vector<16x32xf32>
    %c28_278 = arith.constant 28 : index
    %c0_279 = arith.constant 0 : index
    %c0_280 = arith.constant 0 : index
    %402 = vector.load %arg4[%c28_278, %c0_279, %c0_280] : memref<35x32x32xf32, #tpu.memory_space<vmem>>, vector<1x32x32xf32>
    %403 = vector.shape_cast %402 : vector<1x32x32xf32> to vector<32x32xf32>
    %cst_281 = arith.constant dense<0.000000e+00> : vector<16x32xf32>
    %404 = tpu.matmul %362, %403, %cst_281 {dimension_numbers = #tpu.dot_dimension_numbers<[1], [0], [0], [1], [0, 0, 1, 1], [], []>} : vector<16x32xf32>, vector<32x32xf32>, vector<16x32xf32> -> vector<16x32xf32>
    %405 = arith.addf %397, %404 : vector<16x32xf32>
    %c29 = arith.constant 29 : index
    %c0_282 = arith.constant 0 : index
    %c0_283 = arith.constant 0 : index
    %406 = vector.load %arg3[%c29, %c0_282, %c0_283] : memref<35x32x32xf32, #tpu.memory_space<vmem>>, vector<1x32x32xf32>
    %407 = vector.shape_cast %406 : vector<1x32x32xf32> to vector<32x32xf32>
    %cst_284 = arith.constant dense<0.000000e+00> : vector<16x32xf32>
    %408 = tpu.matmul %365, %407, %cst_284 {dimension_numbers = #tpu.dot_dimension_numbers<[1], [0], [0], [1], [0, 0, 1, 1], [], []>} : vector<16x32xf32>, vector<32x32xf32>, vector<16x32xf32> -> vector<16x32xf32>
    %409 = arith.addf %401, %408 : vector<16x32xf32>
    %c29_285 = arith.constant 29 : index
    %c0_286 = arith.constant 0 : index
    %c0_287 = arith.constant 0 : index
    %410 = vector.load %arg4[%c29_285, %c0_286, %c0_287] : memref<35x32x32xf32, #tpu.memory_space<vmem>>, vector<1x32x32xf32>
    %411 = vector.shape_cast %410 : vector<1x32x32xf32> to vector<32x32xf32>
    %cst_288 = arith.constant dense<0.000000e+00> : vector<16x32xf32>
    %412 = tpu.matmul %365, %411, %cst_288 {dimension_numbers = #tpu.dot_dimension_numbers<[1], [0], [0], [1], [0, 0, 1, 1], [], []>} : vector<16x32xf32>, vector<32x32xf32>, vector<16x32xf32> -> vector<16x32xf32>
    %413 = arith.addf %405, %412 : vector<16x32xf32>
    %414 = arith.negf %413 : vector<16x32xf32>
    %415 = math.exp %414 : vector<16x32xf32>
    %cst_289 = arith.constant 1.000000e+00 : f32
    %416 = vector.broadcast %cst_289 : f32 to vector<16x32xf32>
    %417 = arith.addf %416, %415 : vector<16x32xf32>
    %418 = arith.divf %416, %417 : vector<16x32xf32>
    %419 = arith.mulf %409, %418 : vector<16x32xf32>
    %420 = arith.addf %419, %353 : vector<16x32xf32>
    %cst_290 = arith.constant 0.707106769 : f32
    %421 = vector.broadcast %cst_290 : f32 to vector<16x32xf32>
    %422 = arith.mulf %420, %421 : vector<16x32xf32>
    %c2_i32_291 = arith.constant 2 : i32
    %423 = tpu.dynamic_rotate %422 by %c2_i32_291 dim 0 : vector<16x32xf32>, i32 -> vector<16x32xf32>
    %424 = vector.broadcast %2 : vector<16x1xf32> to vector<16x32xf32>
    %425 = arith.mulf %423, %424 : vector<16x32xf32>
    %c1_i32_292 = arith.constant 1 : i32
    %426 = tpu.dynamic_rotate %422 by %c1_i32_292 dim 0 : vector<16x32xf32>, i32 -> vector<16x32xf32>
    %427 = vector.broadcast %4 : vector<16x1xf32> to vector<16x32xf32>
    %428 = arith.mulf %426, %427 : vector<16x32xf32>
    %c15_i32_293 = arith.constant 15 : i32
    %429 = tpu.dynamic_rotate %422 by %c15_i32_293 dim 0 : vector<16x32xf32>, i32 -> vector<16x32xf32>
    %430 = vector.broadcast %6 : vector<16x1xf32> to vector<16x32xf32>
    %431 = arith.mulf %429, %430 : vector<16x32xf32>
    %c14_i32_294 = arith.constant 14 : i32
    %432 = tpu.dynamic_rotate %422 by %c14_i32_294 dim 0 : vector<16x32xf32>, i32 -> vector<16x32xf32>
    %433 = vector.broadcast %8 : vector<16x1xf32> to vector<16x32xf32>
    %434 = arith.mulf %432, %433 : vector<16x32xf32>
    %c6_295 = arith.constant 6 : index
    %c0_296 = arith.constant 0 : index
    %c0_297 = arith.constant 0 : index
    %435 = vector.load %arg5[%c6_295, %c0_296, %c0_297] : memref<7x1x32xf32, #tpu.memory_space<vmem>>, vector<1x1x32xf32>
    %436 = vector.shape_cast %435 : vector<1x1x32xf32> to vector<1x32xf32>
    %437 = vector.shape_cast %436 : vector<1x32xf32> to vector<1x32xf32>
    %438 = vector.broadcast %437 : vector<1x32xf32> to vector<16x32xf32>
    %c6_298 = arith.constant 6 : index
    %c0_299 = arith.constant 0 : index
    %c0_300 = arith.constant 0 : index
    %439 = vector.load %arg6[%c6_298, %c0_299, %c0_300] : memref<7x1x32xf32, #tpu.memory_space<vmem>>, vector<1x1x32xf32>
    %440 = vector.shape_cast %439 : vector<1x1x32xf32> to vector<1x32xf32>
    %441 = vector.shape_cast %440 : vector<1x32xf32> to vector<1x32xf32>
    %442 = vector.broadcast %441 : vector<1x32xf32> to vector<16x32xf32>
    %c30 = arith.constant 30 : index
    %c0_301 = arith.constant 0 : index
    %c0_302 = arith.constant 0 : index
    %443 = vector.load %arg3[%c30, %c0_301, %c0_302] : memref<35x32x32xf32, #tpu.memory_space<vmem>>, vector<1x32x32xf32>
    %444 = vector.shape_cast %443 : vector<1x32x32xf32> to vector<32x32xf32>
    %cst_303 = arith.constant dense<0.000000e+00> : vector<16x32xf32>
    %445 = tpu.matmul %425, %444, %cst_303 {dimension_numbers = #tpu.dot_dimension_numbers<[1], [0], [0], [1], [0, 0, 1, 1], [], []>} : vector<16x32xf32>, vector<32x32xf32>, vector<16x32xf32> -> vector<16x32xf32>
    %446 = arith.addf %438, %445 : vector<16x32xf32>
    %c30_304 = arith.constant 30 : index
    %c0_305 = arith.constant 0 : index
    %c0_306 = arith.constant 0 : index
    %447 = vector.load %arg4[%c30_304, %c0_305, %c0_306] : memref<35x32x32xf32, #tpu.memory_space<vmem>>, vector<1x32x32xf32>
    %448 = vector.shape_cast %447 : vector<1x32x32xf32> to vector<32x32xf32>
    %cst_307 = arith.constant dense<0.000000e+00> : vector<16x32xf32>
    %449 = tpu.matmul %425, %448, %cst_307 {dimension_numbers = #tpu.dot_dimension_numbers<[1], [0], [0], [1], [0, 0, 1, 1], [], []>} : vector<16x32xf32>, vector<32x32xf32>, vector<16x32xf32> -> vector<16x32xf32>
    %450 = arith.addf %442, %449 : vector<16x32xf32>
    %c31 = arith.constant 31 : index
    %c0_308 = arith.constant 0 : index
    %c0_309 = arith.constant 0 : index
    %451 = vector.load %arg3[%c31, %c0_308, %c0_309] : memref<35x32x32xf32, #tpu.memory_space<vmem>>, vector<1x32x32xf32>
    %452 = vector.shape_cast %451 : vector<1x32x32xf32> to vector<32x32xf32>
    %cst_310 = arith.constant dense<0.000000e+00> : vector<16x32xf32>
    %453 = tpu.matmul %428, %452, %cst_310 {dimension_numbers = #tpu.dot_dimension_numbers<[1], [0], [0], [1], [0, 0, 1, 1], [], []>} : vector<16x32xf32>, vector<32x32xf32>, vector<16x32xf32> -> vector<16x32xf32>
    %454 = arith.addf %446, %453 : vector<16x32xf32>
    %c31_311 = arith.constant 31 : index
    %c0_312 = arith.constant 0 : index
    %c0_313 = arith.constant 0 : index
    %455 = vector.load %arg4[%c31_311, %c0_312, %c0_313] : memref<35x32x32xf32, #tpu.memory_space<vmem>>, vector<1x32x32xf32>
    %456 = vector.shape_cast %455 : vector<1x32x32xf32> to vector<32x32xf32>
    %cst_314 = arith.constant dense<0.000000e+00> : vector<16x32xf32>
    %457 = tpu.matmul %428, %456, %cst_314 {dimension_numbers = #tpu.dot_dimension_numbers<[1], [0], [0], [1], [0, 0, 1, 1], [], []>} : vector<16x32xf32>, vector<32x32xf32>, vector<16x32xf32> -> vector<16x32xf32>
    %458 = arith.addf %450, %457 : vector<16x32xf32>
    %c32 = arith.constant 32 : index
    %c0_315 = arith.constant 0 : index
    %c0_316 = arith.constant 0 : index
    %459 = vector.load %arg3[%c32, %c0_315, %c0_316] : memref<35x32x32xf32, #tpu.memory_space<vmem>>, vector<1x32x32xf32>
    %460 = vector.shape_cast %459 : vector<1x32x32xf32> to vector<32x32xf32>
    %cst_317 = arith.constant dense<0.000000e+00> : vector<16x32xf32>
    %461 = tpu.matmul %422, %460, %cst_317 {dimension_numbers = #tpu.dot_dimension_numbers<[1], [0], [0], [1], [0, 0, 1, 1], [], []>} : vector<16x32xf32>, vector<32x32xf32>, vector<16x32xf32> -> vector<16x32xf32>
    %462 = arith.addf %454, %461 : vector<16x32xf32>
    %c32_318 = arith.constant 32 : index
    %c0_319 = arith.constant 0 : index
    %c0_320 = arith.constant 0 : index
    %463 = vector.load %arg4[%c32_318, %c0_319, %c0_320] : memref<35x32x32xf32, #tpu.memory_space<vmem>>, vector<1x32x32xf32>
    %464 = vector.shape_cast %463 : vector<1x32x32xf32> to vector<32x32xf32>
    %cst_321 = arith.constant dense<0.000000e+00> : vector<16x32xf32>
    %465 = tpu.matmul %422, %464, %cst_321 {dimension_numbers = #tpu.dot_dimension_numbers<[1], [0], [0], [1], [0, 0, 1, 1], [], []>} : vector<16x32xf32>, vector<32x32xf32>, vector<16x32xf32> -> vector<16x32xf32>
    %466 = arith.addf %458, %465 : vector<16x32xf32>
    %c33 = arith.constant 33 : index
    %c0_322 = arith.constant 0 : index
    %c0_323 = arith.constant 0 : index
    %467 = vector.load %arg3[%c33, %c0_322, %c0_323] : memref<35x32x32xf32, #tpu.memory_space<vmem>>, vector<1x32x32xf32>
    %468 = vector.shape_cast %467 : vector<1x32x32xf32> to vector<32x32xf32>
    %cst_324 = arith.constant dense<0.000000e+00> : vector<16x32xf32>
    %469 = tpu.matmul %431, %468, %cst_324 {dimension_numbers = #tpu.dot_dimension_numbers<[1], [0], [0], [1], [0, 0, 1, 1], [], []>} : vector<16x32xf32>, vector<32x32xf32>, vector<16x32xf32> -> vector<16x32xf32>
    %470 = arith.addf %462, %469 : vector<16x32xf32>
    %c33_325 = arith.constant 33 : index
    %c0_326 = arith.constant 0 : index
    %c0_327 = arith.constant 0 : index
    %471 = vector.load %arg4[%c33_325, %c0_326, %c0_327] : memref<35x32x32xf32, #tpu.memory_space<vmem>>, vector<1x32x32xf32>
    %472 = vector.shape_cast %471 : vector<1x32x32xf32> to vector<32x32xf32>
    %cst_328 = arith.constant dense<0.000000e+00> : vector<16x32xf32>
    %473 = tpu.matmul %431, %472, %cst_328 {dimension_numbers = #tpu.dot_dimension_numbers<[1], [0], [0], [1], [0, 0, 1, 1], [], []>} : vector<16x32xf32>, vector<32x32xf32>, vector<16x32xf32> -> vector<16x32xf32>
    %474 = arith.addf %466, %473 : vector<16x32xf32>
    %c34 = arith.constant 34 : index
    %c0_329 = arith.constant 0 : index
    %c0_330 = arith.constant 0 : index
    %475 = vector.load %arg3[%c34, %c0_329, %c0_330] : memref<35x32x32xf32, #tpu.memory_space<vmem>>, vector<1x32x32xf32>
    %476 = vector.shape_cast %475 : vector<1x32x32xf32> to vector<32x32xf32>
    %cst_331 = arith.constant dense<0.000000e+00> : vector<16x32xf32>
    %477 = tpu.matmul %434, %476, %cst_331 {dimension_numbers = #tpu.dot_dimension_numbers<[1], [0], [0], [1], [0, 0, 1, 1], [], []>} : vector<16x32xf32>, vector<32x32xf32>, vector<16x32xf32> -> vector<16x32xf32>
    %478 = arith.addf %470, %477 : vector<16x32xf32>
    %c34_332 = arith.constant 34 : index
    %c0_333 = arith.constant 0 : index
    %c0_334 = arith.constant 0 : index
    %479 = vector.load %arg4[%c34_332, %c0_333, %c0_334] : memref<35x32x32xf32, #tpu.memory_space<vmem>>, vector<1x32x32xf32>
    %480 = vector.shape_cast %479 : vector<1x32x32xf32> to vector<32x32xf32>
    %cst_335 = arith.constant dense<0.000000e+00> : vector<16x32xf32>
    %481 = tpu.matmul %434, %480, %cst_335 {dimension_numbers = #tpu.dot_dimension_numbers<[1], [0], [0], [1], [0, 0, 1, 1], [], []>} : vector<16x32xf32>, vector<32x32xf32>, vector<16x32xf32> -> vector<16x32xf32>
    %482 = arith.addf %474, %481 : vector<16x32xf32>
    %483 = arith.negf %482 : vector<16x32xf32>
    %484 = math.exp %483 : vector<16x32xf32>
    %cst_336 = arith.constant 1.000000e+00 : f32
    %485 = vector.broadcast %cst_336 : f32 to vector<16x32xf32>
    %486 = arith.addf %485, %484 : vector<16x32xf32>
    %487 = arith.divf %485, %486 : vector<16x32xf32>
    %488 = arith.mulf %478, %487 : vector<16x32xf32>
    %489 = arith.addf %488, %422 : vector<16x32xf32>
    %cst_337 = arith.constant 0.707106769 : f32
    %490 = vector.broadcast %cst_337 : f32 to vector<16x32xf32>
    %491 = arith.mulf %489, %490 : vector<16x32xf32>
    %c0_338 = arith.constant 0 : index
    %c0_339 = arith.constant 0 : index
    %492 = vector.load %arg7[%c0_338, %c0_339] : memref<16x32xf32, #tpu.memory_space<vmem>>, vector<16x32xf32>
    tpu.vector_store %arg7[%c0_338, %c0_339], %491 {strides = array<i32>} : memref<16x32xf32, #tpu.memory_space<vmem>>, vector<16x32xf32>,
    %493 = arith.addf %491, %0 : vector<16x32xf32>
    %cst_340 = arith.constant 0.707106769 : f32
    %494 = vector.broadcast %cst_340 : f32 to vector<16x32xf32>
    %495 = arith.mulf %493, %494 : vector<16x32xf32>
    %c0_341 = arith.constant 0 : index
    %c0_342 = arith.constant 0 : index
    %496 = vector.load %arg8[%c0_341, %c0_342] : memref<16x32xf32, #tpu.memory_space<vmem>>, vector<16x32xf32>
    tpu.vector_store %arg8[%c0_341, %c0_342], %495 {strides = array<i32>} : memref<16x32xf32, #tpu.memory_space<vmem>>, vector<16x32xf32>,
    return
  }
  func.func @transform_0(%arg0: i32) -> (i32, i32) {
    %c0_i32 = arith.constant 0 : i32
    %c0_i32_0 = arith.constant 0 : i32
    return %arg0, %c0_i32 : i32, i32
  }
  func.func @transform_1(%arg0: i32) -> (i32, i32, i32) {
    %c0_i32 = arith.constant 0 : i32
    %c0_i32_0 = arith.constant 0 : i32
    %c0_i32_1 = arith.constant 0 : i32
    %c0_i32_2 = arith.constant 0 : i32
    return %c0_i32, %c0_i32_0, %c0_i32_1 : i32, i32, i32
  }
  func.func @transform_2(%arg0: i32) -> (i32, i32, i32) {
    %c0_i32 = arith.constant 0 : i32
    %c0_i32_0 = arith.constant 0 : i32
    %c0_i32_1 = arith.constant 0 : i32
    %c0_i32_2 = arith.constant 0 : i32
    return %c0_i32, %c0_i32_0, %c0_i32_1 : i32, i32, i32
  }
  func.func @transform_3(%arg0: i32) -> (i32, i32, i32) {
    %c0_i32 = arith.constant 0 : i32
    %c0_i32_0 = arith.constant 0 : i32
    %c0_i32_1 = arith.constant 0 : i32
    %c0_i32_2 = arith.constant 0 : i32
    return %c0_i32, %c0_i32_0, %c0_i32_1 : i32, i32, i32
  }
  func.func @transform_4(%arg0: i32) -> (i32, i32, i32) {
    %c0_i32 = arith.constant 0 : i32
    %c0_i32_0 = arith.constant 0 : i32
    %c0_i32_1 = arith.constant 0 : i32
    %c0_i32_2 = arith.constant 0 : i32
    return %c0_i32, %c0_i32_0, %c0_i32_1 : i32, i32, i32
  }
  func.func @transform_5(%arg0: i32) -> (i32, i32, i32) {
    %c0_i32 = arith.constant 0 : i32
    %c0_i32_0 = arith.constant 0 : i32
    %c0_i32_1 = arith.constant 0 : i32
    %c0_i32_2 = arith.constant 0 : i32
    return %c0_i32, %c0_i32_0, %c0_i32_1 : i32, i32, i32
  }
  func.func @transform_6(%arg0: i32) -> (i32, i32) {
    %c0_i32 = arith.constant 0 : i32
    %c0_i32_0 = arith.constant 0 : i32
    return %arg0, %c0_i32 : i32, i32
  }
  func.func @transform_7(%arg0: i32) -> (i32, i32) {
    %c0_i32 = arith.constant 0 : i32
    %c0_i32_0 = arith.constant 0 : i32
    return %arg0, %c0_i32 : i32, i32
  }
}

</mosaic_0001>

<llo_original>
// kernel: tpu_custom_call.1
$region0: #{tpu_custom_call.1}
  #allocation0 [shape = 'u32[]', space=smem, size = 0x4, offset = 0x4, fixed_abs, tag = 'smem constant byte address 0x4 - core index']
  #allocation1 [shape = 'u32[144,128]{1,0:T(1,128)}', space=vmem, size = 0x12000, scoped, tag = 'internal scratch']
  %s0 = inlined_call_operand.vmem [shape: f32[16,32], index: 0, kind: input, shape index: {}]
  %s1 = inlined_call_operand.vmem [shape: f32[5,16,1], index: 1, kind: input, shape index: {}]
  %s2 = inlined_call_operand.vmem [shape: f32[35,32,32], index: 2, kind: input, shape index: {}]
  %s3 = inlined_call_operand.vmem [shape: f32[35,32,32], index: 3, kind: input, shape index: {}]
  %s4 = inlined_call_operand.vmem [shape: f32[7,1,32], index: 4, kind: input, shape index: {}]
  %s5 = inlined_call_operand.vmem [shape: f32[7,1,32], index: 5, kind: input, shape index: {}]
  %s6 = inlined_call_operand.hbm [shape: f32[16,32], index: 6, kind: output, shape index: {0}]
  %s7 = inlined_call_operand.hbm [shape: f32[16,32], index: 7, kind: output, shape index: {1}]
  %8 = xla_tuple %s6, %s7
  %s9 = sld [smem:[#allocation0]]
  $region42: #{tpu_custom_call.1} parent=0
    _
  %s11 = ssub.s32 1, %s9
  %s12 = scalar_select 0, %s11, %s9
  $region1: #{tpu_custom_call.1} parent=0
    #allocation2 [shape = 'u8[8192]{0}', space=vmem, size = 0x2000, scoped, tag = 'output window, operand 0, single buffered']
    #allocation3 [shape = 's32[1]{0}', space=sflag, size = 0x4, scoped, tag = 'scoped memory for tpu_custom_call.1']
    #allocation4 [shape = 'u8[8192]{0}', space=vmem, size = 0x2000, scoped, tag = 'output window, operand 1, single buffered']
    #allocation5 [shape = 's32[1]{0}', space=sflag, size = 0x4, scoped, tag = 'scoped memory for tpu_custom_call.1']
    %13 = vsyncpa [#allocation3], 0
    %14 = vsyncpa [#allocation5], 0
    // Predicated region
    $region2: #{tpu_custom_call.1} parent=1 // pred_check
      _
    $region3: #{tpu_custom_call.1} parent=1 // pred_check_branch
      %16 = sbr.rel (0) target = $region5
    $region4: #{tpu_custom_call.1} parent=1 // pred_region
      _
    $region5: #{tpu_custom_call.1} parent=1 // pred_fallthru
      _
    // Predicated region
    $region6: #{tpu_custom_call.1} parent=1 // pred_check
      _
    $region7: #{tpu_custom_call.1} parent=1 // pred_check_branch
      %18 = sbr.rel (0) target = $region9
    $region8: #{tpu_custom_call.1} parent=1 // pred_region
      _
    $region9: #{tpu_custom_call.1} parent=1 // pred_fallthru
      _
    // Predicated region
    $region10: #{tpu_custom_call.1} parent=1 // pred_check
      _
    $region11: #{tpu_custom_call.1} parent=1 // pred_check_branch
      %20 = sbr.rel (0) target = $region13
    $region12: #{tpu_custom_call.1} parent=1 // pred_region
      _
    $region13: #{tpu_custom_call.1} parent=1 // pred_fallthru
      _
    // Predicated region
    $region14: #{tpu_custom_call.1} parent=1 // pred_check
      _
    $region15: #{tpu_custom_call.1} parent=1 // pred_check_branch
      %22 = sbr.rel (0) target = $region17
    $region16: #{tpu_custom_call.1} parent=1 // pred_region
      _
    $region17: #{tpu_custom_call.1} parent=1 // pred_fallthru
      _
    // Predicated region
    $region18: #{tpu_custom_call.1} parent=1 // pred_check
      _
    $region19: #{tpu_custom_call.1} parent=1 // pred_check_branch
      %24 = sbr.rel (0) target = $region21
    $region20: #{tpu_custom_call.1} parent=1 // pred_region
      _
    $region21: #{tpu_custom_call.1} parent=1 // pred_fallthru
      _
    // Predicated region
    $region22: #{tpu_custom_call.1} parent=1 // pred_check
      _
    $region23: #{tpu_custom_call.1} parent=1 // pred_check_branch
      %26 = sbr.rel (0) target = $region25
    $region24: #{tpu_custom_call.1} parent=1 // pred_region
      _
    $region25: #{tpu_custom_call.1} parent=1 // pred_fallthru
      _
    %v27 = vld [vmem:[%s0] sm:$0xff]
    %v28 = vld [vmem:[%s0 + $0x8] sm:$0xff]
    %v29 = vld [vmem:[%s1] sm:$0xff]
    %v30 = vld [vmem:[%s1 + $0x8] sm:$0xff]
    %s31 = scalar_lea.vmem %s1, 16
    %v32 = vld [vmem:[%s31] sm:$0xff]
    %v33 = vld [vmem:[%s31 + $0x8] sm:$0xff]
    %s34 = scalar_lea.vmem %s1, 48
    %v35 = vld [vmem:[%s34] sm:$0xff]
    %v36 = vld [vmem:[%s34 + $0x8] sm:$0xff]
    %s37 = scalar_lea.vmem %s1, 64
    %v38 = vld [vmem:[%s37] sm:$0xff]
    %v39 = vld [vmem:[%s37 + $0x8] sm:$0xff]
    %v40 = vrot.slane %v27, 6
    %v41 = vrot.slane %v28, 6
    %v42 = vlaneseq
    %v43 = vshrl.u32 %v42, 7
    %vm44 = vcmp.lt.s32.totalorder %v43, 2
    %v45 = vsel %vm44, %v40, %v41
    %v46 = vsel %vm44, %v41, %v40
    %48 = vset.pattern.permute.xlu0 0
    %49 = vperm.xlu0 %48, %v29
    %v50 = vpop.permute.xlu0 %49
    %53 = vset.pattern.permute.xlu0 0
    %54 = vperm.xlu0 %53, %v30
    %v55 = vpop.permute.xlu0 %54
    %v57 = vmul.f32 %v46, %v50
    %v58 = vmul.f32 %v45, %v55
    %v59 = vrot.slane %v27, 7
    %v60 = vrot.slane %v28, 7
    %vm61 = vcmp.lt.s32.totalorder %v43, 1
    %v62 = vsel %vm61, %v59, %v60
    %v63 = vsel %vm61, %v60, %v59
    %65 = vset.pattern.permute.xlu0 0
    %66 = vperm.xlu0 %65, %v32
    %v67 = vpop.permute.xlu0 %66
    %70 = vset.pattern.permute.xlu0 0
    %71 = vperm.xlu0 %70, %v33
    %v72 = vpop.permute.xlu0 %71
    %v74 = vmul.f32 %v63, %v67
    %v75 = vmul.f32 %v62, %v72
    %v76 = vrot.slane %v27, 1
    %v77 = vrot.slane %v28, 1
    %vm78 = vcmp.lt.s32.totalorder %v43, 7
    %v79 = vsel %vm78, %v76, %v77
    %v80 = vsel %vm78, %v77, %v76
    %82 = vset.pattern.permute.xlu0 0
    %83 = vperm.xlu0 %82, %v35
    %v84 = vpop.permute.xlu0 %83
    %87 = vset.pattern.permute.xlu0 0
    %88 = vperm.xlu0 %87, %v36
    %v89 = vpop.permute.xlu0 %88
    %v91 = vmul.f32 %v79, %v84
    %v92 = vmul.f32 %v80, %v89
    %v93 = vrot.slane %v27, 2
    %v94 = vrot.slane %v28, 2
    %vm95 = vcmp.lt.s32.totalorder %v43, 6
    %v96 = vsel %vm95, %v93, %v94
    %v97 = vsel %vm95, %v94, %v93
    %99 = vset.pattern.permute.xlu0 0
    %100 = vperm.xlu0 %99, %v38
    %v101 = vpop.permute.xlu0 %100
    %104 = vset.pattern.permute.xlu0 0
    %105 = vperm.xlu0 %104, %v39
    %v106 = vpop.permute.xlu0 %105
    %v108 = vmul.f32 %v96, %v101
    %v109 = vmul.f32 %v97, %v106
    %v110 = vld [vmem:[%s4] sm:$0x1]
    %v112 = vlaneseq
    %v113 = vshrl.u32 %v112, 7
    %v114 = vsub.s32 0, %v113
    %v115 = vrot.slane %v110, %v114
    %v117 = vld [vmem:[%s5] sm:$0x1]
    %v119 = vlaneseq
    %v120 = vshrl.u32 %v119, 7
    %v121 = vsub.s32 0, %v120
    %v122 = vrot.slane %v117, %v121
    %v124 = vld [vmem:[%s2] sm:$0xff]
    %v125 = vld [vmem:[%s2 + $0x8] sm:$0xff]
    %v126 = vld [vmem:[%s2 + $0x10] sm:$0xff]
    %v127 = vld [vmem:[%s2 + $0x18] sm:$0xff]
    %vm128 = vcmask 261120
    %v130 = vsel %vm128, %v57, 0
    %v133 = vsel %vm128, %v58, 0
    %135 = vmatprep.subr.mxu0 0.0
    %136 = vmatpush1.msra.mxu0 %v124
    %137 = vmatprep.subr.mxu0 0.0
    %138 = vmatpush1.msra.mxu0 %v125
    %139 = vmatprep.subr.mxu0 0.0
    %140 = vmatpush1.msra.mxu0 %v126
    %141 = vmatprep.subr.mxu0 0.0
    %142 = vmatpush1.msra.mxu0 %v127
    %143 = vmatprep.subr.mxu0 0.0
    %144 = vmatpush1.msra.mxu0 0.0
    %145 = vmatprep.subr.mxu0 0.0
    %146 = vmatpush1.msra.mxu0 0.0
    %147 = vmatprep.subr.mxu0 0.0
    %148 = vmatpush1.msra.mxu0 0.0
    %149 = vmatprep.subr.mxu0 0.0
    %150 = vmatpush1.msra.mxu0 0.0
    %151 = vmatprep.subr.mxu0 0.0
    %152 = vmatpush1.msra.mxu0 0.0
    %153 = vmatprep.subr.mxu0 0.0
    %154 = vmatpush1.msra.mxu0 0.0
    %155 = vmatprep.subr.mxu0 0.0
    %156 = vmatpush1.msra.mxu0 0.0
    %157 = vmatprep.subr.mxu0 0.0
    %158 = vmatpush1.msra.mxu0 0.0
    %159 = vmatprep.subr.mxu0 0.0
    %160 = vmatpush1.msra.mxu0 0.0
    %161 = vmatprep.subr.mxu0 0.0
    %162 = vmatpush1.msra.mxu0 0.0
    %163 = vmatprep.subr.mxu0 0.0
    %164 = vmatpush1.msra.mxu0 0.0
    %165 = vmatprep.subr.mxu0 0.0
    %166 = vmatpush1.msra.mxu0 0.0
    %167 = vmatprep.subr.mxu0 0.0
    %168 = vmatpush1.msra.mxu0 0.0
    %169 = vmatprep.subr.mxu0 0.0
    %170 = vmatpush1.msra.mxu0 0.0
    %171 = vmatprep.subr.mxu0 0.0
    %172 = vmatpush1.msra.mxu0 0.0
    %173 = vmatprep.subr.mxu0 0.0
    %174 = vmatpush1.msra.mxu0 0.0
    %175 = vmatprep.subr.mxu0 0.0
    %176 = vmatpush1.msra.mxu0 0.0
    %177 = vmatprep.subr.mxu0 0.0
    %178 = vmatpush1.msra.mxu0 0.0
    %179 = vmatprep.subr.mxu0 0.0
    %180 = vmatpush1.msra.mxu0 0.0
    %181 = vmatprep.subr.mxu0 0.0
    %182 = vmatpush1.msra.mxu0 0.0
    %183 = vmatprep.subr.mxu0 0.0
    %184 = vmatpush1.msra.mxu0 0.0
    %185 = vmatprep.subr.mxu0 0.0
    %186 = vmatpush1.msra.mxu0 0.0
    %187 = vmatprep.subr.mxu0 0.0
    %188 = vmatpush1.msra.mxu0 0.0
    %189 = vmatprep.subr.mxu0 0.0
    %190 = vmatpush1.msra.mxu0 0.0
    %191 = vmatprep.subr.mxu0 0.0
    %192 = vmatpush1.msra.mxu0 0.0
    %193 = vmatprep.subr.mxu0 0.0
    %194 = vmatpush1.msra.mxu0 0.0
    %195 = vmatprep.subr.mxu0 0.0
    %196 = vmatpush1.msra.mxu0 0.0
    %197 = vmatprep.subr.mxu0 0.0
    %198 = vmatpush1.msra.mxu0 0.0
    %199 = vmatprep.mubr.f32.mxu0 0.0
    %200 = vmatmul.mubr.f32.gmra.mrb[0].mxu0 %v130
    %v201 = vpop.f32.mrb[0].mxu0
    %v202 = vadd.f32 0.0, %v201
    %v203 = vpop.f32.mrb[0].mxu0
    %204 = vmatprep.mubr.f32.mxu0 0.0
    %205 = vmatmul.mubr.f32.gmra.mrb[0].mxu0 %v133
    %v206 = vpop.f32.mrb[0].mxu0
    %v207 = vadd.f32 0.0, %v206
    %v208 = vpop.f32.mrb[0].mxu0
    %209 = vdwg.mxu0
    %v210 = vadd.f32 %v115, %v202
    %v211 = vadd.f32 %v115, %v207
    %v212 = vld [vmem:[%s3] sm:$0xff]
    %v213 = vld [vmem:[%s3 + $0x8] sm:$0xff]
    %v214 = vld [vmem:[%s3 + $0x10] sm:$0xff]
    %v215 = vld [vmem:[%s3 + $0x18] sm:$0xff]
    %216 = vmatprep.subr.mxu0 0.0
    %217 = vmatpush1.msra.mxu0 %v212
    %218 = vmatprep.subr.mxu0 0.0
    %219 = vmatpush1.msra.mxu0 %v213
    %220 = vmatprep.subr.mxu0 0.0
    %221 = vmatpush1.msra.mxu0 %v214
    %222 = vmatprep.subr.mxu0 0.0
    %223 = vmatpush1.msra.mxu0 %v215
    %224 = vmatprep.subr.mxu0 0.0
    %225 = vmatpush1.msra.mxu0 0.0
    %226 = vmatprep.subr.mxu0 0.0
    %227 = vmatpush1.msra.mxu0 0.0
    %228 = vmatprep.subr.mxu0 0.0
    %229 = vmatpush1.msra.mxu0 0.0
    %230 = vmatprep.subr.mxu0 0.0
    %231 = vmatpush1.msra.mxu0 0.0
    %232 = vmatprep.subr.mxu0 0.0
    %233 = vmatpush1.msra.mxu0 0.0
    %234 = vmatprep.subr.mxu0 0.0
    %235 = vmatpush1.msra.mxu0 0.0
    %236 = vmatprep.subr.mxu0 0.0
    %237 = vmatpush1.msra.mxu0 0.0
    %238 = vmatprep.subr.mxu0 0.0
    %239 = vmatpush1.msra.mxu0 0.0
    %240 = vmatprep.subr.mxu0 0.0
    %241 = vmatpush1.msra.mxu0 0.0
    %242 = vmatprep.subr.mxu0 0.0
    %243 = vmatpush1.msra.mxu0 0.0
    %244 = vmatprep.subr.mxu0 0.0
    %245 = vmatpush1.msra.mxu0 0.0
    %246 = vmatprep.subr.mxu0 0.0
    %247 = vmatpush1.msra.mxu0 0.0
    %248 = vmatprep.subr.mxu0 0.0
    %249 = vmatpush1.msra.mxu0 0.0
    %250 = vmatprep.subr.mxu0 0.0
    %251 = vmatpush1.msra.mxu0 0.0
    %252 = vmatprep.subr.mxu0 0.0
    %253 = vmatpush1.msra.mxu0 0.0
    %254 = vmatprep.subr.mxu0 0.0
    %255 = vmatpush1.msra.mxu0 0.0
    %256 = vmatprep.subr.mxu0 0.0
    %257 = vmatpush1.msra.mxu0 0.0
    %258 = vmatprep.subr.mxu0 0.0
    %259 = vmatpush1.msra.mxu0 0.0
    %260 = vmatprep.subr.mxu0 0.0
    %261 = vmatpush1.msra.mxu0 0.0
    %262 = vmatprep.subr.mxu0 0.0
    %263 = vmatpush1.msra.mxu0 0.0
    %264 = vmatprep.subr.mxu0 0.0
    %265 = vmatpush1.msra.mxu0 0.0
    %266 = vmatprep.subr.mxu0 0.0
    %267 = vmatpush1.msra.mxu0 0.0
    %268 = vmatprep.subr.mxu0 0.0
    %269 = vmatpush1.msra.mxu0 0.0
    %270 = vmatprep.subr.mxu0 0.0
    %271 = vmatpush1.msra.mxu0 0.0
    %272 = vmatprep.subr.mxu0 0.0
    %273 = vmatpush1.msra.mxu0 0.0
    %274 = vmatprep.subr.mxu0 0.0
    %275 = vmatpush1.msra.mxu0 0.0
    %276 = vmatprep.subr.mxu0 0.0
    %277 = vmatpush1.msra.mxu0 0.0
    %278 = vmatprep.subr.mxu0 0.0
    %279 = vmatpush1.msra.mxu0 0.0
    %280 = vmatprep.mubr.f32.mxu0 0.0
    %281 = vmatmul.mubr.f32.gmra.mrb[0].mxu0 %v130
    %v282 = vpop.f32.mrb[0].mxu0
    %v283 = vadd.f32 0.0, %v282
    %v284 = vpop.f32.mrb[0].mxu0
    %285 = vmatprep.mubr.f32.mxu0 0.0
    %286 = vmatmul.mubr.f32.gmra.mrb[0].mxu0 %v133
    %v287 = vpop.f32.mrb[0].mxu0
    %v288 = vadd.f32 0.0, %v287
    %v289 = vpop.f32.mrb[0].mxu0
    %290 = vdwg.mxu0
    %v291 = vadd.f32 %v122, %v283
    %v292 = vadd.f32 %v122, %v288
    %s293 = scalar_lea.vmem %s2, 32
    %v294 = vld [vmem:[%s293] sm:$0xff]
    %v295 = vld [vmem:[%s293 + $0x8] sm:$0xff]
    %v296 = vld [vmem:[%s293 + $0x10] sm:$0xff]
    %v297 = vld [vmem:[%s293 + $0x18] sm:$0xff]
    %v299 = vsel %vm128, %v74, 0
    %v302 = vsel %vm128, %v75, 0
    %304 = vmatprep.subr.mxu0 0.0
    %305 = vmatpush1.msra.mxu0 %v294
    %306 = vmatprep.subr.mxu0 0.0
    %307 = vmatpush1.msra.mxu0 %v295
    %308 = vmatprep.subr.mxu0 0.0
    %309 = vmatpush1.msra.mxu0 %v296
    %310 = vmatprep.subr.mxu0 0.0
    %311 = vmatpush1.msra.mxu0 %v297
    %312 = vmatprep.subr.mxu0 0.0
    %313 = vmatpush1.msra.mxu0 0.0
    %314 = vmatprep.subr.mxu0 0.0
    %315 = vmatpush1.msra.mxu0 0.0
    %316 = vmatprep.subr.mxu0 0.0
    %317 = vmatpush1.msra.mxu0 0.0
    %318 = vmatprep.subr.mxu0 0.0
    %319 = vmatpush1.msra.mxu0 0.0
    %320 = vmatprep.subr.mxu0 0.0
    %321 = vmatpush1.msra.mxu0 0.0
    %322 = vmatprep.subr.mxu0 0.0
    %323 = vmatpush1.msra.mxu0 0.0
    %324 = vmatprep.subr.mxu0 0.0
    %325 = vmatpush1.msra.mxu0 0.0
    %326 = vmatprep.subr.mxu0 0.0
    %327 = vmatpush1.msra.mxu0 0.0
    %328 = vmatprep.subr.mxu0 0.0
    %329 = vmatpush1.msra.mxu0 0.0
    %330 = vmatprep.subr.mxu0 0.0
    %331 = vmatpush1.msra.mxu0 0.0
    %332 = vmatprep.subr.mxu0 0.0
    %333 = vmatpush1.msra.mxu0 0.0
    %334 = vmatprep.subr.mxu0 0.0
    %335 = vmatpush1.msra.mxu0 0.0
    %336 = vmatprep.subr.mxu0 0.0
    %337 = vmatpush1.msra.mxu0 0.0
    %338 = vmatprep.subr.mxu0 0.0
    %339 = vmatpush1.msra.mxu0 0.0
    %340 = vmatprep.subr.mxu0 0.0
    %341 = vmatpush1.msra.mxu0 0.0
    %342 = vmatprep.subr.mxu0 0.0
    %343 = vmatpush1.msra.mxu0 0.0
    %344 = vmatprep.subr.mxu0 0.0
    %345 = vmatpush1.msra.mxu0 0.0
    %346 = vmatprep.subr.mxu0 0.0
    %347 = vmatpush1.msra.mxu0 0.0
    %348 = vmatprep.subr.mxu0 0.0
    %349 = vmatpush1.msra.mxu0 0.0
    %350 = vmatprep.subr.mxu0 0.0
    %351 = vmatpush1.msra.mxu0 0.0
    %352 = vmatprep.subr.mxu0 0.0
    %353 = vmatpush1.msra.mxu0 0.0
    %354 = vmatprep.subr.mxu0 0.0
    %355 = vmatpush1.msra.mxu0 0.0
    %356 = vmatprep.subr.mxu0 0.0
    %357 = vmatpush1.msra.mxu0 0.0
    %358 = vmatprep.subr.mxu0 0.0
    %359 = vmatpush1.msra.mxu0 0.0
    %360 = vmatprep.subr.mxu0 0.0
    %361 = vmatpush1.msra.mxu0 0.0
    %362 = vmatprep.subr.mxu0 0.0
    %363 = vmatpush1.msra.mxu0 0.0
    %364 = vmatprep.subr.mxu0 0.0
    %365 = vmatpush1.msra.mxu0 0.0
    %366 = vmatprep.subr.mxu0 0.0
    %367 = vmatpush1.msra.mxu0 0.0
    %368 = vmatprep.mubr.f32.mxu0 0.0
    %369 = vmatmul.mubr.f32.gmra.mrb[0].mxu0 %v299
    %v370 = vpop.f32.mrb[0].mxu0
    %v371 = vadd.f32 0.0, %v370
    %v372 = vpop.f32.mrb[0].mxu0
    %373 = vmatprep.mubr.f32.mxu0 0.0
    %374 = vmatmul.mubr.f32.gmra.mrb[0].mxu0 %v302
    %v375 = vpop.f32.mrb[0].mxu0
    %v376 = vadd.f32 0.0, %v375
    %v377 = vpop.f32.mrb[0].mxu0
    %378 = vdwg.mxu0
    %v379 = vadd.f32 %v210, %v371
    %v380 = vadd.f32 %v211, %v376
    %s381 = scalar_lea.vmem %s3, 32
    %v382 = vld [vmem:[%s381] sm:$0xff]
    %v383 = vld [vmem:[%s381 + $0x8] sm:$0xff]
    %v384 = vld [vmem:[%s381 + $0x10] sm:$0xff]
    %v385 = vld [vmem:[%s381 + $0x18] sm:$0xff]
    %386 = vmatprep.subr.mxu0 0.0
    %387 = vmatpush1.msra.mxu0 %v382
    %388 = vmatprep.subr.mxu0 0.0
    %389 = vmatpush1.msra.mxu0 %v383
    %390 = vmatprep.subr.mxu0 0.0
    %391 = vmatpush1.msra.mxu0 %v384
    %392 = vmatprep.subr.mxu0 0.0
    %393 = vmatpush1.msra.mxu0 %v385
    %394 = vmatprep.subr.mxu0 0.0
    %395 = vmatpush1.msra.mxu0 0.0
    %396 = vmatprep.subr.mxu0 0.0
    %397 = vmatpush1.msra.mxu0 0.0
    %398 = vmatprep.subr.mxu0 0.0
    %399 = vmatpush1.msra.mxu0 0.0
    %400 = vmatprep.subr.mxu0 0.0
    %401 = vmatpush1.msra.mxu0 0.0
    %402 = vmatprep.subr.mxu0 0.0
    %403 = vmatpush1.msra.mxu0 0.0
    %404 = vmatprep.subr.mxu0 0.0
    %405 = vmatpush1.msra.mxu0 0.0
    %406 = vmatprep.subr.mxu0 0.0
    %407 = vmatpush1.msra.mxu0 0.0
    %408 = vmatprep.subr.mxu0 0.0
    %409 = vmatpush1.msra.mxu0 0.0
    %410 = vmatprep.subr.mxu0 0.0
    %411 = vmatpush1.msra.mxu0 0.0
    %412 = vmatprep.subr.mxu0 0.0
    %413 = vmatpush1.msra.mxu0 0.0
    %414 = vmatprep.subr.mxu0 0.0
    %415 = vmatpush1.msra.mxu0 0.0
    %416 = vmatprep.subr.mxu0 0.0
    %417 = vmatpush1.msra.mxu0 0.0
    %418 = vmatprep.subr.mxu0 0.0
    %419 = vmatpush1.msra.mxu0 0.0
    %420 = vmatprep.subr.mxu0 0.0
    %421 = vmatpush1.msra.mxu0 0.0
    %422 = vmatprep.subr.mxu0 0.0
    %423 = vmatpush1.msra.mxu0 0.0
    %424 = vmatprep.subr.mxu0 0.0
    %425 = vmatpush1.msra.mxu0 0.0
    %426 = vmatprep.subr.mxu0 0.0
    %427 = vmatpush1.msra.mxu0 0.0
    %428 = vmatprep.subr.mxu0 0.0
    %429 = vmatpush1.msra.mxu0 0.0
    %430 = vmatprep.subr.mxu0 0.0
    %431 = vmatpush1.msra.mxu0 0.0
    %432 = vmatprep.subr.mxu0 0.0
    %433 = vmatpush1.msra.mxu0 0.0
    %434 = vmatprep.subr.mxu0 0.0
    %435 = vmatpush1.msra.mxu0 0.0
    %436 = vmatprep.subr.mxu0 0.0
    %437 = vmatpush1.msra.mxu0 0.0
    %438 = vmatprep.subr.mxu0 0.0
    %439 = vmatpush1.msra.mxu0 0.0
    %440 = vmatprep.subr.mxu0 0.0
    %441 = vmatpush1.msra.mxu0 0.0
    %442 = vmatprep.subr.mxu0 0.0
    %443 = vmatpush1.msra.mxu0 0.0
    %444 = vmatprep.subr.mxu0 0.0
    %445 = vmatpush1.msra.mxu0 0.0
    %446 = vmatprep.subr.mxu0 0.0
    %447 = vmatpush1.msra.mxu0 0.0
    %448 = vmatprep.subr.mxu0 0.0
    %449 = vmatpush1.msra.mxu0 0.0
    %450 = vmatprep.mubr.f32.mxu0 0.0
    %451 = vmatmul.mubr.f32.gmra.mrb[0].mxu0 %v299
    %v452 = vpop.f32.mrb[0].mxu0
    %v453 = vadd.f32 0.0, %v452
    %v454 = vpop.f32.mrb[0].mxu0
    %455 = vmatprep.mubr.f32.mxu0 0.0
    %456 = vmatmul.mubr.f32.gmra.mrb[0].mxu0 %v302
    %v457 = vpop.f32.mrb[0].mxu0
    %v458 = vadd.f32 0.0, %v457
    %v459 = vpop.f32.mrb[0].mxu0
    %460 = vdwg.mxu0
    %v461 = vadd.f32 %v291, %v453
    %v462 = vadd.f32 %v292, %v458
    %s463 = scalar_lea.vmem %s2, 64
    %v464 = vld [vmem:[%s463] sm:$0xff]
    %v465 = vld [vmem:[%s463 + $0x8] sm:$0xff]
    %v466 = vld [vmem:[%s463 + $0x10] sm:$0xff]
    %v467 = vld [vmem:[%s463 + $0x18] sm:$0xff]
    %v469 = vsel %vm128, %v27, 0
    %v472 = vsel %vm128, %v28, 0
    %474 = vmatprep.subr.mxu0 0.0
    %475 = vmatpush1.msra.mxu0 %v464
    %476 = vmatprep.subr.mxu0 0.0
    %477 = vmatpush1.msra.mxu0 %v465
    %478 = vmatprep.subr.mxu0 0.0
    %479 = vmatpush1.msra.mxu0 %v466
    %480 = vmatprep.subr.mxu0 0.0
    %481 = vmatpush1.msra.mxu0 %v467
    %482 = vmatprep.subr.mxu0 0.0
    %483 = vmatpush1.msra.mxu0 0.0
    %484 = vmatprep.subr.mxu0 0.0
    %485 = vmatpush1.msra.mxu0 0.0
    %486 = vmatprep.subr.mxu0 0.0
    %487 = vmatpush1.msra.mxu0 0.0
    %488 = vmatprep.subr.mxu0 0.0
    %489 = vmatpush1.msra.mxu0 0.0
    %490 = vmatprep.subr.mxu0 0.0
    %491 = vmatpush1.msra.mxu0 0.0
    %492 = vmatprep.subr.mxu0 0.0
    %493 = vmatpush1.msra.mxu0 0.0
    %494 = vmatprep.subr.mxu0 0.0
    %495 = vmatpush1.msra.mxu0 0.0
    %496 = vmatprep.subr.mxu0 0.0
    %497 = vmatpush1.msra.mxu0 0.0
    %498 = vmatprep.subr.mxu0 0.0
    %499 = vmatpush1.msra.mxu0 0.0
    %500 = vmatprep.subr.mxu0 0.0
    %501 = vmatpush1.msra.mxu0 0.0
    %502 = vmatprep.subr.mxu0 0.0
    %503 = vmatpush1.msra.mxu0 0.0
    %504 = vmatprep.subr.mxu0 0.0
    %505 = vmatpush1.msra.mxu0 0.0
    %506 = vmatprep.subr.mxu0 0.0
    %507 = vmatpush1.msra.mxu0 0.0
    %508 = vmatprep.subr.mxu0 0.0
    %509 = vmatpush1.msra.mxu0 0.0
    %510 = vmatprep.subr.mxu0 0.0
    %511 = vmatpush1.msra.mxu0 0.0
    %512 = vmatprep.subr.mxu0 0.0
    %513 = vmatpush1.msra.mxu0 0.0
    %514 = vmatprep.subr.mxu0 0.0
    %515 = vmatpush1.msra.mxu0 0.0
    %516 = vmatprep.subr.mxu0 0.0
    %517 = vmatpush1.msra.mxu0 0.0
    %518 = vmatprep.subr.mxu0 0.0
    %519 = vmatpush1.msra.mxu0 0.0
    %520 = vmatprep.subr.mxu0 0.0
    %521 = vmatpush1.msra.mxu0 0.0
    %522 = vmatprep.subr.mxu0 0.0
    %523 = vmatpush1.msra.mxu0 0.0
    %524 = vmatprep.subr.mxu0 0.0
    %525 = vmatpush1.msra.mxu0 0.0
    %526 = vmatprep.subr.mxu0 0.0
    %527 = vmatpush1.msra.mxu0 0.0
    %528 = vmatprep.subr.mxu0 0.0
    %529 = vmatpush1.msra.mxu0 0.0
    %530 = vmatprep.subr.mxu0 0.0
    %531 = vmatpush1.msra.mxu0 0.0
    %532 = vmatprep.subr.mxu0 0.0
    %533 = vmatpush1.msra.mxu0 0.0
    %534 = vmatprep.subr.mxu0 0.0
    %535 = vmatpush1.msra.mxu0 0.0
    %536 = vmatprep.subr.mxu0 0.0
    %537 = vmatpush1.msra.mxu0 0.0
    %538 = vmatprep.mubr.f32.mxu0 0.0
    %539 = vmatmul.mubr.f32.gmra.mrb[0].mxu0 %v469
    %v540 = vpop.f32.mrb[0].mxu0
    %v541 = vadd.f32 0.0, %v540
    %v542 = vpop.f32.mrb[0].mxu0
    %543 = vmatprep.mubr.f32.mxu0 0.0
    %544 = vmatmul.mubr.f32.gmra.mrb[0].mxu0 %v472
    %v545 = vpop.f32.mrb[0].mxu0
    %v546 = vadd.f32 0.0, %v545
    %v547 = vpop.f32.mrb[0].mxu0
    %548 = vdwg.mxu0
    %v549 = vadd.f32 %v379, %v541
    %v550 = vadd.f32 %v380, %v546
    %s551 = scalar_lea.vmem %s3, 64
    %v552 = vld [vmem:[%s551] sm:$0xff]
    %v553 = vld [vmem:[%s551 + $0x8] sm:$0xff]
    %v554 = vld [vmem:[%s551 + $0x10] sm:$0xff]
    %v555 = vld [vmem:[%s551 + $0x18] sm:$0xff]
    %556 = vmatprep.subr.mxu0 0.0
    %557 = vmatpush1.msra.mxu0 %v552
    %558 = vmatprep.subr.mxu0 0.0
    %559 = vmatpush1.msra.mxu0 %v553
    %560 = vmatprep.subr.mxu0 0.0
    %561 = vmatpush1.msra.mxu0 %v554
    %562 = vmatprep.subr.mxu0 0.0
    %563 = vmatpush1.msra.mxu0 %v555
    %564 = vmatprep.subr.mxu0 0.0
    %565 = vmatpush1.msra.mxu0 0.0
    %566 = vmatprep.subr.mxu0 0.0
    %567 = vmatpush1.msra.mxu0 0.0
    %568 = vmatprep.subr.mxu0 0.0
    %569 = vmatpush1.msra.mxu0 0.0
    %570 = vmatprep.subr.mxu0 0.0
    %571 = vmatpush1.msra.mxu0 0.0
    %572 = vmatprep.subr.mxu0 0.0
    %573 = vmatpush1.msra.mxu0 0.0
    %574 = vmatprep.subr.mxu0 0.0
    %575 = vmatpush1.msra.mxu0 0.0
    %576 = vmatprep.subr.mxu0 0.0
    %577 = vmatpush1.msra.mxu0 0.0
    %578 = vmatprep.subr.mxu0 0.0
    %579 = vmatpush1.msra.mxu0 0.0
    %580 = vmatprep.subr.mxu0 0.0
    %581 = vmatpush1.msra.mxu0 0.0
    %582 = vmatprep.subr.mxu0 0.0
    %583 = vmatpush1.msra.mxu0 0.0
    %584 = vmatprep.subr.mxu0 0.0
    %585 = vmatpush1.msra.mxu0 0.0
    %586 = vmatprep.subr.mxu0 0.0
    %587 = vmatpush1.msra.mxu0 0.0
    %588 = vmatprep.subr.mxu0 0.0
    %589 = vmatpush1.msra.mxu0 0.0
    %590 = vmatprep.subr.mxu0 0.0
    %591 = vmatpush1.msra.mxu0 0.0
    %592 = vmatprep.subr.mxu0 0.0
    %593 = vmatpush1.msra.mxu0 0.0
    %594 = vmatprep.subr.mxu0 0.0
    %595 = vmatpush1.msra.mxu0 0.0
    %596 = vmatprep.subr.mxu0 0.0
    %597 = vmatpush1.msra.mxu0 0.0
    %598 = vmatprep.subr.mxu0 0.0
    %599 = vmatpush1.msra.mxu0 0.0
    %600 = vmatprep.subr.mxu0 0.0
    %601 = vmatpush1.msra.mxu0 0.0
    %602 = vmatprep.subr.mxu0 0.0
    %603 = vmatpush1.msra.mxu0 0.0
    %604 = vmatprep.subr.mxu0 0.0
    %605 = vmatpush1.msra.mxu0 0.0
    %606 = vmatprep.subr.mxu0 0.0
    %607 = vmatpush1.msra.mxu0 0.0
    %608 = vmatprep.subr.mxu0 0.0
    %609 = vmatpush1.msra.mxu0 0.0
    %610 = vmatprep.subr.mxu0 0.0
    %611 = vmatpush1.msra.mxu0 0.0
    %612 = vmatprep.subr.mxu0 0.0
    %613 = vmatpush1.msra.mxu0 0.0
    %614 = vmatprep.subr.mxu0 0.0
    %615 = vmatpush1.msra.mxu0 0.0
    %616 = vmatprep.subr.mxu0 0.0
    %617 = vmatpush1.msra.mxu0 0.0
    %618 = vmatprep.subr.mxu0 0.0
    %619 = vmatpush1.msra.mxu0 0.0
    %620 = vmatprep.mubr.f32.mxu0 0.0
    %621 = vmatmul.mubr.f32.gmra.mrb[0].mxu0 %v469
    %v622 = vpop.f32.mrb[0].mxu0
    %v623 = vadd.f32 0.0, %v622
    %v624 = vpop.f32.mrb[0].mxu0
    %625 = vmatprep.mubr.f32.mxu0 0.0
    %626 = vmatmul.mubr.f32.gmra.mrb[0].mxu0 %v472
    %v627 = vpop.f32.mrb[0].mxu0
    %v628 = vadd.f32 0.0, %v627
    %v629 = vpop.f32.mrb[0].mxu0
    %630 = vdwg.mxu0
    %v631 = vadd.f32 %v461, %v623
    %v632 = vadd.f32 %v462, %v628
    %s633 = scalar_lea.vmem %s2, 96
    %v634 = vld [vmem:[%s633] sm:$0xff]
    %v635 = vld [vmem:[%s633 + $0x8] sm:$0xff]
    %v636 = vld [vmem:[%s633 + $0x10] sm:$0xff]
    %v637 = vld [vmem:[%s633 + $0x18] sm:$0xff]
    %v639 = vsel %vm128, %v91, 0
    %v642 = vsel %vm128, %v92, 0
    %644 = vmatprep.subr.mxu0 0.0
    %645 = vmatpush1.msra.mxu0 %v634
    %646 = vmatprep.subr.mxu0 0.0
    %647 = vmatpush1.msra.mxu0 %v635
    %648 = vmatprep.subr.mxu0 0.0
    %649 = vmatpush1.msra.mxu0 %v636
    %650 = vmatprep.subr.mxu0 0.0
    %651 = vmatpush1.msra.mxu0 %v637
    %652 = vmatprep.subr.mxu0 0.0
    %653 = vmatpush1.msra.mxu0 0.0
    %654 = vmatprep.subr.mxu0 0.0
    %655 = vmatpush1.msra.mxu0 0.0
    %656 = vmatprep.subr.mxu0 0.0
    %657 = vmatpush1.msra.mxu0 0.0
    %658 = vmatprep.subr.mxu0 0.0
    %659 = vmatpush1.msra.mxu0 0.0
    %660 = vmatprep.subr.mxu0 0.0
    %661 = vmatpush1.msra.mxu0 0.0
    %662 = vmatprep.subr.mxu0 0.0
    %663 = vmatpush1.msra.mxu0 0.0
    %664 = vmatprep.subr.mxu0 0.0
    %665 = vmatpush1.msra.mxu0 0.0
    %666 = vmatprep.subr.mxu0 0.0
    %667 = vmatpush1.msra.mxu0 0.0
    %668 = vmatprep.subr.mxu0 0.0
    %669 = vmatpush1.msra.mxu0 0.0
    %670 = vmatprep.subr.mxu0 0.0
    %671 = vmatpush1.msra.mxu0 0.0
    %672 = vmatprep.subr.mxu0 0.0
    %673 = vmatpush1.msra.mxu0 0.0
    %674 = vmatprep.subr.mxu0 0.0
    %675 = vmatpush1.msra.mxu0 0.0
    %676 = vmatprep.subr.mxu0 0.0
    %677 = vmatpush1.msra.mxu0 0.0
    %678 = vmatprep.subr.mxu0 0.0
    %679 = vmatpush1.msra.mxu0 0.0
    %680 = vmatprep.subr.mxu0 0.0
    %681 = vmatpush1.msra.mxu0 0.0
    %682 = vmatprep.subr.mxu0 0.0
    %683 = vmatpush1.msra.mxu0 0.0
    %684 = vmatprep.subr.mxu0 0.0
    %685 = vmatpush1.msra.mxu0 0.0
    %686 = vmatprep.subr.mxu0 0.0
    %687 = vmatpush1.msra.mxu0 0.0
    %688 = vmatprep.subr.mxu0 0.0
    %689 = vmatpush1.msra.mxu0 0.0
    %690 = vmatprep.subr.mxu0 0.0
    %691 = vmatpush1.msra.mxu0 0.0
    %692 = vmatprep.subr.mxu0 0.0
    %693 = vmatpush1.msra.mxu0 0.0
    %694 = vmatprep.subr.mxu0 0.0
    %695 = vmatpush1.msra.mxu0 0.0
    %696 = vmatprep.subr.mxu0 0.0
    %697 = vmatpush1.msra.mxu0 0.0
    %698 = vmatprep.subr.mxu0 0.0
    %699 = vmatpush1.msra.mxu0 0.0
    %700 = vmatprep.subr.mxu0 0.0
    %701 = vmatpush1.msra.mxu0 0.0
    %702 = vmatprep.subr.mxu0 0.0
    %703 = vmatpush1.msra.mxu0 0.0
    %704 = vmatprep.subr.mxu0 0.0
    %705 = vmatpush1.msra.mxu0 0.0
    %706 = vmatprep.subr.mxu0 0.0
    %707 = vmatpush1.msra.mxu0 0.0
    %708 = vmatprep.mubr.f32.mxu0 0.0
    %709 = vmatmul.mubr.f32.gmra.mrb[0].mxu0 %v639
    %v710 = vpop.f32.mrb[0].mxu0
    %v711 = vadd.f32 0.0, %v710
    %v712 = vpop.f32.mrb[0].mxu0
    %713 = vmatprep.mubr.f32.mxu0 0.0
    %714 = vmatmul.mubr.f32.gmra.mrb[0].mxu0 %v642
    %v715 = vpop.f32.mrb[0].mxu0
    %v716 = vadd.f32 0.0, %v715
    %v717 = vpop.f32.mrb[0].mxu0
    %718 = vdwg.mxu0
    %v719 = vadd.f32 %v549, %v711
    %v720 = vadd.f32 %v550, %v716
    %s721 = scalar_lea.vmem %s3, 96
    %v722 = vld [vmem:[%s721] sm:$0xff]
    %v723 = vld [vmem:[%s721 + $0x8] sm:$0xff]
    %v724 = vld [vmem:[%s721 + $0x10] sm:$0xff]
    %v725 = vld [vmem:[%s721 + $0x18] sm:$0xff]
    %726 = vmatprep.subr.mxu0 0.0
    %727 = vmatpush1.msra.mxu0 %v722
    %728 = vmatprep.subr.mxu0 0.0
    %729 = vmatpush1.msra.mxu0 %v723
    %730 = vmatprep.subr.mxu0 0.0
    %731 = vmatpush1.msra.mxu0 %v724
    %732 = vmatprep.subr.mxu0 0.0
    %733 = vmatpush1.msra.mxu0 %v725
    %734 = vmatprep.subr.mxu0 0.0
    %735 = vmatpush1.msra.mxu0 0.0
    %736 = vmatprep.subr.mxu0 0.0
    %737 = vmatpush1.msra.mxu0 0.0
    %738 = vmatprep.subr.mxu0 0.0
    %739 = vmatpush1.msra.mxu0 0.0
    %740 = vmatprep.subr.mxu0 0.0
    %741 = vmatpush1.msra.mxu0 0.0
    %742 = vmatprep.subr.mxu0 0.0
    %743 = vmatpush1.msra.mxu0 0.0
    %744 = vmatprep.subr.mxu0 0.0
    %745 = vmatpush1.msra.mxu0 0.0
    %746 = vmatprep.subr.mxu0 0.0
    %747 = vmatpush1.msra.mxu0 0.0
    %748 = vmatprep.subr.mxu0 0.0
    %749 = vmatpush1.msra.mxu0 0.0
    %750 = vmatprep.subr.mxu0 0.0
    %751 = vmatpush1.msra.mxu0 0.0
    %752 = vmatprep.subr.mxu0 0.0
    %753 = vmatpush1.msra.mxu0 0.0
    %754 = vmatprep.subr.mxu0 0.0
    %755 = vmatpush1.msra.mxu0 0.0
    %756 = vmatprep.subr.mxu0 0.0
    %757 = vmatpush1.msra.mxu0 0.0
    %758 = vmatprep.subr.mxu0 0.0
    %759 = vmatpush1.msra.mxu0 0.0
    %760 = vmatprep.subr.mxu0 0.0
    %761 = vmatpush1.msra.mxu0 0.0
    %762 = vmatprep.subr.mxu0 0.0
    %763 = vmatpush1.msra.mxu0 0.0
    %764 = vmatprep.subr.mxu0 0.0
    %765 = vmatpush1.msra.mxu0 0.0
    %766 = vmatprep.subr.mxu0 0.0
    %767 = vmatpush1.msra.mxu0 0.0
    %768 = vmatprep.subr.mxu0 0.0
    %769 = vmatpush1.msra.mxu0 0.0
    %770 = vmatprep.subr.mxu0 0.0
    %771 = vmatpush1.msra.mxu0 0.0
    %772 = vmatprep.subr.mxu0 0.0
    %773 = vmatpush1.msra.mxu0 0.0
    %774 = vmatprep.subr.mxu0 0.0
    %775 = vmatpush1.msra.mxu0 0.0
    %776 = vmatprep.subr.mxu0 0.0
    %777 = vmatpush1.msra.mxu0 0.0
    %778 = vmatprep.subr.mxu0 0.0
    %779 = vmatpush1.msra.mxu0 0.0
    %780 = vmatprep.subr.mxu0 0.0
    %781 = vmatpush1.msra.mxu0 0.0
    %782 = vmatprep.subr.mxu0 0.0
    %783 = vmatpush1.msra.mxu0 0.0
    %784 = vmatprep.subr.mxu0 0.0
    %785 = vmatpush1.msra.mxu0 0.0
    %786 = vmatprep.subr.mxu0 0.0
    %787 = vmatpush1.msra.mxu0 0.0
    %788 = vmatprep.subr.mxu0 0.0
    %789 = vmatpush1.msra.mxu0 0.0
    %790 = vmatprep.mubr.f32.mxu0 0.0
    %791 = vmatmul.mubr.f32.gmra.mrb[0].mxu0 %v639
    %v792 = vpop.f32.mrb[0].mxu0
    %v793 = vadd.f32 0.0, %v792
    %v794 = vpop.f32.mrb[0].mxu0
    %795 = vmatprep.mubr.f32.mxu0 0.0
    %796 = vmatmul.mubr.f32.gmra.mrb[0].mxu0 %v642
    %v797 = vpop.f32.mrb[0].mxu0
    %v798 = vadd.f32 0.0, %v797
    %v799 = vpop.f32.mrb[0].mxu0
    %800 = vdwg.mxu0
    %v801 = vadd.f32 %v631, %v793
    %v802 = vadd.f32 %v632, %v798
    %s803 = scalar_lea.vmem %s2, 128
    %v804 = vld [vmem:[%s803] sm:$0xff]
    %v805 = vld [vmem:[%s803 + $0x8] sm:$0xff]
    %v806 = vld [vmem:[%s803 + $0x10] sm:$0xff]
    %v807 = vld [vmem:[%s803 + $0x18] sm:$0xff]
    %v809 = vsel %vm128, %v108, 0
    %v812 = vsel %vm128, %v109, 0
    %814 = vmatprep.subr.mxu0 0.0
    %815 = vmatpush1.msra.mxu0 %v804
    %816 = vmatprep.subr.mxu0 0.0
    %817 = vmatpush1.msra.mxu0 %v805
    %818 = vmatprep.subr.mxu0 0.0
    %819 = vmatpush1.msra.mxu0 %v806
    %820 = vmatprep.subr.mxu0 0.0
    %821 = vmatpush1.msra.mxu0 %v807
    %822 = vmatprep.subr.mxu0 0.0
    %823 = vmatpush1.msra.mxu0 0.0
    %824 = vmatprep.subr.mxu0 0.0
    %825 = vmatpush1.msra.mxu0 0.0
    %826 = vmatprep.subr.mxu0 0.0
    %827 = vmatpush1.msra.mxu0 0.0
    %828 = vmatprep.subr.mxu0 0.0
    %829 = vmatpush1.msra.mxu0 0.0
    %830 = vmatprep.subr.mxu0 0.0
    %831 = vmatpush1.msra.mxu0 0.0
    %832 = vmatprep.subr.mxu0 0.0
    %833 = vmatpush1.msra.mxu0 0.0
    %834 = vmatprep.subr.mxu0 0.0
    %835 = vmatpush1.msra.mxu0 0.0
    %836 = vmatprep.subr.mxu0 0.0
    %837 = vmatpush1.msra.mxu0 0.0
    %838 = vmatprep.subr.mxu0 0.0
    %839 = vmatpush1.msra.mxu0 0.0
    %840 = vmatprep.subr.mxu0 0.0
    %841 = vmatpush1.msra.mxu0 0.0
    %842 = vmatprep.subr.mxu0 0.0
    %843 = vmatpush1.msra.mxu0 0.0
    %844 = vmatprep.subr.mxu0 0.0
    %845 = vmatpush1.msra.mxu0 0.0
    %846 = vmatprep.subr.mxu0 0.0
    %847 = vmatpush1.msra.mxu0 0.0
    %848 = vmatprep.subr.mxu0 0.0
    %849 = vmatpush1.msra.mxu0 0.0
    %850 = vmatprep.subr.mxu0 0.0
    %851 = vmatpush1.msra.mxu0 0.0
    %852 = vmatprep.subr.mxu0 0.0
    %853 = vmatpush1.msra.mxu0 0.0
    %854 = vmatprep.subr.mxu0 0.0
    %855 = vmatpush1.msra.mxu0 0.0
    %856 = vmatprep.subr.mxu0 0.0
    %857 = vmatpush1.msra.mxu0 0.0
    %858 = vmatprep.subr.mxu0 0.0
    %859 = vmatpush1.msra.mxu0 0.0
    %860 = vmatprep.subr.mxu0 0.0
    %861 = vmatpush1.msra.mxu0 0.0
    %862 = vmatprep.subr.mxu0 0.0
    %863 = vmatpush1.msra.mxu0 0.0
    %864 = vmatprep.subr.mxu0 0.0
    %865 = vmatpush1.msra.mxu0 0.0
    %866 = vmatprep.subr.mxu0 0.0
    %867 = vmatpush1.msra.mxu0 0.0
    %868 = vmatprep.subr.mxu0 0.0
    %869 = vmatpush1.msra.mxu0 0.0
    %870 = vmatprep.subr.mxu0 0.0
    %871 = vmatpush1.msra.mxu0 0.0
    %872 = vmatprep.subr.mxu0 0.0
    %873 = vmatpush1.msra.mxu0 0.0
    %874 = vmatprep.subr.mxu0 0.0
    %875 = vmatpush1.msra.mxu0 0.0
    %876 = vmatprep.subr.mxu0 0.0
    %877 = vmatpush1.msra.mxu0 0.0
    %878 = vmatprep.mubr.f32.mxu0 0.0
    %879 = vmatmul.mubr.f32.gmra.mrb[0].mxu0 %v809
    %v880 = vpop.f32.mrb[0].mxu0
    %v881 = vadd.f32 0.0, %v880
    %v882 = vpop.f32.mrb[0].mxu0
    %883 = vmatprep.mubr.f32.mxu0 0.0
    %884 = vmatmul.mubr.f32.gmra.mrb[0].mxu0 %v812
    %v885 = vpop.f32.mrb[0].mxu0
    %v886 = vadd.f32 0.0, %v885
    %v887 = vpop.f32.mrb[0].mxu0
    %888 = vdwg.mxu0
    %v889 = vadd.f32 %v719, %v881
    %v890 = vadd.f32 %v720, %v886
    %s891 = scalar_lea.vmem %s3, 128
    %v892 = vld [vmem:[%s891] sm:$0xff]
    %v893 = vld [vmem:[%s891 + $0x8] sm:$0xff]
    %v894 = vld [vmem:[%s891 + $0x10] sm:$0xff]
    %v895 = vld [vmem:[%s891 + $0x18] sm:$0xff]
    %896 = vmatprep.subr.mxu0 0.0
    %897 = vmatpush1.msra.mxu0 %v892
    %898 = vmatprep.subr.mxu0 0.0
    %899 = vmatpush1.msra.mxu0 %v893
    %900 = vmatprep.subr.mxu0 0.0
    %901 = vmatpush1.msra.mxu0 %v894
    %902 = vmatprep.subr.mxu0 0.0
    %903 = vmatpush1.msra.mxu0 %v895
    %904 = vmatprep.subr.mxu0 0.0
    %905 = vmatpush1.msra.mxu0 0.0
    %906 = vmatprep.subr.mxu0 0.0
    %907 = vmatpush1.msra.mxu0 0.0
    %908 = vmatprep.subr.mxu0 0.0
    %909 = vmatpush1.msra.mxu0 0.0
    %910 = vmatprep.subr.mxu0 0.0
    %911 = vmatpush1.msra.mxu0 0.0
    %912 = vmatprep.subr.mxu0 0.0
    %913 = vmatpush1.msra.mxu0 0.0
    %914 = vmatprep.subr.mxu0 0.0
    %915 = vmatpush1.msra.mxu0 0.0
    %916 = vmatprep.subr.mxu0 0.0
    %917 = vmatpush1.msra.mxu0 0.0
    %918 = vmatprep.subr.mxu0 0.0
    %919 = vmatpush1.msra.mxu0 0.0
    %920 = vmatprep.subr.mxu0 0.0
    %921 = vmatpush1.msra.mxu0 0.0
    %922 = vmatprep.subr.mxu0 0.0
    %923 = vmatpush1.msra.mxu0 0.0
    %924 = vmatprep.subr.mxu0 0.0
    %925 = vmatpush1.msra.mxu0 0.0
    %926 = vmatprep.subr.mxu0 0.0
    %927 = vmatpush1.msra.mxu0 0.0
    %928 = vmatprep.subr.mxu0 0.0
    %929 = vmatpush1.msra.mxu0 0.0
    %930 = vmatprep.subr.mxu0 0.0
    %931 = vmatpush1.msra.mxu0 0.0
    %932 = vmatprep.subr.mxu0 0.0
    %933 = vmatpush1.msra.mxu0 0.0
    %934 = vmatprep.subr.mxu0 0.0
    %935 = vmatpush1.msra.mxu0 0.0
    %936 = vmatprep.subr.mxu0 0.0
    %937 = vmatpush1.msra.mxu0 0.0
    %938 = vmatprep.subr.mxu0 0.0
    %939 = vmatpush1.msra.mxu0 0.0
    %940 = vmatprep.subr.mxu0 0.0
    %941 = vmatpush1.msra.mxu0 0.0
    %942 = vmatprep.subr.mxu0 0.0
    %943 = vmatpush1.msra.mxu0 0.0
    %944 = vmatprep.subr.mxu0 0.0
    %945 = vmatpush1.msra.mxu0 0.0
    %946 = vmatprep.subr.mxu0 0.0
    %947 = vmatpush1.msra.mxu0 0.0
    %948 = vmatprep.subr.mxu0 0.0
    %949 = vmatpush1.msra.mxu0 0.0
    %950 = vmatprep.subr.mxu0 0.0
    %951 = vmatpush1.msra.mxu0 0.0
    %952 = vmatprep.subr.mxu0 0.0
    %953 = vmatpush1.msra.mxu0 0.0
    %954 = vmatprep.subr.mxu0 0.0
    %955 = vmatpush1.msra.mxu0 0.0
    %956 = vmatprep.subr.mxu0 0.0
    %957 = vmatpush1.msra.mxu0 0.0
    %958 = vmatprep.subr.mxu0 0.0
    %959 = vmatpush1.msra.mxu0 0.0
    %960 = vmatprep.mubr.f32.mxu0 0.0
    %961 = vmatmul.mubr.f32.gmra.mrb[0].mxu0 %v809
    %v962 = vpop.f32.mrb[0].mxu0
    %v963 = vadd.f32 0.0, %v962
    %v964 = vpop.f32.mrb[0].mxu0
    %965 = vmatprep.mubr.f32.mxu0 0.0
    %966 = vmatmul.mubr.f32.gmra.mrb[0].mxu0 %v812
    %v967 = vpop.f32.mrb[0].mxu0
    %v968 = vadd.f32 0.0, %v967
    %v969 = vpop.f32.mrb[0].mxu0
    %970 = vdwg.mxu0
    %v971 = vadd.f32 %v801, %v963
    %v972 = vadd.f32 %v802, %v968
    %v973 = vxor.u32 %v971, 2147483648
    %v974 = vxor.u32 %v972, 2147483648
    %v975 = vmul.f32 %v973, 1.442695
    %v976 = vpow.pop %v975
    %v977 = vmul.f32 %v974, 1.442695
    %v978 = vpow.pop %v977
    %v979 = vadd.f32 %v976, 1.0
    %v980 = vadd.f32 %v978, 1.0
    %v981 = vrcp.pop %v979
    %v982 = vmul.f32 1.0, %v981
    %v983 = vrcp.pop %v980
    %v984 = vmul.f32 1.0, %v983
    %v985 = vmul.f32 %v889, %v982
    %v986 = vmul.f32 %v890, %v984
    %v987 = vadd.f32 %v985, %v27
    %v988 = vadd.f32 %v986, %v28
    %v989 = vmul.f32 %v987, 0.70710677
    %v990 = vmul.f32 %v988, 0.70710677
    %v991 = vrot.slane %v989, 6
    %v992 = vrot.slane %v990, 6
    %v993 = vsel %vm44, %v991, %v992
    %v994 = vsel %vm44, %v992, %v991
    %v995 = vmul.f32 %v994, %v50
    %v996 = vmul.f32 %v993, %v55
    %v997 = vrot.slane %v989, 7
    %v998 = vrot.slane %v990, 7
    %v999 = vsel %vm61, %v997, %v998
    %v1000 = vsel %vm61, %v998, %v997
    %v1001 = vmul.f32 %v1000, %v67
    %v1002 = vmul.f32 %v999, %v72
    %v1003 = vrot.slane %v989, 1
    %v1004 = vrot.slane %v990, 1
    %v1005 = vsel %vm78, %v1003, %v1004
    %v1006 = vsel %vm78, %v1004, %v1003
    %v1007 = vmul.f32 %v1005, %v84
    %v1008 = vmul.f32 %v1006, %v89
    %v1009 = vrot.slane %v989, 2
    %v1010 = vrot.slane %v990, 2
    %v1011 = vsel %vm95, %v1009, %v1010
    %v1012 = vsel %vm95, %v1010, %v1009
    %v1013 = vmul.f32 %v1011, %v101
    %v1014 = vmul.f32 %v1012, %v106
    %s1015 = scalar_lea.vmem %s4, 1
    %v1016 = vld [vmem:[%s1015] sm:$0x1]
    %v1018 = vlaneseq
    %v1019 = vshrl.u32 %v1018, 7
    %v1020 = vsub.s32 0, %v1019
    %v1021 = vrot.slane %v1016, %v1020
    %s1023 = scalar_lea.vmem %s5, 1
    %v1024 = vld [vmem:[%s1023] sm:$0x1]
    %v1026 = vlaneseq
    %v1027 = vshrl.u32 %v1026, 7
    %v1028 = vsub.s32 0, %v1027
    %v1029 = vrot.slane %v1024, %v1028
    %s1031 = scalar_lea.vmem %s2, 160
    %v1032 = vld [vmem:[%s1031] sm:$0xff]
    %v1033 = vld [vmem:[%s1031 + $0x8] sm:$0xff]
    %v1034 = vld [vmem:[%s1031 + $0x10] sm:$0xff]
    %v1035 = vld [vmem:[%s1031 + $0x18] sm:$0xff]
    %v1037 = vsel %vm128, %v995, 0
    %v1040 = vsel %vm128, %v996, 0
    %1042 = vmatprep.subr.mxu0 0.0
    %1043 = vmatpush1.msra.mxu0 %v1032
    %1044 = vmatprep.subr.mxu0 0.0
    %1045 = vmatpush1.msra.mxu0 %v1033
    %1046 = vmatprep.subr.mxu0 0.0
    %1047 = vmatpush1.msra.mxu0 %v1034
    %1048 = vmatprep.subr.mxu0 0.0
    %1049 = vmatpush1.msra.mxu0 %v1035
    %1050 = vmatprep.subr.mxu0 0.0
    %1051 = vmatpush1.msra.mxu0 0.0
    %1052 = vmatprep.subr.mxu0 0.0
    %1053 = vmatpush1.msra.mxu0 0.0
    %1054 = vmatprep.subr.mxu0 0.0
    %1055 = vmatpush1.msra.mxu0 0.0
    %1056 = vmatprep.subr.mxu0 0.0
    %1057 = vmatpush1.msra.mxu0 0.0
    %1058 = vmatprep.subr.mxu0 0.0
    %1059 = vmatpush1.msra.mxu0 0.0
    %1060 = vmatprep.subr.mxu0 0.0
    %1061 = vmatpush1.msra.mxu0 0.0
    %1062 = vmatprep.subr.mxu0 0.0
    %1063 = vmatpush1.msra.mxu0 0.0
    %1064 = vmatprep.subr.mxu0 0.0
    %1065 = vmatpush1.msra.mxu0 0.0
    %1066 = vmatprep.subr.mxu0 0.0
    %1067 = vmatpush1.msra.mxu0 0.0
    %1068 = vmatprep.subr.mxu0 0.0
    %1069 = vmatpush1.msra.mxu0 0.0
    %1070 = vmatprep.subr.mxu0 0.0
    %1071 = vmatpush1.msra.mxu0 0.0
    %1072 = vmatprep.subr.mxu0 0.0
    %1073 = vmatpush1.msra.mxu0 0.0
    %1074 = vmatprep.subr.mxu0 0.0
    %1075 = vmatpush1.msra.mxu0 0.0
    %1076 = vmatprep.subr.mxu0 0.0
    %1077 = vmatpush1.msra.mxu0 0.0
    %1078 = vmatprep.subr.mxu0 0.0
    %1079 = vmatpush1.msra.mxu0 0.0
    %1080 = vmatprep.subr.mxu0 0.0
    %1081 = vmatpush1.msra.mxu0 0.0
    %1082 = vmatprep.subr.mxu0 0.0
    %1083 = vmatpush1.msra.mxu0 0.0
    %1084 = vmatprep.subr.mxu0 0.0
    %1085 = vmatpush1.msra.mxu0 0.0
    %1086 = vmatprep.subr.mxu0 0.0
    %1087 = vmatpush1.msra.mxu0 0.0
    %1088 = vmatprep.subr.mxu0 0.0
    %1089 = vmatpush1.msra.mxu0 0.0
    %1090 = vmatprep.subr.mxu0 0.0
    %1091 = vmatpush1.msra.mxu0 0.0
    %1092 = vmatprep.subr.mxu0 0.0
    %1093 = vmatpush1.msra.mxu0 0.0
    %1094 = vmatprep.subr.mxu0 0.0
    %1095 = vmatpush1.msra.mxu0 0.0
    %1096 = vmatprep.subr.mxu0 0.0
    %1097 = vmatpush1.msra.mxu0 0.0
    %1098 = vmatprep.subr.mxu0 0.0
    %1099 = vmatpush1.msra.mxu0 0.0
    %1100 = vmatprep.subr.mxu0 0.0
    %1101 = vmatpush1.msra.mxu0 0.0
    %1102 = vmatprep.subr.mxu0 0.0
    %1103 = vmatpush1.msra.mxu0 0.0
    %1104 = vmatprep.subr.mxu0 0.0
    %1105 = vmatpush1.msra.mxu0 0.0
    %1106 = vmatprep.mubr.f32.mxu0 0.0
    %1107 = vmatmul.mubr.f32.gmra.mrb[0].mxu0 %v1037
    %v1108 = vpop.f32.mrb[0].mxu0
    %v1109 = vadd.f32 0.0, %v1108
    %v1110 = vpop.f32.mrb[0].mxu0
    %1111 = vmatprep.mubr.f32.mxu0 0.0
    %1112 = vmatmul.mubr.f32.gmra.mrb[0].mxu0 %v1040
    %v1113 = vpop.f32.mrb[0].mxu0
    %v1114 = vadd.f32 0.0, %v1113
    %v1115 = vpop.f32.mrb[0].mxu0
    %1116 = vdwg.mxu0
    %v1117 = vadd.f32 %v1021, %v1109
    %v1118 = vadd.f32 %v1021, %v1114
    %s1119 = scalar_lea.vmem %s3, 160
    %v1120 = vld [vmem:[%s1119] sm:$0xff]
    %v1121 = vld [vmem:[%s1119 + $0x8] sm:$0xff]
    %v1122 = vld [vmem:[%s1119 + $0x10] sm:$0xff]
    %v1123 = vld [vmem:[%s1119 + $0x18] sm:$0xff]
    %1124 = vmatprep.subr.mxu0 0.0
    %1125 = vmatpush1.msra.mxu0 %v1120
    %1126 = vmatprep.subr.mxu0 0.0
    %1127 = vmatpush1.msra.mxu0 %v1121
    %1128 = vmatprep.subr.mxu0 0.0
    %1129 = vmatpush1.msra.mxu0 %v1122
    %1130 = vmatprep.subr.mxu0 0.0
    %1131 = vmatpush1.msra.mxu0 %v1123
    %1132 = vmatprep.subr.mxu0 0.0
    %1133 = vmatpush1.msra.mxu0 0.0
    %1134 = vmatprep.subr.mxu0 0.0
    %1135 = vmatpush1.msra.mxu0 0.0
    %1136 = vmatprep.subr.mxu0 0.0
    %1137 = vmatpush1.msra.mxu0 0.0
    %1138 = vmatprep.subr.mxu0 0.0
    %1139 = vmatpush1.msra.mxu0 0.0
    %1140 = vmatprep.subr.mxu0 0.0
    %1141 = vmatpush1.msra.mxu0 0.0
    %1142 = vmatprep.subr.mxu0 0.0
    %1143 = vmatpush1.msra.mxu0 0.0
    %1144 = vmatprep.subr.mxu0 0.0
    %1145 = vmatpush1.msra.mxu0 0.0
    %1146 = vmatprep.subr.mxu0 0.0
    %1147 = vmatpush1.msra.mxu0 0.0
    %1148 = vmatprep.subr.mxu0 0.0
    %1149 = vmatpush1.msra.mxu0 0.0
    %1150 = vmatprep.subr.mxu0 0.0
    %1151 = vmatpush1.msra.mxu0 0.0
    %1152 = vmatprep.subr.mxu0 0.0
    %1153 = vmatpush1.msra.mxu0 0.0
    %1154 = vmatprep.subr.mxu0 0.0
    %1155 = vmatpush1.msra.mxu0 0.0
    %1156 = vmatprep.subr.mxu0 0.0
    %1157 = vmatpush1.msra.mxu0 0.0
    %1158 = vmatprep.subr.mxu0 0.0
    %1159 = vmatpush1.msra.mxu0 0.0
    %1160 = vmatprep.subr.mxu0 0.0
    %1161 = vmatpush1.msra.mxu0 0.0
    %1162 = vmatprep.subr.mxu0 0.0
    %1163 = vmatpush1.msra.mxu0 0.0
    %1164 = vmatprep.subr.mxu0 0.0
    %1165 = vmatpush1.msra.mxu0 0.0
    %1166 = vmatprep.subr.mxu0 0.0
    %1167 = vmatpush1.msra.mxu0 0.0
    %1168 = vmatprep.subr.mxu0 0.0
    %1169 = vmatpush1.msra.mxu0 0.0
    %1170 = vmatprep.subr.mxu0 0.0
    %1171 = vmatpush1.msra.mxu0 0.0
    %1172 = vmatprep.subr.mxu0 0.0
    %1173 = vmatpush1.msra.mxu0 0.0
    %1174 = vmatprep.subr.mxu0 0.0
    %1175 = vmatpush1.msra.mxu0 0.0
    %1176 = vmatprep.subr.mxu0 0.0
    %1177 = vmatpush1.msra.mxu0 0.0
    %1178 = vmatprep.subr.mxu0 0.0
    %1179 = vmatpush1.msra.mxu0 0.0
    %1180 = vmatprep.subr.mxu0 0.0
    %1181 = vmatpush1.msra.mxu0 0.0
    %1182 = vmatprep.subr.mxu0 0.0
    %1183 = vmatpush1.msra.mxu0 0.0
    %1184 = vmatprep.subr.mxu0 0.0
    %1185 = vmatpush1.msra.mxu0 0.0
    %1186 = vmatprep.subr.mxu0 0.0
    %1187 = vmatpush1.msra.mxu0 0.0
    %1188 = vmatprep.mubr.f32.mxu0 0.0
    %1189 = vmatmul.mubr.f32.gmra.mrb[0].mxu0 %v1037
    %v1190 = vpop.f32.mrb[0].mxu0
    %v1191 = vadd.f32 0.0, %v1190
    %v1192 = vpop.f32.mrb[0].mxu0
    %1193 = vmatprep.mubr.f32.mxu0 0.0
    %1194 = vmatmul.mubr.f32.gmra.mrb[0].mxu0 %v1040
    %v1195 = vpop.f32.mrb[0].mxu0
    %v1196 = vadd.f32 0.0, %v1195
    %v1197 = vpop.f32.mrb[0].mxu0
    %1198 = vdwg.mxu0
    %v1199 = vadd.f32 %v1029, %v1191
    %v1200 = vadd.f32 %v1029, %v1196
    %s1201 = scalar_lea.vmem %s2, 192
    %v1202 = vld [vmem:[%s1201] sm:$0xff]
    %v1203 = vld [vmem:[%s1201 + $0x8] sm:$0xff]
    %v1204 = vld [vmem:[%s1201 + $0x10] sm:$0xff]
    %v1205 = vld [vmem:[%s1201 + $0x18] sm:$0xff]
    %v1207 = vsel %vm128, %v1001, 0
    %v1210 = vsel %vm128, %v1002, 0
    %1212 = vmatprep.subr.mxu0 0.0
    %1213 = vmatpush1.msra.mxu0 %v1202
    %1214 = vmatprep.subr.mxu0 0.0
    %1215 = vmatpush1.msra.mxu0 %v1203
    %1216 = vmatprep.subr.mxu0 0.0
    %1217 = vmatpush1.msra.mxu0 %v1204
    %1218 = vmatprep.subr.mxu0 0.0
    %1219 = vmatpush1.msra.mxu0 %v1205
    %1220 = vmatprep.subr.mxu0 0.0
    %1221 = vmatpush1.msra.mxu0 0.0
    %1222 = vmatprep.subr.mxu0 0.0
    %1223 = vmatpush1.msra.mxu0 0.0
    %1224 = vmatprep.subr.mxu0 0.0
    %1225 = vmatpush1.msra.mxu0 0.0
    %1226 = vmatprep.subr.mxu0 0.0
    %1227 = vmatpush1.msra.mxu0 0.0
    %1228 = vmatprep.subr.mxu0 0.0
    %1229 = vmatpush1.msra.mxu0 0.0
    %1230 = vmatprep.subr.mxu0 0.0
    %1231 = vmatpush1.msra.mxu0 0.0
    %1232 = vmatprep.subr.mxu0 0.0
    %1233 = vmatpush1.msra.mxu0 0.0
    %1234 = vmatprep.subr.mxu0 0.0
    %1235 = vmatpush1.msra.mxu0 0.0
    %1236 = vmatprep.subr.mxu0 0.0
    %1237 = vmatpush1.msra.mxu0 0.0
    %1238 = vmatprep.subr.mxu0 0.0
    %1239 = vmatpush1.msra.mxu0 0.0
    %1240 = vmatprep.subr.mxu0 0.0
    %1241 = vmatpush1.msra.mxu0 0.0
    %1242 = vmatprep.subr.mxu0 0.0
    %1243 = vmatpush1.msra.mxu0 0.0
    %1244 = vmatprep.subr.mxu0 0.0
    %1245 = vmatpush1.msra.mxu0 0.0
    %1246 = vmatprep.subr.mxu0 0.0
    %1247 = vmatpush1.msra.mxu0 0.0
    %1248 = vmatprep.subr.mxu0 0.0
    %1249 = vmatpush1.msra.mxu0 0.0
    %1250 = vmatprep.subr.mxu0 0.0
    %1251 = vmatpush1.msra.mxu0 0.0
    %1252 = vmatprep.subr.mxu0 0.0
    %1253 = vmatpush1.msra.mxu0 0.0
    %1254 = vmatprep.subr.mxu0 0.0
    %1255 = vmatpush1.msra.mxu0 0.0
    %1256 = vmatprep.subr.mxu0 0.0
    %1257 = vmatpush1.msra.mxu0 0.0
    %1258 = vmatprep.subr.mxu0 0.0
    %1259 = vmatpush1.msra.mxu0 0.0
    %1260 = vmatprep.subr.mxu0 0.0
    %1261 = vmatpush1.msra.mxu0 0.0
    %1262 = vmatprep.subr.mxu0 0.0
    %1263 = vmatpush1.msra.mxu0 0.0
    %1264 = vmatprep.subr.mxu0 0.0
    %1265 = vmatpush1.msra.mxu0 0.0
    %1266 = vmatprep.subr.mxu0 0.0
    %1267 = vmatpush1.msra.mxu0 0.0
    %1268 = vmatprep.subr.mxu0 0.0
    %1269 = vmatpush1.msra.mxu0 0.0
    %1270 = vmatprep.subr.mxu0 0.0
    %1271 = vmatpush1.msra.mxu0 0.0
    %1272 = vmatprep.subr.mxu0 0.0
    %1273 = vmatpush1.msra.mxu0 0.0
    %1274 = vmatprep.subr.mxu0 0.0
    %1275 = vmatpush1.msra.mxu0 0.0
    %1276 = vmatprep.mubr.f32.mxu0 0.0
    %1277 = vmatmul.mubr.f32.gmra.mrb[0].mxu0 %v1207
    %v1278 = vpop.f32.mrb[0].mxu0
    %v1279 = vadd.f32 0.0, %v1278
    %v1280 = vpop.f32.mrb[0].mxu0
    %1281 = vmatprep.mubr.f32.mxu0 0.0
    %1282 = vmatmul.mubr.f32.gmra.mrb[0].mxu0 %v1210
    %v1283 = vpop.f32.mrb[0].mxu0
    %v1284 = vadd.f32 0.0, %v1283
    %v1285 = vpop.f32.mrb[0].mxu0
    %1286 = vdwg.mxu0
    %v1287 = vadd.f32 %v1117, %v1279
    %v1288 = vadd.f32 %v1118, %v1284
    %s1289 = scalar_lea.vmem %s3, 192
    %v1290 = vld [vmem:[%s1289] sm:$0xff]
    %v1291 = vld [vmem:[%s1289 + $0x8] sm:$0xff]
    %v1292 = vld [vmem:[%s1289 + $0x10] sm:$0xff]
    %v1293 = vld [vmem:[%s1289 + $0x18] sm:$0xff]
    %1294 = vmatprep.subr.mxu0 0.0
    %1295 = vmatpush1.msra.mxu0 %v1290
    %1296 = vmatprep.subr.mxu0 0.0
    %1297 = vmatpush1.msra.mxu0 %v1291
    %1298 = vmatprep.subr.mxu0 0.0
    %1299 = vmatpush1.msra.mxu0 %v1292
    %1300 = vmatprep.subr.mxu0 0.0
    %1301 = vmatpush1.msra.mxu0 %v1293
    %1302 = vmatprep.subr.mxu0 0.0
    %1303 = vmatpush1.msra.mxu0 0.0
    %1304 = vmatprep.subr.mxu0 0.0
    %1305 = vmatpush1.msra.mxu0 0.0
    %1306 = vmatprep.subr.mxu0 0.0
    %1307 = vmatpush1.msra.mxu0 0.0
    %1308 = vmatprep.subr.mxu0 0.0
    %1309 = vmatpush1.msra.mxu0 0.0
    %1310 = vmatprep.subr.mxu0 0.0
    %1311 = vmatpush1.msra.mxu0 0.0
    %1312 = vmatprep.subr.mxu0 0.0
    %1313 = vmatpush1.msra.mxu0 0.0
    %1314 = vmatprep.subr.mxu0 0.0
    %1315 = vmatpush1.msra.mxu0 0.0
    %1316 = vmatprep.subr.mxu0 0.0
    %1317 = vmatpush1.msra.mxu0 0.0
    %1318 = vmatprep.subr.mxu0 0.0
    %1319 = vmatpush1.msra.mxu0 0.0
    %1320 = vmatprep.subr.mxu0 0.0
    %1321 = vmatpush1.msra.mxu0 0.0
    %1322 = vmatprep.subr.mxu0 0.0
    %1323 = vmatpush1.msra.mxu0 0.0
    %1324 = vmatprep.subr.mxu0 0.0
    %1325 = vmatpush1.msra.mxu0 0.0
    %1326 = vmatprep.subr.mxu0 0.0
    %1327 = vmatpush1.msra.mxu0 0.0
    %1328 = vmatprep.subr.mxu0 0.0
    %1329 = vmatpush1.msra.mxu0 0.0
    %1330 = vmatprep.subr.mxu0 0.0
    %1331 = vmatpush1.msra.mxu0 0.0
    %1332 = vmatprep.subr.mxu0 0.0
    %1333 = vmatpush1.msra.mxu0 0.0
    %1334 = vmatprep.subr.mxu0 0.0
    %1335 = vmatpush1.msra.mxu0 0.0
    %1336 = vmatprep.subr.mxu0 0.0
    %1337 = vmatpush1.msra.mxu0 0.0
    %1338 = vmatprep.subr.mxu0 0.0
    %1339 = vmatpush1.msra.mxu0 0.0
    %1340 = vmatprep.subr.mxu0 0.0
    %1341 = vmatpush1.msra.mxu0 0.0
    %1342 = vmatprep.subr.mxu0 0.0
    %1343 = vmatpush1.msra.mxu0 0.0
    %1344 = vmatprep.subr.mxu0 0.0
    %1345 = vmatpush1.msra.mxu0 0.0
    %1346 = vmatprep.subr.mxu0 0.0
    %1347 = vmatpush1.msra.mxu0 0.0
    %1348 = vmatprep.subr.mxu0 0.0
    %1349 = vmatpush1.msra.mxu0 0.0
    %1350 = vmatprep.subr.mxu0 0.0
    %1351 = vmatpush1.msra.mxu0 0.0
    %1352 = vmatprep.subr.mxu0 0.0
    %1353 = vmatpush1.msra.mxu0 0.0
    %1354 = vmatprep.subr.mxu0 0.0
    %1355 = vmatpush1.msra.mxu0 0.0
    %1356 = vmatprep.subr.mxu0 0.0
    %1357 = vmatpush1.msra.mxu0 0.0
    %1358 = vmatprep.mubr.f32.mxu0 0.0
    %1359 = vmatmul.mubr.f32.gmra.mrb[0].mxu0 %v1207
    %v1360 = vpop.f32.mrb[0].mxu0
    %v1361 = vadd.f32 0.0, %v1360
    %v1362 = vpop.f32.mrb[0].mxu0
    %1363 = vmatprep.mubr.f32.mxu0 0.0
    %1364 = vmatmul.mubr.f32.gmra.mrb[0].mxu0 %v1210
    %v1365 = vpop.f32.mrb[0].mxu0
    %v1366 = vadd.f32 0.0, %v1365
    %v1367 = vpop.f32.mrb[0].mxu0
    %1368 = vdwg.mxu0
    %v1369 = vadd.f32 %v1199, %v1361
    %v1370 = vadd.f32 %v1200, %v1366
    %s1371 = scalar_lea.vmem %s2, 224
    %v1372 = vld [vmem:[%s1371] sm:$0xff]
    %v1373 = vld [vmem:[%s1371 + $0x8] sm:$0xff]
    %v1374 = vld [vmem:[%s1371 + $0x10] sm:$0xff]
    %v1375 = vld [vmem:[%s1371 + $0x18] sm:$0xff]
    %v1377 = vsel %vm128, %v989, 0
    %v1380 = vsel %vm128, %v990, 0
    %1382 = vmatprep.subr.mxu0 0.0
    %1383 = vmatpush1.msra.mxu0 %v1372
    %1384 = vmatprep.subr.mxu0 0.0
    %1385 = vmatpush1.msra.mxu0 %v1373
    %1386 = vmatprep.subr.mxu0 0.0
    %1387 = vmatpush1.msra.mxu0 %v1374
    %1388 = vmatprep.subr.mxu0 0.0
    %1389 = vmatpush1.msra.mxu0 %v1375
    %1390 = vmatprep.subr.mxu0 0.0
    %1391 = vmatpush1.msra.mxu0 0.0
    %1392 = vmatprep.subr.mxu0 0.0
    %1393 = vmatpush1.msra.mxu0 0.0
    %1394 = vmatprep.subr.mxu0 0.0
    %1395 = vmatpush1.msra.mxu0 0.0
    %1396 = vmatprep.subr.mxu0 0.0
    %1397 = vmatpush1.msra.mxu0 0.0
    %1398 = vmatprep.subr.mxu0 0.0
    %1399 = vmatpush1.msra.mxu0 0.0
    %1400 = vmatprep.subr.mxu0 0.0
    %1401 = vmatpush1.msra.mxu0 0.0
    %1402 = vmatprep.subr.mxu0 0.0
    %1403 = vmatpush1.msra.mxu0 0.0
    %1404 = vmatprep.subr.mxu0 0.0
    %1405 = vmatpush1.msra.mxu0 0.0
    %1406 = vmatprep.subr.mxu0 0.0
    %1407 = vmatpush1.msra.mxu0 0.0
    %1408 = vmatprep.subr.mxu0 0.0
    %1409 = vmatpush1.msra.mxu0 0.0
    %1410 = vmatprep.subr.mxu0 0.0
    %1411 = vmatpush1.msra.mxu0 0.0
    %1412 = vmatprep.subr.mxu0 0.0
    %1413 = vmatpush1.msra.mxu0 0.0
    %1414 = vmatprep.subr.mxu0 0.0
    %1415 = vmatpush1.msra.mxu0 0.0
    %1416 = vmatprep.subr.mxu0 0.0
    %1417 = vmatpush1.msra.mxu0 0.0
    %1418 = vmatprep.subr.mxu0 0.0
    %1419 = vmatpush1.msra.mxu0 0.0
    %1420 = vmatprep.subr.mxu0 0.0
    %1421 = vmatpush1.msra.mxu0 0.0
    %1422 = vmatprep.subr.mxu0 0.0
    %1423 = vmatpush1.msra.mxu0 0.0
    %1424 = vmatprep.subr.mxu0 0.0
    %1425 = vmatpush1.msra.mxu0 0.0
    %1426 = vmatprep.subr.mxu0 0.0
    %1427 = vmatpush1.msra.mxu0 0.0
    %1428 = vmatprep.subr.mxu0 0.0
    %1429 = vmatpush1.msra.mxu0 0.0
    %1430 = vmatprep.subr.mxu0 0.0
    %1431 = vmatpush1.msra.mxu0 0.0
    %1432 = vmatprep.subr.mxu0 0.0
    %1433 = vmatpush1.msra.mxu0 0.0
    %1434 = vmatprep.subr.mxu0 0.0
    %1435 = vmatpush1.msra.mxu0 0.0
    %1436 = vmatprep.subr.mxu0 0.0
    %1437 = vmatpush1.msra.mxu0 0.0
    %1438 = vmatprep.subr.mxu0 0.0
    %1439 = vmatpush1.msra.mxu0 0.0
    %1440 = vmatprep.subr.mxu0 0.0
    %1441 = vmatpush1.msra.mxu0 0.0
    %1442 = vmatprep.subr.mxu0 0.0
    %1443 = vmatpush1.msra.mxu0 0.0
    %1444 = vmatprep.subr.mxu0 0.0
    %1445 = vmatpush1.msra.mxu0 0.0
    %1446 = vmatprep.mubr.f32.mxu0 0.0
    %1447 = vmatmul.mubr.f32.gmra.mrb[0].mxu0 %v1377
    %v1448 = vpop.f32.mrb[0].mxu0
    %v1449 = vadd.f32 0.0, %v1448
    %v1450 = vpop.f32.mrb[0].mxu0
    %1451 = vmatprep.mubr.f32.mxu0 0.0
    %1452 = vmatmul.mubr.f32.gmra.mrb[0].mxu0 %v1380
    %v1453 = vpop.f32.mrb[0].mxu0
    %v1454 = vadd.f32 0.0, %v1453
    %v1455 = vpop.f32.mrb[0].mxu0
    %1456 = vdwg.mxu0
    %v1457 = vadd.f32 %v1287, %v1449
    %v1458 = vadd.f32 %v1288, %v1454
    %s1459 = scalar_lea.vmem %s3, 224
    %v1460 = vld [vmem:[%s1459] sm:$0xff]
    %v1461 = vld [vmem:[%s1459 + $0x8] sm:$0xff]
    %v1462 = vld [vmem:[%s1459 + $0x10] sm:$0xff]
    %v1463 = vld [vmem:[%s1459 + $0x18] sm:$0xff]
    %1464 = vmatprep.subr.mxu0 0.0
    %1465 = vmatpush1.msra.mxu0 %v1460
    %1466 = vmatprep.subr.mxu0 0.0
    %1467 = vmatpush1.msra.mxu0 %v1461
    %1468 = vmatprep.subr.mxu0 0.0
    %1469 = vmatpush1.msra.mxu0 %v1462
    %1470 = vmatprep.subr.mxu0 0.0
    %1471 = vmatpush1.msra.mxu0 %v1463
    %1472 = vmatprep.subr.mxu0 0.0
    %1473 = vmatpush1.msra.mxu0 0.0
    %1474 = vmatprep.subr.mxu0 0.0
    %1475 = vmatpush1.msra.mxu0 0.0
    %1476 = vmatprep.subr.mxu0 0.0
    %1477 = vmatpush1.msra.mxu0 0.0
    %1478 = vmatprep.subr.mxu0 0.0
    %1479 = vmatpush1.msra.mxu0 0.0
    %1480 = vmatprep.subr.mxu0 0.0
    %1481 = vmatpush1.msra.mxu0 0.0
    %1482 = vmatprep.subr.mxu0 0.0
    %1483 = vmatpush1.msra.mxu0 0.0
    %1484 = vmatprep.subr.mxu0 0.0
    %1485 = vmatpush1.msra.mxu0 0.0
    %1486 = vmatprep.subr.mxu0 0.0
    %1487 = vmatpush1.msra.mxu0 0.0
    %1488 = vmatprep.subr.mxu0 0.0
    %1489 = vmatpush1.msra.mxu0 0.0
    %1490 = vmatprep.subr.mxu0 0.0
    %1491 = vmatpush1.msra.mxu0 0.0
    %1492 = vmatprep.subr.mxu0 0.0
    %1493 = vmatpush1.msra.mxu0 0.0
    %1494 = vmatprep.subr.mxu0 0.0
    %1495 = vmatpush1.msra.mxu0 0.0
    %1496 = vmatprep.subr.mxu0 0.0
    %1497 = vmatpush1.msra.mxu0 0.0
    %1498 = vmatprep.subr.mxu0 0.0
    %1499 = vmatpush1.msra.mxu0 0.0
    %1500 = vmatprep.subr.mxu0 0.0
    %1501 = vmatpush1.msra.mxu0 0.0
    %1502 = vmatprep.subr.mxu0 0.0
    %1503 = vmatpush1.msra.mxu0 0.0
    %1504 = vmatprep.subr.mxu0 0.0
    %1505 = vmatpush1.msra.mxu0 0.0
    %1506 = vmatprep.subr.mxu0 0.0
    %1507 = vmatpush1.msra.mxu0 0.0
    %1508 = vmatprep.subr.mxu0 0.0
    %1509 = vmatpush1.msra.mxu0 0.0
    %1510 = vmatprep.subr.mxu0 0.0
    %1511 = vmatpush1.msra.mxu0 0.0
    %1512 = vmatprep.subr.mxu0 0.0
    %1513 = vmatpush1.msra.mxu0 0.0
    %1514 = vmatprep.subr.mxu0 0.0
    %1515 = vmatpush1.msra.mxu0 0.0
    %1516 = vmatprep.subr.mxu0 0.0
    %1517 = vmatpush1.msra.mxu0 0.0
    %1518 = vmatprep.subr.mxu0 0.0
    %1519 = vmatpush1.msra.mxu0 0.0
    %1520 = vmatprep.subr.mxu0 0.0
    %1521 = vmatpush1.msra.mxu0 0.0
    %1522 = vmatprep.subr.mxu0 0.0
    %1523 = vmatpush1.msra.mxu0 0.0
    %1524 = vmatprep.subr.mxu0 0.0
    %1525 = vmatpush1.msra.mxu0 0.0
    %1526 = vmatprep.subr.mxu0 0.0
    %1527 = vmatpush1.msra.mxu0 0.0
    %1528 = vmatprep.mubr.f32.mxu0 0.0
    %1529 = vmatmul.mubr.f32.gmra.mrb[0].mxu0 %v1377
    %v1530 = vpop.f32.mrb[0].mxu0
    %v1531 = vadd.f32 0.0, %v1530
    %v1532 = vpop.f32.mrb[0].mxu0
    %1533 = vmatprep.mubr.f32.mxu0 0.0
    %1534 = vmatmul.mubr.f32.gmra.mrb[0].mxu0 %v1380
    %v1535 = vpop.f32.mrb[0].mxu0
    %v1536 = vadd.f32 0.0, %v1535
    %v1537 = vpop.f32.mrb[0].mxu0
    %1538 = vdwg.mxu0
    %v1539 = vadd.f32 %v1369, %v1531
    %v1540 = vadd.f32 %v1370, %v1536
    %s1541 = scalar_lea.vmem %s2, 256
    %v1542 = vld [vmem:[%s1541] sm:$0xff]
    %v1543 = vld [vmem:[%s1541 + $0x8] sm:$0xff]
    %v1544 = vld [vmem:[%s1541 + $0x10] sm:$0xff]
    %v1545 = vld [vmem:[%s1541 + $0x18] sm:$0xff]
    %v1547 = vsel %vm128, %v1007, 0
    %v1550 = vsel %vm128, %v1008, 0
    %1552 = vmatprep.subr.mxu0 0.0
    %1553 = vmatpush1.msra.mxu0 %v1542
    %1554 = vmatprep.subr.mxu0 0.0
    %1555 = vmatpush1.msra.mxu0 %v1543
    %1556 = vmatprep.subr.mxu0 0.0
    %1557 = vmatpush1.msra.mxu0 %v1544
    %1558 = vmatprep.subr.mxu0 0.0
    %1559 = vmatpush1.msra.mxu0 %v1545
    %1560 = vmatprep.subr.mxu0 0.0
    %1561 = vmatpush1.msra.mxu0 0.0
    %1562 = vmatprep.subr.mxu0 0.0
    %1563 = vmatpush1.msra.mxu0 0.0
    %1564 = vmatprep.subr.mxu0 0.0
    %1565 = vmatpush1.msra.mxu0 0.0
    %1566 = vmatprep.subr.mxu0 0.0
    %1567 = vmatpush1.msra.mxu0 0.0
    %1568 = vmatprep.subr.mxu0 0.0
    %1569 = vmatpush1.msra.mxu0 0.0
    %1570 = vmatprep.subr.mxu0 0.0
    %1571 = vmatpush1.msra.mxu0 0.0
    %1572 = vmatprep.subr.mxu0 0.0
    %1573 = vmatpush1.msra.mxu0 0.0
    %1574 = vmatprep.subr.mxu0 0.0
    %1575 = vmatpush1.msra.mxu0 0.0
    %1576 = vmatprep.subr.mxu0 0.0
    %1577 = vmatpush1.msra.mxu0 0.0
    %1578 = vmatprep.subr.mxu0 0.0
    %1579 = vmatpush1.msra.mxu0 0.0
    %1580 = vmatprep.subr.mxu0 0.0
    %1581 = vmatpush1.msra.mxu0 0.0
    %1582 = vmatprep.subr.mxu0 0.0
    %1583 = vmatpush1.msra.mxu0 0.0
    %1584 = vmatprep.subr.mxu0 0.0
    %1585 = vmatpush1.msra.mxu0 0.0
    %1586 = vmatprep.subr.mxu0 0.0
    %1587 = vmatpush1.msra.mxu0 0.0
    %1588 = vmatprep.subr.mxu0 0.0
    %1589 = vmatpush1.msra.mxu0 0.0
    %1590 = vmatprep.subr.mxu0 0.0
    %1591 = vmatpush1.msra.mxu0 0.0
    %1592 = vmatprep.subr.mxu0 0.0
    %1593 = vmatpush1.msra.mxu0 0.0
    %1594 = vmatprep.subr.mxu0 0.0
    %1595 = vmatpush1.msra.mxu0 0.0
    %1596 = vmatprep.subr.mxu0 0.0
    %1597 = vmatpush1.msra.mxu0 0.0
    %1598 = vmatprep.subr.mxu0 0.0
    %1599 = vmatpush1.msra.mxu0 0.0
    %1600 = vmatprep.subr.mxu0 0.0
    %1601 = vmatpush1.msra.mxu0 0.0
    %1602 = vmatprep.subr.mxu0 0.0
    %1603 = vmatpush1.msra.mxu0 0.0
    %1604 = vmatprep.subr.mxu0 0.0
    %1605 = vmatpush1.msra.mxu0 0.0
    %1606 = vmatprep.subr.mxu0 0.0
    %1607 = vmatpush1.msra.mxu0 0.0
    %1608 = vmatprep.subr.mxu0 0.0
    %1609 = vmatpush1.msra.mxu0 0.0
    %1610 = vmatprep.subr.mxu0 0.0
    %1611 = vmatpush1.msra.mxu0 0.0
    %1612 = vmatprep.subr.mxu0 0.0
    %1613 = vmatpush1.msra.mxu0 0.0
    %1614 = vmatprep.subr.mxu0 0.0
    %1615 = vmatpush1.msra.mxu0 0.0
    %1616 = vmatprep.mubr.f32.mxu0 0.0
    %1617 = vmatmul.mubr.f32.gmra.mrb[0].mxu0 %v1547
    %v1618 = vpop.f32.mrb[0].mxu0
    %v1619 = vadd.f32 0.0, %v1618
    %v1620 = vpop.f32.mrb[0].mxu0
    %1621 = vmatprep.mubr.f32.mxu0 0.0
    %1622 = vmatmul.mubr.f32.gmra.mrb[0].mxu0 %v1550
    %v1623 = vpop.f32.mrb[0].mxu0
    %v1624 = vadd.f32 0.0, %v1623
    %v1625 = vpop.f32.mrb[0].mxu0
    %1626 = vdwg.mxu0
    %v1627 = vadd.f32 %v1457, %v1619
    %v1628 = vadd.f32 %v1458, %v1624
    %s1629 = scalar_lea.vmem %s3, 256
    %v1630 = vld [vmem:[%s1629] sm:$0xff]
    %v1631 = vld [vmem:[%s1629 + $0x8] sm:$0xff]
    %v1632 = vld [vmem:[%s1629 + $0x10] sm:$0xff]
    %v1633 = vld [vmem:[%s1629 + $0x18] sm:$0xff]
    %1634 = vmatprep.subr.mxu0 0.0
    %1635 = vmatpush1.msra.mxu0 %v1630
    %1636 = vmatprep.subr.mxu0 0.0
    %1637 = vmatpush1.msra.mxu0 %v1631
    %1638 = vmatprep.subr.mxu0 0.0
    %1639 = vmatpush1.msra.mxu0 %v1632
    %1640 = vmatprep.subr.mxu0 0.0
    %1641 = vmatpush1.msra.mxu0 %v1633
    %1642 = vmatprep.subr.mxu0 0.0
    %1643 = vmatpush1.msra.mxu0 0.0
    %1644 = vmatprep.subr.mxu0 0.0
    %1645 = vmatpush1.msra.mxu0 0.0
    %1646 = vmatprep.subr.mxu0 0.0
    %1647 = vmatpush1.msra.mxu0 0.0
    %1648 = vmatprep.subr.mxu0 0.0
    %1649 = vmatpush1.msra.mxu0 0.0
    %1650 = vmatprep.subr.mxu0 0.0
    %1651 = vmatpush1.msra.mxu0 0.0
    %1652 = vmatprep.subr.mxu0 0.0
    %1653 = vmatpush1.msra.mxu0 0.0
    %1654 = vmatprep.subr.mxu0 0.0
    %1655 = vmatpush1.msra.mxu0 0.0
    %1656 = vmatprep.subr.mxu0 0.0
    %1657 = vmatpush1.msra.mxu0 0.0
    %1658 = vmatprep.subr.mxu0 0.0
    %1659 = vmatpush1.msra.mxu0 0.0
    %1660 = vmatprep.subr.mxu0 0.0
    %1661 = vmatpush1.msra.mxu0 0.0
    %1662 = vmatprep.subr.mxu0 0.0
    %1663 = vmatpush1.msra.mxu0 0.0
    %1664 = vmatprep.subr.mxu0 0.0
    %1665 = vmatpush1.msra.mxu0 0.0
    %1666 = vmatprep.subr.mxu0 0.0
    %1667 = vmatpush1.msra.mxu0 0.0
    %1668 = vmatprep.subr.mxu0 0.0
    %1669 = vmatpush1.msra.mxu0 0.0
    %1670 = vmatprep.subr.mxu0 0.0
    %1671 = vmatpush1.msra.mxu0 0.0
    %1672 = vmatprep.subr.mxu0 0.0
    %1673 = vmatpush1.msra.mxu0 0.0
    %1674 = vmatprep.subr.mxu0 0.0
    %1675 = vmatpush1.msra.mxu0 0.0
    %1676 = vmatprep.subr.mxu0 0.0
    %1677 = vmatpush1.msra.mxu0 0.0
    %1678 = vmatprep.subr.mxu0 0.0
    %1679 = vmatpush1.msra.mxu0 0.0
    %1680 = vmatprep.subr.mxu0 0.0
    %1681 = vmatpush1.msra.mxu0 0.0
    %1682 = vmatprep.subr.mxu0 0.0
    %1683 = vmatpush1.msra.mxu0 0.0
    %1684 = vmatprep.subr.mxu0 0.0
    %1685 = vmatpush1.msra.mxu0 0.0
    %1686 = vmatprep.subr.mxu0 0.0
    %1687 = vmatpush1.msra.mxu0 0.0
    %1688 = vmatprep.subr.mxu0 0.0
    %1689 = vmatpush1.msra.mxu0 0.0
    %1690 = vmatprep.subr.mxu0 0.0
    %1691 = vmatpush1.msra.mxu0 0.0
    %1692 = vmatprep.subr.mxu0 0.0
    %1693 = vmatpush1.msra.mxu0 0.0
    %1694 = vmatprep.subr.mxu0 0.0
    %1695 = vmatpush1.msra.mxu0 0.0
    %1696 = vmatprep.subr.mxu0 0.0
    %1697 = vmatpush1.msra.mxu0 0.0
    %1698 = vmatprep.mubr.f32.mxu0 0.0
    %1699 = vmatmul.mubr.f32.gmra.mrb[0].mxu0 %v1547
    %v1700 = vpop.f32.mrb[0].mxu0
    %v1701 = vadd.f32 0.0, %v1700
    %v1702 = vpop.f32.mrb[0].mxu0
    %1703 = vmatprep.mubr.f32.mxu0 0.0
    %1704 = vmatmul.mubr.f32.gmra.mrb[0].mxu0 %v1550
    %v1705 = vpop.f32.mrb[0].mxu0
    %v1706 = vadd.f32 0.0, %v1705
    %v1707 = vpop.f32.mrb[0].mxu0
    %1708 = vdwg.mxu0
    %v1709 = vadd.f32 %v1539, %v1701
    %v1710 = vadd.f32 %v1540, %v1706
    %s1711 = scalar_lea.vmem %s2, 288
    %v1712 = vld [vmem:[%s1711] sm:$0xff]
    %v1713 = vld [vmem:[%s1711 + $0x8] sm:$0xff]
    %v1714 = vld [vmem:[%s1711 + $0x10] sm:$0xff]
    %v1715 = vld [vmem:[%s1711 + $0x18] sm:$0xff]
    %v1717 = vsel %vm128, %v1013, 0
    %v1720 = vsel %vm128, %v1014, 0
    %1722 = vmatprep.subr.mxu0 0.0
    %1723 = vmatpush1.msra.mxu0 %v1712
    %1724 = vmatprep.subr.mxu0 0.0
    %1725 = vmatpush1.msra.mxu0 %v1713
    %1726 = vmatprep.subr.mxu0 0.0
    %1727 = vmatpush1.msra.mxu0 %v1714
    %1728 = vmatprep.subr.mxu0 0.0
    %1729 = vmatpush1.msra.mxu0 %v1715
    %1730 = vmatprep.subr.mxu0 0.0
    %1731 = vmatpush1.msra.mxu0 0.0
    %1732 = vmatprep.subr.mxu0 0.0
    %1733 = vmatpush1.msra.mxu0 0.0
    %1734 = vmatprep.subr.mxu0 0.0
    %1735 = vmatpush1.msra.mxu0 0.0
    %1736 = vmatprep.subr.mxu0 0.0
    %1737 = vmatpush1.msra.mxu0 0.0
    %1738 = vmatprep.subr.mxu0 0.0
    %1739 = vmatpush1.msra.mxu0 0.0
    %1740 = vmatprep.subr.mxu0 0.0
    %1741 = vmatpush1.msra.mxu0 0.0
    %1742 = vmatprep.subr.mxu0 0.0
    %1743 = vmatpush1.msra.mxu0 0.0
    %1744 = vmatprep.subr.mxu0 0.0
    %1745 = vmatpush1.msra.mxu0 0.0
    %1746 = vmatprep.subr.mxu0 0.0
    %1747 = vmatpush1.msra.mxu0 0.0
    %1748 = vmatprep.subr.mxu0 0.0
    %1749 = vmatpush1.msra.mxu0 0.0
    %1750 = vmatprep.subr.mxu0 0.0
    %1751 = vmatpush1.msra.mxu0 0.0
    %1752 = vmatprep.subr.mxu0 0.0
    %1753 = vmatpush1.msra.mxu0 0.0
    %1754 = vmatprep.subr.mxu0 0.0
    %1755 = vmatpush1.msra.mxu0 0.0
    %1756 = vmatprep.subr.mxu0 0.0
    %1757 = vmatpush1.msra.mxu0 0.0
    %1758 = vmatprep.subr.mxu0 0.0
    %1759 = vmatpush1.msra.mxu0 0.0
    %1760 = vmatprep.subr.mxu0 0.0
    %1761 = vmatpush1.msra.mxu0 0.0
    %1762 = vmatprep.subr.mxu0 0.0
    %1763 = vmatpush1.msra.mxu0 0.0
    %1764 = vmatprep.subr.mxu0 0.0
    %1765 = vmatpush1.msra.mxu0 0.0
    %1766 = vmatprep.subr.mxu0 0.0
    %1767 = vmatpush1.msra.mxu0 0.0
    %1768 = vmatprep.subr.mxu0 0.0
    %1769 = vmatpush1.msra.mxu0 0.0
    %1770 = vmatprep.subr.mxu0 0.0
    %1771 = vmatpush1.msra.mxu0 0.0
    %1772 = vmatprep.subr.mxu0 0.0
    %1773 = vmatpush1.msra.mxu0 0.0
    %1774 = vmatprep.subr.mxu0 0.0
    %1775 = vmatpush1.msra.mxu0 0.0
    %1776 = vmatprep.subr.mxu0 0.0
    %1777 = vmatpush1.msra.mxu0 0.0
    %1778 = vmatprep.subr.mxu0 0.0
    %1779 = vmatpush1.msra.mxu0 0.0
    %1780 = vmatprep.subr.mxu0 0.0
    %1781 = vmatpush1.msra.mxu0 0.0
    %1782 = vmatprep.subr.mxu0 0.0
    %1783 = vmatpush1.msra.mxu0 0.0
    %1784 = vmatprep.subr.mxu0 0.0
    %1785 = vmatpush1.msra.mxu0 0.0
    %1786 = vmatprep.mubr.f32.mxu0 0.0
    %1787 = vmatmul.mubr.f32.gmra.mrb[0].mxu0 %v1717
    %v1788 = vpop.f32.mrb[0].mxu0
    %v1789 = vadd.f32 0.0, %v1788
    %v1790 = vpop.f32.mrb[0].mxu0
    %1791 = vmatprep.mubr.f32.mxu0 0.0
    %1792 = vmatmul.mubr.f32.gmra.mrb[0].mxu0 %v1720
    %v1793 = vpop.f32.mrb[0].mxu0
    %v1794 = vadd.f32 0.0, %v1793
    %v1795 = vpop.f32.mrb[0].mxu0
    %1796 = vdwg.mxu0
    %v1797 = vadd.f32 %v1627, %v1789
    %v1798 = vadd.f32 %v1628, %v1794
    %s1799 = scalar_lea.vmem %s3, 288
    %v1800 = vld [vmem:[%s1799] sm:$0xff]
    %v1801 = vld [vmem:[%s1799 + $0x8] sm:$0xff]
    %v1802 = vld [vmem:[%s1799 + $0x10] sm:$0xff]
    %v1803 = vld [vmem:[%s1799 + $0x18] sm:$0xff]
    %1804 = vmatprep.subr.mxu0 0.0
    %1805 = vmatpush1.msra.mxu0 %v1800
    %1806 = vmatprep.subr.mxu0 0.0
    %1807 = vmatpush1.msra.mxu0 %v1801
    %1808 = vmatprep.subr.mxu0 0.0
    %1809 = vmatpush1.msra.mxu0 %v1802
    %1810 = vmatprep.subr.mxu0 0.0
    %1811 = vmatpush1.msra.mxu0 %v1803
    %1812 = vmatprep.subr.mxu0 0.0
    %1813 = vmatpush1.msra.mxu0 0.0
    %1814 = vmatprep.subr.mxu0 0.0
    %1815 = vmatpush1.msra.mxu0 0.0
    %1816 = vmatprep.subr.mxu0 0.0
    %1817 = vmatpush1.msra.mxu0 0.0
    %1818 = vmatprep.subr.mxu0 0.0
    %1819 = vmatpush1.msra.mxu0 0.0
    %1820 = vmatprep.subr.mxu0 0.0
    %1821 = vmatpush1.msra.mxu0 0.0
    %1822 = vmatprep.subr.mxu0 0.0
    %1823 = vmatpush1.msra.mxu0 0.0
    %1824 = vmatprep.subr.mxu0 0.0
    %1825 = vmatpush1.msra.mxu0 0.0
    %1826 = vmatprep.subr.mxu0 0.0
    %1827 = vmatpush1.msra.mxu0 0.0
    %1828 = vmatprep.subr.mxu0 0.0
    %1829 = vmatpush1.msra.mxu0 0.0
    %1830 = vmatprep.subr.mxu0 0.0
    %1831 = vmatpush1.msra.mxu0 0.0
    %1832 = vmatprep.subr.mxu0 0.0
    %1833 = vmatpush1.msra.mxu0 0.0
    %1834 = vmatprep.subr.mxu0 0.0
    %1835 = vmatpush1.msra.mxu0 0.0
    %1836 = vmatprep.subr.mxu0 0.0
    %1837 = vmatpush1.msra.mxu0 0.0
    %1838 = vmatprep.subr.mxu0 0.0
    %1839 = vmatpush1.msra.mxu0 0.0
    %1840 = vmatprep.subr.mxu0 0.0
    %1841 = vmatpush1.msra.mxu0 0.0
    %1842 = vmatprep.subr.mxu0 0.0
    %1843 = vmatpush1.msra.mxu0 0.0
    %1844 = vmatprep.subr.mxu0 0.0
    %1845 = vmatpush1.msra.mxu0 0.0
    %1846 = vmatprep.subr.mxu0 0.0
    %1847 = vmatpush1.msra.mxu0 0.0
    %1848 = vmatprep.subr.mxu0 0.0
    %1849 = vmatpush1.msra.mxu0 0.0
    %1850 = vmatprep.subr.mxu0 0.0
    %1851 = vmatpush1.msra.mxu0 0.0
    %1852 = vmatprep.subr.mxu0 0.0
    %1853 = vmatpush1.msra.mxu0 0.0
    %1854 = vmatprep.subr.mxu0 0.0
    %1855 = vmatpush1.msra.mxu0 0.0
    %1856 = vmatprep.subr.mxu0 0.0
    %1857 = vmatpush1.msra.mxu0 0.0
    %1858 = vmatprep.subr.mxu0 0.0
    %1859 = vmatpush1.msra.mxu0 0.0
    %1860 = vmatprep.subr.mxu0 0.0
    %1861 = vmatpush1.msra.mxu0 0.0
    %1862 = vmatprep.subr.mxu0 0.0
    %1863 = vmatpush1.msra.mxu0 0.0
    %1864 = vmatprep.subr.mxu0 0.0
    %1865 = vmatpush1.msra.mxu0 0.0
    %1866 = vmatprep.subr.mxu0 0.0
    %1867 = vmatpush1.msra.mxu0 0.0
    %1868 = vmatprep.mubr.f32.mxu0 0.0
    %1869 = vmatmul.mubr.f32.gmra.mrb[0].mxu0 %v1717
    %v1870 = vpop.f32.mrb[0].mxu0
    %v1871 = vadd.f32 0.0, %v1870
    %v1872 = vpop.f32.mrb[0].mxu0
    %1873 = vmatprep.mubr.f32.mxu0 0.0
    %1874 = vmatmul.mubr.f32.gmra.mrb[0].mxu0 %v1720
    %v1875 = vpop.f32.mrb[0].mxu0
    %v1876 = vadd.f32 0.0, %v1875
    %v1877 = vpop.f32.mrb[0].mxu0
    %1878 = vdwg.mxu0
    %v1879 = vadd.f32 %v1709, %v1871
    %v1880 = vadd.f32 %v1710, %v1876
    %v1881 = vxor.u32 %v1879, 2147483648
    %v1882 = vxor.u32 %v1880, 2147483648
    %v1883 = vmul.f32 %v1881, 1.442695
    %v1884 = vpow.pop %v1883
    %v1885 = vmul.f32 %v1882, 1.442695
    %v1886 = vpow.pop %v1885
    %v1887 = vadd.f32 %v1884, 1.0
    %v1888 = vadd.f32 %v1886, 1.0
    %v1889 = vrcp.pop %v1887
    %v1890 = vmul.f32 1.0, %v1889
    %v1891 = vrcp.pop %v1888
    %v1892 = vmul.f32 1.0, %v1891
    %v1893 = vmul.f32 %v1797, %v1890
    %v1894 = vmul.f32 %v1798, %v1892
    %v1895 = vadd.f32 %v1893, %v989
    %v1896 = vadd.f32 %v1894, %v990
    %v1897 = vmul.f32 %v1895, 0.70710677
    %v1898 = vmul.f32 %v1896, 0.70710677
    %v1899 = vrot.slane %v1897, 6
    %v1900 = vrot.slane %v1898, 6
    %v1901 = vsel %vm44, %v1899, %v1900
    %v1902 = vsel %vm44, %v1900, %v1899
    %v1903 = vmul.f32 %v1902, %v50
    %v1904 = vmul.f32 %v1901, %v55
    %v1905 = vrot.slane %v1897, 7
    %v1906 = vrot.slane %v1898, 7
    %v1907 = vsel %vm61, %v1905, %v1906
    %v1908 = vsel %vm61, %v1906, %v1905
    %v1909 = vmul.f32 %v1908, %v67
    %v1910 = vmul.f32 %v1907, %v72
    %v1911 = vrot.slane %v1897, 1
    %v1912 = vrot.slane %v1898, 1
    %v1913 = vsel %vm78, %v1911, %v1912
    %v1914 = vsel %vm78, %v1912, %v1911
    %v1915 = vmul.f32 %v1913, %v84
    %v1916 = vmul.f32 %v1914, %v89
    %v1917 = vrot.slane %v1897, 2
    %v1918 = vrot.slane %v1898, 2
    %v1919 = vsel %vm95, %v1917, %v1918
    %v1920 = vsel %vm95, %v1918, %v1917
    %v1921 = vmul.f32 %v1919, %v101
    %v1922 = vmul.f32 %v1920, %v106
    %s1923 = scalar_lea.vmem %s4, 2
    %v1924 = vld [vmem:[%s1923] sm:$0x1]
    %v1926 = vlaneseq
    %v1927 = vshrl.u32 %v1926, 7
    %v1928 = vsub.s32 0, %v1927
    %v1929 = vrot.slane %v1924, %v1928
    %s1931 = scalar_lea.vmem %s5, 2
    %v1932 = vld [vmem:[%s1931] sm:$0x1]
    %v1934 = vlaneseq
    %v1935 = vshrl.u32 %v1934, 7
    %v1936 = vsub.s32 0, %v1935
    %v1937 = vrot.slane %v1932, %v1936
    %s1939 = scalar_lea.vmem %s2, 320
    %v1940 = vld [vmem:[%s1939] sm:$0xff]
    %v1941 = vld [vmem:[%s1939 + $0x8] sm:$0xff]
    %v1942 = vld [vmem:[%s1939 + $0x10] sm:$0xff]
    %v1943 = vld [vmem:[%s1939 + $0x18] sm:$0xff]
    %v1945 = vsel %vm128, %v1903, 0
    %v1948 = vsel %vm128, %v1904, 0
    %1950 = vmatprep.subr.mxu0 0.0
    %1951 = vmatpush1.msra.mxu0 %v1940
    %1952 = vmatprep.subr.mxu0 0.0
    %1953 = vmatpush1.msra.mxu0 %v1941
    %1954 = vmatprep.subr.mxu0 0.0
    %1955 = vmatpush1.msra.mxu0 %v1942
    %1956 = vmatprep.subr.mxu0 0.0
    %1957 = vmatpush1.msra.mxu0 %v1943
    %1958 = vmatprep.subr.mxu0 0.0
    %1959 = vmatpush1.msra.mxu0 0.0
    %1960 = vmatprep.subr.mxu0 0.0
    %1961 = vmatpush1.msra.mxu0 0.0
    %1962 = vmatprep.subr.mxu0 0.0
    %1963 = vmatpush1.msra.mxu0 0.0
    %1964 = vmatprep.subr.mxu0 0.0
    %1965 = vmatpush1.msra.mxu0 0.0
    %1966 = vmatprep.subr.mxu0 0.0
    %1967 = vmatpush1.msra.mxu0 0.0
    %1968 = vmatprep.subr.mxu0 0.0
    %1969 = vmatpush1.msra.mxu0 0.0
    %1970 = vmatprep.subr.mxu0 0.0
    %1971 = vmatpush1.msra.mxu0 0.0
    %1972 = vmatprep.subr.mxu0 0.0
    %1973 = vmatpush1.msra.mxu0 0.0
    %1974 = vmatprep.subr.mxu0 0.0
    %1975 = vmatpush1.msra.mxu0 0.0
    %1976 = vmatprep.subr.mxu0 0.0
    %1977 = vmatpush1.msra.mxu0 0.0
    %1978 = vmatprep.subr.mxu0 0.0
    %1979 = vmatpush1.msra.mxu0 0.0
    %1980 = vmatprep.subr.mxu0 0.0
    %1981 = vmatpush1.msra.mxu0 0.0
    %1982 = vmatprep.subr.mxu0 0.0
    %1983 = vmatpush1.msra.mxu0 0.0
    %1984 = vmatprep.subr.mxu0 0.0
    %1985 = vmatpush1.msra.mxu0 0.0
    %1986 = vmatprep.subr.mxu0 0.0
    %1987 = vmatpush1.msra.mxu0 0.0
    %1988 = vmatprep.subr.mxu0 0.0
    %1989 = vmatpush1.msra.mxu0 0.0
    %1990 = vmatprep.subr.mxu0 0.0
    %1991 = vmatpush1.msra.mxu0 0.0
    %1992 = vmatprep.subr.mxu0 0.0
    %1993 = vmatpush1.msra.mxu0 0.0
    %1994 = vmatprep.subr.mxu0 0.0
    %1995 = vmatpush1.msra.mxu0 0.0
    %1996 = vmatprep.subr.mxu0 0.0
    %1997 = vmatpush1.msra.mxu0 0.0
    %1998 = vmatprep.subr.mxu0 0.0
    %1999 = vmatpush1.msra.mxu0 0.0
    %2000 = vmatprep.subr.mxu0 0.0
    %2001 = vmatpush1.msra.mxu0 0.0
    %2002 = vmatprep.subr.mxu0 0.0
    %2003 = vmatpush1.msra.mxu0 0.0
    %2004 = vmatprep.subr.mxu0 0.0
    %2005 = vmatpush1.msra.mxu0 0.0
    %2006 = vmatprep.subr.mxu0 0.0
    %2007 = vmatpush1.msra.mxu0 0.0
    %2008 = vmatprep.subr.mxu0 0.0
    %2009 = vmatpush1.msra.mxu0 0.0
    %2010 = vmatprep.subr.mxu0 0.0
    %2011 = vmatpush1.msra.mxu0 0.0
    %2012 = vmatprep.subr.mxu0 0.0
    %2013 = vmatpush1.msra.mxu0 0.0
    %2014 = vmatprep.mubr.f32.mxu0 0.0
    %2015 = vmatmul.mubr.f32.gmra.mrb[0].mxu0 %v1945
    %v2016 = vpop.f32.mrb[0].mxu0
    %v2017 = vadd.f32 0.0, %v2016
    %v2018 = vpop.f32.mrb[0].mxu0
    %2019 = vmatprep.mubr.f32.mxu0 0.0
    %2020 = vmatmul.mubr.f32.gmra.mrb[0].mxu0 %v1948
    %v2021 = vpop.f32.mrb[0].mxu0
    %v2022 = vadd.f32 0.0, %v2021
    %v2023 = vpop.f32.mrb[0].mxu0
    %2024 = vdwg.mxu0
    %v2025 = vadd.f32 %v1929, %v2017
    %v2026 = vadd.f32 %v1929, %v2022
    %s2027 = scalar_lea.vmem %s3, 320
    %v2028 = vld [vmem:[%s2027] sm:$0xff]
    %v2029 = vld [vmem:[%s2027 + $0x8] sm:$0xff]
    %v2030 = vld [vmem:[%s2027 + $0x10] sm:$0xff]
    %v2031 = vld [vmem:[%s2027 + $0x18] sm:$0xff]
    %2032 = vmatprep.subr.mxu0 0.0
    %2033 = vmatpush1.msra.mxu0 %v2028
    %2034 = vmatprep.subr.mxu0 0.0
    %2035 = vmatpush1.msra.mxu0 %v2029
    %2036 = vmatprep.subr.mxu0 0.0
    %2037 = vmatpush1.msra.mxu0 %v2030
    %2038 = vmatprep.subr.mxu0 0.0
    %2039 = vmatpush1.msra.mxu0 %v2031
    %2040 = vmatprep.subr.mxu0 0.0
    %2041 = vmatpush1.msra.mxu0 0.0
    %2042 = vmatprep.subr.mxu0 0.0
    %2043 = vmatpush1.msra.mxu0 0.0
    %2044 = vmatprep.subr.mxu0 0.0
    %2045 = vmatpush1.msra.mxu0 0.0
    %2046 = vmatprep.subr.mxu0 0.0
    %2047 = vmatpush1.msra.mxu0 0.0
    %2048 = vmatprep.subr.mxu0 0.0
    %2049 = vmatpush1.msra.mxu0 0.0
    %2050 = vmatprep.subr.mxu0 0.0
    %2051 = vmatpush1.msra.mxu0 0.0
    %2052 = vmatprep.subr.mxu0 0.0
    %2053 = vmatpush1.msra.mxu0 0.0
    %2054 = vmatprep.subr.mxu0 0.0
    %2055 = vmatpush1.msra.mxu0 0.0
    %2056 = vmatprep.subr.mxu0 0.0
    %2057 = vmatpush1.msra.mxu0 0.0
    %2058 = vmatprep.subr.mxu0 0.0
    %2059 = vmatpush1.msra.mxu0 0.0
    %2060 = vmatprep.subr.mxu0 0.0
    %2061 = vmatpush1.msra.mxu0 0.0
    %2062 = vmatprep.subr.mxu0 0.0
    %2063 = vmatpush1.msra.mxu0 0.0
    %2064 = vmatprep.subr.mxu0 0.0
    %2065 = vmatpush1.msra.mxu0 0.0
    %2066 = vmatprep.subr.mxu0 0.0
    %2067 = vmatpush1.msra.mxu0 0.0
    %2068 = vmatprep.subr.mxu0 0.0
    %2069 = vmatpush1.msra.mxu0 0.0
    %2070 = vmatprep.subr.mxu0 0.0
    %2071 = vmatpush1.msra.mxu0 0.0
    %2072 = vmatprep.subr.mxu0 0.0
    %2073 = vmatpush1.msra.mxu0 0.0
    %2074 = vmatprep.subr.mxu0 0.0
    %2075 = vmatpush1.msra.mxu0 0.0
    %2076 = vmatprep.subr.mxu0 0.0
    %2077 = vmatpush1.msra.mxu0 0.0
    %2078 = vmatprep.subr.mxu0 0.0
    %2079 = vmatpush1.msra.mxu0 0.0
    %2080 = vmatprep.subr.mxu0 0.0
    %2081 = vmatpush1.msra.mxu0 0.0
    %2082 = vmatprep.subr.mxu0 0.0
    %2083 = vmatpush1.msra.mxu0 0.0
    %2084 = vmatprep.subr.mxu0 0.0
    %2085 = vmatpush1.msra.mxu0 0.0
    %2086 = vmatprep.subr.mxu0 0.0
    %2087 = vmatpush1.msra.mxu0 0.0
    %2088 = vmatprep.subr.mxu0 0.0
    %2089 = vmatpush1.msra.mxu0 0.0
    %2090 = vmatprep.subr.mxu0 0.0
    %2091 = vmatpush1.msra.mxu0 0.0
    %2092 = vmatprep.subr.mxu0 0.0
    %2093 = vmatpush1.msra.mxu0 0.0
    %2094 = vmatprep.subr.mxu0 0.0
    %2095 = vmatpush1.msra.mxu0 0.0
    %2096 = vmatprep.mubr.f32.mxu0 0.0
    %2097 = vmatmul.mubr.f32.gmra.mrb[0].mxu0 %v1945
    %v2098 = vpop.f32.mrb[0].mxu0
    %v2099 = vadd.f32 0.0, %v2098
    %v2100 = vpop.f32.mrb[0].mxu0
    %2101 = vmatprep.mubr.f32.mxu0 0.0
    %2102 = vmatmul.mubr.f32.gmra.mrb[0].mxu0 %v1948
    %v2103 = vpop.f32.mrb[0].mxu0
    %v2104 = vadd.f32 0.0, %v2103
    %v2105 = vpop.f32.mrb[0].mxu0
    %2106 = vdwg.mxu0
    %v2107 = vadd.f32 %v1937, %v2099
    %v2108 = vadd.f32 %v1937, %v2104
    %s2109 = scalar_lea.vmem %s2, 352
    %v2110 = vld [vmem:[%s2109] sm:$0xff]
    %v2111 = vld [vmem:[%s2109 + $0x8] sm:$0xff]
    %v2112 = vld [vmem:[%s2109 + $0x10] sm:$0xff]
    %v2113 = vld [vmem:[%s2109 + $0x18] sm:$0xff]
    %v2115 = vsel %vm128, %v1909, 0
    %v2118 = vsel %vm128, %v1910, 0
    %2120 = vmatprep.subr.mxu0 0.0
    %2121 = vmatpush1.msra.mxu0 %v2110
    %2122 = vmatprep.subr.mxu0 0.0
    %2123 = vmatpush1.msra.mxu0 %v2111
    %2124 = vmatprep.subr.mxu0 0.0
    %2125 = vmatpush1.msra.mxu0 %v2112
    %2126 = vmatprep.subr.mxu0 0.0
    %2127 = vmatpush1.msra.mxu0 %v2113
    %2128 = vmatprep.subr.mxu0 0.0
    %2129 = vmatpush1.msra.mxu0 0.0
    %2130 = vmatprep.subr.mxu0 0.0
    %2131 = vmatpush1.msra.mxu0 0.0
    %2132 = vmatprep.subr.mxu0 0.0
    %2133 = vmatpush1.msra.mxu0 0.0
    %2134 = vmatprep.subr.mxu0 0.0
    %2135 = vmatpush1.msra.mxu0 0.0
    %2136 = vmatprep.subr.mxu0 0.0
    %2137 = vmatpush1.msra.mxu0 0.0
    %2138 = vmatprep.subr.mxu0 0.0
    %2139 = vmatpush1.msra.mxu0 0.0
    %2140 = vmatprep.subr.mxu0 0.0
    %2141 = vmatpush1.msra.mxu0 0.0
    %2142 = vmatprep.subr.mxu0 0.0
    %2143 = vmatpush1.msra.mxu0 0.0
    %2144 = vmatprep.subr.mxu0 0.0
    %2145 = vmatpush1.msra.mxu0 0.0
    %2146 = vmatprep.subr.mxu0 0.0
    %2147 = vmatpush1.msra.mxu0 0.0
    %2148 = vmatprep.subr.mxu0 0.0
    %2149 = vmatpush1.msra.mxu0 0.0
    %2150 = vmatprep.subr.mxu0 0.0
    %2151 = vmatpush1.msra.mxu0 0.0
    %2152 = vmatprep.subr.mxu0 0.0
    %2153 = vmatpush1.msra.mxu0 0.0
    %2154 = vmatprep.subr.mxu0 0.0
    %2155 = vmatpush1.msra.mxu0 0.0
    %2156 = vmatprep.subr.mxu0 0.0
    %2157 = vmatpush1.msra.mxu0 0.0
    %2158 = vmatprep.subr.mxu0 0.0
    %2159 = vmatpush1.msra.mxu0 0.0
    %2160 = vmatprep.subr.mxu0 0.0
    %2161 = vmatpush1.msra.mxu0 0.0
    %2162 = vmatprep.subr.mxu0 0.0
    %2163 = vmatpush1.msra.mxu0 0.0
    %2164 = vmatprep.subr.mxu0 0.0
    %2165 = vmatpush1.msra.mxu0 0.0
    %2166 = vmatprep.subr.mxu0 0.0
    %2167 = vmatpush1.msra.mxu0 0.0
    %2168 = vmatprep.subr.mxu0 0.0
    %2169 = vmatpush1.msra.mxu0 0.0
    %2170 = vmatprep.subr.mxu0 0.0
    %2171 = vmatpush1.msra.mxu0 0.0
    %2172 = vmatprep.subr.mxu0 0.0
    %2173 = vmatpush1.msra.mxu0 0.0
    %2174 = vmatprep.subr.mxu0 0.0
    %2175 = vmatpush1.msra.mxu0 0.0
    %2176 = vmatprep.subr.mxu0 0.0
    %2177 = vmatpush1.msra.mxu0 0.0
    %2178 = vmatprep.subr.mxu0 0.0
    %2179 = vmatpush1.msra.mxu0 0.0
    %2180 = vmatprep.subr.mxu0 0.0
    %2181 = vmatpush1.msra.mxu0 0.0
    %2182 = vmatprep.subr.mxu0 0.0
    %2183 = vmatpush1.msra.mxu0 0.0
    %2184 = vmatprep.mubr.f32.mxu0 0.0
    %2185 = vmatmul.mubr.f32.gmra.mrb[0].mxu0 %v2115
    %v2186 = vpop.f32.mrb[0].mxu0
    %v2187 = vadd.f32 0.0, %v2186
    %v2188 = vpop.f32.mrb[0].mxu0
    %2189 = vmatprep.mubr.f32.mxu0 0.0
    %2190 = vmatmul.mubr.f32.gmra.mrb[0].mxu0 %v2118
    %v2191 = vpop.f32.mrb[0].mxu0
    %v2192 = vadd.f32 0.0, %v2191
    %v2193 = vpop.f32.mrb[0].mxu0
    %2194 = vdwg.mxu0
    %v2195 = vadd.f32 %v2025, %v2187
    %v2196 = vadd.f32 %v2026, %v2192
    %s2197 = scalar_lea.vmem %s3, 352
    %v2198 = vld [vmem:[%s2197] sm:$0xff]
    %v2199 = vld [vmem:[%s2197 + $0x8] sm:$0xff]
    %v2200 = vld [vmem:[%s2197 + $0x10] sm:$0xff]
    %v2201 = vld [vmem:[%s2197 + $0x18] sm:$0xff]
    %2202 = vmatprep.subr.mxu0 0.0
    %2203 = vmatpush1.msra.mxu0 %v2198
    %2204 = vmatprep.subr.mxu0 0.0
    %2205 = vmatpush1.msra.mxu0 %v2199
    %2206 = vmatprep.subr.mxu0 0.0
    %2207 = vmatpush1.msra.mxu0 %v2200
    %2208 = vmatprep.subr.mxu0 0.0
    %2209 = vmatpush1.msra.mxu0 %v2201
    %2210 = vmatprep.subr.mxu0 0.0
    %2211 = vmatpush1.msra.mxu0 0.0
    %2212 = vmatprep.subr.mxu0 0.0
    %2213 = vmatpush1.msra.mxu0 0.0
    %2214 = vmatprep.subr.mxu0 0.0
    %2215 = vmatpush1.msra.mxu0 0.0
    %2216 = vmatprep.subr.mxu0 0.0
    %2217 = vmatpush1.msra.mxu0 0.0
    %2218 = vmatprep.subr.mxu0 0.0
    %2219 = vmatpush1.msra.mxu0 0.0
    %2220 = vmatprep.subr.mxu0 0.0
    %2221 = vmatpush1.msra.mxu0 0.0
    %2222 = vmatprep.subr.mxu0 0.0
    %2223 = vmatpush1.msra.mxu0 0.0
    %2224 = vmatprep.subr.mxu0 0.0
    %2225 = vmatpush1.msra.mxu0 0.0
    %2226 = vmatprep.subr.mxu0 0.0
    %2227 = vmatpush1.msra.mxu0 0.0
    %2228 = vmatprep.subr.mxu0 0.0
    %2229 = vmatpush1.msra.mxu0 0.0
    %2230 = vmatprep.subr.mxu0 0.0
    %2231 = vmatpush1.msra.mxu0 0.0
    %2232 = vmatprep.subr.mxu0 0.0
    %2233 = vmatpush1.msra.mxu0 0.0
    %2234 = vmatprep.subr.mxu0 0.0
    %2235 = vmatpush1.msra.mxu0 0.0
    %2236 = vmatprep.subr.mxu0 0.0
    %2237 = vmatpush1.msra.mxu0 0.0
    %2238 = vmatprep.subr.mxu0 0.0
    %2239 = vmatpush1.msra.mxu0 0.0
    %2240 = vmatprep.subr.mxu0 0.0
    %2241 = vmatpush1.msra.mxu0 0.0
    %2242 = vmatprep.subr.mxu0 0.0
    %2243 = vmatpush1.msra.mxu0 0.0
    %2244 = vmatprep.subr.mxu0 0.0
    %2245 = vmatpush1.msra.mxu0 0.0
    %2246 = vmatprep.subr.mxu0 0.0
    %2247 = vmatpush1.msra.mxu0 0.0
    %2248 = vmatprep.subr.mxu0 0.0
    %2249 = vmatpush1.msra.mxu0 0.0
    %2250 = vmatprep.subr.mxu0 0.0
    %2251 = vmatpush1.msra.mxu0 0.0
    %2252 = vmatprep.subr.mxu0 0.0
    %2253 = vmatpush1.msra.mxu0 0.0
    %2254 = vmatprep.subr.mxu0 0.0
    %2255 = vmatpush1.msra.mxu0 0.0
    %2256 = vmatprep.subr.mxu0 0.0
    %2257 = vmatpush1.msra.mxu0 0.0
    %2258 = vmatprep.subr.mxu0 0.0
    %2259 = vmatpush1.msra.mxu0 0.0
    %2260 = vmatprep.subr.mxu0 0.0
    %2261 = vmatpush1.msra.mxu0 0.0
    %2262 = vmatprep.subr.mxu0 0.0
    %2263 = vmatpush1.msra.mxu0 0.0
    %2264 = vmatprep.subr.mxu0 0.0
    %2265 = vmatpush1.msra.mxu0 0.0
    %2266 = vmatprep.mubr.f32.mxu0 0.0
    %2267 = vmatmul.mubr.f32.gmra.mrb[0].mxu0 %v2115
    %v2268 = vpop.f32.mrb[0].mxu0
    %v2269 = vadd.f32 0.0, %v2268
    %v2270 = vpop.f32.mrb[0].mxu0
    %2271 = vmatprep.mubr.f32.mxu0 0.0
    %2272 = vmatmul.mubr.f32.gmra.mrb[0].mxu0 %v2118
    %v2273 = vpop.f32.mrb[0].mxu0
    %v2274 = vadd.f32 0.0, %v2273
    %v2275 = vpop.f32.mrb[0].mxu0
    %2276 = vdwg.mxu0
    %v2277 = vadd.f32 %v2107, %v2269
    %v2278 = vadd.f32 %v2108, %v2274
    %s2279 = scalar_lea.vmem %s2, 384
    %v2280 = vld [vmem:[%s2279] sm:$0xff]
    %v2281 = vld [vmem:[%s2279 + $0x8] sm:$0xff]
    %v2282 = vld [vmem:[%s2279 + $0x10] sm:$0xff]
    %v2283 = vld [vmem:[%s2279 + $0x18] sm:$0xff]
    %v2285 = vsel %vm128, %v1897, 0
    %v2288 = vsel %vm128, %v1898, 0
    %2290 = vmatprep.subr.mxu0 0.0
    %2291 = vmatpush1.msra.mxu0 %v2280
    %2292 = vmatprep.subr.mxu0 0.0
    %2293 = vmatpush1.msra.mxu0 %v2281
    %2294 = vmatprep.subr.mxu0 0.0
    %2295 = vmatpush1.msra.mxu0 %v2282
    %2296 = vmatprep.subr.mxu0 0.0
    %2297 = vmatpush1.msra.mxu0 %v2283
    %2298 = vmatprep.subr.mxu0 0.0
    %2299 = vmatpush1.msra.mxu0 0.0
    %2300 = vmatprep.subr.mxu0 0.0
    %2301 = vmatpush1.msra.mxu0 0.0
    %2302 = vmatprep.subr.mxu0 0.0
    %2303 = vmatpush1.msra.mxu0 0.0
    %2304 = vmatprep.subr.mxu0 0.0
    %2305 = vmatpush1.msra.mxu0 0.0
    %2306 = vmatprep.subr.mxu0 0.0
    %2307 = vmatpush1.msra.mxu0 0.0
    %2308 = vmatprep.subr.mxu0 0.0
    %2309 = vmatpush1.msra.mxu0 0.0
    %2310 = vmatprep.subr.mxu0 0.0
    %2311 = vmatpush1.msra.mxu0 0.0
    %2312 = vmatprep.subr.mxu0 0.0
    %2313 = vmatpush1.msra.mxu0 0.0
    %2314 = vmatprep.subr.mxu0 0.0
    %2315 = vmatpush1.msra.mxu0 0.0
    %2316 = vmatprep.subr.mxu0 0.0
    %2317 = vmatpush1.msra.mxu0 0.0
    %2318 = vmatprep.subr.mxu0 0.0
    %2319 = vmatpush1.msra.mxu0 0.0
    %2320 = vmatprep.subr.mxu0 0.0
    %2321 = vmatpush1.msra.mxu0 0.0
    %2322 = vmatprep.subr.mxu0 0.0
    %2323 = vmatpush1.msra.mxu0 0.0
    %2324 = vmatprep.subr.mxu0 0.0
    %2325 = vmatpush1.msra.mxu0 0.0
    %2326 = vmatprep.subr.mxu0 0.0
    %2327 = vmatpush1.msra.mxu0 0.0
    %2328 = vmatprep.subr.mxu0 0.0
    %2329 = vmatpush1.msra.mxu0 0.0
    %2330 = vmatprep.subr.mxu0 0.0
    %2331 = vmatpush1.msra.mxu0 0.0
    %2332 = vmatprep.subr.mxu0 0.0
    %2333 = vmatpush1.msra.mxu0 0.0
    %2334 = vmatprep.subr.mxu0 0.0
    %2335 = vmatpush1.msra.mxu0 0.0
    %2336 = vmatprep.subr.mxu0 0.0
    %2337 = vmatpush1.msra.mxu0 0.0
    %2338 = vmatprep.subr.mxu0 0.0
    %2339 = vmatpush1.msra.mxu0 0.0
    %2340 = vmatprep.subr.mxu0 0.0
    %2341 = vmatpush1.msra.mxu0 0.0
    %2342 = vmatprep.subr.mxu0 0.0
    %2343 = vmatpush1.msra.mxu0 0.0
    %2344 = vmatprep.subr.mxu0 0.0
    %2345 = vmatpush1.msra.mxu0 0.0
    %2346 = vmatprep.subr.mxu0 0.0
    %2347 = vmatpush1.msra.mxu0 0.0
    %2348 = vmatprep.subr.mxu0 0.0
    %2349 = vmatpush1.msra.mxu0 0.0
    %2350 = vmatprep.subr.mxu0 0.0
    %2351 = vmatpush1.msra.mxu0 0.0
    %2352 = vmatprep.subr.mxu0 0.0
    %2353 = vmatpush1.msra.mxu0 0.0
    %2354 = vmatprep.mubr.f32.mxu0 0.0
    %2355 = vmatmul.mubr.f32.gmra.mrb[0].mxu0 %v2285
    %v2356 = vpop.f32.mrb[0].mxu0
    %v2357 = vadd.f32 0.0, %v2356
    %v2358 = vpop.f32.mrb[0].mxu0
    %2359 = vmatprep.mubr.f32.mxu0 0.0
    %2360 = vmatmul.mubr.f32.gmra.mrb[0].mxu0 %v2288
    %v2361 = vpop.f32.mrb[0].mxu0
    %v2362 = vadd.f32 0.0, %v2361
    %v2363 = vpop.f32.mrb[0].mxu0
    %2364 = vdwg.mxu0
    %v2365 = vadd.f32 %v2195, %v2357
    %v2366 = vadd.f32 %v2196, %v2362
    %s2367 = scalar_lea.vmem %s3, 384
    %v2368 = vld [vmem:[%s2367] sm:$0xff]
    %v2369 = vld [vmem:[%s2367 + $0x8] sm:$0xff]
    %v2370 = vld [vmem:[%s2367 + $0x10] sm:$0xff]
    %v2371 = vld [vmem:[%s2367 + $0x18] sm:$0xff]
    %2372 = vmatprep.subr.mxu0 0.0
    %2373 = vmatpush1.msra.mxu0 %v2368
    %2374 = vmatprep.subr.mxu0 0.0
    %2375 = vmatpush1.msra.mxu0 %v2369
    %2376 = vmatprep.subr.mxu0 0.0
    %2377 = vmatpush1.msra.mxu0 %v2370
    %2378 = vmatprep.subr.mxu0 0.0
    %2379 = vmatpush1.msra.mxu0 %v2371
    %2380 = vmatprep.subr.mxu0 0.0
    %2381 = vmatpush1.msra.mxu0 0.0
    %2382 = vmatprep.subr.mxu0 0.0
    %2383 = vmatpush1.msra.mxu0 0.0
    %2384 = vmatprep.subr.mxu0 0.0
    %2385 = vmatpush1.msra.mxu0 0.0
    %2386 = vmatprep.subr.mxu0 0.0
    %2387 = vmatpush1.msra.mxu0 0.0
    %2388 = vmatprep.subr.mxu0 0.0
    %2389 = vmatpush1.msra.mxu0 0.0
    %2390 = vmatprep.subr.mxu0 0.0
    %2391 = vmatpush1.msra.mxu0 0.0
    %2392 = vmatprep.subr.mxu0 0.0
    %2393 = vmatpush1.msra.mxu0 0.0
    %2394 = vmatprep.subr.mxu0 0.0
    %2395 = vmatpush1.msra.mxu0 0.0
    %2396 = vmatprep.subr.mxu0 0.0
    %2397 = vmatpush1.msra.mxu0 0.0
    %2398 = vmatprep.subr.mxu0 0.0
    %2399 = vmatpush1.msra.mxu0 0.0
    %2400 = vmatprep.subr.mxu0 0.0
    %2401 = vmatpush1.msra.mxu0 0.0
    %2402 = vmatprep.subr.mxu0 0.0
    %2403 = vmatpush1.msra.mxu0 0.0
    %2404 = vmatprep.subr.mxu0 0.0
    %2405 = vmatpush1.msra.mxu0 0.0
    %2406 = vmatprep.subr.mxu0 0.0
    %2407 = vmatpush1.msra.mxu0 0.0
    %2408 = vmatprep.subr.mxu0 0.0
    %2409 = vmatpush1.msra.mxu0 0.0
    %2410 = vmatprep.subr.mxu0 0.0
    %2411 = vmatpush1.msra.mxu0 0.0
    %2412 = vmatprep.subr.mxu0 0.0
    %2413 = vmatpush1.msra.mxu0 0.0
    %2414 = vmatprep.subr.mxu0 0.0
    %2415 = vmatpush1.msra.mxu0 0.0
    %2416 = vmatprep.subr.mxu0 0.0
    %2417 = vmatpush1.msra.mxu0 0.0
    %2418 = vmatprep.subr.mxu0 0.0
    %2419 = vmatpush1.msra.mxu0 0.0
    %2420 = vmatprep.subr.mxu0 0.0
    %2421 = vmatpush1.msra.mxu0 0.0
    %2422 = vmatprep.subr.mxu0 0.0
    %2423 = vmatpush1.msra.mxu0 0.0
    %2424 = vmatprep.subr.mxu0 0.0
    %2425 = vmatpush1.msra.mxu0 0.0
    %2426 = vmatprep.subr.mxu0 0.0
    %2427 = vmatpush1.msra.mxu0 0.0
    %2428 = vmatprep.subr.mxu0 0.0
    %2429 = vmatpush1.msra.mxu0 0.0
    %2430 = vmatprep.subr.mxu0 0.0
    %2431 = vmatpush1.msra.mxu0 0.0
    %2432 = vmatprep.subr.mxu0 0.0
    %2433 = vmatpush1.msra.mxu0 0.0
    %2434 = vmatprep.subr.mxu0 0.0
    %2435 = vmatpush1.msra.mxu0 0.0
    %2436 = vmatprep.mubr.f32.mxu0 0.0
    %2437 = vmatmul.mubr.f32.gmra.mrb[0].mxu0 %v2285
    %v2438 = vpop.f32.mrb[0].mxu0
    %v2439 = vadd.f32 0.0, %v2438
    %v2440 = vpop.f32.mrb[0].mxu0
    %2441 = vmatprep.mubr.f32.mxu0 0.0
    %2442 = vmatmul.mubr.f32.gmra.mrb[0].mxu0 %v2288
    %v2443 = vpop.f32.mrb[0].mxu0
    %v2444 = vadd.f32 0.0, %v2443
    %v2445 = vpop.f32.mrb[0].mxu0
    %2446 = vdwg.mxu0
    %v2447 = vadd.f32 %v2277, %v2439
    %v2448 = vadd.f32 %v2278, %v2444
    %s2449 = scalar_lea.vmem %s2, 416
    %v2450 = vld [vmem:[%s2449] sm:$0xff]
    %v2451 = vld [vmem:[%s2449 + $0x8] sm:$0xff]
    %v2452 = vld [vmem:[%s2449 + $0x10] sm:$0xff]
    %v2453 = vld [vmem:[%s2449 + $0x18] sm:$0xff]
    %v2455 = vsel %vm128, %v1915, 0
    %v2458 = vsel %vm128, %v1916, 0
    %2460 = vmatprep.subr.mxu0 0.0
    %2461 = vmatpush1.msra.mxu0 %v2450
    %2462 = vmatprep.subr.mxu0 0.0
    %2463 = vmatpush1.msra.mxu0 %v2451
    %2464 = vmatprep.subr.mxu0 0.0
    %2465 = vmatpush1.msra.mxu0 %v2452
    %2466 = vmatprep.subr.mxu0 0.0
    %2467 = vmatpush1.msra.mxu0 %v2453
    %2468 = vmatprep.subr.mxu0 0.0
    %2469 = vmatpush1.msra.mxu0 0.0
    %2470 = vmatprep.subr.mxu0 0.0
    %2471 = vmatpush1.msra.mxu0 0.0
    %2472 = vmatprep.subr.mxu0 0.0
    %2473 = vmatpush1.msra.mxu0 0.0
    %2474 = vmatprep.subr.mxu0 0.0
    %2475 = vmatpush1.msra.mxu0 0.0
    %2476 = vmatprep.subr.mxu0 0.0
    %2477 = vmatpush1.msra.mxu0 0.0
    %2478 = vmatprep.subr.mxu0 0.0
    %2479 = vmatpush1.msra.mxu0 0.0
    %2480 = vmatprep.subr.mxu0 0.0
    %2481 = vmatpush1.msra.mxu0 0.0
    %2482 = vmatprep.subr.mxu0 0.0
    %2483 = vmatpush1.msra.mxu0 0.0
    %2484 = vmatprep.subr.mxu0 0.0
    %2485 = vmatpush1.msra.mxu0 0.0
    %2486 = vmatprep.subr.mxu0 0.0
    %2487 = vmatpush1.msra.mxu0 0.0
    %2488 = vmatprep.subr.mxu0 0.0
    %2489 = vmatpush1.msra.mxu0 0.0
    %2490 = vmatprep.subr.mxu0 0.0
    %2491 = vmatpush1.msra.mxu0 0.0
    %2492 = vmatprep.subr.mxu0 0.0
    %2493 = vmatpush1.msra.mxu0 0.0
    %2494 = vmatprep.subr.mxu0 0.0
    %2495 = vmatpush1.msra.mxu0 0.0
    %2496 = vmatprep.subr.mxu0 0.0
    %2497 = vmatpush1.msra.mxu0 0.0
    %2498 = vmatprep.subr.mxu0 0.0
    %2499 = vmatpush1.msra.mxu0 0.0
    %2500 = vmatprep.subr.mxu0 0.0
    %2501 = vmatpush1.msra.mxu0 0.0
    %2502 = vmatprep.subr.mxu0 0.0
    %2503 = vmatpush1.msra.mxu0 0.0
    %2504 = vmatprep.subr.mxu0 0.0
    %2505 = vmatpush1.msra.mxu0 0.0
    %2506 = vmatprep.subr.mxu0 0.0
    %2507 = vmatpush1.msra.mxu0 0.0
    %2508 = vmatprep.subr.mxu0 0.0
    %2509 = vmatpush1.msra.mxu0 0.0
    %2510 = vmatprep.subr.mxu0 0.0
    %2511 = vmatpush1.msra.mxu0 0.0
    %2512 = vmatprep.subr.mxu0 0.0
    %2513 = vmatpush1.msra.mxu0 0.0
    %2514 = vmatprep.subr.mxu0 0.0
    %2515 = vmatpush1.msra.mxu0 0.0
    %2516 = vmatprep.subr.mxu0 0.0
    %2517 = vmatpush1.msra.mxu0 0.0
    %2518 = vmatprep.subr.mxu0 0.0
    %2519 = vmatpush1.msra.mxu0 0.0
    %2520 = vmatprep.subr.mxu0 0.0
    %2521 = vmatpush1.msra.mxu0 0.0
    %2522 = vmatprep.subr.mxu0 0.0
    %2523 = vmatpush1.msra.mxu0 0.0
    %2524 = vmatprep.mubr.f32.mxu0 0.0
    %2525 = vmatmul.mubr.f32.gmra.mrb[0].mxu0 %v2455
    %v2526 = vpop.f32.mrb[0].mxu0
    %v2527 = vadd.f32 0.0, %v2526
    %v2528 = vpop.f32.mrb[0].mxu0
    %2529 = vmatprep.mubr.f32.mxu0 0.0
    %2530 = vmatmul.mubr.f32.gmra.mrb[0].mxu0 %v2458
    %v2531 = vpop.f32.mrb[0].mxu0
    %v2532 = vadd.f32 0.0, %v2531
    %v2533 = vpop.f32.mrb[0].mxu0
    %2534 = vdwg.mxu0
    %v2535 = vadd.f32 %v2365, %v2527
    %v2536 = vadd.f32 %v2366, %v2532
    %s2537 = scalar_lea.vmem %s3, 416
    %v2538 = vld [vmem:[%s2537] sm:$0xff]
    %v2539 = vld [vmem:[%s2537 + $0x8] sm:$0xff]
    %v2540 = vld [vmem:[%s2537 + $0x10] sm:$0xff]
    %v2541 = vld [vmem:[%s2537 + $0x18] sm:$0xff]
    %2542 = vmatprep.subr.mxu0 0.0
    %2543 = vmatpush1.msra.mxu0 %v2538
    %2544 = vmatprep.subr.mxu0 0.0
    %2545 = vmatpush1.msra.mxu0 %v2539
    %2546 = vmatprep.subr.mxu0 0.0
    %2547 = vmatpush1.msra.mxu0 %v2540
    %2548 = vmatprep.subr.mxu0 0.0
    %2549 = vmatpush1.msra.mxu0 %v2541
    %2550 = vmatprep.subr.mxu0 0.0
    %2551 = vmatpush1.msra.mxu0 0.0
    %2552 = vmatprep.subr.mxu0 0.0
    %2553 = vmatpush1.msra.mxu0 0.0
    %2554 = vmatprep.subr.mxu0 0.0
    %2555 = vmatpush1.msra.mxu0 0.0
    %2556 = vmatprep.subr.mxu0 0.0
    %2557 = vmatpush1.msra.mxu0 0.0
    %2558 = vmatprep.subr.mxu0 0.0
    %2559 = vmatpush1.msra.mxu0 0.0
    %2560 = vmatprep.subr.mxu0 0.0
    %2561 = vmatpush1.msra.mxu0 0.0
    %2562 = vmatprep.subr.mxu0 0.0
    %2563 = vmatpush1.msra.mxu0 0.0
    %2564 = vmatprep.subr.mxu0 0.0
    %2565 = vmatpush1.msra.mxu0 0.0
    %2566 = vmatprep.subr.mxu0 0.0
    %2567 = vmatpush1.msra.mxu0 0.0
    %2568 = vmatprep.subr.mxu0 0.0
    %2569 = vmatpush1.msra.mxu0 0.0
    %2570 = vmatprep.subr.mxu0 0.0
    %2571 = vmatpush1.msra.mxu0 0.0
    %2572 = vmatprep.subr.mxu0 0.0
    %2573 = vmatpush1.msra.mxu0 0.0
    %2574 = vmatprep.subr.mxu0 0.0
    %2575 = vmatpush1.msra.mxu0 0.0
    %2576 = vmatprep.subr.mxu0 0.0
    %2577 = vmatpush1.msra.mxu0 0.0
    %2578 = vmatprep.subr.mxu0 0.0
    %2579 = vmatpush1.msra.mxu0 0.0
    %2580 = vmatprep.subr.mxu0 0.0
    %2581 = vmatpush1.msra.mxu0 0.0
    %2582 = vmatprep.subr.mxu0 0.0
    %2583 = vmatpush1.msra.mxu0 0.0
    %2584 = vmatprep.subr.mxu0 0.0
    %2585 = vmatpush1.msra.mxu0 0.0
    %2586 = vmatprep.subr.mxu0 0.0
    %2587 = vmatpush1.msra.mxu0 0.0
    %2588 = vmatprep.subr.mxu0 0.0
    %2589 = vmatpush1.msra.mxu0 0.0
    %2590 = vmatprep.subr.mxu0 0.0
    %2591 = vmatpush1.msra.mxu0 0.0
    %2592 = vmatprep.subr.mxu0 0.0
    %2593 = vmatpush1.msra.mxu0 0.0
    %2594 = vmatprep.subr.mxu0 0.0
    %2595 = vmatpush1.msra.mxu0 0.0
    %2596 = vmatprep.subr.mxu0 0.0
    %2597 = vmatpush1.msra.mxu0 0.0
    %2598 = vmatprep.subr.mxu0 0.0
    %2599 = vmatpush1.msra.mxu0 0.0
    %2600 = vmatprep.subr.mxu0 0.0
    %2601 = vmatpush1.msra.mxu0 0.0
    %2602 = vmatprep.subr.mxu0 0.0
    %2603 = vmatpush1.msra.mxu0 0.0
    %2604 = vmatprep.subr.mxu0 0.0
    %2605 = vmatpush1.msra.mxu0 0.0
    %2606 = vmatprep.mubr.f32.mxu0 0.0
    %2607 = vmatmul.mubr.f32.gmra.mrb[0].mxu0 %v2455
    %v2608 = vpop.f32.mrb[0].mxu0
    %v2609 = vadd.f32 0.0, %v2608
    %v2610 = vpop.f32.mrb[0].mxu0
    %2611 = vmatprep.mubr.f32.mxu0 0.0
    %2612 = vmatmul.mubr.f32.gmra.mrb[0].mxu0 %v2458
    %v2613 = vpop.f32.mrb[0].mxu0
    %v2614 = vadd.f32 0.0, %v2613
    %v2615 = vpop.f32.mrb[0].mxu0
    %2616 = vdwg.mxu0
    %v2617 = vadd.f32 %v2447, %v2609
    %v2618 = vadd.f32 %v2448, %v2614
    %s2619 = scalar_lea.vmem %s2, 448
    %v2620 = vld [vmem:[%s2619] sm:$0xff]
    %v2621 = vld [vmem:[%s2619 + $0x8] sm:$0xff]
    %v2622 = vld [vmem:[%s2619 + $0x10] sm:$0xff]
    %v2623 = vld [vmem:[%s2619 + $0x18] sm:$0xff]
    %v2625 = vsel %vm128, %v1921, 0
    %v2628 = vsel %vm128, %v1922, 0
    %2630 = vmatprep.subr.mxu0 0.0
    %2631 = vmatpush1.msra.mxu0 %v2620
    %2632 = vmatprep.subr.mxu0 0.0
    %2633 = vmatpush1.msra.mxu0 %v2621
    %2634 = vmatprep.subr.mxu0 0.0
    %2635 = vmatpush1.msra.mxu0 %v2622
    %2636 = vmatprep.subr.mxu0 0.0
    %2637 = vmatpush1.msra.mxu0 %v2623
    %2638 = vmatprep.subr.mxu0 0.0
    %2639 = vmatpush1.msra.mxu0 0.0
    %2640 = vmatprep.subr.mxu0 0.0
    %2641 = vmatpush1.msra.mxu0 0.0
    %2642 = vmatprep.subr.mxu0 0.0
    %2643 = vmatpush1.msra.mxu0 0.0
    %2644 = vmatprep.subr.mxu0 0.0
    %2645 = vmatpush1.msra.mxu0 0.0
    %2646 = vmatprep.subr.mxu0 0.0
    %2647 = vmatpush1.msra.mxu0 0.0
    %2648 = vmatprep.subr.mxu0 0.0
    %2649 = vmatpush1.msra.mxu0 0.0
    %2650 = vmatprep.subr.mxu0 0.0
    %2651 = vmatpush1.msra.mxu0 0.0
    %2652 = vmatprep.subr.mxu0 0.0
    %2653 = vmatpush1.msra.mxu0 0.0
    %2654 = vmatprep.subr.mxu0 0.0
    %2655 = vmatpush1.msra.mxu0 0.0
    %2656 = vmatprep.subr.mxu0 0.0
    %2657 = vmatpush1.msra.mxu0 0.0
    %2658 = vmatprep.subr.mxu0 0.0
    %2659 = vmatpush1.msra.mxu0 0.0
    %2660 = vmatprep.subr.mxu0 0.0
    %2661 = vmatpush1.msra.mxu0 0.0
    %2662 = vmatprep.subr.mxu0 0.0
    %2663 = vmatpush1.msra.mxu0 0.0
    %2664 = vmatprep.subr.mxu0 0.0
    %2665 = vmatpush1.msra.mxu0 0.0
    %2666 = vmatprep.subr.mxu0 0.0
    %2667 = vmatpush1.msra.mxu0 0.0
    %2668 = vmatprep.subr.mxu0 0.0
    %2669 = vmatpush1.msra.mxu0 0.0
    %2670 = vmatprep.subr.mxu0 0.0
    %2671 = vmatpush1.msra.mxu0 0.0
    %2672 = vmatprep.subr.mxu0 0.0
    %2673 = vmatpush1.msra.mxu0 0.0
    %2674 = vmatprep.subr.mxu0 0.0
    %2675 = vmatpush1.msra.mxu0 0.0
    %2676 = vmatprep.subr.mxu0 0.0
    %2677 = vmatpush1.msra.mxu0 0.0
    %2678 = vmatprep.subr.mxu0 0.0
    %2679 = vmatpush1.msra.mxu0 0.0
    %2680 = vmatprep.subr.mxu0 0.0
    %2681 = vmatpush1.msra.mxu0 0.0
    %2682 = vmatprep.subr.mxu0 0.0
    %2683 = vmatpush1.msra.mxu0 0.0
    %2684 = vmatprep.subr.mxu0 0.0
    %2685 = vmatpush1.msra.mxu0 0.0
    %2686 = vmatprep.subr.mxu0 0.0
    %2687 = vmatpush1.msra.mxu0 0.0
    %2688 = vmatprep.subr.mxu0 0.0
    %2689 = vmatpush1.msra.mxu0 0.0
    %2690 = vmatprep.subr.mxu0 0.0
    %2691 = vmatpush1.msra.mxu0 0.0
    %2692 = vmatprep.subr.mxu0 0.0
    %2693 = vmatpush1.msra.mxu0 0.0
    %2694 = vmatprep.mubr.f32.mxu0 0.0
    %2695 = vmatmul.mubr.f32.gmra.mrb[0].mxu0 %v2625
    %v2696 = vpop.f32.mrb[0].mxu0
    %v2697 = vadd.f32 0.0, %v2696
    %v2698 = vpop.f32.mrb[0].mxu0
    %2699 = vmatprep.mubr.f32.mxu0 0.0
    %2700 = vmatmul.mubr.f32.gmra.mrb[0].mxu0 %v2628
    %v2701 = vpop.f32.mrb[0].mxu0
    %v2702 = vadd.f32 0.0, %v2701
    %v2703 = vpop.f32.mrb[0].mxu0
    %2704 = vdwg.mxu0
    %v2705 = vadd.f32 %v2535, %v2697
    %v2706 = vadd.f32 %v2536, %v2702
    %s2707 = scalar_lea.vmem %s3, 448
    %v2708 = vld [vmem:[%s2707] sm:$0xff]
    %v2709 = vld [vmem:[%s2707 + $0x8] sm:$0xff]
    %v2710 = vld [vmem:[%s2707 + $0x10] sm:$0xff]
    %v2711 = vld [vmem:[%s2707 + $0x18] sm:$0xff]
    %2712 = vmatprep.subr.mxu0 0.0
    %2713 = vmatpush1.msra.mxu0 %v2708
    %2714 = vmatprep.subr.mxu0 0.0
    %2715 = vmatpush1.msra.mxu0 %v2709
    %2716 = vmatprep.subr.mxu0 0.0
    %2717 = vmatpush1.msra.mxu0 %v2710
    %2718 = vmatprep.subr.mxu0 0.0
    %2719 = vmatpush1.msra.mxu0 %v2711
    %2720 = vmatprep.subr.mxu0 0.0
    %2721 = vmatpush1.msra.mxu0 0.0
    %2722 = vmatprep.subr.mxu0 0.0
    %2723 = vmatpush1.msra.mxu0 0.0
    %2724 = vmatprep.subr.mxu0 0.0
    %2725 = vmatpush1.msra.mxu0 0.0
    %2726 = vmatprep.subr.mxu0 0.0
    %2727 = vmatpush1.msra.mxu0 0.0
    %2728 = vmatprep.subr.mxu0 0.0
    %2729 = vmatpush1.msra.mxu0 0.0
    %2730 = vmatprep.subr.mxu0 0.0
    %2731 = vmatpush1.msra.mxu0 0.0
    %2732 = vmatprep.subr.mxu0 0.0
    %2733 = vmatpush1.msra.mxu0 0.0
    %2734 = vmatprep.subr.mxu0 0.0
    %2735 = vmatpush1.msra.mxu0 0.0
    %2736 = vmatprep.subr.mxu0 0.0
    %2737 = vmatpush1.msra.mxu0 0.0
    %2738 = vmatprep.subr.mxu0 0.0
    %2739 = vmatpush1.msra.mxu0 0.0
    %2740 = vmatprep.subr.mxu0 0.0
    %2741 = vmatpush1.msra.mxu0 0.0
    %2742 = vmatprep.subr.mxu0 0.0
    %2743 = vmatpush1.msra.mxu0 0.0
    %2744 = vmatprep.subr.mxu0 0.0
    %2745 = vmatpush1.msra.mxu0 0.0
    %2746 = vmatprep.subr.mxu0 0.0
    %2747 = vmatpush1.msra.mxu0 0.0
    %2748 = vmatprep.subr.mxu0 0.0
    %2749 = vmatpush1.msra.mxu0 0.0
    %2750 = vmatprep.subr.mxu0 0.0
    %2751 = vmatpush1.msra.mxu0 0.0
    %2752 = vmatprep.subr.mxu0 0.0
    %2753 = vmatpush1.msra.mxu0 0.0
    %2754 = vmatprep.subr.mxu0 0.0
    %2755 = vmatpush1.msra.mxu0 0.0
    %2756 = vmatprep.subr.mxu0 0.0
    %2757 = vmatpush1.msra.mxu0 0.0
    %2758 = vmatprep.subr.mxu0 0.0
    %2759 = vmatpush1.msra.mxu0 0.0
    %2760 = vmatprep.subr.mxu0 0.0
    %2761 = vmatpush1.msra.mxu0 0.0
    %2762 = vmatprep.subr.mxu0 0.0
    %2763 = vmatpush1.msra.mxu0 0.0
    %2764 = vmatprep.subr.mxu0 0.0
    %2765 = vmatpush1.msra.mxu0 0.0
    %2766 = vmatprep.subr.mxu0 0.0
    %2767 = vmatpush1.msra.mxu0 0.0
    %2768 = vmatprep.subr.mxu0 0.0
    %2769 = vmatpush1.msra.mxu0 0.0
    %2770 = vmatprep.subr.mxu0 0.0
    %2771 = vmatpush1.msra.mxu0 0.0
    %2772 = vmatprep.subr.mxu0 0.0
    %2773 = vmatpush1.msra.mxu0 0.0
    %2774 = vmatprep.subr.mxu0 0.0
    %2775 = vmatpush1.msra.mxu0 0.0
    %2776 = vmatprep.mubr.f32.mxu0 0.0
    %2777 = vmatmul.mubr.f32.gmra.mrb[0].mxu0 %v2625
    %v2778 = vpop.f32.mrb[0].mxu0
    %v2779 = vadd.f32 0.0, %v2778
    %v2780 = vpop.f32.mrb[0].mxu0
    %2781 = vmatprep.mubr.f32.mxu0 0.0
    %2782 = vmatmul.mubr.f32.gmra.mrb[0].mxu0 %v2628
    %v2783 = vpop.f32.mrb[0].mxu0
    %v2784 = vadd.f32 0.0, %v2783
    %v2785 = vpop.f32.mrb[0].mxu0
    %2786 = vdwg.mxu0
    %v2787 = vadd.f32 %v2617, %v2779
    %v2788 = vadd.f32 %v2618, %v2784
    %v2789 = vxor.u32 %v2787, 2147483648
    %v2790 = vxor.u32 %v2788, 2147483648
    %v2791 = vmul.f32 %v2789, 1.442695
    %v2792 = vpow.pop %v2791
    %v2793 = vmul.f32 %v2790, 1.442695
    %v2794 = vpow.pop %v2793
    %v2795 = vadd.f32 %v2792, 1.0
    %v2796 = vadd.f32 %v2794, 1.0
    %v2797 = vrcp.pop %v2795
    %v2798 = vmul.f32 1.0, %v2797
    %v2799 = vrcp.pop %v2796
    %v2800 = vmul.f32 1.0, %v2799
    %v2801 = vmul.f32 %v2705, %v2798
    %v2802 = vmul.f32 %v2706, %v2800
    %v2803 = vadd.f32 %v2801, %v1897
    %v2804 = vadd.f32 %v2802, %v1898
    %v2805 = vmul.f32 %v2803, 0.70710677
    %v2806 = vmul.f32 %v2804, 0.70710677
    %v2807 = vrot.slane %v2805, 6
    %v2808 = vrot.slane %v2806, 6
    %v2809 = vsel %vm44, %v2807, %v2808
    %v2810 = vsel %vm44, %v2808, %v2807
    %v2811 = vmul.f32 %v2810, %v50
    %v2812 = vmul.f32 %v2809, %v55
    %v2813 = vrot.slane %v2805, 7
    %v2814 = vrot.slane %v2806, 7
    %v2815 = vsel %vm61, %v2813, %v2814
    %v2816 = vsel %vm61, %v2814, %v2813
    %v2817 = vmul.f32 %v2816, %v67
    %v2818 = vmul.f32 %v2815, %v72
    %v2819 = vrot.slane %v2805, 1
    %v2820 = vrot.slane %v2806, 1
    %v2821 = vsel %vm78, %v2819, %v2820
    %v2822 = vsel %vm78, %v2820, %v2819
    %v2823 = vmul.f32 %v2821, %v84
    %v2824 = vmul.f32 %v2822, %v89
    %v2825 = vrot.slane %v2805, 2
    %v2826 = vrot.slane %v2806, 2
    %v2827 = vsel %vm95, %v2825, %v2826
    %v2828 = vsel %vm95, %v2826, %v2825
    %v2829 = vmul.f32 %v2827, %v101
    %v2830 = vmul.f32 %v2828, %v106
    %s2831 = scalar_lea.vmem %s4, 3
    %v2832 = vld [vmem:[%s2831] sm:$0x1]
    %v2834 = vlaneseq
    %v2835 = vshrl.u32 %v2834, 7
    %v2836 = vsub.s32 0, %v2835
    %v2837 = vrot.slane %v2832, %v2836
    %s2839 = scalar_lea.vmem %s5, 3
    %v2840 = vld [vmem:[%s2839] sm:$0x1]
    %v2842 = vlaneseq
    %v2843 = vshrl.u32 %v2842, 7
    %v2844 = vsub.s32 0, %v2843
    %v2845 = vrot.slane %v2840, %v2844
    %s2847 = scalar_lea.vmem %s2, 480
    %v2848 = vld [vmem:[%s2847] sm:$0xff]
    %v2849 = vld [vmem:[%s2847 + $0x8] sm:$0xff]
    %v2850 = vld [vmem:[%s2847 + $0x10] sm:$0xff]
    %v2851 = vld [vmem:[%s2847 + $0x18] sm:$0xff]
    %v2853 = vsel %vm128, %v2811, 0
    %v2856 = vsel %vm128, %v2812, 0
    %2858 = vmatprep.subr.mxu0 0.0
    %2859 = vmatpush1.msra.mxu0 %v2848
    %2860 = vmatprep.subr.mxu0 0.0
    %2861 = vmatpush1.msra.mxu0 %v2849
    %2862 = vmatprep.subr.mxu0 0.0
    %2863 = vmatpush1.msra.mxu0 %v2850
    %2864 = vmatprep.subr.mxu0 0.0
    %2865 = vmatpush1.msra.mxu0 %v2851
    %2866 = vmatprep.subr.mxu0 0.0
    %2867 = vmatpush1.msra.mxu0 0.0
    %2868 = vmatprep.subr.mxu0 0.0
    %2869 = vmatpush1.msra.mxu0 0.0
    %2870 = vmatprep.subr.mxu0 0.0
    %2871 = vmatpush1.msra.mxu0 0.0
    %2872 = vmatprep.subr.mxu0 0.0
    %2873 = vmatpush1.msra.mxu0 0.0
    %2874 = vmatprep.subr.mxu0 0.0
    %2875 = vmatpush1.msra.mxu0 0.0
    %2876 = vmatprep.subr.mxu0 0.0
    %2877 = vmatpush1.msra.mxu0 0.0
    %2878 = vmatprep.subr.mxu0 0.0
    %2879 = vmatpush1.msra.mxu0 0.0
    %2880 = vmatprep.subr.mxu0 0.0
    %2881 = vmatpush1.msra.mxu0 0.0
    %2882 = vmatprep.subr.mxu0 0.0
    %2883 = vmatpush1.msra.mxu0 0.0
    %2884 = vmatprep.subr.mxu0 0.0
    %2885 = vmatpush1.msra.mxu0 0.0
    %2886 = vmatprep.subr.mxu0 0.0
    %2887 = vmatpush1.msra.mxu0 0.0
    %2888 = vmatprep.subr.mxu0 0.0
    %2889 = vmatpush1.msra.mxu0 0.0
    %2890 = vmatprep.subr.mxu0 0.0
    %2891 = vmatpush1.msra.mxu0 0.0
    %2892 = vmatprep.subr.mxu0 0.0
    %2893 = vmatpush1.msra.mxu0 0.0
    %2894 = vmatprep.subr.mxu0 0.0
    %2895 = vmatpush1.msra.mxu0 0.0
    %2896 = vmatprep.subr.mxu0 0.0
    %2897 = vmatpush1.msra.mxu0 0.0
    %2898 = vmatprep.subr.mxu0 0.0
    %2899 = vmatpush1.msra.mxu0 0.0
    %2900 = vmatprep.subr.mxu0 0.0
    %2901 = vmatpush1.msra.mxu0 0.0
    %2902 = vmatprep.subr.mxu0 0.0
    %2903 = vmatpush1.msra.mxu0 0.0
    %2904 = vmatprep.subr.mxu0 0.0
    %2905 = vmatpush1.msra.mxu0 0.0
    %2906 = vmatprep.subr.mxu0 0.0
    %2907 = vmatpush1.msra.mxu0 0.0
    %2908 = vmatprep.subr.mxu0 0.0
    %2909 = vmatpush1.msra.mxu0 0.0
    %2910 = vmatprep.subr.mxu0 0.0
    %2911 = vmatpush1.msra.mxu0 0.0
    %2912 = vmatprep.subr.mxu0 0.0
    %2913 = vmatpush1.msra.mxu0 0.0
    %2914 = vmatprep.subr.mxu0 0.0
    %2915 = vmatpush1.msra.mxu0 0.0
    %2916 = vmatprep.subr.mxu0 0.0
    %2917 = vmatpush1.msra.mxu0 0.0
    %2918 = vmatprep.subr.mxu0 0.0
    %2919 = vmatpush1.msra.mxu0 0.0
    %2920 = vmatprep.subr.mxu0 0.0
    %2921 = vmatpush1.msra.mxu0 0.0
    %2922 = vmatprep.mubr.f32.mxu0 0.0
    %2923 = vmatmul.mubr.f32.gmra.mrb[0].mxu0 %v2853
    %v2924 = vpop.f32.mrb[0].mxu0
    %v2925 = vadd.f32 0.0, %v2924
    %v2926 = vpop.f32.mrb[0].mxu0
    %2927 = vmatprep.mubr.f32.mxu0 0.0
    %2928 = vmatmul.mubr.f32.gmra.mrb[0].mxu0 %v2856
    %v2929 = vpop.f32.mrb[0].mxu0
    %v2930 = vadd.f32 0.0, %v2929
    %v2931 = vpop.f32.mrb[0].mxu0
    %2932 = vdwg.mxu0
    %v2933 = vadd.f32 %v2837, %v2925
    %v2934 = vadd.f32 %v2837, %v2930
    %s2935 = scalar_lea.vmem %s3, 480
    %v2936 = vld [vmem:[%s2935] sm:$0xff]
    %v2937 = vld [vmem:[%s2935 + $0x8] sm:$0xff]
    %v2938 = vld [vmem:[%s2935 + $0x10] sm:$0xff]
    %v2939 = vld [vmem:[%s2935 + $0x18] sm:$0xff]
    %2940 = vmatprep.subr.mxu0 0.0
    %2941 = vmatpush1.msra.mxu0 %v2936
    %2942 = vmatprep.subr.mxu0 0.0
    %2943 = vmatpush1.msra.mxu0 %v2937
    %2944 = vmatprep.subr.mxu0 0.0
    %2945 = vmatpush1.msra.mxu0 %v2938
    %2946 = vmatprep.subr.mxu0 0.0
    %2947 = vmatpush1.msra.mxu0 %v2939
    %2948 = vmatprep.subr.mxu0 0.0
    %2949 = vmatpush1.msra.mxu0 0.0
    %2950 = vmatprep.subr.mxu0 0.0
    %2951 = vmatpush1.msra.mxu0 0.0
    %2952 = vmatprep.subr.mxu0 0.0
    %2953 = vmatpush1.msra.mxu0 0.0
    %2954 = vmatprep.subr.mxu0 0.0
    %2955 = vmatpush1.msra.mxu0 0.0
    %2956 = vmatprep.subr.mxu0 0.0
    %2957 = vmatpush1.msra.mxu0 0.0
    %2958 = vmatprep.subr.mxu0 0.0
    %2959 = vmatpush1.msra.mxu0 0.0
    %2960 = vmatprep.subr.mxu0 0.0
    %2961 = vmatpush1.msra.mxu0 0.0
    %2962 = vmatprep.subr.mxu0 0.0
    %2963 = vmatpush1.msra.mxu0 0.0
    %2964 = vmatprep.subr.mxu0 0.0
    %2965 = vmatpush1.msra.mxu0 0.0
    %2966 = vmatprep.subr.mxu0 0.0
    %2967 = vmatpush1.msra.mxu0 0.0
    %2968 = vmatprep.subr.mxu0 0.0
    %2969 = vmatpush1.msra.mxu0 0.0
    %2970 = vmatprep.subr.mxu0 0.0
    %2971 = vmatpush1.msra.mxu0 0.0
    %2972 = vmatprep.subr.mxu0 0.0
    %2973 = vmatpush1.msra.mxu0 0.0
    %2974 = vmatprep.subr.mxu0 0.0
    %2975 = vmatpush1.msra.mxu0 0.0
    %2976 = vmatprep.subr.mxu0 0.0
    %2977 = vmatpush1.msra.mxu0 0.0
    %2978 = vmatprep.subr.mxu0 0.0
    %2979 = vmatpush1.msra.mxu0 0.0
    %2980 = vmatprep.subr.mxu0 0.0
    %2981 = vmatpush1.msra.mxu0 0.0
    %2982 = vmatprep.subr.mxu0 0.0
    %2983 = vmatpush1.msra.mxu0 0.0
    %2984 = vmatprep.subr.mxu0 0.0
    %2985 = vmatpush1.msra.mxu0 0.0
    %2986 = vmatprep.subr.mxu0 0.0
    %2987 = vmatpush1.msra.mxu0 0.0
    %2988 = vmatprep.subr.mxu0 0.0
    %2989 = vmatpush1.msra.mxu0 0.0
    %2990 = vmatprep.subr.mxu0 0.0
    %2991 = vmatpush1.msra.mxu0 0.0
    %2992 = vmatprep.subr.mxu0 0.0
    %2993 = vmatpush1.msra.mxu0 0.0
    %2994 = vmatprep.subr.mxu0 0.0
    %2995 = vmatpush1.msra.mxu0 0.0
    %2996 = vmatprep.subr.mxu0 0.0
    %2997 = vmatpush1.msra.mxu0 0.0
    %2998 = vmatprep.subr.mxu0 0.0
    %2999 = vmatpush1.msra.mxu0 0.0
    %3000 = vmatprep.subr.mxu0 0.0
    %3001 = vmatpush1.msra.mxu0 0.0
    %3002 = vmatprep.subr.mxu0 0.0
    %3003 = vmatpush1.msra.mxu0 0.0
    %3004 = vmatprep.mubr.f32.mxu0 0.0
    %3005 = vmatmul.mubr.f32.gmra.mrb[0].mxu0 %v2853
    %v3006 = vpop.f32.mrb[0].mxu0
    %v3007 = vadd.f32 0.0, %v3006
    %v3008 = vpop.f32.mrb[0].mxu0
    %3009 = vmatprep.mubr.f32.mxu0 0.0
    %3010 = vmatmul.mubr.f32.gmra.mrb[0].mxu0 %v2856
    %v3011 = vpop.f32.mrb[0].mxu0
    %v3012 = vadd.f32 0.0, %v3011
    %v3013 = vpop.f32.mrb[0].mxu0
    %3014 = vdwg.mxu0
    %v3015 = vadd.f32 %v2845, %v3007
    %v3016 = vadd.f32 %v2845, %v3012
    %s3017 = scalar_lea.vmem %s2, 512
    %v3018 = vld [vmem:[%s3017] sm:$0xff]
    %v3019 = vld [vmem:[%s3017 + $0x8] sm:$0xff]
    %v3020 = vld [vmem:[%s3017 + $0x10] sm:$0xff]
    %v3021 = vld [vmem:[%s3017 + $0x18] sm:$0xff]
    %v3023 = vsel %vm128, %v2817, 0
    %v3026 = vsel %vm128, %v2818, 0
    %3028 = vmatprep.subr.mxu0 0.0
    %3029 = vmatpush1.msra.mxu0 %v3018
    %3030 = vmatprep.subr.mxu0 0.0
    %3031 = vmatpush1.msra.mxu0 %v3019
    %3032 = vmatprep.subr.mxu0 0.0
    %3033 = vmatpush1.msra.mxu0 %v3020
    %3034 = vmatprep.subr.mxu0 0.0
    %3035 = vmatpush1.msra.mxu0 %v3021
    %3036 = vmatprep.subr.mxu0 0.0
    %3037 = vmatpush1.msra.mxu0 0.0
    %3038 = vmatprep.subr.mxu0 0.0
    %3039 = vmatpush1.msra.mxu0 0.0
    %3040 = vmatprep.subr.mxu0 0.0
    %3041 = vmatpush1.msra.mxu0 0.0
    %3042 = vmatprep.subr.mxu0 0.0
    %3043 = vmatpush1.msra.mxu0 0.0
    %3044 = vmatprep.subr.mxu0 0.0
    %3045 = vmatpush1.msra.mxu0 0.0
    %3046 = vmatprep.subr.mxu0 0.0
    %3047 = vmatpush1.msra.mxu0 0.0
    %3048 = vmatprep.subr.mxu0 0.0
    %3049 = vmatpush1.msra.mxu0 0.0
    %3050 = vmatprep.subr.mxu0 0.0
    %3051 = vmatpush1.msra.mxu0 0.0
    %3052 = vmatprep.subr.mxu0 0.0
    %3053 = vmatpush1.msra.mxu0 0.0
    %3054 = vmatprep.subr.mxu0 0.0
    %3055 = vmatpush1.msra.mxu0 0.0
    %3056 = vmatprep.subr.mxu0 0.0
    %3057 = vmatpush1.msra.mxu0 0.0
    %3058 = vmatprep.subr.mxu0 0.0
    %3059 = vmatpush1.msra.mxu0 0.0
    %3060 = vmatprep.subr.mxu0 0.0
    %3061 = vmatpush1.msra.mxu0 0.0
    %3062 = vmatprep.subr.mxu0 0.0
    %3063 = vmatpush1.msra.mxu0 0.0
    %3064 = vmatprep.subr.mxu0 0.0
    %3065 = vmatpush1.msra.mxu0 0.0
    %3066 = vmatprep.subr.mxu0 0.0
    %3067 = vmatpush1.msra.mxu0 0.0
    %3068 = vmatprep.subr.mxu0 0.0
    %3069 = vmatpush1.msra.mxu0 0.0
    %3070 = vmatprep.subr.mxu0 0.0
    %3071 = vmatpush1.msra.mxu0 0.0
    %3072 = vmatprep.subr.mxu0 0.0
    %3073 = vmatpush1.msra.mxu0 0.0
    %3074 = vmatprep.subr.mxu0 0.0
    %3075 = vmatpush1.msra.mxu0 0.0
    %3076 = vmatprep.subr.mxu0 0.0
    %3077 = vmatpush1.msra.mxu0 0.0
    %3078 = vmatprep.subr.mxu0 0.0
    %3079 = vmatpush1.msra.mxu0 0.0
    %3080 = vmatprep.subr.mxu0 0.0
    %3081 = vmatpush1.msra.mxu0 0.0
    %3082 = vmatprep.subr.mxu0 0.0
    %3083 = vmatpush1.msra.mxu0 0.0
    %3084 = vmatprep.subr.mxu0 0.0
    %3085 = vmatpush1.msra.mxu0 0.0
    %3086 = vmatprep.subr.mxu0 0.0
    %3087 = vmatpush1.msra.mxu0 0.0
    %3088 = vmatprep.subr.mxu0 0.0
    %3089 = vmatpush1.msra.mxu0 0.0
    %3090 = vmatprep.subr.mxu0 0.0
    %3091 = vmatpush1.msra.mxu0 0.0
    %3092 = vmatprep.mubr.f32.mxu0 0.0
    %3093 = vmatmul.mubr.f32.gmra.mrb[0].mxu0 %v3023
    %v3094 = vpop.f32.mrb[0].mxu0
    %v3095 = vadd.f32 0.0, %v3094
    %v3096 = vpop.f32.mrb[0].mxu0
    %3097 = vmatprep.mubr.f32.mxu0 0.0
    %3098 = vmatmul.mubr.f32.gmra.mrb[0].mxu0 %v3026
    %v3099 = vpop.f32.mrb[0].mxu0
    %v3100 = vadd.f32 0.0, %v3099
    %v3101 = vpop.f32.mrb[0].mxu0
    %3102 = vdwg.mxu0
    %v3103 = vadd.f32 %v2933, %v3095
    %v3104 = vadd.f32 %v2934, %v3100
    %s3105 = scalar_lea.vmem %s3, 512
    %v3106 = vld [vmem:[%s3105] sm:$0xff]
    %v3107 = vld [vmem:[%s3105 + $0x8] sm:$0xff]
    %v3108 = vld [vmem:[%s3105 + $0x10] sm:$0xff]
    %v3109 = vld [vmem:[%s3105 + $0x18] sm:$0xff]
    %3110 = vmatprep.subr.mxu0 0.0
    %3111 = vmatpush1.msra.mxu0 %v3106
    %3112 = vmatprep.subr.mxu0 0.0
    %3113 = vmatpush1.msra.mxu0 %v3107
    %3114 = vmatprep.subr.mxu0 0.0
    %3115 = vmatpush1.msra.mxu0 %v3108
    %3116 = vmatprep.subr.mxu0 0.0
    %3117 = vmatpush1.msra.mxu0 %v3109
    %3118 = vmatprep.subr.mxu0 0.0
    %3119 = vmatpush1.msra.mxu0 0.0
    %3120 = vmatprep.subr.mxu0 0.0
    %3121 = vmatpush1.msra.mxu0 0.0
    %3122 = vmatprep.subr.mxu0 0.0
    %3123 = vmatpush1.msra.mxu0 0.0
    %3124 = vmatprep.subr.mxu0 0.0
    %3125 = vmatpush1.msra.mxu0 0.0
    %3126 = vmatprep.subr.mxu0 0.0
    %3127 = vmatpush1.msra.mxu0 0.0
    %3128 = vmatprep.subr.mxu0 0.0
    %3129 = vmatpush1.msra.mxu0 0.0
    %3130 = vmatprep.subr.mxu0 0.0
    %3131 = vmatpush1.msra.mxu0 0.0
    %3132 = vmatprep.subr.mxu0 0.0
    %3133 = vmatpush1.msra.mxu0 0.0
    %3134 = vmatprep.subr.mxu0 0.0
    %3135 = vmatpush1.msra.mxu0 0.0
    %3136 = vmatprep.subr.mxu0 0.0
    %3137 = vmatpush1.msra.mxu0 0.0
    %3138 = vmatprep.subr.mxu0 0.0
    %3139 = vmatpush1.msra.mxu0 0.0
    %3140 = vmatprep.subr.mxu0 0.0
    %3141 = vmatpush1.msra.mxu0 0.0
    %3142 = vmatprep.subr.mxu0 0.0
    %3143 = vmatpush1.msra.mxu0 0.0
    %3144 = vmatprep.subr.mxu0 0.0
    %3145 = vmatpush1.msra.mxu0 0.0
    %3146 = vmatprep.subr.mxu0 0.0
    %3147 = vmatpush1.msra.mxu0 0.0
    %3148 = vmatprep.subr.mxu0 0.0
    %3149 = vmatpush1.msra.mxu0 0.0
    %3150 = vmatprep.subr.mxu0 0.0
    %3151 = vmatpush1.msra.mxu0 0.0
    %3152 = vmatprep.subr.mxu0 0.0
    %3153 = vmatpush1.msra.mxu0 0.0
    %3154 = vmatprep.subr.mxu0 0.0
    %3155 = vmatpush1.msra.mxu0 0.0
    %3156 = vmatprep.subr.mxu0 0.0
    %3157 = vmatpush1.msra.mxu0 0.0
    %3158 = vmatprep.subr.mxu0 0.0
    %3159 = vmatpush1.msra.mxu0 0.0
    %3160 = vmatprep.subr.mxu0 0.0
    %3161 = vmatpush1.msra.mxu0 0.0
    %3162 = vmatprep.subr.mxu0 0.0
    %3163 = vmatpush1.msra.mxu0 0.0
    %3164 = vmatprep.subr.mxu0 0.0
    %3165 = vmatpush1.msra.mxu0 0.0
    %3166 = vmatprep.subr.mxu0 0.0
    %3167 = vmatpush1.msra.mxu0 0.0
    %3168 = vmatprep.subr.mxu0 0.0
    %3169 = vmatpush1.msra.mxu0 0.0
    %3170 = vmatprep.subr.mxu0 0.0
    %3171 = vmatpush1.msra.mxu0 0.0
    %3172 = vmatprep.subr.mxu0 0.0
    %3173 = vmatpush1.msra.mxu0 0.0
    %3174 = vmatprep.mubr.f32.mxu0 0.0
    %3175 = vmatmul.mubr.f32.gmra.mrb[0].mxu0 %v3023
    %v3176 = vpop.f32.mrb[0].mxu0
    %v3177 = vadd.f32 0.0, %v3176
    %v3178 = vpop.f32.mrb[0].mxu0
    %3179 = vmatprep.mubr.f32.mxu0 0.0
    %3180 = vmatmul.mubr.f32.gmra.mrb[0].mxu0 %v3026
    %v3181 = vpop.f32.mrb[0].mxu0
    %v3182 = vadd.f32 0.0, %v3181
    %v3183 = vpop.f32.mrb[0].mxu0
    %3184 = vdwg.mxu0
    %v3185 = vadd.f32 %v3015, %v3177
    %v3186 = vadd.f32 %v3016, %v3182
    %s3187 = scalar_lea.vmem %s2, 544
    %v3188 = vld [vmem:[%s3187] sm:$0xff]
    %v3189 = vld [vmem:[%s3187 + $0x8] sm:$0xff]
    %v3190 = vld [vmem:[%s3187 + $0x10] sm:$0xff]
    %v3191 = vld [vmem:[%s3187 + $0x18] sm:$0xff]
    %v3193 = vsel %vm128, %v2805, 0
    %v3196 = vsel %vm128, %v2806, 0
    %3198 = vmatprep.subr.mxu0 0.0
    %3199 = vmatpush1.msra.mxu0 %v3188
    %3200 = vmatprep.subr.mxu0 0.0
    %3201 = vmatpush1.msra.mxu0 %v3189
    %3202 = vmatprep.subr.mxu0 0.0
    %3203 = vmatpush1.msra.mxu0 %v3190
    %3204 = vmatprep.subr.mxu0 0.0
    %3205 = vmatpush1.msra.mxu0 %v3191
    %3206 = vmatprep.subr.mxu0 0.0
    %3207 = vmatpush1.msra.mxu0 0.0
    %3208 = vmatprep.subr.mxu0 0.0
    %3209 = vmatpush1.msra.mxu0 0.0
    %3210 = vmatprep.subr.mxu0 0.0
    %3211 = vmatpush1.msra.mxu0 0.0
    %3212 = vmatprep.subr.mxu0 0.0
    %3213 = vmatpush1.msra.mxu0 0.0
    %3214 = vmatprep.subr.mxu0 0.0
    %3215 = vmatpush1.msra.mxu0 0.0
    %3216 = vmatprep.subr.mxu0 0.0
    %3217 = vmatpush1.msra.mxu0 0.0
    %3218 = vmatprep.subr.mxu0 0.0
    %3219 = vmatpush1.msra.mxu0 0.0
    %3220 = vmatprep.subr.mxu0 0.0
    %3221 = vmatpush1.msra.mxu0 0.0
    %3222 = vmatprep.subr.mxu0 0.0
    %3223 = vmatpush1.msra.mxu0 0.0
    %3224 = vmatprep.subr.mxu0 0.0
    %3225 = vmatpush1.msra.mxu0 0.0
    %3226 = vmatprep.subr.mxu0 0.0
    %3227 = vmatpush1.msra.mxu0 0.0
    %3228 = vmatprep.subr.mxu0 0.0
    %3229 = vmatpush1.msra.mxu0 0.0
    %3230 = vmatprep.subr.mxu0 0.0
    %3231 = vmatpush1.msra.mxu0 0.0
    %3232 = vmatprep.subr.mxu0 0.0
    %3233 = vmatpush1.msra.mxu0 0.0
    %3234 = vmatprep.subr.mxu0 0.0
    %3235 = vmatpush1.msra.mxu0 0.0
    %3236 = vmatprep.subr.mxu0 0.0
    %3237 = vmatpush1.msra.mxu0 0.0
    %3238 = vmatprep.subr.mxu0 0.0
    %3239 = vmatpush1.msra.mxu0 0.0
    %3240 = vmatprep.subr.mxu0 0.0
    %3241 = vmatpush1.msra.mxu0 0.0
    %3242 = vmatprep.subr.mxu0 0.0
    %3243 = vmatpush1.msra.mxu0 0.0
    %3244 = vmatprep.subr.mxu0 0.0
    %3245 = vmatpush1.msra.mxu0 0.0
    %3246 = vmatprep.subr.mxu0 0.0
    %3247 = vmatpush1.msra.mxu0 0.0
    %3248 = vmatprep.subr.mxu0 0.0
    %3249 = vmatpush1.msra.mxu0 0.0
    %3250 = vmatprep.subr.mxu0 0.0
    %3251 = vmatpush1.msra.mxu0 0.0
    %3252 = vmatprep.subr.mxu0 0.0
    %3253 = vmatpush1.msra.mxu0 0.0
    %3254 = vmatprep.subr.mxu0 0.0
    %3255 = vmatpush1.msra.mxu0 0.0
    %3256 = vmatprep.subr.mxu0 0.0
    %3257 = vmatpush1.msra.mxu0 0.0
    %3258 = vmatprep.subr.mxu0 0.0
    %3259 = vmatpush1.msra.mxu0 0.0
    %3260 = vmatprep.subr.mxu0 0.0
    %3261 = vmatpush1.msra.mxu0 0.0
    %3262 = vmatprep.mubr.f32.mxu0 0.0
    %3263 = vmatmul.mubr.f32.gmra.mrb[0].mxu0 %v3193
    %v3264 = vpop.f32.mrb[0].mxu0
    %v3265 = vadd.f32 0.0, %v3264
    %v3266 = vpop.f32.mrb[0].mxu0
    %3267 = vmatprep.mubr.f32.mxu0 0.0
    %3268 = vmatmul.mubr.f32.gmra.mrb[0].mxu0 %v3196
    %v3269 = vpop.f32.mrb[0].mxu0
    %v3270 = vadd.f32 0.0, %v3269
    %v3271 = vpop.f32.mrb[0].mxu0
    %3272 = vdwg.mxu0
    %v3273 = vadd.f32 %v3103, %v3265
    %v3274 = vadd.f32 %v3104, %v3270
    %s3275 = scalar_lea.vmem %s3, 544
    %v3276 = vld [vmem:[%s3275] sm:$0xff]
    %v3277 = vld [vmem:[%s3275 + $0x8] sm:$0xff]
    %v3278 = vld [vmem:[%s3275 + $0x10] sm:$0xff]
    %v3279 = vld [vmem:[%s3275 + $0x18] sm:$0xff]
    %3280 = vmatprep.subr.mxu0 0.0
    %3281 = vmatpush1.msra.mxu0 %v3276
    %3282 = vmatprep.subr.mxu0 0.0
    %3283 = vmatpush1.msra.mxu0 %v3277
    %3284 = vmatprep.subr.mxu0 0.0
    %3285 = vmatpush1.msra.mxu0 %v3278
    %3286 = vmatprep.subr.mxu0 0.0
    %3287 = vmatpush1.msra.mxu0 %v3279
    %3288 = vmatprep.subr.mxu0 0.0
    %3289 = vmatpush1.msra.mxu0 0.0
    %3290 = vmatprep.subr.mxu0 0.0
    %3291 = vmatpush1.msra.mxu0 0.0
    %3292 = vmatprep.subr.mxu0 0.0
    %3293 = vmatpush1.msra.mxu0 0.0
    %3294 = vmatprep.subr.mxu0 0.0
    %3295 = vmatpush1.msra.mxu0 0.0
    %3296 = vmatprep.subr.mxu0 0.0
    %3297 = vmatpush1.msra.mxu0 0.0
    %3298 = vmatprep.subr.mxu0 0.0
    %3299 = vmatpush1.msra.mxu0 0.0
    %3300 = vmatprep.subr.mxu0 0.0
    %3301 = vmatpush1.msra.mxu0 0.0
    %3302 = vmatprep.subr.mxu0 0.0
    %3303 = vmatpush1.msra.mxu0 0.0
    %3304 = vmatprep.subr.mxu0 0.0
    %3305 = vmatpush1.msra.mxu0 0.0
    %3306 = vmatprep.subr.mxu0 0.0
    %3307 = vmatpush1.msra.mxu0 0.0
    %3308 = vmatprep.subr.mxu0 0.0
    %3309 = vmatpush1.msra.mxu0 0.0
    %3310 = vmatprep.subr.mxu0 0.0
    %3311 = vmatpush1.msra.mxu0 0.0
    %3312 = vmatprep.subr.mxu0 0.0
    %3313 = vmatpush1.msra.mxu0 0.0
    %3314 = vmatprep.subr.mxu0 0.0
    %3315 = vmatpush1.msra.mxu0 0.0
    %3316 = vmatprep.subr.mxu0 0.0
    %3317 = vmatpush1.msra.mxu0 0.0
    %3318 = vmatprep.subr.mxu0 0.0
    %3319 = vmatpush1.msra.mxu0 0.0
    %3320 = vmatprep.subr.mxu0 0.0
    %3321 = vmatpush1.msra.mxu0 0.0
    %3322 = vmatprep.subr.mxu0 0.0
    %3323 = vmatpush1.msra.mxu0 0.0
    %3324 = vmatprep.subr.mxu0 0.0
    %3325 = vmatpush1.msra.mxu0 0.0
    %3326 = vmatprep.subr.mxu0 0.0
    %3327 = vmatpush1.msra.mxu0 0.0
    %3328 = vmatprep.subr.mxu0 0.0
    %3329 = vmatpush1.msra.mxu0 0.0
    %3330 = vmatprep.subr.mxu0 0.0
    %3331 = vmatpush1.msra.mxu0 0.0
    %3332 = vmatprep.subr.mxu0 0.0
    %3333 = vmatpush1.msra.mxu0 0.0
    %3334 = vmatprep.subr.mxu0 0.0
    %3335 = vmatpush1.msra.mxu0 0.0
    %3336 = vmatprep.subr.mxu0 0.0
    %3337 = vmatpush1.msra.mxu0 0.0
    %3338 = vmatprep.subr.mxu0 0.0
    %3339 = vmatpush1.msra.mxu0 0.0
    %3340 = vmatprep.subr.mxu0 0.0
    %3341 = vmatpush1.msra.mxu0 0.0
    %3342 = vmatprep.subr.mxu0 0.0
    %3343 = vmatpush1.msra.mxu0 0.0
    %3344 = vmatprep.mubr.f32.mxu0 0.0
    %3345 = vmatmul.mubr.f32.gmra.mrb[0].mxu0 %v3193
    %v3346 = vpop.f32.mrb[0].mxu0
    %v3347 = vadd.f32 0.0, %v3346
    %v3348 = vpop.f32.mrb[0].mxu0
    %3349 = vmatprep.mubr.f32.mxu0 0.0
    %3350 = vmatmul.mubr.f32.gmra.mrb[0].mxu0 %v3196
    %v3351 = vpop.f32.mrb[0].mxu0
    %v3352 = vadd.f32 0.0, %v3351
    %v3353 = vpop.f32.mrb[0].mxu0
    %3354 = vdwg.mxu0
    %v3355 = vadd.f32 %v3185, %v3347
    %v3356 = vadd.f32 %v3186, %v3352
    %s3357 = scalar_lea.vmem %s2, 576
    %v3358 = vld [vmem:[%s3357] sm:$0xff]
    %v3359 = vld [vmem:[%s3357 + $0x8] sm:$0xff]
    %v3360 = vld [vmem:[%s3357 + $0x10] sm:$0xff]
    %v3361 = vld [vmem:[%s3357 + $0x18] sm:$0xff]
    %v3363 = vsel %vm128, %v2823, 0
    %v3366 = vsel %vm128, %v2824, 0
    %3368 = vmatprep.subr.mxu0 0.0
    %3369 = vmatpush1.msra.mxu0 %v3358
    %3370 = vmatprep.subr.mxu0 0.0
    %3371 = vmatpush1.msra.mxu0 %v3359
    %3372 = vmatprep.subr.mxu0 0.0
    %3373 = vmatpush1.msra.mxu0 %v3360
    %3374 = vmatprep.subr.mxu0 0.0
    %3375 = vmatpush1.msra.mxu0 %v3361
    %3376 = vmatprep.subr.mxu0 0.0
    %3377 = vmatpush1.msra.mxu0 0.0
    %3378 = vmatprep.subr.mxu0 0.0
    %3379 = vmatpush1.msra.mxu0 0.0
    %3380 = vmatprep.subr.mxu0 0.0
    %3381 = vmatpush1.msra.mxu0 0.0
    %3382 = vmatprep.subr.mxu0 0.0
    %3383 = vmatpush1.msra.mxu0 0.0
    %3384 = vmatprep.subr.mxu0 0.0
    %3385 = vmatpush1.msra.mxu0 0.0
    %3386 = vmatprep.subr.mxu0 0.0
    %3387 = vmatpush1.msra.mxu0 0.0
    %3388 = vmatprep.subr.mxu0 0.0
    %3389 = vmatpush1.msra.mxu0 0.0
    %3390 = vmatprep.subr.mxu0 0.0
    %3391 = vmatpush1.msra.mxu0 0.0
    %3392 = vmatprep.subr.mxu0 0.0
    %3393 = vmatpush1.msra.mxu0 0.0
    %3394 = vmatprep.subr.mxu0 0.0
    %3395 = vmatpush1.msra.mxu0 0.0
    %3396 = vmatprep.subr.mxu0 0.0
    %3397 = vmatpush1.msra.mxu0 0.0
    %3398 = vmatprep.subr.mxu0 0.0
    %3399 = vmatpush1.msra.mxu0 0.0
    %3400 = vmatprep.subr.mxu0 0.0
    %3401 = vmatpush1.msra.mxu0 0.0
    %3402 = vmatprep.subr.mxu0 0.0
    %3403 = vmatpush1.msra.mxu0 0.0
    %3404 = vmatprep.subr.mxu0 0.0
    %3405 = vmatpush1.msra.mxu0 0.0
    %3406 = vmatprep.subr.mxu0 0.0
    %3407 = vmatpush1.msra.mxu0 0.0
    %3408 = vmatprep.subr.mxu0 0.0
    %3409 = vmatpush1.msra.mxu0 0.0
    %3410 = vmatprep.subr.mxu0 0.0
    %3411 = vmatpush1.msra.mxu0 0.0
    %3412 = vmatprep.subr.mxu0 0.0
    %3413 = vmatpush1.msra.mxu0 0.0
    %3414 = vmatprep.subr.mxu0 0.0
    %3415 = vmatpush1.msra.mxu0 0.0
    %3416 = vmatprep.subr.mxu0 0.0
    %3417 = vmatpush1.msra.mxu0 0.0
    %3418 = vmatprep.subr.mxu0 0.0
    %3419 = vmatpush1.msra.mxu0 0.0
    %3420 = vmatprep.subr.mxu0 0.0
    %3421 = vmatpush1.msra.mxu0 0.0
    %3422 = vmatprep.subr.mxu0 0.0
    %3423 = vmatpush1.msra.mxu0 0.0
    %3424 = vmatprep.subr.mxu0 0.0
    %3425 = vmatpush1.msra.mxu0 0.0
    %3426 = vmatprep.subr.mxu0 0.0
    %3427 = vmatpush1.msra.mxu0 0.0
    %3428 = vmatprep.subr.mxu0 0.0
    %3429 = vmatpush1.msra.mxu0 0.0
    %3430 = vmatprep.subr.mxu0 0.0
    %3431 = vmatpush1.msra.mxu0 0.0
    %3432 = vmatprep.mubr.f32.mxu0 0.0
    %3433 = vmatmul.mubr.f32.gmra.mrb[0].mxu0 %v3363
    %v3434 = vpop.f32.mrb[0].mxu0
    %v3435 = vadd.f32 0.0, %v3434
    %v3436 = vpop.f32.mrb[0].mxu0
    %3437 = vmatprep.mubr.f32.mxu0 0.0
    %3438 = vmatmul.mubr.f32.gmra.mrb[0].mxu0 %v3366
    %v3439 = vpop.f32.mrb[0].mxu0
    %v3440 = vadd.f32 0.0, %v3439
    %v3441 = vpop.f32.mrb[0].mxu0
    %3442 = vdwg.mxu0
    %v3443 = vadd.f32 %v3273, %v3435
    %v3444 = vadd.f32 %v3274, %v3440
    %s3445 = scalar_lea.vmem %s3, 576
    %v3446 = vld [vmem:[%s3445] sm:$0xff]
    %v3447 = vld [vmem:[%s3445 + $0x8] sm:$0xff]
    %v3448 = vld [vmem:[%s3445 + $0x10] sm:$0xff]
    %v3449 = vld [vmem:[%s3445 + $0x18] sm:$0xff]
    %3450 = vmatprep.subr.mxu0 0.0
    %3451 = vmatpush1.msra.mxu0 %v3446
    %3452 = vmatprep.subr.mxu0 0.0
    %3453 = vmatpush1.msra.mxu0 %v3447
    %3454 = vmatprep.subr.mxu0 0.0
    %3455 = vmatpush1.msra.mxu0 %v3448
    %3456 = vmatprep.subr.mxu0 0.0
    %3457 = vmatpush1.msra.mxu0 %v3449
    %3458 = vmatprep.subr.mxu0 0.0
    %3459 = vmatpush1.msra.mxu0 0.0
    %3460 = vmatprep.subr.mxu0 0.0
    %3461 = vmatpush1.msra.mxu0 0.0
    %3462 = vmatprep.subr.mxu0 0.0
    %3463 = vmatpush1.msra.mxu0 0.0
    %3464 = vmatprep.subr.mxu0 0.0
    %3465 = vmatpush1.msra.mxu0 0.0
    %3466 = vmatprep.subr.mxu0 0.0
    %3467 = vmatpush1.msra.mxu0 0.0
    %3468 = vmatprep.subr.mxu0 0.0
    %3469 = vmatpush1.msra.mxu0 0.0
    %3470 = vmatprep.subr.mxu0 0.0
    %3471 = vmatpush1.msra.mxu0 0.0
    %3472 = vmatprep.subr.mxu0 0.0
    %3473 = vmatpush1.msra.mxu0 0.0
    %3474 = vmatprep.subr.mxu0 0.0
    %3475 = vmatpush1.msra.mxu0 0.0
    %3476 = vmatprep.subr.mxu0 0.0
    %3477 = vmatpush1.msra.mxu0 0.0
    %3478 = vmatprep.subr.mxu0 0.0
    %3479 = vmatpush1.msra.mxu0 0.0
    %3480 = vmatprep.subr.mxu0 0.0
    %3481 = vmatpush1.msra.mxu0 0.0
    %3482 = vmatprep.subr.mxu0 0.0
    %3483 = vmatpush1.msra.mxu0 0.0
    %3484 = vmatprep.subr.mxu0 0.0
    %3485 = vmatpush1.msra.mxu0 0.0
    %3486 = vmatprep.subr.mxu0 0.0
    %3487 = vmatpush1.msra.mxu0 0.0
    %3488 = vmatprep.subr.mxu0 0.0
    %3489 = vmatpush1.msra.mxu0 0.0
    %3490 = vmatprep.subr.mxu0 0.0
    %3491 = vmatpush1.msra.mxu0 0.0
    %3492 = vmatprep.subr.mxu0 0.0
    %3493 = vmatpush1.msra.mxu0 0.0
    %3494 = vmatprep.subr.mxu0 0.0
    %3495 = vmatpush1.msra.mxu0 0.0
    %3496 = vmatprep.subr.mxu0 0.0
    %3497 = vmatpush1.msra.mxu0 0.0
    %3498 = vmatprep.subr.mxu0 0.0
    %3499 = vmatpush1.msra.mxu0 0.0
    %3500 = vmatprep.subr.mxu0 0.0
    %3501 = vmatpush1.msra.mxu0 0.0
    %3502 = vmatprep.subr.mxu0 0.0
    %3503 = vmatpush1.msra.mxu0 0.0
    %3504 = vmatprep.subr.mxu0 0.0
    %3505 = vmatpush1.msra.mxu0 0.0
    %3506 = vmatprep.subr.mxu0 0.0
    %3507 = vmatpush1.msra.mxu0 0.0
    %3508 = vmatprep.subr.mxu0 0.0
    %3509 = vmatpush1.msra.mxu0 0.0
    %3510 = vmatprep.subr.mxu0 0.0
    %3511 = vmatpush1.msra.mxu0 0.0
    %3512 = vmatprep.subr.mxu0 0.0
    %3513 = vmatpush1.msra.mxu0 0.0
    %3514 = vmatprep.mubr.f32.mxu0 0.0
    %3515 = vmatmul.mubr.f32.gmra.mrb[0].mxu0 %v3363
    %v3516 = vpop.f32.mrb[0].mxu0
    %v3517 = vadd.f32 0.0, %v3516
    %v3518 = vpop.f32.mrb[0].mxu0
    %3519 = vmatprep.mubr.f32.mxu0 0.0
    %3520 = vmatmul.mubr.f32.gmra.mrb[0].mxu0 %v3366
    %v3521 = vpop.f32.mrb[0].mxu0
    %v3522 = vadd.f32 0.0, %v3521
    %v3523 = vpop.f32.mrb[0].mxu0
    %3524 = vdwg.mxu0
    %v3525 = vadd.f32 %v3355, %v3517
    %v3526 = vadd.f32 %v3356, %v3522
    %s3527 = scalar_lea.vmem %s2, 608
    %v3528 = vld [vmem:[%s3527] sm:$0xff]
    %v3529 = vld [vmem:[%s3527 + $0x8] sm:$0xff]
    %v3530 = vld [vmem:[%s3527 + $0x10] sm:$0xff]
    %v3531 = vld [vmem:[%s3527 + $0x18] sm:$0xff]
    %v3533 = vsel %vm128, %v2829, 0
    %v3536 = vsel %vm128, %v2830, 0
    %3538 = vmatprep.subr.mxu0 0.0
    %3539 = vmatpush1.msra.mxu0 %v3528
    %3540 = vmatprep.subr.mxu0 0.0
    %3541 = vmatpush1.msra.mxu0 %v3529
    %3542 = vmatprep.subr.mxu0 0.0
    %3543 = vmatpush1.msra.mxu0 %v3530
    %3544 = vmatprep.subr.mxu0 0.0
    %3545 = vmatpush1.msra.mxu0 %v3531
    %3546 = vmatprep.subr.mxu0 0.0
    %3547 = vmatpush1.msra.mxu0 0.0
    %3548 = vmatprep.subr.mxu0 0.0
    %3549 = vmatpush1.msra.mxu0 0.0
    %3550 = vmatprep.subr.mxu0 0.0
    %3551 = vmatpush1.msra.mxu0 0.0
    %3552 = vmatprep.subr.mxu0 0.0
    %3553 = vmatpush1.msra.mxu0 0.0
    %3554 = vmatprep.subr.mxu0 0.0
    %3555 = vmatpush1.msra.mxu0 0.0
    %3556 = vmatprep.subr.mxu0 0.0
    %3557 = vmatpush1.msra.mxu0 0.0
    %3558 = vmatprep.subr.mxu0 0.0
    %3559 = vmatpush1.msra.mxu0 0.0
    %3560 = vmatprep.subr.mxu0 0.0
    %3561 = vmatpush1.msra.mxu0 0.0
    %3562 = vmatprep.subr.mxu0 0.0
    %3563 = vmatpush1.msra.mxu0 0.0
    %3564 = vmatprep.subr.mxu0 0.0
    %3565 = vmatpush1.msra.mxu0 0.0
    %3566 = vmatprep.subr.mxu0 0.0
    %3567 = vmatpush1.msra.mxu0 0.0
    %3568 = vmatprep.subr.mxu0 0.0
    %3569 = vmatpush1.msra.mxu0 0.0
    %3570 = vmatprep.subr.mxu0 0.0
    %3571 = vmatpush1.msra.mxu0 0.0
    %3572 = vmatprep.subr.mxu0 0.0
    %3573 = vmatpush1.msra.mxu0 0.0
    %3574 = vmatprep.subr.mxu0 0.0
    %3575 = vmatpush1.msra.mxu0 0.0
    %3576 = vmatprep.subr.mxu0 0.0
    %3577 = vmatpush1.msra.mxu0 0.0
    %3578 = vmatprep.subr.mxu0 0.0
    %3579 = vmatpush1.msra.mxu0 0.0
    %3580 = vmatprep.subr.mxu0 0.0
    %3581 = vmatpush1.msra.mxu0 0.0
    %3582 = vmatprep.subr.mxu0 0.0
    %3583 = vmatpush1.msra.mxu0 0.0
    %3584 = vmatprep.subr.mxu0 0.0
    %3585 = vmatpush1.msra.mxu0 0.0
    %3586 = vmatprep.subr.mxu0 0.0
    %3587 = vmatpush1.msra.mxu0 0.0
    %3588 = vmatprep.subr.mxu0 0.0
    %3589 = vmatpush1.msra.mxu0 0.0
    %3590 = vmatprep.subr.mxu0 0.0
    %3591 = vmatpush1.msra.mxu0 0.0
    %3592 = vmatprep.subr.mxu0 0.0
    %3593 = vmatpush1.msra.mxu0 0.0
    %3594 = vmatprep.subr.mxu0 0.0
    %3595 = vmatpush1.msra.mxu0 0.0
    %3596 = vmatprep.subr.mxu0 0.0
    %3597 = vmatpush1.msra.mxu0 0.0
    %3598 = vmatprep.subr.mxu0 0.0
    %3599 = vmatpush1.msra.mxu0 0.0
    %3600 = vmatprep.subr.mxu0 0.0
    %3601 = vmatpush1.msra.mxu0 0.0
    %3602 = vmatprep.mubr.f32.mxu0 0.0
    %3603 = vmatmul.mubr.f32.gmra.mrb[0].mxu0 %v3533
    %v3604 = vpop.f32.mrb[0].mxu0
    %v3605 = vadd.f32 0.0, %v3604
    %v3606 = vpop.f32.mrb[0].mxu0
    %3607 = vmatprep.mubr.f32.mxu0 0.0
    %3608 = vmatmul.mubr.f32.gmra.mrb[0].mxu0 %v3536
    %v3609 = vpop.f32.mrb[0].mxu0
    %v3610 = vadd.f32 0.0, %v3609
    %v3611 = vpop.f32.mrb[0].mxu0
    %3612 = vdwg.mxu0
    %v3613 = vadd.f32 %v3443, %v3605
    %v3614 = vadd.f32 %v3444, %v3610
    %s3615 = scalar_lea.vmem %s3, 608
    %v3616 = vld [vmem:[%s3615] sm:$0xff]
    %v3617 = vld [vmem:[%s3615 + $0x8] sm:$0xff]
    %v3618 = vld [vmem:[%s3615 + $0x10] sm:$0xff]
    %v3619 = vld [vmem:[%s3615 + $0x18] sm:$0xff]
    %3620 = vmatprep.subr.mxu0 0.0
    %3621 = vmatpush1.msra.mxu0 %v3616
    %3622 = vmatprep.subr.mxu0 0.0
    %3623 = vmatpush1.msra.mxu0 %v3617
    %3624 = vmatprep.subr.mxu0 0.0
    %3625 = vmatpush1.msra.mxu0 %v3618
    %3626 = vmatprep.subr.mxu0 0.0
    %3627 = vmatpush1.msra.mxu0 %v3619
    %3628 = vmatprep.subr.mxu0 0.0
    %3629 = vmatpush1.msra.mxu0 0.0
    %3630 = vmatprep.subr.mxu0 0.0
    %3631 = vmatpush1.msra.mxu0 0.0
    %3632 = vmatprep.subr.mxu0 0.0
    %3633 = vmatpush1.msra.mxu0 0.0
    %3634 = vmatprep.subr.mxu0 0.0
    %3635 = vmatpush1.msra.mxu0 0.0
    %3636 = vmatprep.subr.mxu0 0.0
    %3637 = vmatpush1.msra.mxu0 0.0
    %3638 = vmatprep.subr.mxu0 0.0
    %3639 = vmatpush1.msra.mxu0 0.0
    %3640 = vmatprep.subr.mxu0 0.0
    %3641 = vmatpush1.msra.mxu0 0.0
    %3642 = vmatprep.subr.mxu0 0.0
    %3643 = vmatpush1.msra.mxu0 0.0
    %3644 = vmatprep.subr.mxu0 0.0
    %3645 = vmatpush1.msra.mxu0 0.0
    %3646 = vmatprep.subr.mxu0 0.0
    %3647 = vmatpush1.msra.mxu0 0.0
    %3648 = vmatprep.subr.mxu0 0.0
    %3649 = vmatpush1.msra.mxu0 0.0
    %3650 = vmatprep.subr.mxu0 0.0
    %3651 = vmatpush1.msra.mxu0 0.0
    %3652 = vmatprep.subr.mxu0 0.0
    %3653 = vmatpush1.msra.mxu0 0.0
    %3654 = vmatprep.subr.mxu0 0.0
    %3655 = vmatpush1.msra.mxu0 0.0
    %3656 = vmatprep.subr.mxu0 0.0
    %3657 = vmatpush1.msra.mxu0 0.0
    %3658 = vmatprep.subr.mxu0 0.0
    %3659 = vmatpush1.msra.mxu0 0.0
    %3660 = vmatprep.subr.mxu0 0.0
    %3661 = vmatpush1.msra.mxu0 0.0
    %3662 = vmatprep.subr.mxu0 0.0
    %3663 = vmatpush1.msra.mxu0 0.0
    %3664 = vmatprep.subr.mxu0 0.0
    %3665 = vmatpush1.msra.mxu0 0.0
    %3666 = vmatprep.subr.mxu0 0.0
    %3667 = vmatpush1.msra.mxu0 0.0
    %3668 = vmatprep.subr.mxu0 0.0
    %3669 = vmatpush1.msra.mxu0 0.0
    %3670 = vmatprep.subr.mxu0 0.0
    %3671 = vmatpush1.msra.mxu0 0.0
    %3672 = vmatprep.subr.mxu0 0.0
    %3673 = vmatpush1.msra.mxu0 0.0
    %3674 = vmatprep.subr.mxu0 0.0
    %3675 = vmatpush1.msra.mxu0 0.0
    %3676 = vmatprep.subr.mxu0 0.0
    %3677 = vmatpush1.msra.mxu0 0.0
    %3678 = vmatprep.subr.mxu0 0.0
    %3679 = vmatpush1.msra.mxu0 0.0
    %3680 = vmatprep.subr.mxu0 0.0
    %3681 = vmatpush1.msra.mxu0 0.0
    %3682 = vmatprep.subr.mxu0 0.0
    %3683 = vmatpush1.msra.mxu0 0.0
    %3684 = vmatprep.mubr.f32.mxu0 0.0
    %3685 = vmatmul.mubr.f32.gmra.mrb[0].mxu0 %v3533
    %v3686 = vpop.f32.mrb[0].mxu0
    %v3687 = vadd.f32 0.0, %v3686
    %v3688 = vpop.f32.mrb[0].mxu0
    %3689 = vmatprep.mubr.f32.mxu0 0.0
    %3690 = vmatmul.mubr.f32.gmra.mrb[0].mxu0 %v3536
    %v3691 = vpop.f32.mrb[0].mxu0
    %v3692 = vadd.f32 0.0, %v3691
    %v3693 = vpop.f32.mrb[0].mxu0
    %3694 = vdwg.mxu0
    %v3695 = vadd.f32 %v3525, %v3687
    %v3696 = vadd.f32 %v3526, %v3692
    %v3697 = vxor.u32 %v3695, 2147483648
    %v3698 = vxor.u32 %v3696, 2147483648
    %v3699 = vmul.f32 %v3697, 1.442695
    %v3700 = vpow.pop %v3699
    %v3701 = vmul.f32 %v3698, 1.442695
    %v3702 = vpow.pop %v3701
    %v3703 = vadd.f32 %v3700, 1.0
    %v3704 = vadd.f32 %v3702, 1.0
    %v3705 = vrcp.pop %v3703
    %v3706 = vmul.f32 1.0, %v3705
    %v3707 = vrcp.pop %v3704
    %v3708 = vmul.f32 1.0, %v3707
    %v3709 = vmul.f32 %v3613, %v3706
    %v3710 = vmul.f32 %v3614, %v3708
    %v3711 = vadd.f32 %v3709, %v2805
    %v3712 = vadd.f32 %v3710, %v2806
    %v3713 = vmul.f32 %v3711, 0.70710677
    %v3714 = vmul.f32 %v3712, 0.70710677
    %v3715 = vrot.slane %v3713, 6
    %v3716 = vrot.slane %v3714, 6
    %v3717 = vsel %vm44, %v3715, %v3716
    %v3718 = vsel %vm44, %v3716, %v3715
    %v3719 = vmul.f32 %v3718, %v50
    %v3720 = vmul.f32 %v3717, %v55
    %v3721 = vrot.slane %v3713, 7
    %v3722 = vrot.slane %v3714, 7
    %v3723 = vsel %vm61, %v3721, %v3722
    %v3724 = vsel %vm61, %v3722, %v3721
    %v3725 = vmul.f32 %v3724, %v67
    %v3726 = vmul.f32 %v3723, %v72
    %v3727 = vrot.slane %v3713, 1
    %v3728 = vrot.slane %v3714, 1
    %v3729 = vsel %vm78, %v3727, %v3728
    %v3730 = vsel %vm78, %v3728, %v3727
    %v3731 = vmul.f32 %v3729, %v84
    %v3732 = vmul.f32 %v3730, %v89
    %v3733 = vrot.slane %v3713, 2
    %v3734 = vrot.slane %v3714, 2
    %v3735 = vsel %vm95, %v3733, %v3734
    %v3736 = vsel %vm95, %v3734, %v3733
    %v3737 = vmul.f32 %v3735, %v101
    %v3738 = vmul.f32 %v3736, %v106
    %s3739 = scalar_lea.vmem %s4, 4
    %v3740 = vld [vmem:[%s3739] sm:$0x1]
    %v3742 = vlaneseq
    %v3743 = vshrl.u32 %v3742, 7
    %v3744 = vsub.s32 0, %v3743
    %v3745 = vrot.slane %v3740, %v3744
    %s3747 = scalar_lea.vmem %s5, 4
    %v3748 = vld [vmem:[%s3747] sm:$0x1]
    %v3750 = vlaneseq
    %v3751 = vshrl.u32 %v3750, 7
    %v3752 = vsub.s32 0, %v3751
    %v3753 = vrot.slane %v3748, %v3752
    %s3755 = scalar_lea.vmem %s2, 640
    %v3756 = vld [vmem:[%s3755] sm:$0xff]
    %v3757 = vld [vmem:[%s3755 + $0x8] sm:$0xff]
    %v3758 = vld [vmem:[%s3755 + $0x10] sm:$0xff]
    %v3759 = vld [vmem:[%s3755 + $0x18] sm:$0xff]
    %v3761 = vsel %vm128, %v3719, 0
    %v3764 = vsel %vm128, %v3720, 0
    %3766 = vmatprep.subr.mxu0 0.0
    %3767 = vmatpush1.msra.mxu0 %v3756
    %3768 = vmatprep.subr.mxu0 0.0
    %3769 = vmatpush1.msra.mxu0 %v3757
    %3770 = vmatprep.subr.mxu0 0.0
    %3771 = vmatpush1.msra.mxu0 %v3758
    %3772 = vmatprep.subr.mxu0 0.0
    %3773 = vmatpush1.msra.mxu0 %v3759
    %3774 = vmatprep.subr.mxu0 0.0
    %3775 = vmatpush1.msra.mxu0 0.0
    %3776 = vmatprep.subr.mxu0 0.0
    %3777 = vmatpush1.msra.mxu0 0.0
    %3778 = vmatprep.subr.mxu0 0.0
    %3779 = vmatpush1.msra.mxu0 0.0
    %3780 = vmatprep.subr.mxu0 0.0
    %3781 = vmatpush1.msra.mxu0 0.0
    %3782 = vmatprep.subr.mxu0 0.0
    %3783 = vmatpush1.msra.mxu0 0.0
    %3784 = vmatprep.subr.mxu0 0.0
    %3785 = vmatpush1.msra.mxu0 0.0
    %3786 = vmatprep.subr.mxu0 0.0
    %3787 = vmatpush1.msra.mxu0 0.0
    %3788 = vmatprep.subr.mxu0 0.0
    %3789 = vmatpush1.msra.mxu0 0.0
    %3790 = vmatprep.subr.mxu0 0.0
    %3791 = vmatpush1.msra.mxu0 0.0
    %3792 = vmatprep.subr.mxu0 0.0
    %3793 = vmatpush1.msra.mxu0 0.0
    %3794 = vmatprep.subr.mxu0 0.0
    %3795 = vmatpush1.msra.mxu0 0.0
    %3796 = vmatprep.subr.mxu0 0.0
    %3797 = vmatpush1.msra.mxu0 0.0
    %3798 = vmatprep.subr.mxu0 0.0
    %3799 = vmatpush1.msra.mxu0 0.0
    %3800 = vmatprep.subr.mxu0 0.0
    %3801 = vmatpush1.msra.mxu0 0.0
    %3802 = vmatprep.subr.mxu0 0.0
    %3803 = vmatpush1.msra.mxu0 0.0
    %3804 = vmatprep.subr.mxu0 0.0
    %3805 = vmatpush1.msra.mxu0 0.0
    %3806 = vmatprep.subr.mxu0 0.0
    %3807 = vmatpush1.msra.mxu0 0.0
    %3808 = vmatprep.subr.mxu0 0.0
    %3809 = vmatpush1.msra.mxu0 0.0
    %3810 = vmatprep.subr.mxu0 0.0
    %3811 = vmatpush1.msra.mxu0 0.0
    %3812 = vmatprep.subr.mxu0 0.0
    %3813 = vmatpush1.msra.mxu0 0.0
    %3814 = vmatprep.subr.mxu0 0.0
    %3815 = vmatpush1.msra.mxu0 0.0
    %3816 = vmatprep.subr.mxu0 0.0
    %3817 = vmatpush1.msra.mxu0 0.0
    %3818 = vmatprep.subr.mxu0 0.0
    %3819 = vmatpush1.msra.mxu0 0.0
    %3820 = vmatprep.subr.mxu0 0.0
    %3821 = vmatpush1.msra.mxu0 0.0
    %3822 = vmatprep.subr.mxu0 0.0
    %3823 = vmatpush1.msra.mxu0 0.0
    %3824 = vmatprep.subr.mxu0 0.0
    %3825 = vmatpush1.msra.mxu0 0.0
    %3826 = vmatprep.subr.mxu0 0.0
    %3827 = vmatpush1.msra.mxu0 0.0
    %3828 = vmatprep.subr.mxu0 0.0
    %3829 = vmatpush1.msra.mxu0 0.0
    %3830 = vmatprep.mubr.f32.mxu0 0.0
    %3831 = vmatmul.mubr.f32.gmra.mrb[0].mxu0 %v3761
    %v3832 = vpop.f32.mrb[0].mxu0
    %v3833 = vadd.f32 0.0, %v3832
    %v3834 = vpop.f32.mrb[0].mxu0
    %3835 = vmatprep.mubr.f32.mxu0 0.0
    %3836 = vmatmul.mubr.f32.gmra.mrb[0].mxu0 %v3764
    %v3837 = vpop.f32.mrb[0].mxu0
    %v3838 = vadd.f32 0.0, %v3837
    %v3839 = vpop.f32.mrb[0].mxu0
    %3840 = vdwg.mxu0
    %v3841 = vadd.f32 %v3745, %v3833
    %v3842 = vadd.f32 %v3745, %v3838
    %s3843 = scalar_lea.vmem %s3, 640
    %v3844 = vld [vmem:[%s3843] sm:$0xff]
    %v3845 = vld [vmem:[%s3843 + $0x8] sm:$0xff]
    %v3846 = vld [vmem:[%s3843 + $0x10] sm:$0xff]
    %v3847 = vld [vmem:[%s3843 + $0x18] sm:$0xff]
    %3848 = vmatprep.subr.mxu0 0.0
    %3849 = vmatpush1.msra.mxu0 %v3844
    %3850 = vmatprep.subr.mxu0 0.0
    %3851 = vmatpush1.msra.mxu0 %v3845
    %3852 = vmatprep.subr.mxu0 0.0
    %3853 = vmatpush1.msra.mxu0 %v3846
    %3854 = vmatprep.subr.mxu0 0.0
    %3855 = vmatpush1.msra.mxu0 %v3847
    %3856 = vmatprep.subr.mxu0 0.0
    %3857 = vmatpush1.msra.mxu0 0.0
    %3858 = vmatprep.subr.mxu0 0.0
    %3859 = vmatpush1.msra.mxu0 0.0
    %3860 = vmatprep.subr.mxu0 0.0
    %3861 = vmatpush1.msra.mxu0 0.0
    %3862 = vmatprep.subr.mxu0 0.0
    %3863 = vmatpush1.msra.mxu0 0.0
    %3864 = vmatprep.subr.mxu0 0.0
    %3865 = vmatpush1.msra.mxu0 0.0
    %3866 = vmatprep.subr.mxu0 0.0
    %3867 = vmatpush1.msra.mxu0 0.0
    %3868 = vmatprep.subr.mxu0 0.0
    %3869 = vmatpush1.msra.mxu0 0.0
    %3870 = vmatprep.subr.mxu0 0.0
    %3871 = vmatpush1.msra.mxu0 0.0
    %3872 = vmatprep.subr.mxu0 0.0
    %3873 = vmatpush1.msra.mxu0 0.0
    %3874 = vmatprep.subr.mxu0 0.0
    %3875 = vmatpush1.msra.mxu0 0.0
    %3876 = vmatprep.subr.mxu0 0.0
    %3877 = vmatpush1.msra.mxu0 0.0
    %3878 = vmatprep.subr.mxu0 0.0
    %3879 = vmatpush1.msra.mxu0 0.0
    %3880 = vmatprep.subr.mxu0 0.0
    %3881 = vmatpush1.msra.mxu0 0.0
    %3882 = vmatprep.subr.mxu0 0.0
    %3883 = vmatpush1.msra.mxu0 0.0
    %3884 = vmatprep.subr.mxu0 0.0
    %3885 = vmatpush1.msra.mxu0 0.0
    %3886 = vmatprep.subr.mxu0 0.0
    %3887 = vmatpush1.msra.mxu0 0.0
    %3888 = vmatprep.subr.mxu0 0.0
    %3889 = vmatpush1.msra.mxu0 0.0
    %3890 = vmatprep.subr.mxu0 0.0
    %3891 = vmatpush1.msra.mxu0 0.0
    %3892 = vmatprep.subr.mxu0 0.0
    %3893 = vmatpush1.msra.mxu0 0.0
    %3894 = vmatprep.subr.mxu0 0.0
    %3895 = vmatpush1.msra.mxu0 0.0
    %3896 = vmatprep.subr.mxu0 0.0
    %3897 = vmatpush1.msra.mxu0 0.0
    %3898 = vmatprep.subr.mxu0 0.0
    %3899 = vmatpush1.msra.mxu0 0.0
    %3900 = vmatprep.subr.mxu0 0.0
    %3901 = vmatpush1.msra.mxu0 0.0
    %3902 = vmatprep.subr.mxu0 0.0
    %3903 = vmatpush1.msra.mxu0 0.0
    %3904 = vmatprep.subr.mxu0 0.0
    %3905 = vmatpush1.msra.mxu0 0.0
    %3906 = vmatprep.subr.mxu0 0.0
    %3907 = vmatpush1.msra.mxu0 0.0
    %3908 = vmatprep.subr.mxu0 0.0
    %3909 = vmatpush1.msra.mxu0 0.0
    %3910 = vmatprep.subr.mxu0 0.0
    %3911 = vmatpush1.msra.mxu0 0.0
    %3912 = vmatprep.mubr.f32.mxu0 0.0
    %3913 = vmatmul.mubr.f32.gmra.mrb[0].mxu0 %v3761
    %v3914 = vpop.f32.mrb[0].mxu0
    %v3915 = vadd.f32 0.0, %v3914
    %v3916 = vpop.f32.mrb[0].mxu0
    %3917 = vmatprep.mubr.f32.mxu0 0.0
    %3918 = vmatmul.mubr.f32.gmra.mrb[0].mxu0 %v3764
    %v3919 = vpop.f32.mrb[0].mxu0
    %v3920 = vadd.f32 0.0, %v3919
    %v3921 = vpop.f32.mrb[0].mxu0
    %3922 = vdwg.mxu0
    %v3923 = vadd.f32 %v3753, %v3915
    %v3924 = vadd.f32 %v3753, %v3920
    %s3925 = scalar_lea.vmem %s2, 672
    %v3926 = vld [vmem:[%s3925] sm:$0xff]
    %v3927 = vld [vmem:[%s3925 + $0x8] sm:$0xff]
    %v3928 = vld [vmem:[%s3925 + $0x10] sm:$0xff]
    %v3929 = vld [vmem:[%s3925 + $0x18] sm:$0xff]
    %v3931 = vsel %vm128, %v3725, 0
    %v3934 = vsel %vm128, %v3726, 0
    %3936 = vmatprep.subr.mxu0 0.0
    %3937 = vmatpush1.msra.mxu0 %v3926
    %3938 = vmatprep.subr.mxu0 0.0
    %3939 = vmatpush1.msra.mxu0 %v3927
    %3940 = vmatprep.subr.mxu0 0.0
    %3941 = vmatpush1.msra.mxu0 %v3928
    %3942 = vmatprep.subr.mxu0 0.0
    %3943 = vmatpush1.msra.mxu0 %v3929
    %3944 = vmatprep.subr.mxu0 0.0
    %3945 = vmatpush1.msra.mxu0 0.0
    %3946 = vmatprep.subr.mxu0 0.0
    %3947 = vmatpush1.msra.mxu0 0.0
    %3948 = vmatprep.subr.mxu0 0.0
    %3949 = vmatpush1.msra.mxu0 0.0
    %3950 = vmatprep.subr.mxu0 0.0
    %3951 = vmatpush1.msra.mxu0 0.0
    %3952 = vmatprep.subr.mxu0 0.0
    %3953 = vmatpush1.msra.mxu0 0.0
    %3954 = vmatprep.subr.mxu0 0.0
    %3955 = vmatpush1.msra.mxu0 0.0
    %3956 = vmatprep.subr.mxu0 0.0
    %3957 = vmatpush1.msra.mxu0 0.0
    %3958 = vmatprep.subr.mxu0 0.0
    %3959 = vmatpush1.msra.mxu0 0.0
    %3960 = vmatprep.subr.mxu0 0.0
    %3961 = vmatpush1.msra.mxu0 0.0
    %3962 = vmatprep.subr.mxu0 0.0
    %3963 = vmatpush1.msra.mxu0 0.0
    %3964 = vmatprep.subr.mxu0 0.0
    %3965 = vmatpush1.msra.mxu0 0.0
    %3966 = vmatprep.subr.mxu0 0.0
    %3967 = vmatpush1.msra.mxu0 0.0
    %3968 = vmatprep.subr.mxu0 0.0
    %3969 = vmatpush1.msra.mxu0 0.0
    %3970 = vmatprep.subr.mxu0 0.0
    %3971 = vmatpush1.msra.mxu0 0.0
    %3972 = vmatprep.subr.mxu0 0.0
    %3973 = vmatpush1.msra.mxu0 0.0
    %3974 = vmatprep.subr.mxu0 0.0
    %3975 = vmatpush1.msra.mxu0 0.0
    %3976 = vmatprep.subr.mxu0 0.0
    %3977 = vmatpush1.msra.mxu0 0.0
    %3978 = vmatprep.subr.mxu0 0.0
    %3979 = vmatpush1.msra.mxu0 0.0
    %3980 = vmatprep.subr.mxu0 0.0
    %3981 = vmatpush1.msra.mxu0 0.0
    %3982 = vmatprep.subr.mxu0 0.0
    %3983 = vmatpush1.msra.mxu0 0.0
    %3984 = vmatprep.subr.mxu0 0.0
    %3985 = vmatpush1.msra.mxu0 0.0
    %3986 = vmatprep.subr.mxu0 0.0
    %3987 = vmatpush1.msra.mxu0 0.0
    %3988 = vmatprep.subr.mxu0 0.0
    %3989 = vmatpush1.msra.mxu0 0.0
    %3990 = vmatprep.subr.mxu0 0.0
    %3991 = vmatpush1.msra.mxu0 0.0
    %3992 = vmatprep.subr.mxu0 0.0
    %3993 = vmatpush1.msra.mxu0 0.0
    %3994 = vmatprep.subr.mxu0 0.0
    %3995 = vmatpush1.msra.mxu0 0.0
    %3996 = vmatprep.subr.mxu0 0.0
    %3997 = vmatpush1.msra.mxu0 0.0
    %3998 = vmatprep.subr.mxu0 0.0
    %3999 = vmatpush1.msra.mxu0 0.0
    %4000 = vmatprep.mubr.f32.mxu0 0.0
    %4001 = vmatmul.mubr.f32.gmra.mrb[0].mxu0 %v3931
    %v4002 = vpop.f32.mrb[0].mxu0
    %v4003 = vadd.f32 0.0, %v4002
    %v4004 = vpop.f32.mrb[0].mxu0
    %4005 = vmatprep.mubr.f32.mxu0 0.0
    %4006 = vmatmul.mubr.f32.gmra.mrb[0].mxu0 %v3934
    %v4007 = vpop.f32.mrb[0].mxu0
    %v4008 = vadd.f32 0.0, %v4007
    %v4009 = vpop.f32.mrb[0].mxu0
    %4010 = vdwg.mxu0
    %v4011 = vadd.f32 %v3841, %v4003
    %v4012 = vadd.f32 %v3842, %v4008
    %s4013 = scalar_lea.vmem %s3, 672
    %v4014 = vld [vmem:[%s4013] sm:$0xff]
    %v4015 = vld [vmem:[%s4013 + $0x8] sm:$0xff]
    %v4016 = vld [vmem:[%s4013 + $0x10] sm:$0xff]
    %v4017 = vld [vmem:[%s4013 + $0x18] sm:$0xff]
    %4018 = vmatprep.subr.mxu0 0.0
    %4019 = vmatpush1.msra.mxu0 %v4014
    %4020 = vmatprep.subr.mxu0 0.0
    %4021 = vmatpush1.msra.mxu0 %v4015
    %4022 = vmatprep.subr.mxu0 0.0
    %4023 = vmatpush1.msra.mxu0 %v4016
    %4024 = vmatprep.subr.mxu0 0.0
    %4025 = vmatpush1.msra.mxu0 %v4017
    %4026 = vmatprep.subr.mxu0 0.0
    %4027 = vmatpush1.msra.mxu0 0.0
    %4028 = vmatprep.subr.mxu0 0.0
    %4029 = vmatpush1.msra.mxu0 0.0
    %4030 = vmatprep.subr.mxu0 0.0
    %4031 = vmatpush1.msra.mxu0 0.0
    %4032 = vmatprep.subr.mxu0 0.0
    %4033 = vmatpush1.msra.mxu0 0.0
    %4034 = vmatprep.subr.mxu0 0.0
    %4035 = vmatpush1.msra.mxu0 0.0
    %4036 = vmatprep.subr.mxu0 0.0
    %4037 = vmatpush1.msra.mxu0 0.0
    %4038 = vmatprep.subr.mxu0 0.0
    %4039 = vmatpush1.msra.mxu0 0.0
    %4040 = vmatprep.subr.mxu0 0.0
    %4041 = vmatpush1.msra.mxu0 0.0
    %4042 = vmatprep.subr.mxu0 0.0
    %4043 = vmatpush1.msra.mxu0 0.0
    %4044 = vmatprep.subr.mxu0 0.0
    %4045 = vmatpush1.msra.mxu0 0.0
    %4046 = vmatprep.subr.mxu0 0.0
    %4047 = vmatpush1.msra.mxu0 0.0
    %4048 = vmatprep.subr.mxu0 0.0
    %4049 = vmatpush1.msra.mxu0 0.0
    %4050 = vmatprep.subr.mxu0 0.0
    %4051 = vmatpush1.msra.mxu0 0.0
    %4052 = vmatprep.subr.mxu0 0.0
    %4053 = vmatpush1.msra.mxu0 0.0
    %4054 = vmatprep.subr.mxu0 0.0
    %4055 = vmatpush1.msra.mxu0 0.0
    %4056 = vmatprep.subr.mxu0 0.0
    %4057 = vmatpush1.msra.mxu0 0.0
    %4058 = vmatprep.subr.mxu0 0.0
    %4059 = vmatpush1.msra.mxu0 0.0
    %4060 = vmatprep.subr.mxu0 0.0
    %4061 = vmatpush1.msra.mxu0 0.0
    %4062 = vmatprep.subr.mxu0 0.0
    %4063 = vmatpush1.msra.mxu0 0.0
    %4064 = vmatprep.subr.mxu0 0.0
    %4065 = vmatpush1.msra.mxu0 0.0
    %4066 = vmatprep.subr.mxu0 0.0
    %4067 = vmatpush1.msra.mxu0 0.0
    %4068 = vmatprep.subr.mxu0 0.0
    %4069 = vmatpush1.msra.mxu0 0.0
    %4070 = vmatprep.subr.mxu0 0.0
    %4071 = vmatpush1.msra.mxu0 0.0
    %4072 = vmatprep.subr.mxu0 0.0
    %4073 = vmatpush1.msra.mxu0 0.0
    %4074 = vmatprep.subr.mxu0 0.0
    %4075 = vmatpush1.msra.mxu0 0.0
    %4076 = vmatprep.subr.mxu0 0.0
    %4077 = vmatpush1.msra.mxu0 0.0
    %4078 = vmatprep.subr.mxu0 0.0
    %4079 = vmatpush1.msra.mxu0 0.0
    %4080 = vmatprep.subr.mxu0 0.0
    %4081 = vmatpush1.msra.mxu0 0.0
    %4082 = vmatprep.mubr.f32.mxu0 0.0
    %4083 = vmatmul.mubr.f32.gmra.mrb[0].mxu0 %v3931
    %v4084 = vpop.f32.mrb[0].mxu0
    %v4085 = vadd.f32 0.0, %v4084
    %v4086 = vpop.f32.mrb[0].mxu0
    %4087 = vmatprep.mubr.f32.mxu0 0.0
    %4088 = vmatmul.mubr.f32.gmra.mrb[0].mxu0 %v3934
    %v4089 = vpop.f32.mrb[0].mxu0
    %v4090 = vadd.f32 0.0, %v4089
    %v4091 = vpop.f32.mrb[0].mxu0
    %4092 = vdwg.mxu0
    %v4093 = vadd.f32 %v3923, %v4085
    %v4094 = vadd.f32 %v3924, %v4090
    %s4095 = scalar_lea.vmem %s2, 704
    %v4096 = vld [vmem:[%s4095] sm:$0xff]
    %v4097 = vld [vmem:[%s4095 + $0x8] sm:$0xff]
    %v4098 = vld [vmem:[%s4095 + $0x10] sm:$0xff]
    %v4099 = vld [vmem:[%s4095 + $0x18] sm:$0xff]
    %v4101 = vsel %vm128, %v3713, 0
    %v4104 = vsel %vm128, %v3714, 0
    %4106 = vmatprep.subr.mxu0 0.0
    %4107 = vmatpush1.msra.mxu0 %v4096
    %4108 = vmatprep.subr.mxu0 0.0
    %4109 = vmatpush1.msra.mxu0 %v4097
    %4110 = vmatprep.subr.mxu0 0.0
    %4111 = vmatpush1.msra.mxu0 %v4098
    %4112 = vmatprep.subr.mxu0 0.0
    %4113 = vmatpush1.msra.mxu0 %v4099
    %4114 = vmatprep.subr.mxu0 0.0
    %4115 = vmatpush1.msra.mxu0 0.0
    %4116 = vmatprep.subr.mxu0 0.0
    %4117 = vmatpush1.msra.mxu0 0.0
    %4118 = vmatprep.subr.mxu0 0.0
    %4119 = vmatpush1.msra.mxu0 0.0
    %4120 = vmatprep.subr.mxu0 0.0
    %4121 = vmatpush1.msra.mxu0 0.0
    %4122 = vmatprep.subr.mxu0 0.0
    %4123 = vmatpush1.msra.mxu0 0.0
    %4124 = vmatprep.subr.mxu0 0.0
    %4125 = vmatpush1.msra.mxu0 0.0
    %4126 = vmatprep.subr.mxu0 0.0
    %4127 = vmatpush1.msra.mxu0 0.0
    %4128 = vmatprep.subr.mxu0 0.0
    %4129 = vmatpush1.msra.mxu0 0.0
    %4130 = vmatprep.subr.mxu0 0.0
    %4131 = vmatpush1.msra.mxu0 0.0
    %4132 = vmatprep.subr.mxu0 0.0
    %4133 = vmatpush1.msra.mxu0 0.0
    %4134 = vmatprep.subr.mxu0 0.0
    %4135 = vmatpush1.msra.mxu0 0.0
    %4136 = vmatprep.subr.mxu0 0.0
    %4137 = vmatpush1.msra.mxu0 0.0
    %4138 = vmatprep.subr.mxu0 0.0
    %4139 = vmatpush1.msra.mxu0 0.0
    %4140 = vmatprep.subr.mxu0 0.0
    %4141 = vmatpush1.msra.mxu0 0.0
    %4142 = vmatprep.subr.mxu0 0.0
    %4143 = vmatpush1.msra.mxu0 0.0
    %4144 = vmatprep.subr.mxu0 0.0
    %4145 = vmatpush1.msra.mxu0 0.0
    %4146 = vmatprep.subr.mxu0 0.0
    %4147 = vmatpush1.msra.mxu0 0.0
    %4148 = vmatprep.subr.mxu0 0.0
    %4149 = vmatpush1.msra.mxu0 0.0
    %4150 = vmatprep.subr.mxu0 0.0
    %4151 = vmatpush1.msra.mxu0 0.0
    %4152 = vmatprep.subr.mxu0 0.0
    %4153 = vmatpush1.msra.mxu0 0.0
    %4154 = vmatprep.subr.mxu0 0.0
    %4155 = vmatpush1.msra.mxu0 0.0
    %4156 = vmatprep.subr.mxu0 0.0
    %4157 = vmatpush1.msra.mxu0 0.0
    %4158 = vmatprep.subr.mxu0 0.0
    %4159 = vmatpush1.msra.mxu0 0.0
    %4160 = vmatprep.subr.mxu0 0.0
    %4161 = vmatpush1.msra.mxu0 0.0
    %4162 = vmatprep.subr.mxu0 0.0
    %4163 = vmatpush1.msra.mxu0 0.0
    %4164 = vmatprep.subr.mxu0 0.0
    %4165 = vmatpush1.msra.mxu0 0.0
    %4166 = vmatprep.subr.mxu0 0.0
    %4167 = vmatpush1.msra.mxu0 0.0
    %4168 = vmatprep.subr.mxu0 0.0
    %4169 = vmatpush1.msra.mxu0 0.0
    %4170 = vmatprep.mubr.f32.mxu0 0.0
    %4171 = vmatmul.mubr.f32.gmra.mrb[0].mxu0 %v4101
    %v4172 = vpop.f32.mrb[0].mxu0
    %v4173 = vadd.f32 0.0, %v4172
    %v4174 = vpop.f32.mrb[0].mxu0
    %4175 = vmatprep.mubr.f32.mxu0 0.0
    %4176 = vmatmul.mubr.f32.gmra.mrb[0].mxu0 %v4104
    %v4177 = vpop.f32.mrb[0].mxu0
    %v4178 = vadd.f32 0.0, %v4177
    %v4179 = vpop.f32.mrb[0].mxu0
    %4180 = vdwg.mxu0
    %v4181 = vadd.f32 %v4011, %v4173
    %v4182 = vadd.f32 %v4012, %v4178
    %s4183 = scalar_lea.vmem %s3, 704
    %v4184 = vld [vmem:[%s4183] sm:$0xff]
    %v4185 = vld [vmem:[%s4183 + $0x8] sm:$0xff]
    %v4186 = vld [vmem:[%s4183 + $0x10] sm:$0xff]
    %v4187 = vld [vmem:[%s4183 + $0x18] sm:$0xff]
    %4188 = vmatprep.subr.mxu0 0.0
    %4189 = vmatpush1.msra.mxu0 %v4184
    %4190 = vmatprep.subr.mxu0 0.0
    %4191 = vmatpush1.msra.mxu0 %v4185
    %4192 = vmatprep.subr.mxu0 0.0
    %4193 = vmatpush1.msra.mxu0 %v4186
    %4194 = vmatprep.subr.mxu0 0.0
    %4195 = vmatpush1.msra.mxu0 %v4187
    %4196 = vmatprep.subr.mxu0 0.0
    %4197 = vmatpush1.msra.mxu0 0.0
    %4198 = vmatprep.subr.mxu0 0.0
    %4199 = vmatpush1.msra.mxu0 0.0
    %4200 = vmatprep.subr.mxu0 0.0
    %4201 = vmatpush1.msra.mxu0 0.0
    %4202 = vmatprep.subr.mxu0 0.0
    %4203 = vmatpush1.msra.mxu0 0.0
    %4204 = vmatprep.subr.mxu0 0.0
    %4205 = vmatpush1.msra.mxu0 0.0
    %4206 = vmatprep.subr.mxu0 0.0
    %4207 = vmatpush1.msra.mxu0 0.0
    %4208 = vmatprep.subr.mxu0 0.0
    %4209 = vmatpush1.msra.mxu0 0.0
    %4210 = vmatprep.subr.mxu0 0.0
    %4211 = vmatpush1.msra.mxu0 0.0
    %4212 = vmatprep.subr.mxu0 0.0
    %4213 = vmatpush1.msra.mxu0 0.0
    %4214 = vmatprep.subr.mxu0 0.0
    %4215 = vmatpush1.msra.mxu0 0.0
    %4216 = vmatprep.subr.mxu0 0.0
    %4217 = vmatpush1.msra.mxu0 0.0
    %4218 = vmatprep.subr.mxu0 0.0
    %4219 = vmatpush1.msra.mxu0 0.0
    %4220 = vmatprep.subr.mxu0 0.0
    %4221 = vmatpush1.msra.mxu0 0.0
    %4222 = vmatprep.subr.mxu0 0.0
    %4223 = vmatpush1.msra.mxu0 0.0
    %4224 = vmatprep.subr.mxu0 0.0
    %4225 = vmatpush1.msra.mxu0 0.0
    %4226 = vmatprep.subr.mxu0 0.0
    %4227 = vmatpush1.msra.mxu0 0.0
    %4228 = vmatprep.subr.mxu0 0.0
    %4229 = vmatpush1.msra.mxu0 0.0
    %4230 = vmatprep.subr.mxu0 0.0
    %4231 = vmatpush1.msra.mxu0 0.0
    %4232 = vmatprep.subr.mxu0 0.0
    %4233 = vmatpush1.msra.mxu0 0.0
    %4234 = vmatprep.subr.mxu0 0.0
    %4235 = vmatpush1.msra.mxu0 0.0
    %4236 = vmatprep.subr.mxu0 0.0
    %4237 = vmatpush1.msra.mxu0 0.0
    %4238 = vmatprep.subr.mxu0 0.0
    %4239 = vmatpush1.msra.mxu0 0.0
    %4240 = vmatprep.subr.mxu0 0.0
    %4241 = vmatpush1.msra.mxu0 0.0
    %4242 = vmatprep.subr.mxu0 0.0
    %4243 = vmatpush1.msra.mxu0 0.0
    %4244 = vmatprep.subr.mxu0 0.0
    %4245 = vmatpush1.msra.mxu0 0.0
    %4246 = vmatprep.subr.mxu0 0.0
    %4247 = vmatpush1.msra.mxu0 0.0
    %4248 = vmatprep.subr.mxu0 0.0
    %4249 = vmatpush1.msra.mxu0 0.0
    %4250 = vmatprep.subr.mxu0 0.0
    %4251 = vmatpush1.msra.mxu0 0.0
    %4252 = vmatprep.mubr.f32.mxu0 0.0
    %4253 = vmatmul.mubr.f32.gmra.mrb[0].mxu0 %v4101
    %v4254 = vpop.f32.mrb[0].mxu0
    %v4255 = vadd.f32 0.0, %v4254
    %v4256 = vpop.f32.mrb[0].mxu0
    %4257 = vmatprep.mubr.f32.mxu0 0.0
    %4258 = vmatmul.mubr.f32.gmra.mrb[0].mxu0 %v4104
    %v4259 = vpop.f32.mrb[0].mxu0
    %v4260 = vadd.f32 0.0, %v4259
    %v4261 = vpop.f32.mrb[0].mxu0
    %4262 = vdwg.mxu0
    %v4263 = vadd.f32 %v4093, %v4255
    %v4264 = vadd.f32 %v4094, %v4260
    %s4265 = scalar_lea.vmem %s2, 736
    %v4266 = vld [vmem:[%s4265] sm:$0xff]
    %v4267 = vld [vmem:[%s4265 + $0x8] sm:$0xff]
    %v4268 = vld [vmem:[%s4265 + $0x10] sm:$0xff]
    %v4269 = vld [vmem:[%s4265 + $0x18] sm:$0xff]
    %v4271 = vsel %vm128, %v3731, 0
    %v4274 = vsel %vm128, %v3732, 0
    %4276 = vmatprep.subr.mxu0 0.0
    %4277 = vmatpush1.msra.mxu0 %v4266
    %4278 = vmatprep.subr.mxu0 0.0
    %4279 = vmatpush1.msra.mxu0 %v4267
    %4280 = vmatprep.subr.mxu0 0.0
    %4281 = vmatpush1.msra.mxu0 %v4268
    %4282 = vmatprep.subr.mxu0 0.0
    %4283 = vmatpush1.msra.mxu0 %v4269
    %4284 = vmatprep.subr.mxu0 0.0
    %4285 = vmatpush1.msra.mxu0 0.0
    %4286 = vmatprep.subr.mxu0 0.0
    %4287 = vmatpush1.msra.mxu0 0.0
    %4288 = vmatprep.subr.mxu0 0.0
    %4289 = vmatpush1.msra.mxu0 0.0
    %4290 = vmatprep.subr.mxu0 0.0
    %4291 = vmatpush1.msra.mxu0 0.0
    %4292 = vmatprep.subr.mxu0 0.0
    %4293 = vmatpush1.msra.mxu0 0.0
    %4294 = vmatprep.subr.mxu0 0.0
    %4295 = vmatpush1.msra.mxu0 0.0
    %4296 = vmatprep.subr.mxu0 0.0
    %4297 = vmatpush1.msra.mxu0 0.0
    %4298 = vmatprep.subr.mxu0 0.0
    %4299 = vmatpush1.msra.mxu0 0.0
    %4300 = vmatprep.subr.mxu0 0.0
    %4301 = vmatpush1.msra.mxu0 0.0
    %4302 = vmatprep.subr.mxu0 0.0
    %4303 = vmatpush1.msra.mxu0 0.0
    %4304 = vmatprep.subr.mxu0 0.0
    %4305 = vmatpush1.msra.mxu0 0.0
    %4306 = vmatprep.subr.mxu0 0.0
    %4307 = vmatpush1.msra.mxu0 0.0
    %4308 = vmatprep.subr.mxu0 0.0
    %4309 = vmatpush1.msra.mxu0 0.0
    %4310 = vmatprep.subr.mxu0 0.0
    %4311 = vmatpush1.msra.mxu0 0.0
    %4312 = vmatprep.subr.mxu0 0.0
    %4313 = vmatpush1.msra.mxu0 0.0
    %4314 = vmatprep.subr.mxu0 0.0
    %4315 = vmatpush1.msra.mxu0 0.0
    %4316 = vmatprep.subr.mxu0 0.0
    %4317 = vmatpush1.msra.mxu0 0.0
    %4318 = vmatprep.subr.mxu0 0.0
    %4319 = vmatpush1.msra.mxu0 0.0
    %4320 = vmatprep.subr.mxu0 0.0
    %4321 = vmatpush1.msra.mxu0 0.0
    %4322 = vmatprep.subr.mxu0 0.0
    %4323 = vmatpush1.msra.mxu0 0.0
    %4324 = vmatprep.subr.mxu0 0.0
    %4325 = vmatpush1.msra.mxu0 0.0
    %4326 = vmatprep.subr.mxu0 0.0
    %4327 = vmatpush1.msra.mxu0 0.0
    %4328 = vmatprep.subr.mxu0 0.0
    %4329 = vmatpush1.msra.mxu0 0.0
    %4330 = vmatprep.subr.mxu0 0.0
    %4331 = vmatpush1.msra.mxu0 0.0
    %4332 = vmatprep.subr.mxu0 0.0
    %4333 = vmatpush1.msra.mxu0 0.0
    %4334 = vmatprep.subr.mxu0 0.0
    %4335 = vmatpush1.msra.mxu0 0.0
    %4336 = vmatprep.subr.mxu0 0.0
    %4337 = vmatpush1.msra.mxu0 0.0
    %4338 = vmatprep.subr.mxu0 0.0
    %4339 = vmatpush1.msra.mxu0 0.0
    %4340 = vmatprep.mubr.f32.mxu0 0.0
    %4341 = vmatmul.mubr.f32.gmra.mrb[0].mxu0 %v4271
    %v4342 = vpop.f32.mrb[0].mxu0
    %v4343 = vadd.f32 0.0, %v4342
    %v4344 = vpop.f32.mrb[0].mxu0
    %4345 = vmatprep.mubr.f32.mxu0 0.0
    %4346 = vmatmul.mubr.f32.gmra.mrb[0].mxu0 %v4274
    %v4347 = vpop.f32.mrb[0].mxu0
    %v4348 = vadd.f32 0.0, %v4347
    %v4349 = vpop.f32.mrb[0].mxu0
    %4350 = vdwg.mxu0
    %v4351 = vadd.f32 %v4181, %v4343
    %v4352 = vadd.f32 %v4182, %v4348
    %s4353 = scalar_lea.vmem %s3, 736
    %v4354 = vld [vmem:[%s4353] sm:$0xff]
    %v4355 = vld [vmem:[%s4353 + $0x8] sm:$0xff]
    %v4356 = vld [vmem:[%s4353 + $0x10] sm:$0xff]
    %v4357 = vld [vmem:[%s4353 + $0x18] sm:$0xff]
    %4358 = vmatprep.subr.mxu0 0.0
    %4359 = vmatpush1.msra.mxu0 %v4354
    %4360 = vmatprep.subr.mxu0 0.0
    %4361 = vmatpush1.msra.mxu0 %v4355
    %4362 = vmatprep.subr.mxu0 0.0
    %4363 = vmatpush1.msra.mxu0 %v4356
    %4364 = vmatprep.subr.mxu0 0.0
    %4365 = vmatpush1.msra.mxu0 %v4357
    %4366 = vmatprep.subr.mxu0 0.0
    %4367 = vmatpush1.msra.mxu0 0.0
    %4368 = vmatprep.subr.mxu0 0.0
    %4369 = vmatpush1.msra.mxu0 0.0
    %4370 = vmatprep.subr.mxu0 0.0
    %4371 = vmatpush1.msra.mxu0 0.0
    %4372 = vmatprep.subr.mxu0 0.0
    %4373 = vmatpush1.msra.mxu0 0.0
    %4374 = vmatprep.subr.mxu0 0.0
    %4375 = vmatpush1.msra.mxu0 0.0
    %4376 = vmatprep.subr.mxu0 0.0
    %4377 = vmatpush1.msra.mxu0 0.0
    %4378 = vmatprep.subr.mxu0 0.0
    %4379 = vmatpush1.msra.mxu0 0.0
    %4380 = vmatprep.subr.mxu0 0.0
    %4381 = vmatpush1.msra.mxu0 0.0
    %4382 = vmatprep.subr.mxu0 0.0
    %4383 = vmatpush1.msra.mxu0 0.0
    %4384 = vmatprep.subr.mxu0 0.0
    %4385 = vmatpush1.msra.mxu0 0.0
    %4386 = vmatprep.subr.mxu0 0.0
    %4387 = vmatpush1.msra.mxu0 0.0
    %4388 = vmatprep.subr.mxu0 0.0
    %4389 = vmatpush1.msra.mxu0 0.0
    %4390 = vmatprep.subr.mxu0 0.0
    %4391 = vmatpush1.msra.mxu0 0.0
    %4392 = vmatprep.subr.mxu0 0.0
    %4393 = vmatpush1.msra.mxu0 0.0
    %4394 = vmatprep.subr.mxu0 0.0
    %4395 = vmatpush1.msra.mxu0 0.0
    %4396 = vmatprep.subr.mxu0 0.0
    %4397 = vmatpush1.msra.mxu0 0.0
    %4398 = vmatprep.subr.mxu0 0.0
    %4399 = vmatpush1.msra.mxu0 0.0
    %4400 = vmatprep.subr.mxu0 0.0
    %4401 = vmatpush1.msra.mxu0 0.0
    %4402 = vmatprep.subr.mxu0 0.0
    %4403 = vmatpush1.msra.mxu0 0.0
    %4404 = vmatprep.subr.mxu0 0.0
    %4405 = vmatpush1.msra.mxu0 0.0
    %4406 = vmatprep.subr.mxu0 0.0
    %4407 = vmatpush1.msra.mxu0 0.0
    %4408 = vmatprep.subr.mxu0 0.0
    %4409 = vmatpush1.msra.mxu0 0.0
    %4410 = vmatprep.subr.mxu0 0.0
    %4411 = vmatpush1.msra.mxu0 0.0
    %4412 = vmatprep.subr.mxu0 0.0
    %4413 = vmatpush1.msra.mxu0 0.0
    %4414 = vmatprep.subr.mxu0 0.0
    %4415 = vmatpush1.msra.mxu0 0.0
    %4416 = vmatprep.subr.mxu0 0.0
    %4417 = vmatpush1.msra.mxu0 0.0
    %4418 = vmatprep.subr.mxu0 0.0
    %4419 = vmatpush1.msra.mxu0 0.0
    %4420 = vmatprep.subr.mxu0 0.0
    %4421 = vmatpush1.msra.mxu0 0.0
    %4422 = vmatprep.mubr.f32.mxu0 0.0
    %4423 = vmatmul.mubr.f32.gmra.mrb[0].mxu0 %v4271
    %v4424 = vpop.f32.mrb[0].mxu0
    %v4425 = vadd.f32 0.0, %v4424
    %v4426 = vpop.f32.mrb[0].mxu0
    %4427 = vmatprep.mubr.f32.mxu0 0.0
    %4428 = vmatmul.mubr.f32.gmra.mrb[0].mxu0 %v4274
    %v4429 = vpop.f32.mrb[0].mxu0
    %v4430 = vadd.f32 0.0, %v4429
    %v4431 = vpop.f32.mrb[0].mxu0
    %4432 = vdwg.mxu0
    %v4433 = vadd.f32 %v4263, %v4425
    %v4434 = vadd.f32 %v4264, %v4430
    %s4435 = scalar_lea.vmem %s2, 768
    %v4436 = vld [vmem:[%s4435] sm:$0xff]
    %v4437 = vld [vmem:[%s4435 + $0x8] sm:$0xff]
    %v4438 = vld [vmem:[%s4435 + $0x10] sm:$0xff]
    %v4439 = vld [vmem:[%s4435 + $0x18] sm:$0xff]
    %v4441 = vsel %vm128, %v3737, 0
    %v4444 = vsel %vm128, %v3738, 0
    %4446 = vmatprep.subr.mxu0 0.0
    %4447 = vmatpush1.msra.mxu0 %v4436
    %4448 = vmatprep.subr.mxu0 0.0
    %4449 = vmatpush1.msra.mxu0 %v4437
    %4450 = vmatprep.subr.mxu0 0.0
    %4451 = vmatpush1.msra.mxu0 %v4438
    %4452 = vmatprep.subr.mxu0 0.0
    %4453 = vmatpush1.msra.mxu0 %v4439
    %4454 = vmatprep.subr.mxu0 0.0
    %4455 = vmatpush1.msra.mxu0 0.0
    %4456 = vmatprep.subr.mxu0 0.0
    %4457 = vmatpush1.msra.mxu0 0.0
    %4458 = vmatprep.subr.mxu0 0.0
    %4459 = vmatpush1.msra.mxu0 0.0
    %4460 = vmatprep.subr.mxu0 0.0
    %4461 = vmatpush1.msra.mxu0 0.0
    %4462 = vmatprep.subr.mxu0 0.0
    %4463 = vmatpush1.msra.mxu0 0.0
    %4464 = vmatprep.subr.mxu0 0.0
    %4465 = vmatpush1.msra.mxu0 0.0
    %4466 = vmatprep.subr.mxu0 0.0
    %4467 = vmatpush1.msra.mxu0 0.0
    %4468 = vmatprep.subr.mxu0 0.0
    %4469 = vmatpush1.msra.mxu0 0.0
    %4470 = vmatprep.subr.mxu0 0.0
    %4471 = vmatpush1.msra.mxu0 0.0
    %4472 = vmatprep.subr.mxu0 0.0
    %4473 = vmatpush1.msra.mxu0 0.0
    %4474 = vmatprep.subr.mxu0 0.0
    %4475 = vmatpush1.msra.mxu0 0.0
    %4476 = vmatprep.subr.mxu0 0.0
    %4477 = vmatpush1.msra.mxu0 0.0
    %4478 = vmatprep.subr.mxu0 0.0
    %4479 = vmatpush1.msra.mxu0 0.0
    %4480 = vmatprep.subr.mxu0 0.0
    %4481 = vmatpush1.msra.mxu0 0.0
    %4482 = vmatprep.subr.mxu0 0.0
    %4483 = vmatpush1.msra.mxu0 0.0
    %4484 = vmatprep.subr.mxu0 0.0
    %4485 = vmatpush1.msra.mxu0 0.0
    %4486 = vmatprep.subr.mxu0 0.0
    %4487 = vmatpush1.msra.mxu0 0.0
    %4488 = vmatprep.subr.mxu0 0.0
    %4489 = vmatpush1.msra.mxu0 0.0
    %4490 = vmatprep.subr.mxu0 0.0
    %4491 = vmatpush1.msra.mxu0 0.0
    %4492 = vmatprep.subr.mxu0 0.0
    %4493 = vmatpush1.msra.mxu0 0.0
    %4494 = vmatprep.subr.mxu0 0.0
    %4495 = vmatpush1.msra.mxu0 0.0
    %4496 = vmatprep.subr.mxu0 0.0
    %4497 = vmatpush1.msra.mxu0 0.0
    %4498 = vmatprep.subr.mxu0 0.0
    %4499 = vmatpush1.msra.mxu0 0.0
    %4500 = vmatprep.subr.mxu0 0.0
    %4501 = vmatpush1.msra.mxu0 0.0
    %4502 = vmatprep.subr.mxu0 0.0
    %4503 = vmatpush1.msra.mxu0 0.0
    %4504 = vmatprep.subr.mxu0 0.0
    %4505 = vmatpush1.msra.mxu0 0.0
    %4506 = vmatprep.subr.mxu0 0.0
    %4507 = vmatpush1.msra.mxu0 0.0
    %4508 = vmatprep.subr.mxu0 0.0
    %4509 = vmatpush1.msra.mxu0 0.0
    %4510 = vmatprep.mubr.f32.mxu0 0.0
    %4511 = vmatmul.mubr.f32.gmra.mrb[0].mxu0 %v4441
    %v4512 = vpop.f32.mrb[0].mxu0
    %v4513 = vadd.f32 0.0, %v4512
    %v4514 = vpop.f32.mrb[0].mxu0
    %4515 = vmatprep.mubr.f32.mxu0 0.0
    %4516 = vmatmul.mubr.f32.gmra.mrb[0].mxu0 %v4444
    %v4517 = vpop.f32.mrb[0].mxu0
    %v4518 = vadd.f32 0.0, %v4517
    %v4519 = vpop.f32.mrb[0].mxu0
    %4520 = vdwg.mxu0
    %v4521 = vadd.f32 %v4351, %v4513
    %v4522 = vadd.f32 %v4352, %v4518
    %s4523 = scalar_lea.vmem %s3, 768
    %v4524 = vld [vmem:[%s4523] sm:$0xff]
    %v4525 = vld [vmem:[%s4523 + $0x8] sm:$0xff]
    %v4526 = vld [vmem:[%s4523 + $0x10] sm:$0xff]
    %v4527 = vld [vmem:[%s4523 + $0x18] sm:$0xff]
    %4528 = vmatprep.subr.mxu0 0.0
    %4529 = vmatpush1.msra.mxu0 %v4524
    %4530 = vmatprep.subr.mxu0 0.0
    %4531 = vmatpush1.msra.mxu0 %v4525
    %4532 = vmatprep.subr.mxu0 0.0
    %4533 = vmatpush1.msra.mxu0 %v4526
    %4534 = vmatprep.subr.mxu0 0.0
    %4535 = vmatpush1.msra.mxu0 %v4527
    %4536 = vmatprep.subr.mxu0 0.0
    %4537 = vmatpush1.msra.mxu0 0.0
    %4538 = vmatprep.subr.mxu0 0.0
    %4539 = vmatpush1.msra.mxu0 0.0
    %4540 = vmatprep.subr.mxu0 0.0
    %4541 = vmatpush1.msra.mxu0 0.0
    %4542 = vmatprep.subr.mxu0 0.0
    %4543 = vmatpush1.msra.mxu0 0.0
    %4544 = vmatprep.subr.mxu0 0.0
    %4545 = vmatpush1.msra.mxu0 0.0
    %4546 = vmatprep.subr.mxu0 0.0
    %4547 = vmatpush1.msra.mxu0 0.0
    %4548 = vmatprep.subr.mxu0 0.0
    %4549 = vmatpush1.msra.mxu0 0.0
    %4550 = vmatprep.subr.mxu0 0.0
    %4551 = vmatpush1.msra.mxu0 0.0
    %4552 = vmatprep.subr.mxu0 0.0
    %4553 = vmatpush1.msra.mxu0 0.0
    %4554 = vmatprep.subr.mxu0 0.0
    %4555 = vmatpush1.msra.mxu0 0.0
    %4556 = vmatprep.subr.mxu0 0.0
    %4557 = vmatpush1.msra.mxu0 0.0
    %4558 = vmatprep.subr.mxu0 0.0
    %4559 = vmatpush1.msra.mxu0 0.0
    %4560 = vmatprep.subr.mxu0 0.0
    %4561 = vmatpush1.msra.mxu0 0.0
    %4562 = vmatprep.subr.mxu0 0.0
    %4563 = vmatpush1.msra.mxu0 0.0
    %4564 = vmatprep.subr.mxu0 0.0
    %4565 = vmatpush1.msra.mxu0 0.0
    %4566 = vmatprep.subr.mxu0 0.0
    %4567 = vmatpush1.msra.mxu0 0.0
    %4568 = vmatprep.subr.mxu0 0.0
    %4569 = vmatpush1.msra.mxu0 0.0
    %4570 = vmatprep.subr.mxu0 0.0
    %4571 = vmatpush1.msra.mxu0 0.0
    %4572 = vmatprep.subr.mxu0 0.0
    %4573 = vmatpush1.msra.mxu0 0.0
    %4574 = vmatprep.subr.mxu0 0.0
    %4575 = vmatpush1.msra.mxu0 0.0
    %4576 = vmatprep.subr.mxu0 0.0
    %4577 = vmatpush1.msra.mxu0 0.0
    %4578 = vmatprep.subr.mxu0 0.0
    %4579 = vmatpush1.msra.mxu0 0.0
    %4580 = vmatprep.subr.mxu0 0.0
    %4581 = vmatpush1.msra.mxu0 0.0
    %4582 = vmatprep.subr.mxu0 0.0
    %4583 = vmatpush1.msra.mxu0 0.0
    %4584 = vmatprep.subr.mxu0 0.0
    %4585 = vmatpush1.msra.mxu0 0.0
    %4586 = vmatprep.subr.mxu0 0.0
    %4587 = vmatpush1.msra.mxu0 0.0
    %4588 = vmatprep.subr.mxu0 0.0
    %4589 = vmatpush1.msra.mxu0 0.0
    %4590 = vmatprep.subr.mxu0 0.0
    %4591 = vmatpush1.msra.mxu0 0.0
    %4592 = vmatprep.mubr.f32.mxu0 0.0
    %4593 = vmatmul.mubr.f32.gmra.mrb[0].mxu0 %v4441
    %v4594 = vpop.f32.mrb[0].mxu0
    %v4595 = vadd.f32 0.0, %v4594
    %v4596 = vpop.f32.mrb[0].mxu0
    %4597 = vmatprep.mubr.f32.mxu0 0.0
    %4598 = vmatmul.mubr.f32.gmra.mrb[0].mxu0 %v4444
    %v4599 = vpop.f32.mrb[0].mxu0
    %v4600 = vadd.f32 0.0, %v4599
    %v4601 = vpop.f32.mrb[0].mxu0
    %4602 = vdwg.mxu0
    %v4603 = vadd.f32 %v4433, %v4595
    %v4604 = vadd.f32 %v4434, %v4600
    %v4605 = vxor.u32 %v4603, 2147483648
    %v4606 = vxor.u32 %v4604, 2147483648
    %v4607 = vmul.f32 %v4605, 1.442695
    %v4608 = vpow.pop %v4607
    %v4609 = vmul.f32 %v4606, 1.442695
    %v4610 = vpow.pop %v4609
    %v4611 = vadd.f32 %v4608, 1.0
    %v4612 = vadd.f32 %v4610, 1.0
    %v4613 = vrcp.pop %v4611
    %v4614 = vmul.f32 1.0, %v4613
    %v4615 = vrcp.pop %v4612
    %v4616 = vmul.f32 1.0, %v4615
    %v4617 = vmul.f32 %v4521, %v4614
    %v4618 = vmul.f32 %v4522, %v4616
    %v4619 = vadd.f32 %v4617, %v3713
    %v4620 = vadd.f32 %v4618, %v3714
    %v4621 = vmul.f32 %v4619, 0.70710677
    %v4622 = vmul.f32 %v4620, 0.70710677
    %v4623 = vrot.slane %v4621, 6
    %v4624 = vrot.slane %v4622, 6
    %v4625 = vsel %vm44, %v4623, %v4624
    %v4626 = vsel %vm44, %v4624, %v4623
    %v4627 = vmul.f32 %v4626, %v50
    %v4628 = vmul.f32 %v4625, %v55
    %v4629 = vrot.slane %v4621, 7
    %v4630 = vrot.slane %v4622, 7
    %v4631 = vsel %vm61, %v4629, %v4630
    %v4632 = vsel %vm61, %v4630, %v4629
    %v4633 = vmul.f32 %v4632, %v67
    %v4634 = vmul.f32 %v4631, %v72
    %v4635 = vrot.slane %v4621, 1
    %v4636 = vrot.slane %v4622, 1
    %v4637 = vsel %vm78, %v4635, %v4636
    %v4638 = vsel %vm78, %v4636, %v4635
    %v4639 = vmul.f32 %v4637, %v84
    %v4640 = vmul.f32 %v4638, %v89
    %v4641 = vrot.slane %v4621, 2
    %v4642 = vrot.slane %v4622, 2
    %v4643 = vsel %vm95, %v4641, %v4642
    %v4644 = vsel %vm95, %v4642, %v4641
    %v4645 = vmul.f32 %v4643, %v101
    %v4646 = vmul.f32 %v4644, %v106
    %s4647 = scalar_lea.vmem %s4, 5
    %v4648 = vld [vmem:[%s4647] sm:$0x1]
    %v4650 = vlaneseq
    %v4651 = vshrl.u32 %v4650, 7
    %v4652 = vsub.s32 0, %v4651
    %v4653 = vrot.slane %v4648, %v4652
    %s4655 = scalar_lea.vmem %s5, 5
    %v4656 = vld [vmem:[%s4655] sm:$0x1]
    %v4658 = vlaneseq
    %v4659 = vshrl.u32 %v4658, 7
    %v4660 = vsub.s32 0, %v4659
    %v4661 = vrot.slane %v4656, %v4660
    %s4663 = scalar_lea.vmem %s2, 800
    %v4664 = vld [vmem:[%s4663] sm:$0xff]
    %v4665 = vld [vmem:[%s4663 + $0x8] sm:$0xff]
    %v4666 = vld [vmem:[%s4663 + $0x10] sm:$0xff]
    %v4667 = vld [vmem:[%s4663 + $0x18] sm:$0xff]
    %v4669 = vsel %vm128, %v4627, 0
    %v4672 = vsel %vm128, %v4628, 0
    %4674 = vmatprep.subr.mxu0 0.0
    %4675 = vmatpush1.msra.mxu0 %v4664
    %4676 = vmatprep.subr.mxu0 0.0
    %4677 = vmatpush1.msra.mxu0 %v4665
    %4678 = vmatprep.subr.mxu0 0.0
    %4679 = vmatpush1.msra.mxu0 %v4666
    %4680 = vmatprep.subr.mxu0 0.0
    %4681 = vmatpush1.msra.mxu0 %v4667
    %4682 = vmatprep.subr.mxu0 0.0
    %4683 = vmatpush1.msra.mxu0 0.0
    %4684 = vmatprep.subr.mxu0 0.0
    %4685 = vmatpush1.msra.mxu0 0.0
    %4686 = vmatprep.subr.mxu0 0.0
    %4687 = vmatpush1.msra.mxu0 0.0
    %4688 = vmatprep.subr.mxu0 0.0
    %4689 = vmatpush1.msra.mxu0 0.0
    %4690 = vmatprep.subr.mxu0 0.0
    %4691 = vmatpush1.msra.mxu0 0.0
    %4692 = vmatprep.subr.mxu0 0.0
    %4693 = vmatpush1.msra.mxu0 0.0
    %4694 = vmatprep.subr.mxu0 0.0
    %4695 = vmatpush1.msra.mxu0 0.0
    %4696 = vmatprep.subr.mxu0 0.0
    %4697 = vmatpush1.msra.mxu0 0.0
    %4698 = vmatprep.subr.mxu0 0.0
    %4699 = vmatpush1.msra.mxu0 0.0
    %4700 = vmatprep.subr.mxu0 0.0
    %4701 = vmatpush1.msra.mxu0 0.0
    %4702 = vmatprep.subr.mxu0 0.0
    %4703 = vmatpush1.msra.mxu0 0.0
    %4704 = vmatprep.subr.mxu0 0.0
    %4705 = vmatpush1.msra.mxu0 0.0
    %4706 = vmatprep.subr.mxu0 0.0
    %4707 = vmatpush1.msra.mxu0 0.0
    %4708 = vmatprep.subr.mxu0 0.0
    %4709 = vmatpush1.msra.mxu0 0.0
    %4710 = vmatprep.subr.mxu0 0.0
    %4711 = vmatpush1.msra.mxu0 0.0
    %4712 = vmatprep.subr.mxu0 0.0
    %4713 = vmatpush1.msra.mxu0 0.0
    %4714 = vmatprep.subr.mxu0 0.0
    %4715 = vmatpush1.msra.mxu0 0.0
    %4716 = vmatprep.subr.mxu0 0.0
    %4717 = vmatpush1.msra.mxu0 0.0
    %4718 = vmatprep.subr.mxu0 0.0
    %4719 = vmatpush1.msra.mxu0 0.0
    %4720 = vmatprep.subr.mxu0 0.0
    %4721 = vmatpush1.msra.mxu0 0.0
    %4722 = vmatprep.subr.mxu0 0.0
    %4723 = vmatpush1.msra.mxu0 0.0
    %4724 = vmatprep.subr.mxu0 0.0
    %4725 = vmatpush1.msra.mxu0 0.0
    %4726 = vmatprep.subr.mxu0 0.0
    %4727 = vmatpush1.msra.mxu0 0.0
    %4728 = vmatprep.subr.mxu0 0.0
    %4729 = vmatpush1.msra.mxu0 0.0
    %4730 = vmatprep.subr.mxu0 0.0
    %4731 = vmatpush1.msra.mxu0 0.0
    %4732 = vmatprep.subr.mxu0 0.0
    %4733 = vmatpush1.msra.mxu0 0.0
    %4734 = vmatprep.subr.mxu0 0.0
    %4735 = vmatpush1.msra.mxu0 0.0
    %4736 = vmatprep.subr.mxu0 0.0
    %4737 = vmatpush1.msra.mxu0 0.0
    %4738 = vmatprep.mubr.f32.mxu0 0.0
    %4739 = vmatmul.mubr.f32.gmra.mrb[0].mxu0 %v4669
    %v4740 = vpop.f32.mrb[0].mxu0
    %v4741 = vadd.f32 0.0, %v4740
    %v4742 = vpop.f32.mrb[0].mxu0
    %4743 = vmatprep.mubr.f32.mxu0 0.0
    %4744 = vmatmul.mubr.f32.gmra.mrb[0].mxu0 %v4672
    %v4745 = vpop.f32.mrb[0].mxu0
    %v4746 = vadd.f32 0.0, %v4745
    %v4747 = vpop.f32.mrb[0].mxu0
    %4748 = vdwg.mxu0
    %v4749 = vadd.f32 %v4653, %v4741
    %v4750 = vadd.f32 %v4653, %v4746
    %s4751 = scalar_lea.vmem %s3, 800
    %v4752 = vld [vmem:[%s4751] sm:$0xff]
    %v4753 = vld [vmem:[%s4751 + $0x8] sm:$0xff]
    %v4754 = vld [vmem:[%s4751 + $0x10] sm:$0xff]
    %v4755 = vld [vmem:[%s4751 + $0x18] sm:$0xff]
    %4756 = vmatprep.subr.mxu0 0.0
    %4757 = vmatpush1.msra.mxu0 %v4752
    %4758 = vmatprep.subr.mxu0 0.0
    %4759 = vmatpush1.msra.mxu0 %v4753
    %4760 = vmatprep.subr.mxu0 0.0
    %4761 = vmatpush1.msra.mxu0 %v4754
    %4762 = vmatprep.subr.mxu0 0.0
    %4763 = vmatpush1.msra.mxu0 %v4755
    %4764 = vmatprep.subr.mxu0 0.0
    %4765 = vmatpush1.msra.mxu0 0.0
    %4766 = vmatprep.subr.mxu0 0.0
    %4767 = vmatpush1.msra.mxu0 0.0
    %4768 = vmatprep.subr.mxu0 0.0
    %4769 = vmatpush1.msra.mxu0 0.0
    %4770 = vmatprep.subr.mxu0 0.0
    %4771 = vmatpush1.msra.mxu0 0.0
    %4772 = vmatprep.subr.mxu0 0.0
    %4773 = vmatpush1.msra.mxu0 0.0
    %4774 = vmatprep.subr.mxu0 0.0
    %4775 = vmatpush1.msra.mxu0 0.0
    %4776 = vmatprep.subr.mxu0 0.0
    %4777 = vmatpush1.msra.mxu0 0.0
    %4778 = vmatprep.subr.mxu0 0.0
    %4779 = vmatpush1.msra.mxu0 0.0
    %4780 = vmatprep.subr.mxu0 0.0
    %4781 = vmatpush1.msra.mxu0 0.0
    %4782 = vmatprep.subr.mxu0 0.0
    %4783 = vmatpush1.msra.mxu0 0.0
    %4784 = vmatprep.subr.mxu0 0.0
    %4785 = vmatpush1.msra.mxu0 0.0
    %4786 = vmatprep.subr.mxu0 0.0
    %4787 = vmatpush1.msra.mxu0 0.0
    %4788 = vmatprep.subr.mxu0 0.0
    %4789 = vmatpush1.msra.mxu0 0.0
    %4790 = vmatprep.subr.mxu0 0.0
    %4791 = vmatpush1.msra.mxu0 0.0
    %4792 = vmatprep.subr.mxu0 0.0
    %4793 = vmatpush1.msra.mxu0 0.0
    %4794 = vmatprep.subr.mxu0 0.0
    %4795 = vmatpush1.msra.mxu0 0.0
    %4796 = vmatprep.subr.mxu0 0.0
    %4797 = vmatpush1.msra.mxu0 0.0
    %4798 = vmatprep.subr.mxu0 0.0
    %4799 = vmatpush1.msra.mxu0 0.0
    %4800 = vmatprep.subr.mxu0 0.0
    %4801 = vmatpush1.msra.mxu0 0.0
    %4802 = vmatprep.subr.mxu0 0.0
    %4803 = vmatpush1.msra.mxu0 0.0
    %4804 = vmatprep.subr.mxu0 0.0
    %4805 = vmatpush1.msra.mxu0 0.0
    %4806 = vmatprep.subr.mxu0 0.0
    %4807 = vmatpush1.msra.mxu0 0.0
    %4808 = vmatprep.subr.mxu0 0.0
    %4809 = vmatpush1.msra.mxu0 0.0
    %4810 = vmatprep.subr.mxu0 0.0
    %4811 = vmatpush1.msra.mxu0 0.0
    %4812 = vmatprep.subr.mxu0 0.0
    %4813 = vmatpush1.msra.mxu0 0.0
    %4814 = vmatprep.subr.mxu0 0.0
    %4815 = vmatpush1.msra.mxu0 0.0
    %4816 = vmatprep.subr.mxu0 0.0
    %4817 = vmatpush1.msra.mxu0 0.0
    %4818 = vmatprep.subr.mxu0 0.0
    %4819 = vmatpush1.msra.mxu0 0.0
    %4820 = vmatprep.mubr.f32.mxu0 0.0
    %4821 = vmatmul.mubr.f32.gmra.mrb[0].mxu0 %v4669
    %v4822 = vpop.f32.mrb[0].mxu0
    %v4823 = vadd.f32 0.0, %v4822
    %v4824 = vpop.f32.mrb[0].mxu0
    %4825 = vmatprep.mubr.f32.mxu0 0.0
    %4826 = vmatmul.mubr.f32.gmra.mrb[0].mxu0 %v4672
    %v4827 = vpop.f32.mrb[0].mxu0
    %v4828 = vadd.f32 0.0, %v4827
    %v4829 = vpop.f32.mrb[0].mxu0
    %4830 = vdwg.mxu0
    %v4831 = vadd.f32 %v4661, %v4823
    %v4832 = vadd.f32 %v4661, %v4828
    %s4833 = scalar_lea.vmem %s2, 832
    %v4834 = vld [vmem:[%s4833] sm:$0xff]
    %v4835 = vld [vmem:[%s4833 + $0x8] sm:$0xff]
    %v4836 = vld [vmem:[%s4833 + $0x10] sm:$0xff]
    %v4837 = vld [vmem:[%s4833 + $0x18] sm:$0xff]
    %v4839 = vsel %vm128, %v4633, 0
    %v4842 = vsel %vm128, %v4634, 0
    %4844 = vmatprep.subr.mxu0 0.0
    %4845 = vmatpush1.msra.mxu0 %v4834
    %4846 = vmatprep.subr.mxu0 0.0
    %4847 = vmatpush1.msra.mxu0 %v4835
    %4848 = vmatprep.subr.mxu0 0.0
    %4849 = vmatpush1.msra.mxu0 %v4836
    %4850 = vmatprep.subr.mxu0 0.0
    %4851 = vmatpush1.msra.mxu0 %v4837
    %4852 = vmatprep.subr.mxu0 0.0
    %4853 = vmatpush1.msra.mxu0 0.0
    %4854 = vmatprep.subr.mxu0 0.0
    %4855 = vmatpush1.msra.mxu0 0.0
    %4856 = vmatprep.subr.mxu0 0.0
    %4857 = vmatpush1.msra.mxu0 0.0
    %4858 = vmatprep.subr.mxu0 0.0
    %4859 = vmatpush1.msra.mxu0 0.0
    %4860 = vmatprep.subr.mxu0 0.0
    %4861 = vmatpush1.msra.mxu0 0.0
    %4862 = vmatprep.subr.mxu0 0.0
    %4863 = vmatpush1.msra.mxu0 0.0
    %4864 = vmatprep.subr.mxu0 0.0
    %4865 = vmatpush1.msra.mxu0 0.0
    %4866 = vmatprep.subr.mxu0 0.0
    %4867 = vmatpush1.msra.mxu0 0.0
    %4868 = vmatprep.subr.mxu0 0.0
    %4869 = vmatpush1.msra.mxu0 0.0
    %4870 = vmatprep.subr.mxu0 0.0
    %4871 = vmatpush1.msra.mxu0 0.0
    %4872 = vmatprep.subr.mxu0 0.0
    %4873 = vmatpush1.msra.mxu0 0.0
    %4874 = vmatprep.subr.mxu0 0.0
    %4875 = vmatpush1.msra.mxu0 0.0
    %4876 = vmatprep.subr.mxu0 0.0
    %4877 = vmatpush1.msra.mxu0 0.0
    %4878 = vmatprep.subr.mxu0 0.0
    %4879 = vmatpush1.msra.mxu0 0.0
    %4880 = vmatprep.subr.mxu0 0.0
    %4881 = vmatpush1.msra.mxu0 0.0
    %4882 = vmatprep.subr.mxu0 0.0
    %4883 = vmatpush1.msra.mxu0 0.0
    %4884 = vmatprep.subr.mxu0 0.0
    %4885 = vmatpush1.msra.mxu0 0.0
    %4886 = vmatprep.subr.mxu0 0.0
    %4887 = vmatpush1.msra.mxu0 0.0
    %4888 = vmatprep.subr.mxu0 0.0
    %4889 = vmatpush1.msra.mxu0 0.0
    %4890 = vmatprep.subr.mxu0 0.0
    %4891 = vmatpush1.msra.mxu0 0.0
    %4892 = vmatprep.subr.mxu0 0.0
    %4893 = vmatpush1.msra.mxu0 0.0
    %4894 = vmatprep.subr.mxu0 0.0
    %4895 = vmatpush1.msra.mxu0 0.0
    %4896 = vmatprep.subr.mxu0 0.0
    %4897 = vmatpush1.msra.mxu0 0.0
    %4898 = vmatprep.subr.mxu0 0.0
    %4899 = vmatpush1.msra.mxu0 0.0
    %4900 = vmatprep.subr.mxu0 0.0
    %4901 = vmatpush1.msra.mxu0 0.0
    %4902 = vmatprep.subr.mxu0 0.0
    %4903 = vmatpush1.msra.mxu0 0.0
    %4904 = vmatprep.subr.mxu0 0.0
    %4905 = vmatpush1.msra.mxu0 0.0
    %4906 = vmatprep.subr.mxu0 0.0
    %4907 = vmatpush1.msra.mxu0 0.0
    %4908 = vmatprep.mubr.f32.mxu0 0.0
    %4909 = vmatmul.mubr.f32.gmra.mrb[0].mxu0 %v4839
    %v4910 = vpop.f32.mrb[0].mxu0
    %v4911 = vadd.f32 0.0, %v4910
    %v4912 = vpop.f32.mrb[0].mxu0
    %4913 = vmatprep.mubr.f32.mxu0 0.0
    %4914 = vmatmul.mubr.f32.gmra.mrb[0].mxu0 %v4842
    %v4915 = vpop.f32.mrb[0].mxu0
    %v4916 = vadd.f32 0.0, %v4915
    %v4917 = vpop.f32.mrb[0].mxu0
    %4918 = vdwg.mxu0
    %v4919 = vadd.f32 %v4749, %v4911
    %v4920 = vadd.f32 %v4750, %v4916
    %s4921 = scalar_lea.vmem %s3, 832
    %v4922 = vld [vmem:[%s4921] sm:$0xff]
    %v4923 = vld [vmem:[%s4921 + $0x8] sm:$0xff]
    %v4924 = vld [vmem:[%s4921 + $0x10] sm:$0xff]
    %v4925 = vld [vmem:[%s4921 + $0x18] sm:$0xff]
    %4926 = vmatprep.subr.mxu0 0.0
    %4927 = vmatpush1.msra.mxu0 %v4922
    %4928 = vmatprep.subr.mxu0 0.0
    %4929 = vmatpush1.msra.mxu0 %v4923
    %4930 = vmatprep.subr.mxu0 0.0
    %4931 = vmatpush1.msra.mxu0 %v4924
    %4932 = vmatprep.subr.mxu0 0.0
    %4933 = vmatpush1.msra.mxu0 %v4925
    %4934 = vmatprep.subr.mxu0 0.0
    %4935 = vmatpush1.msra.mxu0 0.0
    %4936 = vmatprep.subr.mxu0 0.0
    %4937 = vmatpush1.msra.mxu0 0.0
    %4938 = vmatprep.subr.mxu0 0.0
    %4939 = vmatpush1.msra.mxu0 0.0
    %4940 = vmatprep.subr.mxu0 0.0
    %4941 = vmatpush1.msra.mxu0 0.0
    %4942 = vmatprep.subr.mxu0 0.0
    %4943 = vmatpush1.msra.mxu0 0.0
    %4944 = vmatprep.subr.mxu0 0.0
    %4945 = vmatpush1.msra.mxu0 0.0
    %4946 = vmatprep.subr.mxu0 0.0
    %4947 = vmatpush1.msra.mxu0 0.0
    %4948 = vmatprep.subr.mxu0 0.0
    %4949 = vmatpush1.msra.mxu0 0.0
    %4950 = vmatprep.subr.mxu0 0.0
    %4951 = vmatpush1.msra.mxu0 0.0
    %4952 = vmatprep.subr.mxu0 0.0
    %4953 = vmatpush1.msra.mxu0 0.0
    %4954 = vmatprep.subr.mxu0 0.0
    %4955 = vmatpush1.msra.mxu0 0.0
    %4956 = vmatprep.subr.mxu0 0.0
    %4957 = vmatpush1.msra.mxu0 0.0
    %4958 = vmatprep.subr.mxu0 0.0
    %4959 = vmatpush1.msra.mxu0 0.0
    %4960 = vmatprep.subr.mxu0 0.0
    %4961 = vmatpush1.msra.mxu0 0.0
    %4962 = vmatprep.subr.mxu0 0.0
    %4963 = vmatpush1.msra.mxu0 0.0
    %4964 = vmatprep.subr.mxu0 0.0
    %4965 = vmatpush1.msra.mxu0 0.0
    %4966 = vmatprep.subr.mxu0 0.0
    %4967 = vmatpush1.msra.mxu0 0.0
    %4968 = vmatprep.subr.mxu0 0.0
    %4969 = vmatpush1.msra.mxu0 0.0
    %4970 = vmatprep.subr.mxu0 0.0
    %4971 = vmatpush1.msra.mxu0 0.0
    %4972 = vmatprep.subr.mxu0 0.0
    %4973 = vmatpush1.msra.mxu0 0.0
    %4974 = vmatprep.subr.mxu0 0.0
    %4975 = vmatpush1.msra.mxu0 0.0
    %4976 = vmatprep.subr.mxu0 0.0
    %4977 = vmatpush1.msra.mxu0 0.0
    %4978 = vmatprep.subr.mxu0 0.0
    %4979 = vmatpush1.msra.mxu0 0.0
    %4980 = vmatprep.subr.mxu0 0.0
    %4981 = vmatpush1.msra.mxu0 0.0
    %4982 = vmatprep.subr.mxu0 0.0
    %4983 = vmatpush1.msra.mxu0 0.0
    %4984 = vmatprep.subr.mxu0 0.0
    %4985 = vmatpush1.msra.mxu0 0.0
    %4986 = vmatprep.subr.mxu0 0.0
    %4987 = vmatpush1.msra.mxu0 0.0
    %4988 = vmatprep.subr.mxu0 0.0
    %4989 = vmatpush1.msra.mxu0 0.0
    %4990 = vmatprep.mubr.f32.mxu0 0.0
    %4991 = vmatmul.mubr.f32.gmra.mrb[0].mxu0 %v4839
    %v4992 = vpop.f32.mrb[0].mxu0
    %v4993 = vadd.f32 0.0, %v4992
    %v4994 = vpop.f32.mrb[0].mxu0
    %4995 = vmatprep.mubr.f32.mxu0 0.0
    %4996 = vmatmul.mubr.f32.gmra.mrb[0].mxu0 %v4842
    %v4997 = vpop.f32.mrb[0].mxu0
    %v4998 = vadd.f32 0.0, %v4997
    %v4999 = vpop.f32.mrb[0].mxu0
    %5000 = vdwg.mxu0
    %v5001 = vadd.f32 %v4831, %v4993
    %v5002 = vadd.f32 %v4832, %v4998
    %s5003 = scalar_lea.vmem %s2, 864
    %v5004 = vld [vmem:[%s5003] sm:$0xff]
    %v5005 = vld [vmem:[%s5003 + $0x8] sm:$0xff]
    %v5006 = vld [vmem:[%s5003 + $0x10] sm:$0xff]
    %v5007 = vld [vmem:[%s5003 + $0x18] sm:$0xff]
    %v5009 = vsel %vm128, %v4621, 0
    %v5012 = vsel %vm128, %v4622, 0
    %5014 = vmatprep.subr.mxu0 0.0
    %5015 = vmatpush1.msra.mxu0 %v5004
    %5016 = vmatprep.subr.mxu0 0.0
    %5017 = vmatpush1.msra.mxu0 %v5005
    %5018 = vmatprep.subr.mxu0 0.0
    %5019 = vmatpush1.msra.mxu0 %v5006
    %5020 = vmatprep.subr.mxu0 0.0
    %5021 = vmatpush1.msra.mxu0 %v5007
    %5022 = vmatprep.subr.mxu0 0.0
    %5023 = vmatpush1.msra.mxu0 0.0
    %5024 = vmatprep.subr.mxu0 0.0
    %5025 = vmatpush1.msra.mxu0 0.0
    %5026 = vmatprep.subr.mxu0 0.0
    %5027 = vmatpush1.msra.mxu0 0.0
    %5028 = vmatprep.subr.mxu0 0.0
    %5029 = vmatpush1.msra.mxu0 0.0
    %5030 = vmatprep.subr.mxu0 0.0
    %5031 = vmatpush1.msra.mxu0 0.0
    %5032 = vmatprep.subr.mxu0 0.0
    %5033 = vmatpush1.msra.mxu0 0.0
    %5034 = vmatprep.subr.mxu0 0.0
    %5035 = vmatpush1.msra.mxu0 0.0
    %5036 = vmatprep.subr.mxu0 0.0
    %5037 = vmatpush1.msra.mxu0 0.0
    %5038 = vmatprep.subr.mxu0 0.0
    %5039 = vmatpush1.msra.mxu0 0.0
    %5040 = vmatprep.subr.mxu0 0.0
    %5041 = vmatpush1.msra.mxu0 0.0
    %5042 = vmatprep.subr.mxu0 0.0
    %5043 = vmatpush1.msra.mxu0 0.0
    %5044 = vmatprep.subr.mxu0 0.0
    %5045 = vmatpush1.msra.mxu0 0.0
    %5046 = vmatprep.subr.mxu0 0.0
    %5047 = vmatpush1.msra.mxu0 0.0
    %5048 = vmatprep.subr.mxu0 0.0
    %5049 = vmatpush1.msra.mxu0 0.0
    %5050 = vmatprep.subr.mxu0 0.0
    %5051 = vmatpush1.msra.mxu0 0.0
    %5052 = vmatprep.subr.mxu0 0.0
    %5053 = vmatpush1.msra.mxu0 0.0
    %5054 = vmatprep.subr.mxu0 0.0
    %5055 = vmatpush1.msra.mxu0 0.0
    %5056 = vmatprep.subr.mxu0 0.0
    %5057 = vmatpush1.msra.mxu0 0.0
    %5058 = vmatprep.subr.mxu0 0.0
    %5059 = vmatpush1.msra.mxu0 0.0
    %5060 = vmatprep.subr.mxu0 0.0
    %5061 = vmatpush1.msra.mxu0 0.0
    %5062 = vmatprep.subr.mxu0 0.0
    %5063 = vmatpush1.msra.mxu0 0.0
    %5064 = vmatprep.subr.mxu0 0.0
    %5065 = vmatpush1.msra.mxu0 0.0
    %5066 = vmatprep.subr.mxu0 0.0
    %5067 = vmatpush1.msra.mxu0 0.0
    %5068 = vmatprep.subr.mxu0 0.0
    %5069 = vmatpush1.msra.mxu0 0.0
    %5070 = vmatprep.subr.mxu0 0.0
    %5071 = vmatpush1.msra.mxu0 0.0
    %5072 = vmatprep.subr.mxu0 0.0
    %5073 = vmatpush1.msra.mxu0 0.0
    %5074 = vmatprep.subr.mxu0 0.0
    %5075 = vmatpush1.msra.mxu0 0.0
    %5076 = vmatprep.subr.mxu0 0.0
    %5077 = vmatpush1.msra.mxu0 0.0
    %5078 = vmatprep.mubr.f32.mxu0 0.0
    %5079 = vmatmul.mubr.f32.gmra.mrb[0].mxu0 %v5009
    %v5080 = vpop.f32.mrb[0].mxu0
    %v5081 = vadd.f32 0.0, %v5080
    %v5082 = vpop.f32.mrb[0].mxu0
    %5083 = vmatprep.mubr.f32.mxu0 0.0
    %5084 = vmatmul.mubr.f32.gmra.mrb[0].mxu0 %v5012
    %v5085 = vpop.f32.mrb[0].mxu0
    %v5086 = vadd.f32 0.0, %v5085
    %v5087 = vpop.f32.mrb[0].mxu0
    %5088 = vdwg.mxu0
    %v5089 = vadd.f32 %v4919, %v5081
    %v5090 = vadd.f32 %v4920, %v5086
    %s5091 = scalar_lea.vmem %s3, 864
    %v5092 = vld [vmem:[%s5091] sm:$0xff]
    %v5093 = vld [vmem:[%s5091 + $0x8] sm:$0xff]
    %v5094 = vld [vmem:[%s5091 + $0x10] sm:$0xff]
    %v5095 = vld [vmem:[%s5091 + $0x18] sm:$0xff]
    %5096 = vmatprep.subr.mxu0 0.0
    %5097 = vmatpush1.msra.mxu0 %v5092
    %5098 = vmatprep.subr.mxu0 0.0
    %5099 = vmatpush1.msra.mxu0 %v5093
    %5100 = vmatprep.subr.mxu0 0.0
    %5101 = vmatpush1.msra.mxu0 %v5094
    %5102 = vmatprep.subr.mxu0 0.0
    %5103 = vmatpush1.msra.mxu0 %v5095
    %5104 = vmatprep.subr.mxu0 0.0
    %5105 = vmatpush1.msra.mxu0 0.0
    %5106 = vmatprep.subr.mxu0 0.0
    %5107 = vmatpush1.msra.mxu0 0.0
    %5108 = vmatprep.subr.mxu0 0.0
    %5109 = vmatpush1.msra.mxu0 0.0
    %5110 = vmatprep.subr.mxu0 0.0
    %5111 = vmatpush1.msra.mxu0 0.0
    %5112 = vmatprep.subr.mxu0 0.0
    %5113 = vmatpush1.msra.mxu0 0.0
    %5114 = vmatprep.subr.mxu0 0.0
    %5115 = vmatpush1.msra.mxu0 0.0
    %5116 = vmatprep.subr.mxu0 0.0
    %5117 = vmatpush1.msra.mxu0 0.0
    %5118 = vmatprep.subr.mxu0 0.0
    %5119 = vmatpush1.msra.mxu0 0.0
    %5120 = vmatprep.subr.mxu0 0.0
    %5121 = vmatpush1.msra.mxu0 0.0
    %5122 = vmatprep.subr.mxu0 0.0
    %5123 = vmatpush1.msra.mxu0 0.0
    %5124 = vmatprep.subr.mxu0 0.0
    %5125 = vmatpush1.msra.mxu0 0.0
    %5126 = vmatprep.subr.mxu0 0.0
    %5127 = vmatpush1.msra.mxu0 0.0
    %5128 = vmatprep.subr.mxu0 0.0
    %5129 = vmatpush1.msra.mxu0 0.0
    %5130 = vmatprep.subr.mxu0 0.0
    %5131 = vmatpush1.msra.mxu0 0.0
    %5132 = vmatprep.subr.mxu0 0.0
    %5133 = vmatpush1.msra.mxu0 0.0
    %5134 = vmatprep.subr.mxu0 0.0
    %5135 = vmatpush1.msra.mxu0 0.0
    %5136 = vmatprep.subr.mxu0 0.0
    %5137 = vmatpush1.msra.mxu0 0.0
    %5138 = vmatprep.subr.mxu0 0.0
    %5139 = vmatpush1.msra.mxu0 0.0
    %5140 = vmatprep.subr.mxu0 0.0
    %5141 = vmatpush1.msra.mxu0 0.0
    %5142 = vmatprep.subr.mxu0 0.0
    %5143 = vmatpush1.msra.mxu0 0.0
    %5144 = vmatprep.subr.mxu0 0.0
    %5145 = vmatpush1.msra.mxu0 0.0
    %5146 = vmatprep.subr.mxu0 0.0
    %5147 = vmatpush1.msra.mxu0 0.0
    %5148 = vmatprep.subr.mxu0 0.0
    %5149 = vmatpush1.msra.mxu0 0.0
    %5150 = vmatprep.subr.mxu0 0.0
    %5151 = vmatpush1.msra.mxu0 0.0
    %5152 = vmatprep.subr.mxu0 0.0
    %5153 = vmatpush1.msra.mxu0 0.0
    %5154 = vmatprep.subr.mxu0 0.0
    %5155 = vmatpush1.msra.mxu0 0.0
    %5156 = vmatprep.subr.mxu0 0.0
    %5157 = vmatpush1.msra.mxu0 0.0
    %5158 = vmatprep.subr.mxu0 0.0
    %5159 = vmatpush1.msra.mxu0 0.0
    %5160 = vmatprep.mubr.f32.mxu0 0.0
    %5161 = vmatmul.mubr.f32.gmra.mrb[0].mxu0 %v5009
    %v5162 = vpop.f32.mrb[0].mxu0
    %v5163 = vadd.f32 0.0, %v5162
    %v5164 = vpop.f32.mrb[0].mxu0
    %5165 = vmatprep.mubr.f32.mxu0 0.0
    %5166 = vmatmul.mubr.f32.gmra.mrb[0].mxu0 %v5012
    %v5167 = vpop.f32.mrb[0].mxu0
    %v5168 = vadd.f32 0.0, %v5167
    %v5169 = vpop.f32.mrb[0].mxu0
    %5170 = vdwg.mxu0
    %v5171 = vadd.f32 %v5001, %v5163
    %v5172 = vadd.f32 %v5002, %v5168
    %s5173 = scalar_lea.vmem %s2, 896
    %v5174 = vld [vmem:[%s5173] sm:$0xff]
    %v5175 = vld [vmem:[%s5173 + $0x8] sm:$0xff]
    %v5176 = vld [vmem:[%s5173 + $0x10] sm:$0xff]
    %v5177 = vld [vmem:[%s5173 + $0x18] sm:$0xff]
    %v5179 = vsel %vm128, %v4639, 0
    %v5182 = vsel %vm128, %v4640, 0
    %5184 = vmatprep.subr.mxu0 0.0
    %5185 = vmatpush1.msra.mxu0 %v5174
    %5186 = vmatprep.subr.mxu0 0.0
    %5187 = vmatpush1.msra.mxu0 %v5175
    %5188 = vmatprep.subr.mxu0 0.0
    %5189 = vmatpush1.msra.mxu0 %v5176
    %5190 = vmatprep.subr.mxu0 0.0
    %5191 = vmatpush1.msra.mxu0 %v5177
    %5192 = vmatprep.subr.mxu0 0.0
    %5193 = vmatpush1.msra.mxu0 0.0
    %5194 = vmatprep.subr.mxu0 0.0
    %5195 = vmatpush1.msra.mxu0 0.0
    %5196 = vmatprep.subr.mxu0 0.0
    %5197 = vmatpush1.msra.mxu0 0.0
    %5198 = vmatprep.subr.mxu0 0.0
    %5199 = vmatpush1.msra.mxu0 0.0
    %5200 = vmatprep.subr.mxu0 0.0
    %5201 = vmatpush1.msra.mxu0 0.0
    %5202 = vmatprep.subr.mxu0 0.0
    %5203 = vmatpush1.msra.mxu0 0.0
    %5204 = vmatprep.subr.mxu0 0.0
    %5205 = vmatpush1.msra.mxu0 0.0
    %5206 = vmatprep.subr.mxu0 0.0
    %5207 = vmatpush1.msra.mxu0 0.0
    %5208 = vmatprep.subr.mxu0 0.0
    %5209 = vmatpush1.msra.mxu0 0.0
    %5210 = vmatprep.subr.mxu0 0.0
    %5211 = vmatpush1.msra.mxu0 0.0
    %5212 = vmatprep.subr.mxu0 0.0
    %5213 = vmatpush1.msra.mxu0 0.0
    %5214 = vmatprep.subr.mxu0 0.0
    %5215 = vmatpush1.msra.mxu0 0.0
    %5216 = vmatprep.subr.mxu0 0.0
    %5217 = vmatpush1.msra.mxu0 0.0
    %5218 = vmatprep.subr.mxu0 0.0
    %5219 = vmatpush1.msra.mxu0 0.0
    %5220 = vmatprep.subr.mxu0 0.0
    %5221 = vmatpush1.msra.mxu0 0.0
    %5222 = vmatprep.subr.mxu0 0.0
    %5223 = vmatpush1.msra.mxu0 0.0
    %5224 = vmatprep.subr.mxu0 0.0
    %5225 = vmatpush1.msra.mxu0 0.0
    %5226 = vmatprep.subr.mxu0 0.0
    %5227 = vmatpush1.msra.mxu0 0.0
    %5228 = vmatprep.subr.mxu0 0.0
    %5229 = vmatpush1.msra.mxu0 0.0
    %5230 = vmatprep.subr.mxu0 0.0
    %5231 = vmatpush1.msra.mxu0 0.0
    %5232 = vmatprep.subr.mxu0 0.0
    %5233 = vmatpush1.msra.mxu0 0.0
    %5234 = vmatprep.subr.mxu0 0.0
    %5235 = vmatpush1.msra.mxu0 0.0
    %5236 = vmatprep.subr.mxu0 0.0
    %5237 = vmatpush1.msra.mxu0 0.0
    %5238 = vmatprep.subr.mxu0 0.0
    %5239 = vmatpush1.msra.mxu0 0.0
    %5240 = vmatprep.subr.mxu0 0.0
    %5241 = vmatpush1.msra.mxu0 0.0
    %5242 = vmatprep.subr.mxu0 0.0
    %5243 = vmatpush1.msra.mxu0 0.0
    %5244 = vmatprep.subr.mxu0 0.0
    %5245 = vmatpush1.msra.mxu0 0.0
    %5246 = vmatprep.subr.mxu0 0.0
    %5247 = vmatpush1.msra.mxu0 0.0
    %5248 = vmatprep.mubr.f32.mxu0 0.0
    %5249 = vmatmul.mubr.f32.gmra.mrb[0].mxu0 %v5179
    %v5250 = vpop.f32.mrb[0].mxu0
    %v5251 = vadd.f32 0.0, %v5250
    %v5252 = vpop.f32.mrb[0].mxu0
    %5253 = vmatprep.mubr.f32.mxu0 0.0
    %5254 = vmatmul.mubr.f32.gmra.mrb[0].mxu0 %v5182
    %v5255 = vpop.f32.mrb[0].mxu0
    %v5256 = vadd.f32 0.0, %v5255
    %v5257 = vpop.f32.mrb[0].mxu0
    %5258 = vdwg.mxu0
    %v5259 = vadd.f32 %v5089, %v5251
    %v5260 = vadd.f32 %v5090, %v5256
    %s5261 = scalar_lea.vmem %s3, 896
    %v5262 = vld [vmem:[%s5261] sm:$0xff]
    %v5263 = vld [vmem:[%s5261 + $0x8] sm:$0xff]
    %v5264 = vld [vmem:[%s5261 + $0x10] sm:$0xff]
    %v5265 = vld [vmem:[%s5261 + $0x18] sm:$0xff]
    %5266 = vmatprep.subr.mxu0 0.0
    %5267 = vmatpush1.msra.mxu0 %v5262
    %5268 = vmatprep.subr.mxu0 0.0
    %5269 = vmatpush1.msra.mxu0 %v5263
    %5270 = vmatprep.subr.mxu0 0.0
    %5271 = vmatpush1.msra.mxu0 %v5264
    %5272 = vmatprep.subr.mxu0 0.0
    %5273 = vmatpush1.msra.mxu0 %v5265
    %5274 = vmatprep.subr.mxu0 0.0
    %5275 = vmatpush1.msra.mxu0 0.0
    %5276 = vmatprep.subr.mxu0 0.0
    %5277 = vmatpush1.msra.mxu0 0.0
    %5278 = vmatprep.subr.mxu0 0.0
    %5279 = vmatpush1.msra.mxu0 0.0
    %5280 = vmatprep.subr.mxu0 0.0
    %5281 = vmatpush1.msra.mxu0 0.0
    %5282 = vmatprep.subr.mxu0 0.0
    %5283 = vmatpush1.msra.mxu0 0.0
    %5284 = vmatprep.subr.mxu0 0.0
    %5285 = vmatpush1.msra.mxu0 0.0
    %5286 = vmatprep.subr.mxu0 0.0
    %5287 = vmatpush1.msra.mxu0 0.0
    %5288 = vmatprep.subr.mxu0 0.0
    %5289 = vmatpush1.msra.mxu0 0.0
    %5290 = vmatprep.subr.mxu0 0.0
    %5291 = vmatpush1.msra.mxu0 0.0
    %5292 = vmatprep.subr.mxu0 0.0
    %5293 = vmatpush1.msra.mxu0 0.0
    %5294 = vmatprep.subr.mxu0 0.0
    %5295 = vmatpush1.msra.mxu0 0.0
    %5296 = vmatprep.subr.mxu0 0.0
    %5297 = vmatpush1.msra.mxu0 0.0
    %5298 = vmatprep.subr.mxu0 0.0
    %5299 = vmatpush1.msra.mxu0 0.0
    %5300 = vmatprep.subr.mxu0 0.0
    %5301 = vmatpush1.msra.mxu0 0.0
    %5302 = vmatprep.subr.mxu0 0.0
    %5303 = vmatpush1.msra.mxu0 0.0
    %5304 = vmatprep.subr.mxu0 0.0
    %5305 = vmatpush1.msra.mxu0 0.0
    %5306 = vmatprep.subr.mxu0 0.0
    %5307 = vmatpush1.msra.mxu0 0.0
    %5308 = vmatprep.subr.mxu0 0.0
    %5309 = vmatpush1.msra.mxu0 0.0
    %5310 = vmatprep.subr.mxu0 0.0
    %5311 = vmatpush1.msra.mxu0 0.0
    %5312 = vmatprep.subr.mxu0 0.0
    %5313 = vmatpush1.msra.mxu0 0.0
    %5314 = vmatprep.subr.mxu0 0.0
    %5315 = vmatpush1.msra.mxu0 0.0
    %5316 = vmatprep.subr.mxu0 0.0
    %5317 = vmatpush1.msra.mxu0 0.0
    %5318 = vmatprep.subr.mxu0 0.0
    %5319 = vmatpush1.msra.mxu0 0.0
    %5320 = vmatprep.subr.mxu0 0.0
    %5321 = vmatpush1.msra.mxu0 0.0
    %5322 = vmatprep.subr.mxu0 0.0
    %5323 = vmatpush1.msra.mxu0 0.0
    %5324 = vmatprep.subr.mxu0 0.0
    %5325 = vmatpush1.msra.mxu0 0.0
    %5326 = vmatprep.subr.mxu0 0.0
    %5327 = vmatpush1.msra.mxu0 0.0
    %5328 = vmatprep.subr.mxu0 0.0
    %5329 = vmatpush1.msra.mxu0 0.0
    %5330 = vmatprep.mubr.f32.mxu0 0.0
    %5331 = vmatmul.mubr.f32.gmra.mrb[0].mxu0 %v5179
    %v5332 = vpop.f32.mrb[0].mxu0
    %v5333 = vadd.f32 0.0, %v5332
    %v5334 = vpop.f32.mrb[0].mxu0
    %5335 = vmatprep.mubr.f32.mxu0 0.0
    %5336 = vmatmul.mubr.f32.gmra.mrb[0].mxu0 %v5182
    %v5337 = vpop.f32.mrb[0].mxu0
    %v5338 = vadd.f32 0.0, %v5337
    %v5339 = vpop.f32.mrb[0].mxu0
    %5340 = vdwg.mxu0
    %v5341 = vadd.f32 %v5171, %v5333
    %v5342 = vadd.f32 %v5172, %v5338
    %s5343 = scalar_lea.vmem %s2, 928
    %v5344 = vld [vmem:[%s5343] sm:$0xff]
    %v5345 = vld [vmem:[%s5343 + $0x8] sm:$0xff]
    %v5346 = vld [vmem:[%s5343 + $0x10] sm:$0xff]
    %v5347 = vld [vmem:[%s5343 + $0x18] sm:$0xff]
    %v5349 = vsel %vm128, %v4645, 0
    %v5352 = vsel %vm128, %v4646, 0
    %5354 = vmatprep.subr.mxu0 0.0
    %5355 = vmatpush1.msra.mxu0 %v5344
    %5356 = vmatprep.subr.mxu0 0.0
    %5357 = vmatpush1.msra.mxu0 %v5345
    %5358 = vmatprep.subr.mxu0 0.0
    %5359 = vmatpush1.msra.mxu0 %v5346
    %5360 = vmatprep.subr.mxu0 0.0
    %5361 = vmatpush1.msra.mxu0 %v5347
    %5362 = vmatprep.subr.mxu0 0.0
    %5363 = vmatpush1.msra.mxu0 0.0
    %5364 = vmatprep.subr.mxu0 0.0
    %5365 = vmatpush1.msra.mxu0 0.0
    %5366 = vmatprep.subr.mxu0 0.0
    %5367 = vmatpush1.msra.mxu0 0.0
    %5368 = vmatprep.subr.mxu0 0.0
    %5369 = vmatpush1.msra.mxu0 0.0
    %5370 = vmatprep.subr.mxu0 0.0
    %5371 = vmatpush1.msra.mxu0 0.0
    %5372 = vmatprep.subr.mxu0 0.0
    %5373 = vmatpush1.msra.mxu0 0.0
    %5374 = vmatprep.subr.mxu0 0.0
    %5375 = vmatpush1.msra.mxu0 0.0
    %5376 = vmatprep.subr.mxu0 0.0
    %5377 = vmatpush1.msra.mxu0 0.0
    %5378 = vmatprep.subr.mxu0 0.0
    %5379 = vmatpush1.msra.mxu0 0.0
    %5380 = vmatprep.subr.mxu0 0.0
    %5381 = vmatpush1.msra.mxu0 0.0
    %5382 = vmatprep.subr.mxu0 0.0
    %5383 = vmatpush1.msra.mxu0 0.0
    %5384 = vmatprep.subr.mxu0 0.0
    %5385 = vmatpush1.msra.mxu0 0.0
    %5386 = vmatprep.subr.mxu0 0.0
    %5387 = vmatpush1.msra.mxu0 0.0
    %5388 = vmatprep.subr.mxu0 0.0
    %5389 = vmatpush1.msra.mxu0 0.0
    %5390 = vmatprep.subr.mxu0 0.0
    %5391 = vmatpush1.msra.mxu0 0.0
    %5392 = vmatprep.subr.mxu0 0.0
    %5393 = vmatpush1.msra.mxu0 0.0
    %5394 = vmatprep.subr.mxu0 0.0
    %5395 = vmatpush1.msra.mxu0 0.0
    %5396 = vmatprep.subr.mxu0 0.0
    %5397 = vmatpush1.msra.mxu0 0.0
    %5398 = vmatprep.subr.mxu0 0.0
    %5399 = vmatpush1.msra.mxu0 0.0
    %5400 = vmatprep.subr.mxu0 0.0
    %5401 = vmatpush1.msra.mxu0 0.0
    %5402 = vmatprep.subr.mxu0 0.0
    %5403 = vmatpush1.msra.mxu0 0.0
    %5404 = vmatprep.subr.mxu0 0.0
    %5405 = vmatpush1.msra.mxu0 0.0
    %5406 = vmatprep.subr.mxu0 0.0
    %5407 = vmatpush1.msra.mxu0 0.0
    %5408 = vmatprep.subr.mxu0 0.0
    %5409 = vmatpush1.msra.mxu0 0.0
    %5410 = vmatprep.subr.mxu0 0.0
    %5411 = vmatpush1.msra.mxu0 0.0
    %5412 = vmatprep.subr.mxu0 0.0
    %5413 = vmatpush1.msra.mxu0 0.0
    %5414 = vmatprep.subr.mxu0 0.0
    %5415 = vmatpush1.msra.mxu0 0.0
    %5416 = vmatprep.subr.mxu0 0.0
    %5417 = vmatpush1.msra.mxu0 0.0
    %5418 = vmatprep.mubr.f32.mxu0 0.0
    %5419 = vmatmul.mubr.f32.gmra.mrb[0].mxu0 %v5349
    %v5420 = vpop.f32.mrb[0].mxu0
    %v5421 = vadd.f32 0.0, %v5420
    %v5422 = vpop.f32.mrb[0].mxu0
    %5423 = vmatprep.mubr.f32.mxu0 0.0
    %5424 = vmatmul.mubr.f32.gmra.mrb[0].mxu0 %v5352
    %v5425 = vpop.f32.mrb[0].mxu0
    %v5426 = vadd.f32 0.0, %v5425
    %v5427 = vpop.f32.mrb[0].mxu0
    %5428 = vdwg.mxu0
    %v5429 = vadd.f32 %v5259, %v5421
    %v5430 = vadd.f32 %v5260, %v5426
    %s5431 = scalar_lea.vmem %s3, 928
    %v5432 = vld [vmem:[%s5431] sm:$0xff]
    %v5433 = vld [vmem:[%s5431 + $0x8] sm:$0xff]
    %v5434 = vld [vmem:[%s5431 + $0x10] sm:$0xff]
    %v5435 = vld [vmem:[%s5431 + $0x18] sm:$0xff]
    %5436 = vmatprep.subr.mxu0 0.0
    %5437 = vmatpush1.msra.mxu0 %v5432
    %5438 = vmatprep.subr.mxu0 0.0
    %5439 = vmatpush1.msra.mxu0 %v5433
    %5440 = vmatprep.subr.mxu0 0.0
    %5441 = vmatpush1.msra.mxu0 %v5434
    %5442 = vmatprep.subr.mxu0 0.0
    %5443 = vmatpush1.msra.mxu0 %v5435
    %5444 = vmatprep.subr.mxu0 0.0
    %5445 = vmatpush1.msra.mxu0 0.0
    %5446 = vmatprep.subr.mxu0 0.0
    %5447 = vmatpush1.msra.mxu0 0.0
    %5448 = vmatprep.subr.mxu0 0.0
    %5449 = vmatpush1.msra.mxu0 0.0
    %5450 = vmatprep.subr.mxu0 0.0
    %5451 = vmatpush1.msra.mxu0 0.0
    %5452 = vmatprep.subr.mxu0 0.0
    %5453 = vmatpush1.msra.mxu0 0.0
    %5454 = vmatprep.subr.mxu0 0.0
    %5455 = vmatpush1.msra.mxu0 0.0
    %5456 = vmatprep.subr.mxu0 0.0
    %5457 = vmatpush1.msra.mxu0 0.0
    %5458 = vmatprep.subr.mxu0 0.0
    %5459 = vmatpush1.msra.mxu0 0.0
    %5460 = vmatprep.subr.mxu0 0.0
    %5461 = vmatpush1.msra.mxu0 0.0
    %5462 = vmatprep.subr.mxu0 0.0
    %5463 = vmatpush1.msra.mxu0 0.0
    %5464 = vmatprep.subr.mxu0 0.0
    %5465 = vmatpush1.msra.mxu0 0.0
    %5466 = vmatprep.subr.mxu0 0.0
    %5467 = vmatpush1.msra.mxu0 0.0
    %5468 = vmatprep.subr.mxu0 0.0
    %5469 = vmatpush1.msra.mxu0 0.0
    %5470 = vmatprep.subr.mxu0 0.0
    %5471 = vmatpush1.msra.mxu0 0.0
    %5472 = vmatprep.subr.mxu0 0.0
    %5473 = vmatpush1.msra.mxu0 0.0
    %5474 = vmatprep.subr.mxu0 0.0
    %5475 = vmatpush1.msra.mxu0 0.0
    %5476 = vmatprep.subr.mxu0 0.0
    %5477 = vmatpush1.msra.mxu0 0.0
    %5478 = vmatprep.subr.mxu0 0.0
    %5479 = vmatpush1.msra.mxu0 0.0
    %5480 = vmatprep.subr.mxu0 0.0
    %5481 = vmatpush1.msra.mxu0 0.0
    %5482 = vmatprep.subr.mxu0 0.0
    %5483 = vmatpush1.msra.mxu0 0.0
    %5484 = vmatprep.subr.mxu0 0.0
    %5485 = vmatpush1.msra.mxu0 0.0
    %5486 = vmatprep.subr.mxu0 0.0
    %5487 = vmatpush1.msra.mxu0 0.0
    %5488 = vmatprep.subr.mxu0 0.0
    %5489 = vmatpush1.msra.mxu0 0.0
    %5490 = vmatprep.subr.mxu0 0.0
    %5491 = vmatpush1.msra.mxu0 0.0
    %5492 = vmatprep.subr.mxu0 0.0
    %5493 = vmatpush1.msra.mxu0 0.0
    %5494 = vmatprep.subr.mxu0 0.0
    %5495 = vmatpush1.msra.mxu0 0.0
    %5496 = vmatprep.subr.mxu0 0.0
    %5497 = vmatpush1.msra.mxu0 0.0
    %5498 = vmatprep.subr.mxu0 0.0
    %5499 = vmatpush1.msra.mxu0 0.0
    %5500 = vmatprep.mubr.f32.mxu0 0.0
    %5501 = vmatmul.mubr.f32.gmra.mrb[0].mxu0 %v5349
    %v5502 = vpop.f32.mrb[0].mxu0
    %v5503 = vadd.f32 0.0, %v5502
    %v5504 = vpop.f32.mrb[0].mxu0
    %5505 = vmatprep.mubr.f32.mxu0 0.0
    %5506 = vmatmul.mubr.f32.gmra.mrb[0].mxu0 %v5352
    %v5507 = vpop.f32.mrb[0].mxu0
    %v5508 = vadd.f32 0.0, %v5507
    %v5509 = vpop.f32.mrb[0].mxu0
    %5510 = vdwg.mxu0
    %v5511 = vadd.f32 %v5341, %v5503
    %v5512 = vadd.f32 %v5342, %v5508
    %v5513 = vxor.u32 %v5511, 2147483648
    %v5514 = vxor.u32 %v5512, 2147483648
    %v5515 = vmul.f32 %v5513, 1.442695
    %v5516 = vpow.pop %v5515
    %v5517 = vmul.f32 %v5514, 1.442695
    %v5518 = vpow.pop %v5517
    %v5519 = vadd.f32 %v5516, 1.0
    %v5520 = vadd.f32 %v5518, 1.0
    %v5521 = vrcp.pop %v5519
    %v5522 = vmul.f32 1.0, %v5521
    %v5523 = vrcp.pop %v5520
    %v5524 = vmul.f32 1.0, %v5523
    %v5525 = vmul.f32 %v5429, %v5522
    %v5526 = vmul.f32 %v5430, %v5524
    %v5527 = vadd.f32 %v5525, %v4621
    %v5528 = vadd.f32 %v5526, %v4622
    %v5529 = vmul.f32 %v5527, 0.70710677
    %v5530 = vmul.f32 %v5528, 0.70710677
    %v5531 = vrot.slane %v5529, 6
    %v5532 = vrot.slane %v5530, 6
    %v5533 = vsel %vm44, %v5531, %v5532
    %v5534 = vsel %vm44, %v5532, %v5531
    %v5535 = vmul.f32 %v5534, %v50
    %v5536 = vmul.f32 %v5533, %v55
    %v5537 = vrot.slane %v5529, 7
    %v5538 = vrot.slane %v5530, 7
    %v5539 = vsel %vm61, %v5537, %v5538
    %v5540 = vsel %vm61, %v5538, %v5537
    %v5541 = vmul.f32 %v5540, %v67
    %v5542 = vmul.f32 %v5539, %v72
    %v5543 = vrot.slane %v5529, 1
    %v5544 = vrot.slane %v5530, 1
    %v5545 = vsel %vm78, %v5543, %v5544
    %v5546 = vsel %vm78, %v5544, %v5543
    %v5547 = vmul.f32 %v5545, %v84
    %v5548 = vmul.f32 %v5546, %v89
    %v5549 = vrot.slane %v5529, 2
    %v5550 = vrot.slane %v5530, 2
    %v5551 = vsel %vm95, %v5549, %v5550
    %v5552 = vsel %vm95, %v5550, %v5549
    %v5553 = vmul.f32 %v5551, %v101
    %v5554 = vmul.f32 %v5552, %v106
    %s5555 = scalar_lea.vmem %s4, 6
    %v5556 = vld [vmem:[%s5555] sm:$0x1]
    %v5558 = vlaneseq
    %v5559 = vshrl.u32 %v5558, 7
    %v5560 = vsub.s32 0, %v5559
    %v5561 = vrot.slane %v5556, %v5560
    %s5563 = scalar_lea.vmem %s5, 6
    %v5564 = vld [vmem:[%s5563] sm:$0x1]
    %v5566 = vlaneseq
    %v5567 = vshrl.u32 %v5566, 7
    %v5568 = vsub.s32 0, %v5567
    %v5569 = vrot.slane %v5564, %v5568
    %s5571 = scalar_lea.vmem %s2, 960
    %v5572 = vld [vmem:[%s5571] sm:$0xff]
    %v5573 = vld [vmem:[%s5571 + $0x8] sm:$0xff]
    %v5574 = vld [vmem:[%s5571 + $0x10] sm:$0xff]
    %v5575 = vld [vmem:[%s5571 + $0x18] sm:$0xff]
    %v5577 = vsel %vm128, %v5535, 0
    %v5580 = vsel %vm128, %v5536, 0
    %5582 = vmatprep.subr.mxu0 0.0
    %5583 = vmatpush1.msra.mxu0 %v5572
    %5584 = vmatprep.subr.mxu0 0.0
    %5585 = vmatpush1.msra.mxu0 %v5573
    %5586 = vmatprep.subr.mxu0 0.0
    %5587 = vmatpush1.msra.mxu0 %v5574
    %5588 = vmatprep.subr.mxu0 0.0
    %5589 = vmatpush1.msra.mxu0 %v5575
    %5590 = vmatprep.subr.mxu0 0.0
    %5591 = vmatpush1.msra.mxu0 0.0
    %5592 = vmatprep.subr.mxu0 0.0
    %5593 = vmatpush1.msra.mxu0 0.0
    %5594 = vmatprep.subr.mxu0 0.0
    %5595 = vmatpush1.msra.mxu0 0.0
    %5596 = vmatprep.subr.mxu0 0.0
    %5597 = vmatpush1.msra.mxu0 0.0
    %5598 = vmatprep.subr.mxu0 0.0
    %5599 = vmatpush1.msra.mxu0 0.0
    %5600 = vmatprep.subr.mxu0 0.0
    %5601 = vmatpush1.msra.mxu0 0.0
    %5602 = vmatprep.subr.mxu0 0.0
    %5603 = vmatpush1.msra.mxu0 0.0
    %5604 = vmatprep.subr.mxu0 0.0
    %5605 = vmatpush1.msra.mxu0 0.0
    %5606 = vmatprep.subr.mxu0 0.0
    %5607 = vmatpush1.msra.mxu0 0.0
    %5608 = vmatprep.subr.mxu0 0.0
    %5609 = vmatpush1.msra.mxu0 0.0
    %5610 = vmatprep.subr.mxu0 0.0
    %5611 = vmatpush1.msra.mxu0 0.0
    %5612 = vmatprep.subr.mxu0 0.0
    %5613 = vmatpush1.msra.mxu0 0.0
    %5614 = vmatprep.subr.mxu0 0.0
    %5615 = vmatpush1.msra.mxu0 0.0
    %5616 = vmatprep.subr.mxu0 0.0
    %5617 = vmatpush1.msra.mxu0 0.0
    %5618 = vmatprep.subr.mxu0 0.0
    %5619 = vmatpush1.msra.mxu0 0.0
    %5620 = vmatprep.subr.mxu0 0.0
    %5621 = vmatpush1.msra.mxu0 0.0
    %5622 = vmatprep.subr.mxu0 0.0
    %5623 = vmatpush1.msra.mxu0 0.0
    %5624 = vmatprep.subr.mxu0 0.0
    %5625 = vmatpush1.msra.mxu0 0.0
    %5626 = vmatprep.subr.mxu0 0.0
    %5627 = vmatpush1.msra.mxu0 0.0
    %5628 = vmatprep.subr.mxu0 0.0
    %5629 = vmatpush1.msra.mxu0 0.0
    %5630 = vmatprep.subr.mxu0 0.0
    %5631 = vmatpush1.msra.mxu0 0.0
    %5632 = vmatprep.subr.mxu0 0.0
    %5633 = vmatpush1.msra.mxu0 0.0
    %5634 = vmatprep.subr.mxu0 0.0
    %5635 = vmatpush1.msra.mxu0 0.0
    %5636 = vmatprep.subr.mxu0 0.0
    %5637 = vmatpush1.msra.mxu0 0.0
    %5638 = vmatprep.subr.mxu0 0.0
    %5639 = vmatpush1.msra.mxu0 0.0
    %5640 = vmatprep.subr.mxu0 0.0
    %5641 = vmatpush1.msra.mxu0 0.0
    %5642 = vmatprep.subr.mxu0 0.0
    %5643 = vmatpush1.msra.mxu0 0.0
    %5644 = vmatprep.subr.mxu0 0.0
    %5645 = vmatpush1.msra.mxu0 0.0
    %5646 = vmatprep.mubr.f32.mxu0 0.0
    %5647 = vmatmul.mubr.f32.gmra.mrb[0].mxu0 %v5577
    %v5648 = vpop.f32.mrb[0].mxu0
    %v5649 = vadd.f32 0.0, %v5648
    %v5650 = vpop.f32.mrb[0].mxu0
    %5651 = vmatprep.mubr.f32.mxu0 0.0
    %5652 = vmatmul.mubr.f32.gmra.mrb[0].mxu0 %v5580
    %v5653 = vpop.f32.mrb[0].mxu0
    %v5654 = vadd.f32 0.0, %v5653
    %v5655 = vpop.f32.mrb[0].mxu0
    %5656 = vdwg.mxu0
    %v5657 = vadd.f32 %v5561, %v5649
    %v5658 = vadd.f32 %v5561, %v5654
    %s5659 = scalar_lea.vmem %s3, 960
    %v5660 = vld [vmem:[%s5659] sm:$0xff]
    %v5661 = vld [vmem:[%s5659 + $0x8] sm:$0xff]
    %v5662 = vld [vmem:[%s5659 + $0x10] sm:$0xff]
    %v5663 = vld [vmem:[%s5659 + $0x18] sm:$0xff]
    %5664 = vmatprep.subr.mxu0 0.0
    %5665 = vmatpush1.msra.mxu0 %v5660
    %5666 = vmatprep.subr.mxu0 0.0
    %5667 = vmatpush1.msra.mxu0 %v5661
    %5668 = vmatprep.subr.mxu0 0.0
    %5669 = vmatpush1.msra.mxu0 %v5662
    %5670 = vmatprep.subr.mxu0 0.0
    %5671 = vmatpush1.msra.mxu0 %v5663
    %5672 = vmatprep.subr.mxu0 0.0
    %5673 = vmatpush1.msra.mxu0 0.0
    %5674 = vmatprep.subr.mxu0 0.0
    %5675 = vmatpush1.msra.mxu0 0.0
    %5676 = vmatprep.subr.mxu0 0.0
    %5677 = vmatpush1.msra.mxu0 0.0
    %5678 = vmatprep.subr.mxu0 0.0
    %5679 = vmatpush1.msra.mxu0 0.0
    %5680 = vmatprep.subr.mxu0 0.0
    %5681 = vmatpush1.msra.mxu0 0.0
    %5682 = vmatprep.subr.mxu0 0.0
    %5683 = vmatpush1.msra.mxu0 0.0
    %5684 = vmatprep.subr.mxu0 0.0
    %5685 = vmatpush1.msra.mxu0 0.0
    %5686 = vmatprep.subr.mxu0 0.0
    %5687 = vmatpush1.msra.mxu0 0.0
    %5688 = vmatprep.subr.mxu0 0.0
    %5689 = vmatpush1.msra.mxu0 0.0
    %5690 = vmatprep.subr.mxu0 0.0
    %5691 = vmatpush1.msra.mxu0 0.0
    %5692 = vmatprep.subr.mxu0 0.0
    %5693 = vmatpush1.msra.mxu0 0.0
    %5694 = vmatprep.subr.mxu0 0.0
    %5695 = vmatpush1.msra.mxu0 0.0
    %5696 = vmatprep.subr.mxu0 0.0
    %5697 = vmatpush1.msra.mxu0 0.0
    %5698 = vmatprep.subr.mxu0 0.0
    %5699 = vmatpush1.msra.mxu0 0.0
    %5700 = vmatprep.subr.mxu0 0.0
    %5701 = vmatpush1.msra.mxu0 0.0
    %5702 = vmatprep.subr.mxu0 0.0
    %5703 = vmatpush1.msra.mxu0 0.0
    %5704 = vmatprep.subr.mxu0 0.0
    %5705 = vmatpush1.msra.mxu0 0.0
    %5706 = vmatprep.subr.mxu0 0.0
    %5707 = vmatpush1.msra.mxu0 0.0
    %5708 = vmatprep.subr.mxu0 0.0
    %5709 = vmatpush1.msra.mxu0 0.0
    %5710 = vmatprep.subr.mxu0 0.0
    %5711 = vmatpush1.msra.mxu0 0.0
    %5712 = vmatprep.subr.mxu0 0.0
    %5713 = vmatpush1.msra.mxu0 0.0
    %5714 = vmatprep.subr.mxu0 0.0
    %5715 = vmatpush1.msra.mxu0 0.0
    %5716 = vmatprep.subr.mxu0 0.0
    %5717 = vmatpush1.msra.mxu0 0.0
    %5718 = vmatprep.subr.mxu0 0.0
    %5719 = vmatpush1.msra.mxu0 0.0
    %5720 = vmatprep.subr.mxu0 0.0
    %5721 = vmatpush1.msra.mxu0 0.0
    %5722 = vmatprep.subr.mxu0 0.0
    %5723 = vmatpush1.msra.mxu0 0.0
    %5724 = vmatprep.subr.mxu0 0.0
    %5725 = vmatpush1.msra.mxu0 0.0
    %5726 = vmatprep.subr.mxu0 0.0
    %5727 = vmatpush1.msra.mxu0 0.0
    %5728 = vmatprep.mubr.f32.mxu0 0.0
    %5729 = vmatmul.mubr.f32.gmra.mrb[0].mxu0 %v5577
    %v5730 = vpop.f32.mrb[0].mxu0
    %v5731 = vadd.f32 0.0, %v5730
    %v5732 = vpop.f32.mrb[0].mxu0
    %5733 = vmatprep.mubr.f32.mxu0 0.0
    %5734 = vmatmul.mubr.f32.gmra.mrb[0].mxu0 %v5580
    %v5735 = vpop.f32.mrb[0].mxu0
    %v5736 = vadd.f32 0.0, %v5735
    %v5737 = vpop.f32.mrb[0].mxu0
    %5738 = vdwg.mxu0
    %v5739 = vadd.f32 %v5569, %v5731
    %v5740 = vadd.f32 %v5569, %v5736
    %s5741 = scalar_lea.vmem %s2, 992
    %v5742 = vld [vmem:[%s5741] sm:$0xff]
    %v5743 = vld [vmem:[%s5741 + $0x8] sm:$0xff]
    %v5744 = vld [vmem:[%s5741 + $0x10] sm:$0xff]
    %v5745 = vld [vmem:[%s5741 + $0x18] sm:$0xff]
    %v5747 = vsel %vm128, %v5541, 0
    %v5750 = vsel %vm128, %v5542, 0
    %5752 = vmatprep.subr.mxu0 0.0
    %5753 = vmatpush1.msra.mxu0 %v5742
    %5754 = vmatprep.subr.mxu0 0.0
    %5755 = vmatpush1.msra.mxu0 %v5743
    %5756 = vmatprep.subr.mxu0 0.0
    %5757 = vmatpush1.msra.mxu0 %v5744
    %5758 = vmatprep.subr.mxu0 0.0
    %5759 = vmatpush1.msra.mxu0 %v5745
    %5760 = vmatprep.subr.mxu0 0.0
    %5761 = vmatpush1.msra.mxu0 0.0
    %5762 = vmatprep.subr.mxu0 0.0
    %5763 = vmatpush1.msra.mxu0 0.0
    %5764 = vmatprep.subr.mxu0 0.0
    %5765 = vmatpush1.msra.mxu0 0.0
    %5766 = vmatprep.subr.mxu0 0.0
    %5767 = vmatpush1.msra.mxu0 0.0
    %5768 = vmatprep.subr.mxu0 0.0
    %5769 = vmatpush1.msra.mxu0 0.0
    %5770 = vmatprep.subr.mxu0 0.0
    %5771 = vmatpush1.msra.mxu0 0.0
    %5772 = vmatprep.subr.mxu0 0.0
    %5773 = vmatpush1.msra.mxu0 0.0
    %5774 = vmatprep.subr.mxu0 0.0
    %5775 = vmatpush1.msra.mxu0 0.0
    %5776 = vmatprep.subr.mxu0 0.0
    %5777 = vmatpush1.msra.mxu0 0.0
    %5778 = vmatprep.subr.mxu0 0.0
    %5779 = vmatpush1.msra.mxu0 0.0
    %5780 = vmatprep.subr.mxu0 0.0
    %5781 = vmatpush1.msra.mxu0 0.0
    %5782 = vmatprep.subr.mxu0 0.0
    %5783 = vmatpush1.msra.mxu0 0.0
    %5784 = vmatprep.subr.mxu0 0.0
    %5785 = vmatpush1.msra.mxu0 0.0
    %5786 = vmatprep.subr.mxu0 0.0
    %5787 = vmatpush1.msra.mxu0 0.0
    %5788 = vmatprep.subr.mxu0 0.0
    %5789 = vmatpush1.msra.mxu0 0.0
    %5790 = vmatprep.subr.mxu0 0.0
    %5791 = vmatpush1.msra.mxu0 0.0
    %5792 = vmatprep.subr.mxu0 0.0
    %5793 = vmatpush1.msra.mxu0 0.0
    %5794 = vmatprep.subr.mxu0 0.0
    %5795 = vmatpush1.msra.mxu0 0.0
    %5796 = vmatprep.subr.mxu0 0.0
    %5797 = vmatpush1.msra.mxu0 0.0
    %5798 = vmatprep.subr.mxu0 0.0
    %5799 = vmatpush1.msra.mxu0 0.0
    %5800 = vmatprep.subr.mxu0 0.0
    %5801 = vmatpush1.msra.mxu0 0.0
    %5802 = vmatprep.subr.mxu0 0.0
    %5803 = vmatpush1.msra.mxu0 0.0
    %5804 = vmatprep.subr.mxu0 0.0
    %5805 = vmatpush1.msra.mxu0 0.0
    %5806 = vmatprep.subr.mxu0 0.0
    %5807 = vmatpush1.msra.mxu0 0.0
    %5808 = vmatprep.subr.mxu0 0.0
    %5809 = vmatpush1.msra.mxu0 0.0
    %5810 = vmatprep.subr.mxu0 0.0
    %5811 = vmatpush1.msra.mxu0 0.0
    %5812 = vmatprep.subr.mxu0 0.0
    %5813 = vmatpush1.msra.mxu0 0.0
    %5814 = vmatprep.subr.mxu0 0.0
    %5815 = vmatpush1.msra.mxu0 0.0
    %5816 = vmatprep.mubr.f32.mxu0 0.0
    %5817 = vmatmul.mubr.f32.gmra.mrb[0].mxu0 %v5747
    %v5818 = vpop.f32.mrb[0].mxu0
    %v5819 = vadd.f32 0.0, %v5818
    %v5820 = vpop.f32.mrb[0].mxu0
    %5821 = vmatprep.mubr.f32.mxu0 0.0
    %5822 = vmatmul.mubr.f32.gmra.mrb[0].mxu0 %v5750
    %v5823 = vpop.f32.mrb[0].mxu0
    %v5824 = vadd.f32 0.0, %v5823
    %v5825 = vpop.f32.mrb[0].mxu0
    %5826 = vdwg.mxu0
    %v5827 = vadd.f32 %v5657, %v5819
    %v5828 = vadd.f32 %v5658, %v5824
    %s5829 = scalar_lea.vmem %s3, 992
    %v5830 = vld [vmem:[%s5829] sm:$0xff]
    %v5831 = vld [vmem:[%s5829 + $0x8] sm:$0xff]
    %v5832 = vld [vmem:[%s5829 + $0x10] sm:$0xff]
    %v5833 = vld [vmem:[%s5829 + $0x18] sm:$0xff]
    %5834 = vmatprep.subr.mxu0 0.0
    %5835 = vmatpush1.msra.mxu0 %v5830
    %5836 = vmatprep.subr.mxu0 0.0
    %5837 = vmatpush1.msra.mxu0 %v5831
    %5838 = vmatprep.subr.mxu0 0.0
    %5839 = vmatpush1.msra.mxu0 %v5832
    %5840 = vmatprep.subr.mxu0 0.0
    %5841 = vmatpush1.msra.mxu0 %v5833
    %5842 = vmatprep.subr.mxu0 0.0
    %5843 = vmatpush1.msra.mxu0 0.0
    %5844 = vmatprep.subr.mxu0 0.0
    %5845 = vmatpush1.msra.mxu0 0.0
    %5846 = vmatprep.subr.mxu0 0.0
    %5847 = vmatpush1.msra.mxu0 0.0
    %5848 = vmatprep.subr.mxu0 0.0
    %5849 = vmatpush1.msra.mxu0 0.0
    %5850 = vmatprep.subr.mxu0 0.0
    %5851 = vmatpush1.msra.mxu0 0.0
    %5852 = vmatprep.subr.mxu0 0.0
    %5853 = vmatpush1.msra.mxu0 0.0
    %5854 = vmatprep.subr.mxu0 0.0
    %5855 = vmatpush1.msra.mxu0 0.0
    %5856 = vmatprep.subr.mxu0 0.0
    %5857 = vmatpush1.msra.mxu0 0.0
    %5858 = vmatprep.subr.mxu0 0.0
    %5859 = vmatpush1.msra.mxu0 0.0
    %5860 = vmatprep.subr.mxu0 0.0
    %5861 = vmatpush1.msra.mxu0 0.0
    %5862 = vmatprep.subr.mxu0 0.0
    %5863 = vmatpush1.msra.mxu0 0.0
    %5864 = vmatprep.subr.mxu0 0.0
    %5865 = vmatpush1.msra.mxu0 0.0
    %5866 = vmatprep.subr.mxu0 0.0
    %5867 = vmatpush1.msra.mxu0 0.0
    %5868 = vmatprep.subr.mxu0 0.0
    %5869 = vmatpush1.msra.mxu0 0.0
    %5870 = vmatprep.subr.mxu0 0.0
    %5871 = vmatpush1.msra.mxu0 0.0
    %5872 = vmatprep.subr.mxu0 0.0
    %5873 = vmatpush1.msra.mxu0 0.0
    %5874 = vmatprep.subr.mxu0 0.0
    %5875 = vmatpush1.msra.mxu0 0.0
    %5876 = vmatprep.subr.mxu0 0.0
    %5877 = vmatpush1.msra.mxu0 0.0
    %5878 = vmatprep.subr.mxu0 0.0
    %5879 = vmatpush1.msra.mxu0 0.0
    %5880 = vmatprep.subr.mxu0 0.0
    %5881 = vmatpush1.msra.mxu0 0.0
    %5882 = vmatprep.subr.mxu0 0.0
    %5883 = vmatpush1.msra.mxu0 0.0
    %5884 = vmatprep.subr.mxu0 0.0
    %5885 = vmatpush1.msra.mxu0 0.0
    %5886 = vmatprep.subr.mxu0 0.0
    %5887 = vmatpush1.msra.mxu0 0.0
    %5888 = vmatprep.subr.mxu0 0.0
    %5889 = vmatpush1.msra.mxu0 0.0
    %5890 = vmatprep.subr.mxu0 0.0
    %5891 = vmatpush1.msra.mxu0 0.0
    %5892 = vmatprep.subr.mxu0 0.0
    %5893 = vmatpush1.msra.mxu0 0.0
    %5894 = vmatprep.subr.mxu0 0.0
    %5895 = vmatpush1.msra.mxu0 0.0
    %5896 = vmatprep.subr.mxu0 0.0
    %5897 = vmatpush1.msra.mxu0 0.0
    %5898 = vmatprep.mubr.f32.mxu0 0.0
    %5899 = vmatmul.mubr.f32.gmra.mrb[0].mxu0 %v5747
    %v5900 = vpop.f32.mrb[0].mxu0
    %v5901 = vadd.f32 0.0, %v5900
    %v5902 = vpop.f32.mrb[0].mxu0
    %5903 = vmatprep.mubr.f32.mxu0 0.0
    %5904 = vmatmul.mubr.f32.gmra.mrb[0].mxu0 %v5750
    %v5905 = vpop.f32.mrb[0].mxu0
    %v5906 = vadd.f32 0.0, %v5905
    %v5907 = vpop.f32.mrb[0].mxu0
    %5908 = vdwg.mxu0
    %v5909 = vadd.f32 %v5739, %v5901
    %v5910 = vadd.f32 %v5740, %v5906
    %s5911 = scalar_lea.vmem %s2, 1024
    %v5912 = vld [vmem:[%s5911] sm:$0xff]
    %v5913 = vld [vmem:[%s5911 + $0x8] sm:$0xff]
    %v5914 = vld [vmem:[%s5911 + $0x10] sm:$0xff]
    %v5915 = vld [vmem:[%s5911 + $0x18] sm:$0xff]
    %v5917 = vsel %vm128, %v5529, 0
    %v5920 = vsel %vm128, %v5530, 0
    %5922 = vmatprep.subr.mxu0 0.0
    %5923 = vmatpush1.msra.mxu0 %v5912
    %5924 = vmatprep.subr.mxu0 0.0
    %5925 = vmatpush1.msra.mxu0 %v5913
    %5926 = vmatprep.subr.mxu0 0.0
    %5927 = vmatpush1.msra.mxu0 %v5914
    %5928 = vmatprep.subr.mxu0 0.0
    %5929 = vmatpush1.msra.mxu0 %v5915
    %5930 = vmatprep.subr.mxu0 0.0
    %5931 = vmatpush1.msra.mxu0 0.0
    %5932 = vmatprep.subr.mxu0 0.0
    %5933 = vmatpush1.msra.mxu0 0.0
    %5934 = vmatprep.subr.mxu0 0.0
    %5935 = vmatpush1.msra.mxu0 0.0
    %5936 = vmatprep.subr.mxu0 0.0
    %5937 = vmatpush1.msra.mxu0 0.0
    %5938 = vmatprep.subr.mxu0 0.0
    %5939 = vmatpush1.msra.mxu0 0.0
    %5940 = vmatprep.subr.mxu0 0.0
    %5941 = vmatpush1.msra.mxu0 0.0
    %5942 = vmatprep.subr.mxu0 0.0
    %5943 = vmatpush1.msra.mxu0 0.0
    %5944 = vmatprep.subr.mxu0 0.0
    %5945 = vmatpush1.msra.mxu0 0.0
    %5946 = vmatprep.subr.mxu0 0.0
    %5947 = vmatpush1.msra.mxu0 0.0
    %5948 = vmatprep.subr.mxu0 0.0
    %5949 = vmatpush1.msra.mxu0 0.0
    %5950 = vmatprep.subr.mxu0 0.0
    %5951 = vmatpush1.msra.mxu0 0.0
    %5952 = vmatprep.subr.mxu0 0.0
    %5953 = vmatpush1.msra.mxu0 0.0
    %5954 = vmatprep.subr.mxu0 0.0
    %5955 = vmatpush1.msra.mxu0 0.0
    %5956 = vmatprep.subr.mxu0 0.0
    %5957 = vmatpush1.msra.mxu0 0.0
    %5958 = vmatprep.subr.mxu0 0.0
    %5959 = vmatpush1.msra.mxu0 0.0
    %5960 = vmatprep.subr.mxu0 0.0
    %5961 = vmatpush1.msra.mxu0 0.0
    %5962 = vmatprep.subr.mxu0 0.0
    %5963 = vmatpush1.msra.mxu0 0.0
    %5964 = vmatprep.subr.mxu0 0.0
    %5965 = vmatpush1.msra.mxu0 0.0
    %5966 = vmatprep.subr.mxu0 0.0
    %5967 = vmatpush1.msra.mxu0 0.0
    %5968 = vmatprep.subr.mxu0 0.0
    %5969 = vmatpush1.msra.mxu0 0.0
    %5970 = vmatprep.subr.mxu0 0.0
    %5971 = vmatpush1.msra.mxu0 0.0
    %5972 = vmatprep.subr.mxu0 0.0
    %5973 = vmatpush1.msra.mxu0 0.0
    %5974 = vmatprep.subr.mxu0 0.0
    %5975 = vmatpush1.msra.mxu0 0.0
    %5976 = vmatprep.subr.mxu0 0.0
    %5977 = vmatpush1.msra.mxu0 0.0
    %5978 = vmatprep.subr.mxu0 0.0
    %5979 = vmatpush1.msra.mxu0 0.0
    %5980 = vmatprep.subr.mxu0 0.0
    %5981 = vmatpush1.msra.mxu0 0.0
    %5982 = vmatprep.subr.mxu0 0.0
    %5983 = vmatpush1.msra.mxu0 0.0
    %5984 = vmatprep.subr.mxu0 0.0
    %5985 = vmatpush1.msra.mxu0 0.0
    %5986 = vmatprep.mubr.f32.mxu0 0.0
    %5987 = vmatmul.mubr.f32.gmra.mrb[0].mxu0 %v5917
    %v5988 = vpop.f32.mrb[0].mxu0
    %v5989 = vadd.f32 0.0, %v5988
    %v5990 = vpop.f32.mrb[0].mxu0
    %5991 = vmatprep.mubr.f32.mxu0 0.0
    %5992 = vmatmul.mubr.f32.gmra.mrb[0].mxu0 %v5920
    %v5993 = vpop.f32.mrb[0].mxu0
    %v5994 = vadd.f32 0.0, %v5993
    %v5995 = vpop.f32.mrb[0].mxu0
    %5996 = vdwg.mxu0
    %v5997 = vadd.f32 %v5827, %v5989
    %v5998 = vadd.f32 %v5828, %v5994
    %s5999 = scalar_lea.vmem %s3, 1024
    %v6000 = vld [vmem:[%s5999] sm:$0xff]
    %v6001 = vld [vmem:[%s5999 + $0x8] sm:$0xff]
    %v6002 = vld [vmem:[%s5999 + $0x10] sm:$0xff]
    %v6003 = vld [vmem:[%s5999 + $0x18] sm:$0xff]
    %6004 = vmatprep.subr.mxu0 0.0
    %6005 = vmatpush1.msra.mxu0 %v6000
    %6006 = vmatprep.subr.mxu0 0.0
    %6007 = vmatpush1.msra.mxu0 %v6001
    %6008 = vmatprep.subr.mxu0 0.0
    %6009 = vmatpush1.msra.mxu0 %v6002
    %6010 = vmatprep.subr.mxu0 0.0
    %6011 = vmatpush1.msra.mxu0 %v6003
    %6012 = vmatprep.subr.mxu0 0.0
    %6013 = vmatpush1.msra.mxu0 0.0
    %6014 = vmatprep.subr.mxu0 0.0
    %6015 = vmatpush1.msra.mxu0 0.0
    %6016 = vmatprep.subr.mxu0 0.0
    %6017 = vmatpush1.msra.mxu0 0.0
    %6018 = vmatprep.subr.mxu0 0.0
    %6019 = vmatpush1.msra.mxu0 0.0
    %6020 = vmatprep.subr.mxu0 0.0
    %6021 = vmatpush1.msra.mxu0 0.0
    %6022 = vmatprep.subr.mxu0 0.0
    %6023 = vmatpush1.msra.mxu0 0.0
    %6024 = vmatprep.subr.mxu0 0.0
    %6025 = vmatpush1.msra.mxu0 0.0
    %6026 = vmatprep.subr.mxu0 0.0
    %6027 = vmatpush1.msra.mxu0 0.0
    %6028 = vmatprep.subr.mxu0 0.0
    %6029 = vmatpush1.msra.mxu0 0.0
    %6030 = vmatprep.subr.mxu0 0.0
    %6031 = vmatpush1.msra.mxu0 0.0
    %6032 = vmatprep.subr.mxu0 0.0
    %6033 = vmatpush1.msra.mxu0 0.0
    %6034 = vmatprep.subr.mxu0 0.0
    %6035 = vmatpush1.msra.mxu0 0.0
    %6036 = vmatprep.subr.mxu0 0.0
    %6037 = vmatpush1.msra.mxu0 0.0
    %6038 = vmatprep.subr.mxu0 0.0
    %6039 = vmatpush1.msra.mxu0 0.0
    %6040 = vmatprep.subr.mxu0 0.0
    %6041 = vmatpush1.msra.mxu0 0.0
    %6042 = vmatprep.subr.mxu0 0.0
    %6043 = vmatpush1.msra.mxu0 0.0
    %6044 = vmatprep.subr.mxu0 0.0
    %6045 = vmatpush1.msra.mxu0 0.0
    %6046 = vmatprep.subr.mxu0 0.0
    %6047 = vmatpush1.msra.mxu0 0.0
    %6048 = vmatprep.subr.mxu0 0.0
    %6049 = vmatpush1.msra.mxu0 0.0
    %6050 = vmatprep.subr.mxu0 0.0
    %6051 = vmatpush1.msra.mxu0 0.0
    %6052 = vmatprep.subr.mxu0 0.0
    %6053 = vmatpush1.msra.mxu0 0.0
    %6054 = vmatprep.subr.mxu0 0.0
    %6055 = vmatpush1.msra.mxu0 0.0
    %6056 = vmatprep.subr.mxu0 0.0
    %6057 = vmatpush1.msra.mxu0 0.0
    %6058 = vmatprep.subr.mxu0 0.0
    %6059 = vmatpush1.msra.mxu0 0.0
    %6060 = vmatprep.subr.mxu0 0.0
    %6061 = vmatpush1.msra.mxu0 0.0
    %6062 = vmatprep.subr.mxu0 0.0
    %6063 = vmatpush1.msra.mxu0 0.0
    %6064 = vmatprep.subr.mxu0 0.0
    %6065 = vmatpush1.msra.mxu0 0.0
    %6066 = vmatprep.subr.mxu0 0.0
    %6067 = vmatpush1.msra.mxu0 0.0
    %6068 = vmatprep.mubr.f32.mxu0 0.0
    %6069 = vmatmul.mubr.f32.gmra.mrb[0].mxu0 %v5917
    %v6070 = vpop.f32.mrb[0].mxu0
    %v6071 = vadd.f32 0.0, %v6070
    %v6072 = vpop.f32.mrb[0].mxu0
    %6073 = vmatprep.mubr.f32.mxu0 0.0
    %6074 = vmatmul.mubr.f32.gmra.mrb[0].mxu0 %v5920
    %v6075 = vpop.f32.mrb[0].mxu0
    %v6076 = vadd.f32 0.0, %v6075
    %v6077 = vpop.f32.mrb[0].mxu0
    %6078 = vdwg.mxu0
    %v6079 = vadd.f32 %v5909, %v6071
    %v6080 = vadd.f32 %v5910, %v6076
    %s6081 = scalar_lea.vmem %s2, 1056
    %v6082 = vld [vmem:[%s6081] sm:$0xff]
    %v6083 = vld [vmem:[%s6081 + $0x8] sm:$0xff]
    %v6084 = vld [vmem:[%s6081 + $0x10] sm:$0xff]
    %v6085 = vld [vmem:[%s6081 + $0x18] sm:$0xff]
    %v6087 = vsel %vm128, %v5547, 0
    %v6090 = vsel %vm128, %v5548, 0
    %6092 = vmatprep.subr.mxu0 0.0
    %6093 = vmatpush1.msra.mxu0 %v6082
    %6094 = vmatprep.subr.mxu0 0.0
    %6095 = vmatpush1.msra.mxu0 %v6083
    %6096 = vmatprep.subr.mxu0 0.0
    %6097 = vmatpush1.msra.mxu0 %v6084
    %6098 = vmatprep.subr.mxu0 0.0
    %6099 = vmatpush1.msra.mxu0 %v6085
    %6100 = vmatprep.subr.mxu0 0.0
    %6101 = vmatpush1.msra.mxu0 0.0
    %6102 = vmatprep.subr.mxu0 0.0
    %6103 = vmatpush1.msra.mxu0 0.0
    %6104 = vmatprep.subr.mxu0 0.0
    %6105 = vmatpush1.msra.mxu0 0.0
    %6106 = vmatprep.subr.mxu0 0.0
    %6107 = vmatpush1.msra.mxu0 0.0
    %6108 = vmatprep.subr.mxu0 0.0
    %6109 = vmatpush1.msra.mxu0 0.0
    %6110 = vmatprep.subr.mxu0 0.0
    %6111 = vmatpush1.msra.mxu0 0.0
    %6112 = vmatprep.subr.mxu0 0.0
    %6113 = vmatpush1.msra.mxu0 0.0
    %6114 = vmatprep.subr.mxu0 0.0
    %6115 = vmatpush1.msra.mxu0 0.0
    %6116 = vmatprep.subr.mxu0 0.0
    %6117 = vmatpush1.msra.mxu0 0.0
    %6118 = vmatprep.subr.mxu0 0.0
    %6119 = vmatpush1.msra.mxu0 0.0
    %6120 = vmatprep.subr.mxu0 0.0
    %6121 = vmatpush1.msra.mxu0 0.0
    %6122 = vmatprep.subr.mxu0 0.0
    %6123 = vmatpush1.msra.mxu0 0.0
    %6124 = vmatprep.subr.mxu0 0.0
    %6125 = vmatpush1.msra.mxu0 0.0
    %6126 = vmatprep.subr.mxu0 0.0
    %6127 = vmatpush1.msra.mxu0 0.0
    %6128 = vmatprep.subr.mxu0 0.0
    %6129 = vmatpush1.msra.mxu0 0.0
    %6130 = vmatprep.subr.mxu0 0.0
    %6131 = vmatpush1.msra.mxu0 0.0
    %6132 = vmatprep.subr.mxu0 0.0
    %6133 = vmatpush1.msra.mxu0 0.0
    %6134 = vmatprep.subr.mxu0 0.0
    %6135 = vmatpush1.msra.mxu0 0.0
    %6136 = vmatprep.subr.mxu0 0.0
    %6137 = vmatpush1.msra.mxu0 0.0
    %6138 = vmatprep.subr.mxu0 0.0
    %6139 = vmatpush1.msra.mxu0 0.0
    %6140 = vmatprep.subr.mxu0 0.0
    %6141 = vmatpush1.msra.mxu0 0.0
    %6142 = vmatprep.subr.mxu0 0.0
    %6143 = vmatpush1.msra.mxu0 0.0
    %6144 = vmatprep.subr.mxu0 0.0
    %6145 = vmatpush1.msra.mxu0 0.0
    %6146 = vmatprep.subr.mxu0 0.0
    %6147 = vmatpush1.msra.mxu0 0.0
    %6148 = vmatprep.subr.mxu0 0.0
    %6149 = vmatpush1.msra.mxu0 0.0
    %6150 = vmatprep.subr.mxu0 0.0
    %6151 = vmatpush1.msra.mxu0 0.0
    %6152 = vmatprep.subr.mxu0 0.0
    %6153 = vmatpush1.msra.mxu0 0.0
    %6154 = vmatprep.subr.mxu0 0.0
    %6155 = vmatpush1.msra.mxu0 0.0
    %6156 = vmatprep.mubr.f32.mxu0 0.0
    %6157 = vmatmul.mubr.f32.gmra.mrb[0].mxu0 %v6087
    %v6158 = vpop.f32.mrb[0].mxu0
    %v6159 = vadd.f32 0.0, %v6158
    %v6160 = vpop.f32.mrb[0].mxu0
    %6161 = vmatprep.mubr.f32.mxu0 0.0
    %6162 = vmatmul.mubr.f32.gmra.mrb[0].mxu0 %v6090
    %v6163 = vpop.f32.mrb[0].mxu0
    %v6164 = vadd.f32 0.0, %v6163
    %v6165 = vpop.f32.mrb[0].mxu0
    %6166 = vdwg.mxu0
    %v6167 = vadd.f32 %v5997, %v6159
    %v6168 = vadd.f32 %v5998, %v6164
    %s6169 = scalar_lea.vmem %s3, 1056
    %v6170 = vld [vmem:[%s6169] sm:$0xff]
    %v6171 = vld [vmem:[%s6169 + $0x8] sm:$0xff]
    %v6172 = vld [vmem:[%s6169 + $0x10] sm:$0xff]
    %v6173 = vld [vmem:[%s6169 + $0x18] sm:$0xff]
    %6174 = vmatprep.subr.mxu0 0.0
    %6175 = vmatpush1.msra.mxu0 %v6170
    %6176 = vmatprep.subr.mxu0 0.0
    %6177 = vmatpush1.msra.mxu0 %v6171
    %6178 = vmatprep.subr.mxu0 0.0
    %6179 = vmatpush1.msra.mxu0 %v6172
    %6180 = vmatprep.subr.mxu0 0.0
    %6181 = vmatpush1.msra.mxu0 %v6173
    %6182 = vmatprep.subr.mxu0 0.0
    %6183 = vmatpush1.msra.mxu0 0.0
    %6184 = vmatprep.subr.mxu0 0.0
    %6185 = vmatpush1.msra.mxu0 0.0
    %6186 = vmatprep.subr.mxu0 0.0
    %6187 = vmatpush1.msra.mxu0 0.0
    %6188 = vmatprep.subr.mxu0 0.0
    %6189 = vmatpush1.msra.mxu0 0.0
    %6190 = vmatprep.subr.mxu0 0.0
    %6191 = vmatpush1.msra.mxu0 0.0
    %6192 = vmatprep.subr.mxu0 0.0
    %6193 = vmatpush1.msra.mxu0 0.0
    %6194 = vmatprep.subr.mxu0 0.0
    %6195 = vmatpush1.msra.mxu0 0.0
    %6196 = vmatprep.subr.mxu0 0.0
    %6197 = vmatpush1.msra.mxu0 0.0
    %6198 = vmatprep.subr.mxu0 0.0
    %6199 = vmatpush1.msra.mxu0 0.0
    %6200 = vmatprep.subr.mxu0 0.0
    %6201 = vmatpush1.msra.mxu0 0.0
    %6202 = vmatprep.subr.mxu0 0.0
    %6203 = vmatpush1.msra.mxu0 0.0
    %6204 = vmatprep.subr.mxu0 0.0
    %6205 = vmatpush1.msra.mxu0 0.0
    %6206 = vmatprep.subr.mxu0 0.0
    %6207 = vmatpush1.msra.mxu0 0.0
    %6208 = vmatprep.subr.mxu0 0.0
    %6209 = vmatpush1.msra.mxu0 0.0
    %6210 = vmatprep.subr.mxu0 0.0
    %6211 = vmatpush1.msra.mxu0 0.0
    %6212 = vmatprep.subr.mxu0 0.0
    %6213 = vmatpush1.msra.mxu0 0.0
    %6214 = vmatprep.subr.mxu0 0.0
    %6215 = vmatpush1.msra.mxu0 0.0
    %6216 = vmatprep.subr.mxu0 0.0
    %6217 = vmatpush1.msra.mxu0 0.0
    %6218 = vmatprep.subr.mxu0 0.0
    %6219 = vmatpush1.msra.mxu0 0.0
    %6220 = vmatprep.subr.mxu0 0.0
    %6221 = vmatpush1.msra.mxu0 0.0
    %6222 = vmatprep.subr.mxu0 0.0
    %6223 = vmatpush1.msra.mxu0 0.0
    %6224 = vmatprep.subr.mxu0 0.0
    %6225 = vmatpush1.msra.mxu0 0.0
    %6226 = vmatprep.subr.mxu0 0.0
    %6227 = vmatpush1.msra.mxu0 0.0
    %6228 = vmatprep.subr.mxu0 0.0
    %6229 = vmatpush1.msra.mxu0 0.0
    %6230 = vmatprep.subr.mxu0 0.0
    %6231 = vmatpush1.msra.mxu0 0.0
    %6232 = vmatprep.subr.mxu0 0.0
    %6233 = vmatpush1.msra.mxu0 0.0
    %6234 = vmatprep.subr.mxu0 0.0
    %6235 = vmatpush1.msra.mxu0 0.0
    %6236 = vmatprep.subr.mxu0 0.0
    %6237 = vmatpush1.msra.mxu0 0.0
    %6238 = vmatprep.mubr.f32.mxu0 0.0
    %6239 = vmatmul.mubr.f32.gmra.mrb[0].mxu0 %v6087
    %v6240 = vpop.f32.mrb[0].mxu0
    %v6241 = vadd.f32 0.0, %v6240
    %v6242 = vpop.f32.mrb[0].mxu0
    %6243 = vmatprep.mubr.f32.mxu0 0.0
    %6244 = vmatmul.mubr.f32.gmra.mrb[0].mxu0 %v6090
    %v6245 = vpop.f32.mrb[0].mxu0
    %v6246 = vadd.f32 0.0, %v6245
    %v6247 = vpop.f32.mrb[0].mxu0
    %6248 = vdwg.mxu0
    %v6249 = vadd.f32 %v6079, %v6241
    %v6250 = vadd.f32 %v6080, %v6246
    %s6251 = scalar_lea.vmem %s2, 1088
    %v6252 = vld [vmem:[%s6251] sm:$0xff]
    %v6253 = vld [vmem:[%s6251 + $0x8] sm:$0xff]
    %v6254 = vld [vmem:[%s6251 + $0x10] sm:$0xff]
    %v6255 = vld [vmem:[%s6251 + $0x18] sm:$0xff]
    %v6257 = vsel %vm128, %v5553, 0
    %v6260 = vsel %vm128, %v5554, 0
    %6262 = vmatprep.subr.mxu0 0.0
    %6263 = vmatpush1.msra.mxu0 %v6252
    %6264 = vmatprep.subr.mxu0 0.0
    %6265 = vmatpush1.msra.mxu0 %v6253
    %6266 = vmatprep.subr.mxu0 0.0
    %6267 = vmatpush1.msra.mxu0 %v6254
    %6268 = vmatprep.subr.mxu0 0.0
    %6269 = vmatpush1.msra.mxu0 %v6255
    %6270 = vmatprep.subr.mxu0 0.0
    %6271 = vmatpush1.msra.mxu0 0.0
    %6272 = vmatprep.subr.mxu0 0.0
    %6273 = vmatpush1.msra.mxu0 0.0
    %6274 = vmatprep.subr.mxu0 0.0
    %6275 = vmatpush1.msra.mxu0 0.0
    %6276 = vmatprep.subr.mxu0 0.0
    %6277 = vmatpush1.msra.mxu0 0.0
    %6278 = vmatprep.subr.mxu0 0.0
    %6279 = vmatpush1.msra.mxu0 0.0
    %6280 = vmatprep.subr.mxu0 0.0
    %6281 = vmatpush1.msra.mxu0 0.0
    %6282 = vmatprep.subr.mxu0 0.0
    %6283 = vmatpush1.msra.mxu0 0.0
    %6284 = vmatprep.subr.mxu0 0.0
    %6285 = vmatpush1.msra.mxu0 0.0
    %6286 = vmatprep.subr.mxu0 0.0
    %6287 = vmatpush1.msra.mxu0 0.0
    %6288 = vmatprep.subr.mxu0 0.0
    %6289 = vmatpush1.msra.mxu0 0.0
    %6290 = vmatprep.subr.mxu0 0.0
    %6291 = vmatpush1.msra.mxu0 0.0
    %6292 = vmatprep.subr.mxu0 0.0
    %6293 = vmatpush1.msra.mxu0 0.0
    %6294 = vmatprep.subr.mxu0 0.0
    %6295 = vmatpush1.msra.mxu0 0.0
    %6296 = vmatprep.subr.mxu0 0.0
    %6297 = vmatpush1.msra.mxu0 0.0
    %6298 = vmatprep.subr.mxu0 0.0
    %6299 = vmatpush1.msra.mxu0 0.0
    %6300 = vmatprep.subr.mxu0 0.0
    %6301 = vmatpush1.msra.mxu0 0.0
    %6302 = vmatprep.subr.mxu0 0.0
    %6303 = vmatpush1.msra.mxu0 0.0
    %6304 = vmatprep.subr.mxu0 0.0
    %6305 = vmatpush1.msra.mxu0 0.0
    %6306 = vmatprep.subr.mxu0 0.0
    %6307 = vmatpush1.msra.mxu0 0.0
    %6308 = vmatprep.subr.mxu0 0.0
    %6309 = vmatpush1.msra.mxu0 0.0
    %6310 = vmatprep.subr.mxu0 0.0
    %6311 = vmatpush1.msra.mxu0 0.0
    %6312 = vmatprep.subr.mxu0 0.0
    %6313 = vmatpush1.msra.mxu0 0.0
    %6314 = vmatprep.subr.mxu0 0.0
    %6315 = vmatpush1.msra.mxu0 0.0
    %6316 = vmatprep.subr.mxu0 0.0
    %6317 = vmatpush1.msra.mxu0 0.0
    %6318 = vmatprep.subr.mxu0 0.0
    %6319 = vmatpush1.msra.mxu0 0.0
    %6320 = vmatprep.subr.mxu0 0.0
    %6321 = vmatpush1.msra.mxu0 0.0
    %6322 = vmatprep.subr.mxu0 0.0
    %6323 = vmatpush1.msra.mxu0 0.0
    %6324 = vmatprep.subr.mxu0 0.0
    %6325 = vmatpush1.msra.mxu0 0.0
    %6326 = vmatprep.mubr.f32.mxu0 0.0
    %6327 = vmatmul.mubr.f32.gmra.mrb[0].mxu0 %v6257
    %v6328 = vpop.f32.mrb[0].mxu0
    %v6329 = vadd.f32 0.0, %v6328
    %v6330 = vpop.f32.mrb[0].mxu0
    %6331 = vmatprep.mubr.f32.mxu0 0.0
    %6332 = vmatmul.mubr.f32.gmra.mrb[0].mxu0 %v6260
    %v6333 = vpop.f32.mrb[0].mxu0
    %v6334 = vadd.f32 0.0, %v6333
    %v6335 = vpop.f32.mrb[0].mxu0
    %6336 = vdwg.mxu0
    %v6337 = vadd.f32 %v6167, %v6329
    %v6338 = vadd.f32 %v6168, %v6334
    %s6339 = scalar_lea.vmem %s3, 1088
    %v6340 = vld [vmem:[%s6339] sm:$0xff]
    %v6341 = vld [vmem:[%s6339 + $0x8] sm:$0xff]
    %v6342 = vld [vmem:[%s6339 + $0x10] sm:$0xff]
    %v6343 = vld [vmem:[%s6339 + $0x18] sm:$0xff]
    %6344 = vmatprep.subr.mxu0 0.0
    %6345 = vmatpush1.msra.mxu0 %v6340
    %6346 = vmatprep.subr.mxu0 0.0
    %6347 = vmatpush1.msra.mxu0 %v6341
    %6348 = vmatprep.subr.mxu0 0.0
    %6349 = vmatpush1.msra.mxu0 %v6342
    %6350 = vmatprep.subr.mxu0 0.0
    %6351 = vmatpush1.msra.mxu0 %v6343
    %6352 = vmatprep.subr.mxu0 0.0
    %6353 = vmatpush1.msra.mxu0 0.0
    %6354 = vmatprep.subr.mxu0 0.0
    %6355 = vmatpush1.msra.mxu0 0.0
    %6356 = vmatprep.subr.mxu0 0.0
    %6357 = vmatpush1.msra.mxu0 0.0
    %6358 = vmatprep.subr.mxu0 0.0
    %6359 = vmatpush1.msra.mxu0 0.0
    %6360 = vmatprep.subr.mxu0 0.0
    %6361 = vmatpush1.msra.mxu0 0.0
    %6362 = vmatprep.subr.mxu0 0.0
    %6363 = vmatpush1.msra.mxu0 0.0
    %6364 = vmatprep.subr.mxu0 0.0
    %6365 = vmatpush1.msra.mxu0 0.0
    %6366 = vmatprep.subr.mxu0 0.0
    %6367 = vmatpush1.msra.mxu0 0.0
    %6368 = vmatprep.subr.mxu0 0.0
    %6369 = vmatpush1.msra.mxu0 0.0
    %6370 = vmatprep.subr.mxu0 0.0
    %6371 = vmatpush1.msra.mxu0 0.0
    %6372 = vmatprep.subr.mxu0 0.0
    %6373 = vmatpush1.msra.mxu0 0.0
    %6374 = vmatprep.subr.mxu0 0.0
    %6375 = vmatpush1.msra.mxu0 0.0
    %6376 = vmatprep.subr.mxu0 0.0
    %6377 = vmatpush1.msra.mxu0 0.0
    %6378 = vmatprep.subr.mxu0 0.0
    %6379 = vmatpush1.msra.mxu0 0.0
    %6380 = vmatprep.subr.mxu0 0.0
    %6381 = vmatpush1.msra.mxu0 0.0
    %6382 = vmatprep.subr.mxu0 0.0
    %6383 = vmatpush1.msra.mxu0 0.0
    %6384 = vmatprep.subr.mxu0 0.0
    %6385 = vmatpush1.msra.mxu0 0.0
    %6386 = vmatprep.subr.mxu0 0.0
    %6387 = vmatpush1.msra.mxu0 0.0
    %6388 = vmatprep.subr.mxu0 0.0
    %6389 = vmatpush1.msra.mxu0 0.0
    %6390 = vmatprep.subr.mxu0 0.0
    %6391 = vmatpush1.msra.mxu0 0.0
    %6392 = vmatprep.subr.mxu0 0.0
    %6393 = vmatpush1.msra.mxu0 0.0
    %6394 = vmatprep.subr.mxu0 0.0
    %6395 = vmatpush1.msra.mxu0 0.0
    %6396 = vmatprep.subr.mxu0 0.0
    %6397 = vmatpush1.msra.mxu0 0.0
    %6398 = vmatprep.subr.mxu0 0.0
    %6399 = vmatpush1.msra.mxu0 0.0
    %6400 = vmatprep.subr.mxu0 0.0
    %6401 = vmatpush1.msra.mxu0 0.0
    %6402 = vmatprep.subr.mxu0 0.0
    %6403 = vmatpush1.msra.mxu0 0.0
    %6404 = vmatprep.subr.mxu0 0.0
    %6405 = vmatpush1.msra.mxu0 0.0
    %6406 = vmatprep.subr.mxu0 0.0
    %6407 = vmatpush1.msra.mxu0 0.0
    %6408 = vmatprep.mubr.f32.mxu0 0.0
    %6409 = vmatmul.mubr.f32.gmra.mrb[0].mxu0 %v6257
    %v6410 = vpop.f32.mrb[0].mxu0
    %v6411 = vadd.f32 0.0, %v6410
    %v6412 = vpop.f32.mrb[0].mxu0
    %6413 = vmatprep.mubr.f32.mxu0 0.0
    %6414 = vmatmul.mubr.f32.gmra.mrb[0].mxu0 %v6260
    %v6415 = vpop.f32.mrb[0].mxu0
    %v6416 = vadd.f32 0.0, %v6415
    %v6417 = vpop.f32.mrb[0].mxu0
    %6418 = vdwg.mxu0
    %v6419 = vadd.f32 %v6249, %v6411
    %v6420 = vadd.f32 %v6250, %v6416
    %v6421 = vxor.u32 %v6419, 2147483648
    %v6422 = vxor.u32 %v6420, 2147483648
    %v6423 = vmul.f32 %v6421, 1.442695
    %v6424 = vpow.pop %v6423
    %v6425 = vmul.f32 %v6422, 1.442695
    %v6426 = vpow.pop %v6425
    %v6427 = vadd.f32 %v6424, 1.0
    %v6428 = vadd.f32 %v6426, 1.0
    %v6429 = vrcp.pop %v6427
    %v6430 = vmul.f32 1.0, %v6429
    %v6431 = vrcp.pop %v6428
    %v6432 = vmul.f32 1.0, %v6431
    %v6433 = vmul.f32 %v6337, %v6430
    %v6434 = vmul.f32 %v6338, %v6432
    %v6435 = vadd.f32 %v6433, %v5529
    %v6436 = vadd.f32 %v6434, %v5530
    %v6437 = vmul.f32 %v6435, 0.70710677
    %v6438 = vmul.f32 %v6436, 0.70710677
    %6439 = vst.msk [vmem:[#allocation2] sm:$0xff] %vm128, %v6437
    %6440 = vst.msk [vmem:[#allocation2 + $0x8] sm:$0xff] %vm128, %v6438
    %v6441 = vadd.f32 %v6437, %v27
    %v6442 = vadd.f32 %v6438, %v28
    %v6443 = vmul.f32 %v6441, 0.70710677
    %v6444 = vmul.f32 %v6442, 0.70710677
    %6445 = vst.msk [vmem:[#allocation4] sm:$0xff] %vm128, %v6443
    %6446 = vst.msk [vmem:[#allocation4 + $0x8] sm:$0xff] %vm128, %v6444
    // Predicated region
    $region26: #{tpu_custom_call.1} parent=1 // pred_check
      _
    $region27: #{tpu_custom_call.1} parent=1 // pred_check_branch
      %6448 = sbr.rel (0) target = $region29
    $region28: #{tpu_custom_call.1} parent=1 // pred_region
      %s6450 = ssub.s32 256, 256
      %6451 = vsyncadd [#allocation3], %s6450
      %s6452 = sshll.u32 [#allocation2], 4
      %s6453 = int_to_ptr.vmem [resolvable:$true] %s6452
      %6458 = dma.vmem_to_hbm [thread:$0]  %s6453, 256, %s6, [#allocation3], 128, 128, 8
    $region29: #{tpu_custom_call.1} parent=1 // pred_fallthru
      _
    // Predicated region
    $region30: #{tpu_custom_call.1} parent=1 // pred_check
      _
    $region31: #{tpu_custom_call.1} parent=1 // pred_check_branch
      %6460 = sbr.rel (0) target = $region33
    $region32: #{tpu_custom_call.1} parent=1 // pred_region
      %s6462 = ssub.s32 256, 256
      %6463 = vsyncadd [#allocation5], %s6462
      %s6464 = sshll.u32 [#allocation4], 4
      %s6465 = int_to_ptr.vmem [resolvable:$true] %s6464
      %6470 = dma.vmem_to_hbm [thread:$0]  %s6465, 256, %s7, [#allocation5], 128, 128, 8
    $region33: #{tpu_custom_call.1} parent=1 // pred_fallthru
      _
    // Predicated region
    $region34: #{tpu_custom_call.1} parent=1 // pred_check
      _
    $region35: #{tpu_custom_call.1} parent=1 // pred_check_branch
      %6472 = sbr.rel (0) target = $region37
    $region36: #{tpu_custom_call.1} parent=1 // pred_region
      %6473 = dma.done [#allocation3], 256
    $region37: #{tpu_custom_call.1} parent=1 // pred_fallthru
      _
    // Predicated region
    $region38: #{tpu_custom_call.1} parent=1 // pred_check
      _
    $region39: #{tpu_custom_call.1} parent=1 // pred_check_branch
      %6475 = sbr.rel (0) target = $region41
    $region40: #{tpu_custom_call.1} parent=1 // pred_region
      %6476 = dma.done [#allocation5], 256
    $region41: #{tpu_custom_call.1} parent=1 // pred_fallthru
      _
    %6477 = vsyncpa [#allocation3], 1
    %6478 = vsyncpa [#allocation5], 1

</llo_original>
